<compile_context>
chip_gen: v5e
topology: v5e:2x2
jax: 0.10.0
libtpu: 0.0.40
codegen_flags: <defaults>
</compile_context>

<pallas_src>
import functools

import jax
import jax.numpy as jnp
from jax import lax
from jax.experimental import pallas as pl
from jax.experimental.pallas import tpu as pltpu


def conv_bn_relu_kernel(x_ref, w_ref, gb_ref, o_ref, *, eps, inv_m):
    # x_ref:  (Cin, M)  f32  -- full input channels x flattened spatial
    # w_ref:  (tn, Cin) bf16 -- tile of output channels (cached bf16 by caller)
    # gb_ref: (tn, 2)   f32  -- gamma in col 0, beta in col 1
    # o_ref:  (tn, M)        -- output tile (f32 by default)
    #
    # In-kernel casts keep all HBM traffic in the kernel (no standalone XLA
    # convert ops); astype on an already-bf16 weight tile is a no-op.
    x_bf = x_ref[...].astype(jnp.bfloat16)
    w_bf = w_ref[...].astype(jnp.bfloat16)

    # 1x1 conv == matmul on the MXU: y[co, m] = sum_ci w[co, ci] * x[ci, m]
    y = jnp.dot(w_bf, x_bf, preferred_element_type=jnp.float32)  # (tn, M) f32

    # BatchNorm2d training-mode batch stats (biased variance over M = N*H*W),
    # single pass: var = E[y^2] - E[y]^2, clamped at 0 to guard against f32
    # cancellation rounding it slightly negative before rsqrt.
    s1 = jnp.sum(y, axis=1, keepdims=True)        # (tn, 1)
    s2 = jnp.sum(y * y, axis=1, keepdims=True)    # (tn, 1)
    mean = s1 * inv_m
    var = jnp.maximum(s2 * inv_m - mean * mean, 0.0)

    gamma = gb_ref[:, 0:1]                        # (tn, 1)
    beta = gb_ref[:, 1:2]                         # (tn, 1)
    scale = gamma * lax.rsqrt(var + eps)          # (tn, 1)
    bias = beta - mean * scale                    # (tn, 1)

    # Normalize + affine + ReLU in a single elementwise pass over the tile.
    o_ref[...] = jnp.maximum(y * scale + bias, 0.0).astype(o_ref.dtype)


def conv2d_bn_relu(x_nchw, w_oi, gamma, beta, *, eps=1e-5, tn=512,
                   out_dtype=jnp.float32):
    """x_nchw: (N, Cin, H, W); w_oi: (Cout, Cin) 1x1 conv weight (squeezed).

    Pass w_oi already cast to bf16 (cached outside the jitted hot path) for the
    lowest HBM traffic; f32 weights also work (cast happens in-kernel).
    """
    N, Cin, H, W = x_nchw.shape
    Cout = w_oi.shape[0]
    M = N * H * W

    # Native-NCHW flattening: for N == 1 the transpose is degenerate and XLA
    # elides it, so x -> (Cin, M) and out -> (N, Cout, H, W) are free reshapes.
    x = jnp.transpose(x_nchw.reshape(N, Cin, H * W), (1, 0, 2)).reshape(Cin, M)

    # Pack gamma/beta into one (Cout, 2) array -> a single small block per step.
    gb = jnp.stack(
        [gamma.astype(jnp.float32), beta.astype(jnp.float32)], axis=1)  # (Cout, 2)

    assert Cout % tn == 0, "Cout must be divisible by the output-channel tile"
    grid = (Cout // tn,)  # >= 2 parallel steps so v7x shards across 2 TCs

    kernel = functools.partial(conv_bn_relu_kernel, eps=eps, inv_m=1.0 / M)

    out = pl.pallas_call(
        kernel,
        out_shape=jax.ShapeDtypeStruct((Cout, M), out_dtype),
        grid_spec=pltpu.PrefetchScalarGridSpec(
            num_scalar_prefetch=0,
            grid=grid,
            in_specs=[
                # x slab: block index constant across the grid -> DMA'd once.
                pl.BlockSpec((Cin, M), lambda j: (0, 0)),
                # weight tile per output-channel block
                pl.BlockSpec((tn, Cin), lambda j: (j, 0)),
                # packed gamma/beta tile
                pl.BlockSpec((tn, 2), lambda j: (j, 0)),
            ],
            out_specs=pl.BlockSpec((tn, M), lambda j: (j, 0)),
        ),
        compiler_params=pltpu.CompilerParams(
            dimension_semantics=("parallel",),
        ),
    )(x, w_oi, gb)

    # (Cout, M) -> (Cout, N, H, W) -> (N, Cout, H, W); free reshape for N == 1.
    return jnp.transpose(out.reshape(Cout, N, H, W), (1, 0, 2, 3))


def reference(x_nchw, w_oi, gamma, beta, eps=1e-5):
    """Pure-JAX f32 reference of the PyTorch forward (training-mode BN)."""
    N, Cin, H, W = x_nchw.shape
    Cout = w_oi.shape[0]
    x = jnp.transpose(x_nchw, (0, 2, 3, 1)).reshape(-1, Cin)
    y = jnp.dot(x, w_oi.T, precision=lax.Precision.HIGHEST)   # true-f32 1x1 conv
    mean = jnp.mean(y, axis=0, keepdims=True)
    var = jnp.mean((y - mean) ** 2, axis=0, keepdims=True)
    y = (y - mean) / jnp.sqrt(var + eps)
    y = y * gamma.reshape(1, -1) + beta.reshape(1, -1)
    y = jnp.maximum(y, 0.0)
    return jnp.transpose(y.reshape(N, H, W, Cout), (0, 3, 1, 2))


if __name__ == "__main__":
    # Shapes of the module: Conv2d(1024, 1024, 1x1) on (1, 1024, 14, 14)
    N, C, Hs, Ws = 1, 1024, 14, 14

    key = jax.random.PRNGKey(0)
    kx, kw, kg, kb = jax.random.split(key, 4)

    x = jax.random.normal(kx, (N, C, Hs, Ws), dtype=jnp.float32)
    # Conv2d weight (Cout, Cin, 1, 1) squeezed -> (Cout, Cin), deterministic init.
    w = jax.random.normal(kw, (C, C), dtype=jnp.float32) * (1.0 / jnp.sqrt(C))
    # BatchNorm2d affine params (perturbed from ones/zeros so the affine path
    # is non-trivial, still deterministic).
    gamma = 1.0 + 0.1 * jax.random.normal(kg, (C,), dtype=jnp.float32)
    beta = 0.1 * jax.random.normal(kb, (C,), dtype=jnp.float32)

    # Cache bf16 weights ONCE outside the jitted hot path (per perf review):
    # the per-call in-kernel weight DMA is then 2 MB bf16 instead of 4 MB f32.
    w_bf16 = jax.block_until_ready(w.astype(jnp.bfloat16))

    fwd = jax.jit(conv2d_bn_relu)
    out = jax.block_until_ready(fwd(x, w_bf16, gamma, beta))

    ref = reference(x, w, gamma, beta)
    assert out.shape == (N, C, Hs, Ws)
    # Kernel uses bf16 conv inputs with f32 accumulation; vs. the true-f32
    # reference the quantization error is O(1e-2) in the tails.
    assert jnp.allclose(out, ref, atol=2e-2, rtol=2e-2), "mismatch vs reference"

    print("KERNEL_OK")
</pallas_src>

<mosaic_0001>
module attributes {stable_mosaic.version = 11 : i64} {
  func.func @conv_bn_relu_kernel(%arg0: i32, %arg1: memref<1024x196xf32, #tpu.memory_space<vmem>>, %arg2: memref<512x1024xbf16, #tpu.memory_space<vmem>>, %arg3: memref<512x2xf32, #tpu.memory_space<vmem>>, %arg4: memref<512x196xf32, #tpu.memory_space<vmem>>) attributes {dimension_semantics = [#tpu.dimension_semantics<parallel>], iteration_bounds = array<i64: 2>, scalar_prefetch = 0 : i64, scratch_operands = 0 : i64, tpu.core_type = #tpu.core_type<tc>, window_params = [{pipeline_mode = #tpu.pipeline_mode<synchronous>, transform_indices = @transform_0, window_bounds = array<i64: 1024, 196>}, {transform_indices = @transform_1, window_bounds = array<i64: 512, 1024>}, {transform_indices = @transform_2, window_bounds = array<i64: 512, 2>}, {transform_indices = @transform_3, window_bounds = array<i64: 512, 196>}]} {
    %c0 = arith.constant 0 : index
    %c0_0 = arith.constant 0 : index
    %0 = vector.load %arg1[%c0, %c0_0] : memref<1024x196xf32, #tpu.memory_space<vmem>>, vector<1024x196xf32>
    %1 = arith.truncf %0 : vector<1024x196xf32> to vector<1024x196xbf16>
    %c0_1 = arith.constant 0 : index
    %c0_2 = arith.constant 0 : index
    %2 = vector.load %arg2[%c0_1, %c0_2] : memref<512x1024xbf16, #tpu.memory_space<vmem>>, vector<512x1024xbf16>
    %cst = arith.constant dense<0.000000e+00> : vector<512x196xf32>
    %3 = tpu.matmul %2, %1, %cst {dimension_numbers = #tpu.dot_dimension_numbers<[1], [0], [0], [1], [0, 0, 1, 1], [], []>} : vector<512x1024xbf16>, vector<1024x196xbf16>, vector<512x196xf32> -> vector<512x196xf32>
    %cst_3 = arith.constant dense<0.000000e+00> : vector<512xf32>
    %4 = vector.multi_reduction <add>, %3, %cst_3 [1] : vector<512x196xf32> to vector<512xf32>
    %5 = vector.shape_cast %4 : vector<512xf32> to vector<512x1xf32>
    %6 = arith.mulf %3, %3 : vector<512x196xf32>
    %cst_4 = arith.constant dense<0.000000e+00> : vector<512xf32>
    %7 = vector.multi_reduction <add>, %6, %cst_4 [1] : vector<512x196xf32> to vector<512xf32>
    %8 = vector.shape_cast %7 : vector<512xf32> to vector<512x1xf32>
    %cst_5 = arith.constant 0.00510204071 : f32
    %9 = vector.broadcast %cst_5 : f32 to vector<512x1xf32>
    %10 = arith.mulf %5, %9 : vector<512x1xf32>
    %cst_6 = arith.constant 0.00510204071 : f32
    %11 = vector.broadcast %cst_6 : f32 to vector<512x1xf32>
    %12 = arith.mulf %8, %11 : vector<512x1xf32>
    %13 = arith.mulf %10, %10 : vector<512x1xf32>
    %14 = arith.subf %12, %13 : vector<512x1xf32>
    %cst_7 = arith.constant 0.000000e+00 : f32
    %15 = vector.broadcast %cst_7 : f32 to vector<512x1xf32>
    %16 = arith.maximumf %14, %15 : vector<512x1xf32>
    %c0_8 = arith.constant 0 : index
    %c0_9 = arith.constant 0 : index
    %17 = vector.load %arg3[%c0_8, %c0_9] : memref<512x2xf32, #tpu.memory_space<vmem>>, vector<512x1xf32>
    %c0_10 = arith.constant 0 : index
    %c1 = arith.constant 1 : index
    %18 = vector.load %arg3[%c0_10, %c1] : memref<512x2xf32, #tpu.memory_space<vmem>>, vector<512x1xf32>
    %cst_11 = arith.constant 9.99999974E-6 : f32
    %19 = vector.broadcast %cst_11 : f32 to vector<512x1xf32>
    %20 = arith.addf %16, %19 : vector<512x1xf32>
    %21 = math.rsqrt %20 : vector<512x1xf32>
    %22 = arith.mulf %17, %21 : vector<512x1xf32>
    %23 = arith.mulf %10, %22 : vector<512x1xf32>
    %24 = arith.subf %18, %23 : vector<512x1xf32>
    %25 = vector.broadcast %22 : vector<512x1xf32> to vector<512x196xf32>
    %26 = arith.mulf %3, %25 : vector<512x196xf32>
    %27 = vector.broadcast %24 : vector<512x1xf32> to vector<512x196xf32>
    %28 = arith.addf %26, %27 : vector<512x196xf32>
    %cst_12 = arith.constant 0.000000e+00 : f32
    %29 = vector.broadcast %cst_12 : f32 to vector<512x196xf32>
    %30 = arith.maximumf %28, %29 : vector<512x196xf32>
    %c0_13 = arith.constant 0 : index
    %c0_14 = arith.constant 0 : index
    %31 = vector.load %arg4[%c0_13, %c0_14] : memref<512x196xf32, #tpu.memory_space<vmem>>, vector<512x196xf32>
    tpu.vector_store %arg4[%c0_13, %c0_14], %30 {strides = array<i32>} : memref<512x196xf32, #tpu.memory_space<vmem>>, vector<512x196xf32>,
    return
  }
  func.func @transform_0(%arg0: i32) -> (i32, i32) {
    %c0_i32 = arith.constant 0 : i32
    %c0_i32_0 = arith.constant 0 : i32
    %c0_i32_1 = arith.constant 0 : i32
    return %c0_i32, %c0_i32_0 : i32, i32
  }
  func.func @transform_1(%arg0: i32) -> (i32, i32) {
    %c0_i32 = arith.constant 0 : i32
    %c0_i32_0 = arith.constant 0 : i32
    return %arg0, %c0_i32 : i32, i32
  }
  func.func @transform_2(%arg0: i32) -> (i32, i32) {
    %c0_i32 = arith.constant 0 : i32
    %c0_i32_0 = arith.constant 0 : i32
    return %arg0, %c0_i32 : i32, i32
  }
  func.func @transform_3(%arg0: i32) -> (i32, i32) {
    %c0_i32 = arith.constant 0 : i32
    %c0_i32_0 = arith.constant 0 : i32
    return %arg0, %c0_i32 : i32, i32
  }
}

</mosaic_0001>

<llo_original>
// kernel: conv2d_bn_relu.1
$region0: #{conv2d_bn_relu.1}
  #allocation0 [shape = 'u32[]', space=smem, size = 0x4, offset = 0x4, fixed_abs, tag = 'smem constant byte address 0x4 - core index']
  #allocation1 [shape = 'u32[72,128]{1,0:T(1,128)}', space=vmem, size = 0x9000, scoped, tag = 'internal scratch']
  %s0 = inlined_call_operand.vmem [shape: f32[1024,196], index: 0, kind: input, shape index: {}]
  %s1 = inlined_call_operand.vmem [shape: bf16[1024,1024], index: 1, kind: input, shape index: {}]
  %s2 = inlined_call_operand.vmem [shape: f32[1024,2], index: 2, kind: input, shape index: {}]
  %s3 = inlined_call_operand.vmem [shape: f32[1024,196], index: 3, kind: output, shape index: {}]
  %s4 = sld [smem:[#allocation0]]
  $region45: #{conv2d_bn_relu.1} parent=0
    _
  %s6 = ssub.s32 1, %s4
  %s7 = scalar_select 0, %s6, %s4
  loop: start=0, step=1, limit=4
  $region2: #{conv2d_bn_relu.1} parent=0 // loop_pre_header
    _
  $region3: #{conv2d_bn_relu.1} parent=0 // loop_header
    %s9 = sphi 0, %s13
    %p10 = scmp.ge.s32.totalorder %s9, 4
    %s17 = sphi 0, %s17
    %s19 = sphi 0, %s17
    %s20 = sphi 0, %s19
    %s34 = sphi 0, %s20
    %s40 = sphi 0, %s42
    %s43 = sphi 0, %s40
    %s44 = sphi 0, %s43
    %s60 = sphi 0, %s44
    %s66 = sphi 0, %s68
    %s69 = sphi 0, %s66
    %s70 = sphi 0, %s69
    %s86 = sphi 0, %s70
    %s92 = sphi 0, %s94
    %s95 = sphi 0, %s92
    %s96 = sphi 0, %s95
    %s112 = sphi 0, %s96
  $region4: #{conv2d_bn_relu.1} parent=0 // loop_header_branch
    %12 = sbr.rel (%p10) target = $region8
  $region5: #{conv2d_bn_relu.1} parent=0 // loop_body
    %s14 = ssub.s32 %s9, 1
    %s15 = ssub.s32 %s9, 2
    %s16 = sadd.s32 %s9, 1
    %s18 = sadd.s32 %s17, 1
    %p21 = scmp.eq.s32.totalorder %s9, 1
    %p22 = scmp.ne.s32.totalorder %s17, %s19
    %p23 = scmp.eq.s32.totalorder %s9, 0
    %p24 = por %p22, %p23
    %p25 = scmp.ne.s32.totalorder %s17, %s19
    %p26 = scmp.eq.s32.totalorder %s14, 1
    %p27 = por %p25, %p26
    %p28 = scmp.ne.s32.totalorder %s19, %s20
    %p29 = scmp.eq.s32.totalorder %s14, 0
    %p30 = por %p28, %p29
    %p31 = scmp.ne.s32.totalorder %s19, %s20
    %p32 = scmp.eq.s32.totalorder %s15, 1
    %p33 = por %p31, %p32
    %p35 = scmp.ne.s32.totalorder %s20, %s34
    %p36 = scmp.eq.s32.totalorder %s15, 0
    %p37 = por %p35, %p36
    %s38 = ssub.s32 %s9, %s16
    %p39 = scmp.eq.s32.totalorder %s38, 0
    %s41 = sadd.s32 %s40, 1
    %s42 = scalar_select %p39, %s40, %s41
    %p45 = pneg %p39
    %p46 = scmp.eq.s32.totalorder %s9, 1
    %p47 = por %p45, %p46
    %p48 = scmp.ne.s32.totalorder %s40, %s43
    %p49 = scmp.eq.s32.totalorder %s9, 0
    %p50 = por %p48, %p49
    %p51 = scmp.ne.s32.totalorder %s40, %s43
    %p52 = scmp.eq.s32.totalorder %s14, 1
    %p53 = por %p51, %p52
    %p54 = scmp.ne.s32.totalorder %s43, %s44
    %p55 = scmp.eq.s32.totalorder %s14, 0
    %p56 = por %p54, %p55
    %p57 = scmp.ne.s32.totalorder %s43, %s44
    %p58 = scmp.eq.s32.totalorder %s15, 1
    %p59 = por %p57, %p58
    %p61 = scmp.ne.s32.totalorder %s44, %s60
    %p62 = scmp.eq.s32.totalorder %s15, 0
    %p63 = por %p61, %p62
    %s64 = ssub.s32 %s9, %s16
    %p65 = scmp.eq.s32.totalorder %s64, 0
    %s67 = sadd.s32 %s66, 1
    %s68 = scalar_select %p65, %s66, %s67
    %p71 = pneg %p65
    %p72 = scmp.eq.s32.totalorder %s9, 1
    %p73 = por %p71, %p72
    %p74 = scmp.ne.s32.totalorder %s66, %s69
    %p75 = scmp.eq.s32.totalorder %s9, 0
    %p76 = por %p74, %p75
    %p77 = scmp.ne.s32.totalorder %s66, %s69
    %p78 = scmp.eq.s32.totalorder %s14, 1
    %p79 = por %p77, %p78
    %p80 = scmp.ne.s32.totalorder %s69, %s70
    %p81 = scmp.eq.s32.totalorder %s14, 0
    %p82 = por %p80, %p81
    %p83 = scmp.ne.s32.totalorder %s69, %s70
    %p84 = scmp.eq.s32.totalorder %s15, 1
    %p85 = por %p83, %p84
    %p87 = scmp.ne.s32.totalorder %s70, %s86
    %p88 = scmp.eq.s32.totalorder %s15, 0
    %p89 = por %p87, %p88
    %s90 = ssub.s32 %s9, %s16
    %p91 = scmp.eq.s32.totalorder %s90, 0
    %s93 = sadd.s32 %s92, 1
    %s94 = scalar_select %p91, %s92, %s93
    %p97 = pneg %p91
    %p98 = scmp.eq.s32.totalorder %s9, 1
    %p99 = por %p97, %p98
    %p100 = scmp.ne.s32.totalorder %s92, %s95
    %p101 = scmp.eq.s32.totalorder %s9, 0
    %p102 = por %p100, %p101
    %p103 = scmp.ne.s32.totalorder %s92, %s95
    %p104 = scmp.eq.s32.totalorder %s14, 1
    %p105 = por %p103, %p104
    %p106 = scmp.ne.s32.totalorder %s95, %s96
    %p107 = scmp.eq.s32.totalorder %s14, 0
    %p108 = por %p106, %p107
    %p109 = scmp.ne.s32.totalorder %s95, %s96
    %p110 = scmp.eq.s32.totalorder %s15, 1
    %p111 = por %p109, %p110
    %p113 = scmp.ne.s32.totalorder %s96, %s112
    %p114 = scmp.eq.s32.totalorder %s15, 0
    %p115 = por %p113, %p114
    %p116 = scmp.le.s32.totalorder 1, %s9
    %p117 = scmp.lt.s32.totalorder %s9, 3
    %p118 = pnand %p116, %p117
    %p119 = pneg %p118
    // Predicated region
    $region9: #{conv2d_bn_relu.1} parent=5 // pred_check
      _
    $region10: #{conv2d_bn_relu.1} parent=5 // pred_check_branch
      %121 = sbr.rel (%p118) target = $region12
    $region11: #{conv2d_bn_relu.1} parent=5 // pred_region
      %s122 = ssub.s32 %s9, 1
      // Predicated region
      $region13: #{conv2d_bn_relu.1} parent=11 // pred_check
        %p123 = pneg %p30
      $region14: #{conv2d_bn_relu.1} parent=11 // pred_check_branch
        %125 = sbr.rel (%p123) target = $region16
      $region15: #{conv2d_bn_relu.1} parent=11 // pred_region
        _
      $region16: #{conv2d_bn_relu.1} parent=11 // pred_fallthru
        _
    $region12: #{conv2d_bn_relu.1} parent=5 // pred_fallthru
      _
    %p126 = scmp.lt.s32.totalorder %s9, 2
    // Predicated region
    $region17: #{conv2d_bn_relu.1} parent=5 // pred_check
      %p127 = pneg %p126
    $region18: #{conv2d_bn_relu.1} parent=5 // pred_check_branch
      %129 = sbr.rel (%p127) target = $region20
    $region19: #{conv2d_bn_relu.1} parent=5 // pred_region
      // Predicated region
      $region21: #{conv2d_bn_relu.1} parent=19 // pred_check
        %p130 = pneg %p50
      $region22: #{conv2d_bn_relu.1} parent=19 // pred_check_branch
        %132 = sbr.rel (%p130) target = $region24
      $region23: #{conv2d_bn_relu.1} parent=19 // pred_region
        %s133 = smul.u32 64, %s9
        %p134 = scmp.lt.s32.totalorder %s133, 127
        %s135 = scalar_select %p134, %s133, 127
        %s136 = smul.addr %s135, 8
        %s137 = smul.addr %s136, 4
        %s138 = scalar_lea.vmem %s1, %s137
        %s139 = smul.u32 64, %s9
      $region24: #{conv2d_bn_relu.1} parent=19 // pred_fallthru
        _
      // Predicated region
      $region25: #{conv2d_bn_relu.1} parent=19 // pred_check
        %p140 = pneg %p76
      $region26: #{conv2d_bn_relu.1} parent=19 // pred_check_branch
        %142 = sbr.rel (%p140) target = $region28
      $region27: #{conv2d_bn_relu.1} parent=19 // pred_region
        %s143 = smul.u32 64, %s9
        %p144 = scmp.lt.s32.totalorder %s143, 127
        %s145 = scalar_select %p144, %s143, 127
        %s146 = smul.addr %s145, 8
        %s147 = scalar_lea.vmem %s2, %s146
        %s148 = smul.u32 64, %s9
      $region28: #{conv2d_bn_relu.1} parent=19 // pred_fallthru
        _
    $region20: #{conv2d_bn_relu.1} parent=5 // pred_fallthru
      _
    %p149 = scmp.le.s32.totalorder 1, %s9
    %p150 = scmp.lt.s32.totalorder %s9, 3
    %p151 = pnand %p149, %p150
    %p152 = pneg %p151
    // Predicated region
    $region29: #{conv2d_bn_relu.1} parent=5 // pred_check
      _
    $region30: #{conv2d_bn_relu.1} parent=5 // pred_check_branch
      %154 = sbr.rel (%p151) target = $region32
    $region31: #{conv2d_bn_relu.1} parent=5 // pred_region
      %s155 = ssub.s32 %s9, 1
      %p156 = pneg %p30
      %p157 = pneg %p27
      %s158 = smul.u32 64, %s14
      %p159 = scmp.lt.s32.totalorder %s158, 127
      %s160 = scalar_select %p159, %s158, 127
      %s161 = smul.addr %s160, 8
      %s162 = smul.addr %s161, 4
      %s163 = scalar_lea.vmem %s1, %s162
      %p164 = pneg %p56
      %p165 = pneg %p53
      %s166 = smul.u32 64, %s14
      %p167 = scmp.lt.s32.totalorder %s166, 127
      %s168 = scalar_select %p167, %s166, 127
      %s169 = smul.addr %s168, 8
      %s170 = scalar_lea.vmem %s2, %s169
      %p171 = pneg %p82
      %p172 = pneg %p79
      %p173 = pneg %p108
      %p174 = pneg %p105
      %s175 = smul.u32 64, %s14
      %p176 = scmp.lt.s32.totalorder %s175, 127
      %s177 = scalar_select %p176, %s175, 127
      %s178 = smul.addr %s177, 2
      %s179 = smul.addr %s178, 8
      %s180 = scalar_lea.vmem %s3, %s179
      %s181 = smul.u32 64, %s14
      %p182 = scmp.lt.s32.totalorder %s181, 127
      %s183 = scalar_select %p182, %s181, 127
      %s184 = smul.addr %s183, 8
      %s185 = smul.addr %s184, 4
      %s186 = scalar_lea.vmem %s1, %s185
      %s187 = smul.u32 64, %s14
      %s188 = smul.u32 64, %s14
      %p189 = scmp.lt.s32.totalorder %s188, 127
      %s190 = scalar_select %p189, %s188, 127
      %s191 = smul.addr %s190, 8
      %s192 = scalar_lea.vmem %s2, %s191
      %s193 = smul.u32 64, %s14
      %s194 = smul.u32 64, %s14
      %p195 = scmp.lt.s32.totalorder %s194, 127
      %s196 = scalar_select %p195, %s194, 127
      %s197 = smul.addr %s196, 2
      %s198 = smul.addr %s197, 8
      %s199 = scalar_lea.vmem %s3, %s198
      %s200 = smul.u32 64, %s14
      %v201 = vld [vmem:[%s0] sm:$0xff]
      %v202 = vld [vmem:[%s0 + $0x8] sm:$0xff]
      %v203 = vld [vmem:[%s0 + $0x10] sm:$0xff]
      %v204 = vld [vmem:[%s0 + $0x18] sm:$0xff]
      %v205 = vld [vmem:[%s0 + $0x20] sm:$0xff]
      %v206 = vld [vmem:[%s0 + $0x28] sm:$0xff]
      %v207 = vld [vmem:[%s0 + $0x30] sm:$0xff]
      %v208 = vld [vmem:[%s0 + $0x38] sm:$0xff]
      %v209 = vld [vmem:[%s0 + $0x40] sm:$0xff]
      %v210 = vld [vmem:[%s0 + $0x48] sm:$0xff]
      %v211 = vld [vmem:[%s0 + $0x50] sm:$0xff]
      %v212 = vld [vmem:[%s0 + $0x58] sm:$0xff]
      %v213 = vld [vmem:[%s0 + $0x60] sm:$0xff]
      %v214 = vld [vmem:[%s0 + $0x68] sm:$0xff]
      %v215 = vld [vmem:[%s0 + $0x70] sm:$0xff]
      %v216 = vld [vmem:[%s0 + $0x78] sm:$0xff]
      %v217 = vld [vmem:[%s0 + $0x80] sm:$0xff]
      %v218 = vld [vmem:[%s0 + $0x88] sm:$0xff]
      %v219 = vld [vmem:[%s0 + $0x90] sm:$0xff]
      %v220 = vld [vmem:[%s0 + $0x98] sm:$0xff]
      %v221 = vld [vmem:[%s0 + $0xa0] sm:$0xff]
      %v222 = vld [vmem:[%s0 + $0xa8] sm:$0xff]
      %v223 = vld [vmem:[%s0 + $0xb0] sm:$0xff]
      %v224 = vld [vmem:[%s0 + $0xb8] sm:$0xff]
      %v225 = vld [vmem:[%s0 + $0xc0] sm:$0xff]
      %v226 = vld [vmem:[%s0 + $0xc8] sm:$0xff]
      %v227 = vld [vmem:[%s0 + $0xd0] sm:$0xff]
      %v228 = vld [vmem:[%s0 + $0xd8] sm:$0xff]
      %v229 = vld [vmem:[%s0 + $0xe0] sm:$0xff]
      %v230 = vld [vmem:[%s0 + $0xe8] sm:$0xff]
      %v231 = vld [vmem:[%s0 + $0xf0] sm:$0xff]
      %v232 = vld [vmem:[%s0 + $0xf8] sm:$0xff]
      %v233 = vld [vmem:[%s0 + $0x100] sm:$0xff]
      %v234 = vld [vmem:[%s0 + $0x108] sm:$0xff]
      %v235 = vld [vmem:[%s0 + $0x110] sm:$0xff]
      %v236 = vld [vmem:[%s0 + $0x118] sm:$0xff]
      %v237 = vld [vmem:[%s0 + $0x120] sm:$0xff]
      %v238 = vld [vmem:[%s0 + $0x128] sm:$0xff]
      %v239 = vld [vmem:[%s0 + $0x130] sm:$0xff]
      %v240 = vld [vmem:[%s0 + $0x138] sm:$0xff]
      %v241 = vld [vmem:[%s0 + $0x140] sm:$0xff]
      %v242 = vld [vmem:[%s0 + $0x148] sm:$0xff]
      %v243 = vld [vmem:[%s0 + $0x150] sm:$0xff]
      %v244 = vld [vmem:[%s0 + $0x158] sm:$0xff]
      %v245 = vld [vmem:[%s0 + $0x160] sm:$0xff]
      %v246 = vld [vmem:[%s0 + $0x168] sm:$0xff]
      %v247 = vld [vmem:[%s0 + $0x170] sm:$0xff]
      %v248 = vld [vmem:[%s0 + $0x178] sm:$0xff]
      %v249 = vld [vmem:[%s0 + $0x180] sm:$0xff]
      %v250 = vld [vmem:[%s0 + $0x188] sm:$0xff]
      %v251 = vld [vmem:[%s0 + $0x190] sm:$0xff]
      %v252 = vld [vmem:[%s0 + $0x198] sm:$0xff]
      %v253 = vld [vmem:[%s0 + $0x1a0] sm:$0xff]
      %v254 = vld [vmem:[%s0 + $0x1a8] sm:$0xff]
      %v255 = vld [vmem:[%s0 + $0x1b0] sm:$0xff]
      %v256 = vld [vmem:[%s0 + $0x1b8] sm:$0xff]
      %v257 = vld [vmem:[%s0 + $0x1c0] sm:$0xff]
      %v258 = vld [vmem:[%s0 + $0x1c8] sm:$0xff]
      %v259 = vld [vmem:[%s0 + $0x1d0] sm:$0xff]
      %v260 = vld [vmem:[%s0 + $0x1d8] sm:$0xff]
      %v261 = vld [vmem:[%s0 + $0x1e0] sm:$0xff]
      %v262 = vld [vmem:[%s0 + $0x1e8] sm:$0xff]
      %v263 = vld [vmem:[%s0 + $0x1f0] sm:$0xff]
      %v264 = vld [vmem:[%s0 + $0x1f8] sm:$0xff]
      %v265 = vld [vmem:[%s0 + $0x200] sm:$0xff]
      %v266 = vld [vmem:[%s0 + $0x208] sm:$0xff]
      %v267 = vld [vmem:[%s0 + $0x210] sm:$0xff]
      %v268 = vld [vmem:[%s0 + $0x218] sm:$0xff]
      %v269 = vld [vmem:[%s0 + $0x220] sm:$0xff]
      %v270 = vld [vmem:[%s0 + $0x228] sm:$0xff]
      %v271 = vld [vmem:[%s0 + $0x230] sm:$0xff]
      %v272 = vld [vmem:[%s0 + $0x238] sm:$0xff]
      %v273 = vld [vmem:[%s0 + $0x240] sm:$0xff]
      %v274 = vld [vmem:[%s0 + $0x248] sm:$0xff]
      %v275 = vld [vmem:[%s0 + $0x250] sm:$0xff]
      %v276 = vld [vmem:[%s0 + $0x258] sm:$0xff]
      %v277 = vld [vmem:[%s0 + $0x260] sm:$0xff]
      %v278 = vld [vmem:[%s0 + $0x268] sm:$0xff]
      %v279 = vld [vmem:[%s0 + $0x270] sm:$0xff]
      %v280 = vld [vmem:[%s0 + $0x278] sm:$0xff]
      %v281 = vld [vmem:[%s0 + $0x280] sm:$0xff]
      %v282 = vld [vmem:[%s0 + $0x288] sm:$0xff]
      %v283 = vld [vmem:[%s0 + $0x290] sm:$0xff]
      %v284 = vld [vmem:[%s0 + $0x298] sm:$0xff]
      %v285 = vld [vmem:[%s0 + $0x2a0] sm:$0xff]
      %v286 = vld [vmem:[%s0 + $0x2a8] sm:$0xff]
      %v287 = vld [vmem:[%s0 + $0x2b0] sm:$0xff]
      %v288 = vld [vmem:[%s0 + $0x2b8] sm:$0xff]
      %v289 = vld [vmem:[%s0 + $0x2c0] sm:$0xff]
      %v290 = vld [vmem:[%s0 + $0x2c8] sm:$0xff]
      %v291 = vld [vmem:[%s0 + $0x2d0] sm:$0xff]
      %v292 = vld [vmem:[%s0 + $0x2d8] sm:$0xff]
      %v293 = vld [vmem:[%s0 + $0x2e0] sm:$0xff]
      %v294 = vld [vmem:[%s0 + $0x2e8] sm:$0xff]
      %v295 = vld [vmem:[%s0 + $0x2f0] sm:$0xff]
      %v296 = vld [vmem:[%s0 + $0x2f8] sm:$0xff]
      %v297 = vld [vmem:[%s0 + $0x300] sm:$0xff]
      %v298 = vld [vmem:[%s0 + $0x308] sm:$0xff]
      %v299 = vld [vmem:[%s0 + $0x310] sm:$0xff]
      %v300 = vld [vmem:[%s0 + $0x318] sm:$0xff]
      %v301 = vld [vmem:[%s0 + $0x320] sm:$0xff]
      %v302 = vld [vmem:[%s0 + $0x328] sm:$0xff]
      %v303 = vld [vmem:[%s0 + $0x330] sm:$0xff]
      %v304 = vld [vmem:[%s0 + $0x338] sm:$0xff]
      %v305 = vld [vmem:[%s0 + $0x340] sm:$0xff]
      %v306 = vld [vmem:[%s0 + $0x348] sm:$0xff]
      %v307 = vld [vmem:[%s0 + $0x350] sm:$0xff]
      %v308 = vld [vmem:[%s0 + $0x358] sm:$0xff]
      %v309 = vld [vmem:[%s0 + $0x360] sm:$0xff]
      %v310 = vld [vmem:[%s0 + $0x368] sm:$0xff]
      %v311 = vld [vmem:[%s0 + $0x370] sm:$0xff]
      %v312 = vld [vmem:[%s0 + $0x378] sm:$0xff]
      %v313 = vld [vmem:[%s0 + $0x380] sm:$0xff]
      %v314 = vld [vmem:[%s0 + $0x388] sm:$0xff]
      %v315 = vld [vmem:[%s0 + $0x390] sm:$0xff]
      %v316 = vld [vmem:[%s0 + $0x398] sm:$0xff]
      %v317 = vld [vmem:[%s0 + $0x3a0] sm:$0xff]
      %v318 = vld [vmem:[%s0 + $0x3a8] sm:$0xff]
      %v319 = vld [vmem:[%s0 + $0x3b0] sm:$0xff]
      %v320 = vld [vmem:[%s0 + $0x3b8] sm:$0xff]
      %v321 = vld [vmem:[%s0 + $0x3c0] sm:$0xff]
      %v322 = vld [vmem:[%s0 + $0x3c8] sm:$0xff]
      %v323 = vld [vmem:[%s0 + $0x3d0] sm:$0xff]
      %v324 = vld [vmem:[%s0 + $0x3d8] sm:$0xff]
      %v325 = vld [vmem:[%s0 + $0x3e0] sm:$0xff]
      %v326 = vld [vmem:[%s0 + $0x3e8] sm:$0xff]
      %v327 = vld [vmem:[%s0 + $0x3f0] sm:$0xff]
      %v328 = vld [vmem:[%s0 + $0x3f8] sm:$0xff]
      %v329 = vld [vmem:[%s0 + $0x400] sm:$0xff]
      %v330 = vld [vmem:[%s0 + $0x408] sm:$0xff]
      %v331 = vld [vmem:[%s0 + $0x410] sm:$0xff]
      %v332 = vld [vmem:[%s0 + $0x418] sm:$0xff]
      %v333 = vld [vmem:[%s0 + $0x420] sm:$0xff]
      %v334 = vld [vmem:[%s0 + $0x428] sm:$0xff]
      %v335 = vld [vmem:[%s0 + $0x430] sm:$0xff]
      %v336 = vld [vmem:[%s0 + $0x438] sm:$0xff]
      %v337 = vld [vmem:[%s0 + $0x440] sm:$0xff]
      %v338 = vld [vmem:[%s0 + $0x448] sm:$0xff]
      %v339 = vld [vmem:[%s0 + $0x450] sm:$0xff]
      %v340 = vld [vmem:[%s0 + $0x458] sm:$0xff]
      %v341 = vld [vmem:[%s0 + $0x460] sm:$0xff]
      %v342 = vld [vmem:[%s0 + $0x468] sm:$0xff]
      %v343 = vld [vmem:[%s0 + $0x470] sm:$0xff]
      %v344 = vld [vmem:[%s0 + $0x478] sm:$0xff]
      %v345 = vld [vmem:[%s0 + $0x480] sm:$0xff]
      %v346 = vld [vmem:[%s0 + $0x488] sm:$0xff]
      %v347 = vld [vmem:[%s0 + $0x490] sm:$0xff]
      %v348 = vld [vmem:[%s0 + $0x498] sm:$0xff]
      %v349 = vld [vmem:[%s0 + $0x4a0] sm:$0xff]
      %v350 = vld [vmem:[%s0 + $0x4a8] sm:$0xff]
      %v351 = vld [vmem:[%s0 + $0x4b0] sm:$0xff]
      %v352 = vld [vmem:[%s0 + $0x4b8] sm:$0xff]
      %v353 = vld [vmem:[%s0 + $0x4c0] sm:$0xff]
      %v354 = vld [vmem:[%s0 + $0x4c8] sm:$0xff]
      %v355 = vld [vmem:[%s0 + $0x4d0] sm:$0xff]
      %v356 = vld [vmem:[%s0 + $0x4d8] sm:$0xff]
      %v357 = vld [vmem:[%s0 + $0x4e0] sm:$0xff]
      %v358 = vld [vmem:[%s0 + $0x4e8] sm:$0xff]
      %v359 = vld [vmem:[%s0 + $0x4f0] sm:$0xff]
      %v360 = vld [vmem:[%s0 + $0x4f8] sm:$0xff]
      %v361 = vld [vmem:[%s0 + $0x500] sm:$0xff]
      %v362 = vld [vmem:[%s0 + $0x508] sm:$0xff]
      %v363 = vld [vmem:[%s0 + $0x510] sm:$0xff]
      %v364 = vld [vmem:[%s0 + $0x518] sm:$0xff]
      %v365 = vld [vmem:[%s0 + $0x520] sm:$0xff]
      %v366 = vld [vmem:[%s0 + $0x528] sm:$0xff]
      %v367 = vld [vmem:[%s0 + $0x530] sm:$0xff]
      %v368 = vld [vmem:[%s0 + $0x538] sm:$0xff]
      %v369 = vld [vmem:[%s0 + $0x540] sm:$0xff]
      %v370 = vld [vmem:[%s0 + $0x548] sm:$0xff]
      %v371 = vld [vmem:[%s0 + $0x550] sm:$0xff]
      %v372 = vld [vmem:[%s0 + $0x558] sm:$0xff]
      %v373 = vld [vmem:[%s0 + $0x560] sm:$0xff]
      %v374 = vld [vmem:[%s0 + $0x568] sm:$0xff]
      %v375 = vld [vmem:[%s0 + $0x570] sm:$0xff]
      %v376 = vld [vmem:[%s0 + $0x578] sm:$0xff]
      %v377 = vld [vmem:[%s0 + $0x580] sm:$0xff]
      %v378 = vld [vmem:[%s0 + $0x588] sm:$0xff]
      %v379 = vld [vmem:[%s0 + $0x590] sm:$0xff]
      %v380 = vld [vmem:[%s0 + $0x598] sm:$0xff]
      %v381 = vld [vmem:[%s0 + $0x5a0] sm:$0xff]
      %v382 = vld [vmem:[%s0 + $0x5a8] sm:$0xff]
      %v383 = vld [vmem:[%s0 + $0x5b0] sm:$0xff]
      %v384 = vld [vmem:[%s0 + $0x5b8] sm:$0xff]
      %v385 = vld [vmem:[%s0 + $0x5c0] sm:$0xff]
      %v386 = vld [vmem:[%s0 + $0x5c8] sm:$0xff]
      %v387 = vld [vmem:[%s0 + $0x5d0] sm:$0xff]
      %v388 = vld [vmem:[%s0 + $0x5d8] sm:$0xff]
      %v389 = vld [vmem:[%s0 + $0x5e0] sm:$0xff]
      %v390 = vld [vmem:[%s0 + $0x5e8] sm:$0xff]
      %v391 = vld [vmem:[%s0 + $0x5f0] sm:$0xff]
      %v392 = vld [vmem:[%s0 + $0x5f8] sm:$0xff]
      %v393 = vld [vmem:[%s0 + $0x600] sm:$0xff]
      %v394 = vld [vmem:[%s0 + $0x608] sm:$0xff]
      %v395 = vld [vmem:[%s0 + $0x610] sm:$0xff]
      %v396 = vld [vmem:[%s0 + $0x618] sm:$0xff]
      %v397 = vld [vmem:[%s0 + $0x620] sm:$0xff]
      %v398 = vld [vmem:[%s0 + $0x628] sm:$0xff]
      %v399 = vld [vmem:[%s0 + $0x630] sm:$0xff]
      %v400 = vld [vmem:[%s0 + $0x638] sm:$0xff]
      %v401 = vld [vmem:[%s0 + $0x640] sm:$0xff]
      %v402 = vld [vmem:[%s0 + $0x648] sm:$0xff]
      %v403 = vld [vmem:[%s0 + $0x650] sm:$0xff]
      %v404 = vld [vmem:[%s0 + $0x658] sm:$0xff]
      %v405 = vld [vmem:[%s0 + $0x660] sm:$0xff]
      %v406 = vld [vmem:[%s0 + $0x668] sm:$0xff]
      %v407 = vld [vmem:[%s0 + $0x670] sm:$0xff]
      %v408 = vld [vmem:[%s0 + $0x678] sm:$0xff]
      %v409 = vld [vmem:[%s0 + $0x680] sm:$0xff]
      %v410 = vld [vmem:[%s0 + $0x688] sm:$0xff]
      %v411 = vld [vmem:[%s0 + $0x690] sm:$0xff]
      %v412 = vld [vmem:[%s0 + $0x698] sm:$0xff]
      %v413 = vld [vmem:[%s0 + $0x6a0] sm:$0xff]
      %v414 = vld [vmem:[%s0 + $0x6a8] sm:$0xff]
      %v415 = vld [vmem:[%s0 + $0x6b0] sm:$0xff]
      %v416 = vld [vmem:[%s0 + $0x6b8] sm:$0xff]
      %v417 = vld [vmem:[%s0 + $0x6c0] sm:$0xff]
      %v418 = vld [vmem:[%s0 + $0x6c8] sm:$0xff]
      %v419 = vld [vmem:[%s0 + $0x6d0] sm:$0xff]
      %v420 = vld [vmem:[%s0 + $0x6d8] sm:$0xff]
      %v421 = vld [vmem:[%s0 + $0x6e0] sm:$0xff]
      %v422 = vld [vmem:[%s0 + $0x6e8] sm:$0xff]
      %v423 = vld [vmem:[%s0 + $0x6f0] sm:$0xff]
      %v424 = vld [vmem:[%s0 + $0x6f8] sm:$0xff]
      %v425 = vld [vmem:[%s0 + $0x700] sm:$0xff]
      %v426 = vld [vmem:[%s0 + $0x708] sm:$0xff]
      %v427 = vld [vmem:[%s0 + $0x710] sm:$0xff]
      %v428 = vld [vmem:[%s0 + $0x718] sm:$0xff]
      %v429 = vld [vmem:[%s0 + $0x720] sm:$0xff]
      %v430 = vld [vmem:[%s0 + $0x728] sm:$0xff]
      %v431 = vld [vmem:[%s0 + $0x730] sm:$0xff]
      %v432 = vld [vmem:[%s0 + $0x738] sm:$0xff]
      %v433 = vld [vmem:[%s0 + $0x740] sm:$0xff]
      %v434 = vld [vmem:[%s0 + $0x748] sm:$0xff]
      %v435 = vld [vmem:[%s0 + $0x750] sm:$0xff]
      %v436 = vld [vmem:[%s0 + $0x758] sm:$0xff]
      %v437 = vld [vmem:[%s0 + $0x760] sm:$0xff]
      %v438 = vld [vmem:[%s0 + $0x768] sm:$0xff]
      %v439 = vld [vmem:[%s0 + $0x770] sm:$0xff]
      %v440 = vld [vmem:[%s0 + $0x778] sm:$0xff]
      %v441 = vld [vmem:[%s0 + $0x780] sm:$0xff]
      %v442 = vld [vmem:[%s0 + $0x788] sm:$0xff]
      %v443 = vld [vmem:[%s0 + $0x790] sm:$0xff]
      %v444 = vld [vmem:[%s0 + $0x798] sm:$0xff]
      %v445 = vld [vmem:[%s0 + $0x7a0] sm:$0xff]
      %v446 = vld [vmem:[%s0 + $0x7a8] sm:$0xff]
      %v447 = vld [vmem:[%s0 + $0x7b0] sm:$0xff]
      %v448 = vld [vmem:[%s0 + $0x7b8] sm:$0xff]
      %v449 = vld [vmem:[%s0 + $0x7c0] sm:$0xff]
      %v450 = vld [vmem:[%s0 + $0x7c8] sm:$0xff]
      %v451 = vld [vmem:[%s0 + $0x7d0] sm:$0xff]
      %v452 = vld [vmem:[%s0 + $0x7d8] sm:$0xff]
      %v453 = vld [vmem:[%s0 + $0x7e0] sm:$0xff]
      %v454 = vld [vmem:[%s0 + $0x7e8] sm:$0xff]
      %v455 = vld [vmem:[%s0 + $0x7f0] sm:$0xff]
      %v456 = vld [vmem:[%s0 + $0x7f8] sm:$0xff]
      %v457 = vpack.c.bf16 %v203, %v201
      %v458 = vpack.c.bf16 %v204, %v202
      %v459 = vpack.c.bf16 %v207, %v205
      %v460 = vpack.c.bf16 %v208, %v206
      %v461 = vpack.c.bf16 %v211, %v209
      %v462 = vpack.c.bf16 %v212, %v210
      %v463 = vpack.c.bf16 %v215, %v213
      %v464 = vpack.c.bf16 %v216, %v214
      %v465 = vpack.c.bf16 %v219, %v217
      %v466 = vpack.c.bf16 %v220, %v218
      %v467 = vpack.c.bf16 %v223, %v221
      %v468 = vpack.c.bf16 %v224, %v222
      %v469 = vpack.c.bf16 %v227, %v225
      %v470 = vpack.c.bf16 %v228, %v226
      %v471 = vpack.c.bf16 %v231, %v229
      %v472 = vpack.c.bf16 %v232, %v230
      %v473 = vpack.c.bf16 %v235, %v233
      %v474 = vpack.c.bf16 %v236, %v234
      %v475 = vpack.c.bf16 %v239, %v237
      %v476 = vpack.c.bf16 %v240, %v238
      %v477 = vpack.c.bf16 %v243, %v241
      %v478 = vpack.c.bf16 %v244, %v242
      %v479 = vpack.c.bf16 %v247, %v245
      %v480 = vpack.c.bf16 %v248, %v246
      %v481 = vpack.c.bf16 %v251, %v249
      %v482 = vpack.c.bf16 %v252, %v250
      %v483 = vpack.c.bf16 %v255, %v253
      %v484 = vpack.c.bf16 %v256, %v254
      %v485 = vpack.c.bf16 %v259, %v257
      %v486 = vpack.c.bf16 %v260, %v258
      %v487 = vpack.c.bf16 %v263, %v261
      %v488 = vpack.c.bf16 %v264, %v262
      %v489 = vpack.c.bf16 %v267, %v265
      %v490 = vpack.c.bf16 %v268, %v266
      %v491 = vpack.c.bf16 %v271, %v269
      %v492 = vpack.c.bf16 %v272, %v270
      %v493 = vpack.c.bf16 %v275, %v273
      %v494 = vpack.c.bf16 %v276, %v274
      %v495 = vpack.c.bf16 %v279, %v277
      %v496 = vpack.c.bf16 %v280, %v278
      %v497 = vpack.c.bf16 %v283, %v281
      %v498 = vpack.c.bf16 %v284, %v282
      %v499 = vpack.c.bf16 %v287, %v285
      %v500 = vpack.c.bf16 %v288, %v286
      %v501 = vpack.c.bf16 %v291, %v289
      %v502 = vpack.c.bf16 %v292, %v290
      %v503 = vpack.c.bf16 %v295, %v293
      %v504 = vpack.c.bf16 %v296, %v294
      %v505 = vpack.c.bf16 %v299, %v297
      %v506 = vpack.c.bf16 %v300, %v298
      %v507 = vpack.c.bf16 %v303, %v301
      %v508 = vpack.c.bf16 %v304, %v302
      %v509 = vpack.c.bf16 %v307, %v305
      %v510 = vpack.c.bf16 %v308, %v306
      %v511 = vpack.c.bf16 %v311, %v309
      %v512 = vpack.c.bf16 %v312, %v310
      %v513 = vpack.c.bf16 %v315, %v313
      %v514 = vpack.c.bf16 %v316, %v314
      %v515 = vpack.c.bf16 %v319, %v317
      %v516 = vpack.c.bf16 %v320, %v318
      %v517 = vpack.c.bf16 %v323, %v321
      %v518 = vpack.c.bf16 %v324, %v322
      %v519 = vpack.c.bf16 %v327, %v325
      %v520 = vpack.c.bf16 %v328, %v326
      %v521 = vpack.c.bf16 %v331, %v329
      %v522 = vpack.c.bf16 %v332, %v330
      %v523 = vpack.c.bf16 %v335, %v333
      %v524 = vpack.c.bf16 %v336, %v334
      %v525 = vpack.c.bf16 %v339, %v337
      %v526 = vpack.c.bf16 %v340, %v338
      %v527 = vpack.c.bf16 %v343, %v341
      %v528 = vpack.c.bf16 %v344, %v342
      %v529 = vpack.c.bf16 %v347, %v345
      %v530 = vpack.c.bf16 %v348, %v346
      %v531 = vpack.c.bf16 %v351, %v349
      %v532 = vpack.c.bf16 %v352, %v350
      %v533 = vpack.c.bf16 %v355, %v353
      %v534 = vpack.c.bf16 %v356, %v354
      %v535 = vpack.c.bf16 %v359, %v357
      %v536 = vpack.c.bf16 %v360, %v358
      %v537 = vpack.c.bf16 %v363, %v361
      %v538 = vpack.c.bf16 %v364, %v362
      %v539 = vpack.c.bf16 %v367, %v365
      %v540 = vpack.c.bf16 %v368, %v366
      %v541 = vpack.c.bf16 %v371, %v369
      %v542 = vpack.c.bf16 %v372, %v370
      %v543 = vpack.c.bf16 %v375, %v373
      %v544 = vpack.c.bf16 %v376, %v374
      %v545 = vpack.c.bf16 %v379, %v377
      %v546 = vpack.c.bf16 %v380, %v378
      %v547 = vpack.c.bf16 %v383, %v381
      %v548 = vpack.c.bf16 %v384, %v382
      %v549 = vpack.c.bf16 %v387, %v385
      %v550 = vpack.c.bf16 %v388, %v386
      %v551 = vpack.c.bf16 %v391, %v389
      %v552 = vpack.c.bf16 %v392, %v390
      %v553 = vpack.c.bf16 %v395, %v393
      %v554 = vpack.c.bf16 %v396, %v394
      %v555 = vpack.c.bf16 %v399, %v397
      %v556 = vpack.c.bf16 %v400, %v398
      %v557 = vpack.c.bf16 %v403, %v401
      %v558 = vpack.c.bf16 %v404, %v402
      %v559 = vpack.c.bf16 %v407, %v405
      %v560 = vpack.c.bf16 %v408, %v406
      %v561 = vpack.c.bf16 %v411, %v409
      %v562 = vpack.c.bf16 %v412, %v410
      %v563 = vpack.c.bf16 %v415, %v413
      %v564 = vpack.c.bf16 %v416, %v414
      %v565 = vpack.c.bf16 %v419, %v417
      %v566 = vpack.c.bf16 %v420, %v418
      %v567 = vpack.c.bf16 %v423, %v421
      %v568 = vpack.c.bf16 %v424, %v422
      %v569 = vpack.c.bf16 %v427, %v425
      %v570 = vpack.c.bf16 %v428, %v426
      %v571 = vpack.c.bf16 %v431, %v429
      %v572 = vpack.c.bf16 %v432, %v430
      %v573 = vpack.c.bf16 %v435, %v433
      %v574 = vpack.c.bf16 %v436, %v434
      %v575 = vpack.c.bf16 %v439, %v437
      %v576 = vpack.c.bf16 %v440, %v438
      %v577 = vpack.c.bf16 %v443, %v441
      %v578 = vpack.c.bf16 %v444, %v442
      %v579 = vpack.c.bf16 %v447, %v445
      %v580 = vpack.c.bf16 %v448, %v446
      %v581 = vpack.c.bf16 %v451, %v449
      %v582 = vpack.c.bf16 %v452, %v450
      %v583 = vpack.c.bf16 %v455, %v453
      %v584 = vpack.c.bf16 %v456, %v454
      %v585 = vld [vmem:[%s186] sm:$0xff]
      %v586 = vld [vmem:[%s186 + $0x8] sm:$0xff]
      %v587 = vld [vmem:[%s186 + $0x10] sm:$0xff]
      %v588 = vld [vmem:[%s186 + $0x18] sm:$0xff]
      %v589 = vld [vmem:[%s186 + $0x20] sm:$0xff]
      %v590 = vld [vmem:[%s186 + $0x28] sm:$0xff]
      %v591 = vld [vmem:[%s186 + $0x30] sm:$0xff]
      %v592 = vld [vmem:[%s186 + $0x38] sm:$0xff]
      %v593 = vld [vmem:[%s186 + $0x40] sm:$0xff]
      %v594 = vld [vmem:[%s186 + $0x48] sm:$0xff]
      %v595 = vld [vmem:[%s186 + $0x50] sm:$0xff]
      %v596 = vld [vmem:[%s186 + $0x58] sm:$0xff]
      %v597 = vld [vmem:[%s186 + $0x60] sm:$0xff]
      %v598 = vld [vmem:[%s186 + $0x68] sm:$0xff]
      %v599 = vld [vmem:[%s186 + $0x70] sm:$0xff]
      %v600 = vld [vmem:[%s186 + $0x78] sm:$0xff]
      %v601 = vld [vmem:[%s186 + $0x80] sm:$0xff]
      %v602 = vld [vmem:[%s186 + $0x88] sm:$0xff]
      %v603 = vld [vmem:[%s186 + $0x90] sm:$0xff]
      %v604 = vld [vmem:[%s186 + $0x98] sm:$0xff]
      %v605 = vld [vmem:[%s186 + $0xa0] sm:$0xff]
      %v606 = vld [vmem:[%s186 + $0xa8] sm:$0xff]
      %v607 = vld [vmem:[%s186 + $0xb0] sm:$0xff]
      %v608 = vld [vmem:[%s186 + $0xb8] sm:$0xff]
      %v609 = vld [vmem:[%s186 + $0xc0] sm:$0xff]
      %v610 = vld [vmem:[%s186 + $0xc8] sm:$0xff]
      %v611 = vld [vmem:[%s186 + $0xd0] sm:$0xff]
      %v612 = vld [vmem:[%s186 + $0xd8] sm:$0xff]
      %v613 = vld [vmem:[%s186 + $0xe0] sm:$0xff]
      %v614 = vld [vmem:[%s186 + $0xe8] sm:$0xff]
      %v615 = vld [vmem:[%s186 + $0xf0] sm:$0xff]
      %v616 = vld [vmem:[%s186 + $0xf8] sm:$0xff]
      %v617 = vld [vmem:[%s186 + $0x100] sm:$0xff]
      %v618 = vld [vmem:[%s186 + $0x108] sm:$0xff]
      %v619 = vld [vmem:[%s186 + $0x110] sm:$0xff]
      %v620 = vld [vmem:[%s186 + $0x118] sm:$0xff]
      %v621 = vld [vmem:[%s186 + $0x120] sm:$0xff]
      %v622 = vld [vmem:[%s186 + $0x128] sm:$0xff]
      %v623 = vld [vmem:[%s186 + $0x130] sm:$0xff]
      %v624 = vld [vmem:[%s186 + $0x138] sm:$0xff]
      %v625 = vld [vmem:[%s186 + $0x140] sm:$0xff]
      %v626 = vld [vmem:[%s186 + $0x148] sm:$0xff]
      %v627 = vld [vmem:[%s186 + $0x150] sm:$0xff]
      %v628 = vld [vmem:[%s186 + $0x158] sm:$0xff]
      %v629 = vld [vmem:[%s186 + $0x160] sm:$0xff]
      %v630 = vld [vmem:[%s186 + $0x168] sm:$0xff]
      %v631 = vld [vmem:[%s186 + $0x170] sm:$0xff]
      %v632 = vld [vmem:[%s186 + $0x178] sm:$0xff]
      %v633 = vld [vmem:[%s186 + $0x180] sm:$0xff]
      %v634 = vld [vmem:[%s186 + $0x188] sm:$0xff]
      %v635 = vld [vmem:[%s186 + $0x190] sm:$0xff]
      %v636 = vld [vmem:[%s186 + $0x198] sm:$0xff]
      %v637 = vld [vmem:[%s186 + $0x1a0] sm:$0xff]
      %v638 = vld [vmem:[%s186 + $0x1a8] sm:$0xff]
      %v639 = vld [vmem:[%s186 + $0x1b0] sm:$0xff]
      %v640 = vld [vmem:[%s186 + $0x1b8] sm:$0xff]
      %v641 = vld [vmem:[%s186 + $0x1c0] sm:$0xff]
      %v642 = vld [vmem:[%s186 + $0x1c8] sm:$0xff]
      %v643 = vld [vmem:[%s186 + $0x1d0] sm:$0xff]
      %v644 = vld [vmem:[%s186 + $0x1d8] sm:$0xff]
      %v645 = vld [vmem:[%s186 + $0x1e0] sm:$0xff]
      %v646 = vld [vmem:[%s186 + $0x1e8] sm:$0xff]
      %v647 = vld [vmem:[%s186 + $0x1f0] sm:$0xff]
      %v648 = vld [vmem:[%s186 + $0x1f8] sm:$0xff]
      %v649 = vld [vmem:[%s186 + $0x200] sm:$0xff]
      %v650 = vld [vmem:[%s186 + $0x208] sm:$0xff]
      %v651 = vld [vmem:[%s186 + $0x210] sm:$0xff]
      %v652 = vld [vmem:[%s186 + $0x218] sm:$0xff]
      %v653 = vld [vmem:[%s186 + $0x220] sm:$0xff]
      %v654 = vld [vmem:[%s186 + $0x228] sm:$0xff]
      %v655 = vld [vmem:[%s186 + $0x230] sm:$0xff]
      %v656 = vld [vmem:[%s186 + $0x238] sm:$0xff]
      %v657 = vld [vmem:[%s186 + $0x240] sm:$0xff]
      %v658 = vld [vmem:[%s186 + $0x248] sm:$0xff]
      %v659 = vld [vmem:[%s186 + $0x250] sm:$0xff]
      %v660 = vld [vmem:[%s186 + $0x258] sm:$0xff]
      %v661 = vld [vmem:[%s186 + $0x260] sm:$0xff]
      %v662 = vld [vmem:[%s186 + $0x268] sm:$0xff]
      %v663 = vld [vmem:[%s186 + $0x270] sm:$0xff]
      %v664 = vld [vmem:[%s186 + $0x278] sm:$0xff]
      %v665 = vld [vmem:[%s186 + $0x280] sm:$0xff]
      %v666 = vld [vmem:[%s186 + $0x288] sm:$0xff]
      %v667 = vld [vmem:[%s186 + $0x290] sm:$0xff]
      %v668 = vld [vmem:[%s186 + $0x298] sm:$0xff]
      %v669 = vld [vmem:[%s186 + $0x2a0] sm:$0xff]
      %v670 = vld [vmem:[%s186 + $0x2a8] sm:$0xff]
      %v671 = vld [vmem:[%s186 + $0x2b0] sm:$0xff]
      %v672 = vld [vmem:[%s186 + $0x2b8] sm:$0xff]
      %v673 = vld [vmem:[%s186 + $0x2c0] sm:$0xff]
      %v674 = vld [vmem:[%s186 + $0x2c8] sm:$0xff]
      %v675 = vld [vmem:[%s186 + $0x2d0] sm:$0xff]
      %v676 = vld [vmem:[%s186 + $0x2d8] sm:$0xff]
      %v677 = vld [vmem:[%s186 + $0x2e0] sm:$0xff]
      %v678 = vld [vmem:[%s186 + $0x2e8] sm:$0xff]
      %v679 = vld [vmem:[%s186 + $0x2f0] sm:$0xff]
      %v680 = vld [vmem:[%s186 + $0x2f8] sm:$0xff]
      %v681 = vld [vmem:[%s186 + $0x300] sm:$0xff]
      %v682 = vld [vmem:[%s186 + $0x308] sm:$0xff]
      %v683 = vld [vmem:[%s186 + $0x310] sm:$0xff]
      %v684 = vld [vmem:[%s186 + $0x318] sm:$0xff]
      %v685 = vld [vmem:[%s186 + $0x320] sm:$0xff]
      %v686 = vld [vmem:[%s186 + $0x328] sm:$0xff]
      %v687 = vld [vmem:[%s186 + $0x330] sm:$0xff]
      %v688 = vld [vmem:[%s186 + $0x338] sm:$0xff]
      %v689 = vld [vmem:[%s186 + $0x340] sm:$0xff]
      %v690 = vld [vmem:[%s186 + $0x348] sm:$0xff]
      %v691 = vld [vmem:[%s186 + $0x350] sm:$0xff]
      %v692 = vld [vmem:[%s186 + $0x358] sm:$0xff]
      %v693 = vld [vmem:[%s186 + $0x360] sm:$0xff]
      %v694 = vld [vmem:[%s186 + $0x368] sm:$0xff]
      %v695 = vld [vmem:[%s186 + $0x370] sm:$0xff]
      %v696 = vld [vmem:[%s186 + $0x378] sm:$0xff]
      %v697 = vld [vmem:[%s186 + $0x380] sm:$0xff]
      %v698 = vld [vmem:[%s186 + $0x388] sm:$0xff]
      %v699 = vld [vmem:[%s186 + $0x390] sm:$0xff]
      %v700 = vld [vmem:[%s186 + $0x398] sm:$0xff]
      %v701 = vld [vmem:[%s186 + $0x3a0] sm:$0xff]
      %v702 = vld [vmem:[%s186 + $0x3a8] sm:$0xff]
      %v703 = vld [vmem:[%s186 + $0x3b0] sm:$0xff]
      %v704 = vld [vmem:[%s186 + $0x3b8] sm:$0xff]
      %v705 = vld [vmem:[%s186 + $0x3c0] sm:$0xff]
      %v706 = vld [vmem:[%s186 + $0x3c8] sm:$0xff]
      %v707 = vld [vmem:[%s186 + $0x3d0] sm:$0xff]
      %v708 = vld [vmem:[%s186 + $0x3d8] sm:$0xff]
      %v709 = vld [vmem:[%s186 + $0x3e0] sm:$0xff]
      %v710 = vld [vmem:[%s186 + $0x3e8] sm:$0xff]
      %v711 = vld [vmem:[%s186 + $0x3f0] sm:$0xff]
      %v712 = vld [vmem:[%s186 + $0x3f8] sm:$0xff]
      %v713 = vld [vmem:[%s186 + $0x400] sm:$0xff]
      %v714 = vld [vmem:[%s186 + $0x408] sm:$0xff]
      %v715 = vld [vmem:[%s186 + $0x410] sm:$0xff]
      %v716 = vld [vmem:[%s186 + $0x418] sm:$0xff]
      %v717 = vld [vmem:[%s186 + $0x420] sm:$0xff]
      %v718 = vld [vmem:[%s186 + $0x428] sm:$0xff]
      %v719 = vld [vmem:[%s186 + $0x430] sm:$0xff]
      %v720 = vld [vmem:[%s186 + $0x438] sm:$0xff]
      %v721 = vld [vmem:[%s186 + $0x440] sm:$0xff]
      %v722 = vld [vmem:[%s186 + $0x448] sm:$0xff]
      %v723 = vld [vmem:[%s186 + $0x450] sm:$0xff]
      %v724 = vld [vmem:[%s186 + $0x458] sm:$0xff]
      %v725 = vld [vmem:[%s186 + $0x460] sm:$0xff]
      %v726 = vld [vmem:[%s186 + $0x468] sm:$0xff]
      %v727 = vld [vmem:[%s186 + $0x470] sm:$0xff]
      %v728 = vld [vmem:[%s186 + $0x478] sm:$0xff]
      %v729 = vld [vmem:[%s186 + $0x480] sm:$0xff]
      %v730 = vld [vmem:[%s186 + $0x488] sm:$0xff]
      %v731 = vld [vmem:[%s186 + $0x490] sm:$0xff]
      %v732 = vld [vmem:[%s186 + $0x498] sm:$0xff]
      %v733 = vld [vmem:[%s186 + $0x4a0] sm:$0xff]
      %v734 = vld [vmem:[%s186 + $0x4a8] sm:$0xff]
      %v735 = vld [vmem:[%s186 + $0x4b0] sm:$0xff]
      %v736 = vld [vmem:[%s186 + $0x4b8] sm:$0xff]
      %v737 = vld [vmem:[%s186 + $0x4c0] sm:$0xff]
      %v738 = vld [vmem:[%s186 + $0x4c8] sm:$0xff]
      %v739 = vld [vmem:[%s186 + $0x4d0] sm:$0xff]
      %v740 = vld [vmem:[%s186 + $0x4d8] sm:$0xff]
      %v741 = vld [vmem:[%s186 + $0x4e0] sm:$0xff]
      %v742 = vld [vmem:[%s186 + $0x4e8] sm:$0xff]
      %v743 = vld [vmem:[%s186 + $0x4f0] sm:$0xff]
      %v744 = vld [vmem:[%s186 + $0x4f8] sm:$0xff]
      %v745 = vld [vmem:[%s186 + $0x500] sm:$0xff]
      %v746 = vld [vmem:[%s186 + $0x508] sm:$0xff]
      %v747 = vld [vmem:[%s186 + $0x510] sm:$0xff]
      %v748 = vld [vmem:[%s186 + $0x518] sm:$0xff]
      %v749 = vld [vmem:[%s186 + $0x520] sm:$0xff]
      %v750 = vld [vmem:[%s186 + $0x528] sm:$0xff]
      %v751 = vld [vmem:[%s186 + $0x530] sm:$0xff]
      %v752 = vld [vmem:[%s186 + $0x538] sm:$0xff]
      %v753 = vld [vmem:[%s186 + $0x540] sm:$0xff]
      %v754 = vld [vmem:[%s186 + $0x548] sm:$0xff]
      %v755 = vld [vmem:[%s186 + $0x550] sm:$0xff]
      %v756 = vld [vmem:[%s186 + $0x558] sm:$0xff]
      %v757 = vld [vmem:[%s186 + $0x560] sm:$0xff]
      %v758 = vld [vmem:[%s186 + $0x568] sm:$0xff]
      %v759 = vld [vmem:[%s186 + $0x570] sm:$0xff]
      %v760 = vld [vmem:[%s186 + $0x578] sm:$0xff]
      %v761 = vld [vmem:[%s186 + $0x580] sm:$0xff]
      %v762 = vld [vmem:[%s186 + $0x588] sm:$0xff]
      %v763 = vld [vmem:[%s186 + $0x590] sm:$0xff]
      %v764 = vld [vmem:[%s186 + $0x598] sm:$0xff]
      %v765 = vld [vmem:[%s186 + $0x5a0] sm:$0xff]
      %v766 = vld [vmem:[%s186 + $0x5a8] sm:$0xff]
      %v767 = vld [vmem:[%s186 + $0x5b0] sm:$0xff]
      %v768 = vld [vmem:[%s186 + $0x5b8] sm:$0xff]
      %v769 = vld [vmem:[%s186 + $0x5c0] sm:$0xff]
      %v770 = vld [vmem:[%s186 + $0x5c8] sm:$0xff]
      %v771 = vld [vmem:[%s186 + $0x5d0] sm:$0xff]
      %v772 = vld [vmem:[%s186 + $0x5d8] sm:$0xff]
      %v773 = vld [vmem:[%s186 + $0x5e0] sm:$0xff]
      %v774 = vld [vmem:[%s186 + $0x5e8] sm:$0xff]
      %v775 = vld [vmem:[%s186 + $0x5f0] sm:$0xff]
      %v776 = vld [vmem:[%s186 + $0x5f8] sm:$0xff]
      %v777 = vld [vmem:[%s186 + $0x600] sm:$0xff]
      %v778 = vld [vmem:[%s186 + $0x608] sm:$0xff]
      %v779 = vld [vmem:[%s186 + $0x610] sm:$0xff]
      %v780 = vld [vmem:[%s186 + $0x618] sm:$0xff]
      %v781 = vld [vmem:[%s186 + $0x620] sm:$0xff]
      %v782 = vld [vmem:[%s186 + $0x628] sm:$0xff]
      %v783 = vld [vmem:[%s186 + $0x630] sm:$0xff]
      %v784 = vld [vmem:[%s186 + $0x638] sm:$0xff]
      %v785 = vld [vmem:[%s186 + $0x640] sm:$0xff]
      %v786 = vld [vmem:[%s186 + $0x648] sm:$0xff]
      %v787 = vld [vmem:[%s186 + $0x650] sm:$0xff]
      %v788 = vld [vmem:[%s186 + $0x658] sm:$0xff]
      %v789 = vld [vmem:[%s186 + $0x660] sm:$0xff]
      %v790 = vld [vmem:[%s186 + $0x668] sm:$0xff]
      %v791 = vld [vmem:[%s186 + $0x670] sm:$0xff]
      %v792 = vld [vmem:[%s186 + $0x678] sm:$0xff]
      %v793 = vld [vmem:[%s186 + $0x680] sm:$0xff]
      %v794 = vld [vmem:[%s186 + $0x688] sm:$0xff]
      %v795 = vld [vmem:[%s186 + $0x690] sm:$0xff]
      %v796 = vld [vmem:[%s186 + $0x698] sm:$0xff]
      %v797 = vld [vmem:[%s186 + $0x6a0] sm:$0xff]
      %v798 = vld [vmem:[%s186 + $0x6a8] sm:$0xff]
      %v799 = vld [vmem:[%s186 + $0x6b0] sm:$0xff]
      %v800 = vld [vmem:[%s186 + $0x6b8] sm:$0xff]
      %v801 = vld [vmem:[%s186 + $0x6c0] sm:$0xff]
      %v802 = vld [vmem:[%s186 + $0x6c8] sm:$0xff]
      %v803 = vld [vmem:[%s186 + $0x6d0] sm:$0xff]
      %v804 = vld [vmem:[%s186 + $0x6d8] sm:$0xff]
      %v805 = vld [vmem:[%s186 + $0x6e0] sm:$0xff]
      %v806 = vld [vmem:[%s186 + $0x6e8] sm:$0xff]
      %v807 = vld [vmem:[%s186 + $0x6f0] sm:$0xff]
      %v808 = vld [vmem:[%s186 + $0x6f8] sm:$0xff]
      %v809 = vld [vmem:[%s186 + $0x700] sm:$0xff]
      %v810 = vld [vmem:[%s186 + $0x708] sm:$0xff]
      %v811 = vld [vmem:[%s186 + $0x710] sm:$0xff]
      %v812 = vld [vmem:[%s186 + $0x718] sm:$0xff]
      %v813 = vld [vmem:[%s186 + $0x720] sm:$0xff]
      %v814 = vld [vmem:[%s186 + $0x728] sm:$0xff]
      %v815 = vld [vmem:[%s186 + $0x730] sm:$0xff]
      %v816 = vld [vmem:[%s186 + $0x738] sm:$0xff]
      %v817 = vld [vmem:[%s186 + $0x740] sm:$0xff]
      %v818 = vld [vmem:[%s186 + $0x748] sm:$0xff]
      %v819 = vld [vmem:[%s186 + $0x750] sm:$0xff]
      %v820 = vld [vmem:[%s186 + $0x758] sm:$0xff]
      %v821 = vld [vmem:[%s186 + $0x760] sm:$0xff]
      %v822 = vld [vmem:[%s186 + $0x768] sm:$0xff]
      %v823 = vld [vmem:[%s186 + $0x770] sm:$0xff]
      %v824 = vld [vmem:[%s186 + $0x778] sm:$0xff]
      %v825 = vld [vmem:[%s186 + $0x780] sm:$0xff]
      %v826 = vld [vmem:[%s186 + $0x788] sm:$0xff]
      %v827 = vld [vmem:[%s186 + $0x790] sm:$0xff]
      %v828 = vld [vmem:[%s186 + $0x798] sm:$0xff]
      %v829 = vld [vmem:[%s186 + $0x7a0] sm:$0xff]
      %v830 = vld [vmem:[%s186 + $0x7a8] sm:$0xff]
      %v831 = vld [vmem:[%s186 + $0x7b0] sm:$0xff]
      %v832 = vld [vmem:[%s186 + $0x7b8] sm:$0xff]
      %v833 = vld [vmem:[%s186 + $0x7c0] sm:$0xff]
      %v834 = vld [vmem:[%s186 + $0x7c8] sm:$0xff]
      %v835 = vld [vmem:[%s186 + $0x7d0] sm:$0xff]
      %v836 = vld [vmem:[%s186 + $0x7d8] sm:$0xff]
      %v837 = vld [vmem:[%s186 + $0x7e0] sm:$0xff]
      %v838 = vld [vmem:[%s186 + $0x7e8] sm:$0xff]
      %v839 = vld [vmem:[%s186 + $0x7f0] sm:$0xff]
      %v840 = vld [vmem:[%s186 + $0x7f8] sm:$0xff]
      %v1097 = vunpack.c.l.b16 %v585
      %v1098 = vunpack.c.h.b16 %v585
      %v1099 = vunpack.c.l.b16 %v586
      %v1100 = vunpack.c.h.b16 %v586
      %v1101 = vunpack.c.l.b16 %v587
      %v1102 = vunpack.c.h.b16 %v587
      %v1103 = vunpack.c.l.b16 %v588
      %v1104 = vunpack.c.h.b16 %v588
      %v1105 = vunpack.c.l.b16 %v589
      %v1106 = vunpack.c.h.b16 %v589
      %v1107 = vunpack.c.l.b16 %v590
      %v1108 = vunpack.c.h.b16 %v590
      %v1109 = vunpack.c.l.b16 %v591
      %v1110 = vunpack.c.h.b16 %v591
      %v1111 = vunpack.c.l.b16 %v592
      %v1112 = vunpack.c.h.b16 %v592
      %v1113 = vunpack.c.l.b16 %v593
      %v1114 = vunpack.c.h.b16 %v593
      %v1115 = vunpack.c.l.b16 %v594
      %v1116 = vunpack.c.h.b16 %v594
      %v1117 = vunpack.c.l.b16 %v595
      %v1118 = vunpack.c.h.b16 %v595
      %v1119 = vunpack.c.l.b16 %v596
      %v1120 = vunpack.c.h.b16 %v596
      %v1121 = vunpack.c.l.b16 %v597
      %v1122 = vunpack.c.h.b16 %v597
      %v1123 = vunpack.c.l.b16 %v598
      %v1124 = vunpack.c.h.b16 %v598
      %v1125 = vunpack.c.l.b16 %v599
      %v1126 = vunpack.c.h.b16 %v599
      %v1127 = vunpack.c.l.b16 %v600
      %v1128 = vunpack.c.h.b16 %v600
      %v1129 = vunpack.c.l.b16 %v601
      %v1130 = vunpack.c.h.b16 %v601
      %v1131 = vunpack.c.l.b16 %v602
      %v1132 = vunpack.c.h.b16 %v602
      %v1133 = vunpack.c.l.b16 %v603
      %v1134 = vunpack.c.h.b16 %v603
      %v1135 = vunpack.c.l.b16 %v604
      %v1136 = vunpack.c.h.b16 %v604
      %v1137 = vunpack.c.l.b16 %v605
      %v1138 = vunpack.c.h.b16 %v605
      %v1139 = vunpack.c.l.b16 %v606
      %v1140 = vunpack.c.h.b16 %v606
      %v1141 = vunpack.c.l.b16 %v607
      %v1142 = vunpack.c.h.b16 %v607
      %v1143 = vunpack.c.l.b16 %v608
      %v1144 = vunpack.c.h.b16 %v608
      %v1145 = vunpack.c.l.b16 %v609
      %v1146 = vunpack.c.h.b16 %v609
      %v1147 = vunpack.c.l.b16 %v610
      %v1148 = vunpack.c.h.b16 %v610
      %v1149 = vunpack.c.l.b16 %v611
      %v1150 = vunpack.c.h.b16 %v611
      %v1151 = vunpack.c.l.b16 %v612
      %v1152 = vunpack.c.h.b16 %v612
      %v1153 = vunpack.c.l.b16 %v613
      %v1154 = vunpack.c.h.b16 %v613
      %v1155 = vunpack.c.l.b16 %v614
      %v1156 = vunpack.c.h.b16 %v614
      %v1157 = vunpack.c.l.b16 %v615
      %v1158 = vunpack.c.h.b16 %v615
      %v1159 = vunpack.c.l.b16 %v616
      %v1160 = vunpack.c.h.b16 %v616
      %v1161 = vunpack.c.l.b16 %v617
      %v1162 = vunpack.c.h.b16 %v617
      %v1163 = vunpack.c.l.b16 %v618
      %v1164 = vunpack.c.h.b16 %v618
      %v1165 = vunpack.c.l.b16 %v619
      %v1166 = vunpack.c.h.b16 %v619
      %v1167 = vunpack.c.l.b16 %v620
      %v1168 = vunpack.c.h.b16 %v620
      %v1169 = vunpack.c.l.b16 %v621
      %v1170 = vunpack.c.h.b16 %v621
      %v1171 = vunpack.c.l.b16 %v622
      %v1172 = vunpack.c.h.b16 %v622
      %v1173 = vunpack.c.l.b16 %v623
      %v1174 = vunpack.c.h.b16 %v623
      %v1175 = vunpack.c.l.b16 %v624
      %v1176 = vunpack.c.h.b16 %v624
      %v1177 = vunpack.c.l.b16 %v625
      %v1178 = vunpack.c.h.b16 %v625
      %v1179 = vunpack.c.l.b16 %v626
      %v1180 = vunpack.c.h.b16 %v626
      %v1181 = vunpack.c.l.b16 %v627
      %v1182 = vunpack.c.h.b16 %v627
      %v1183 = vunpack.c.l.b16 %v628
      %v1184 = vunpack.c.h.b16 %v628
      %v1185 = vunpack.c.l.b16 %v629
      %v1186 = vunpack.c.h.b16 %v629
      %v1187 = vunpack.c.l.b16 %v630
      %v1188 = vunpack.c.h.b16 %v630
      %v1189 = vunpack.c.l.b16 %v631
      %v1190 = vunpack.c.h.b16 %v631
      %v1191 = vunpack.c.l.b16 %v632
      %v1192 = vunpack.c.h.b16 %v632
      %v1193 = vunpack.c.l.b16 %v633
      %v1194 = vunpack.c.h.b16 %v633
      %v1195 = vunpack.c.l.b16 %v634
      %v1196 = vunpack.c.h.b16 %v634
      %v1197 = vunpack.c.l.b16 %v635
      %v1198 = vunpack.c.h.b16 %v635
      %v1199 = vunpack.c.l.b16 %v636
      %v1200 = vunpack.c.h.b16 %v636
      %v1201 = vunpack.c.l.b16 %v637
      %v1202 = vunpack.c.h.b16 %v637
      %v1203 = vunpack.c.l.b16 %v638
      %v1204 = vunpack.c.h.b16 %v638
      %v1205 = vunpack.c.l.b16 %v639
      %v1206 = vunpack.c.h.b16 %v639
      %v1207 = vunpack.c.l.b16 %v640
      %v1208 = vunpack.c.h.b16 %v640
      %v1209 = vunpack.c.l.b16 %v641
      %v1210 = vunpack.c.h.b16 %v641
      %v1211 = vunpack.c.l.b16 %v642
      %v1212 = vunpack.c.h.b16 %v642
      %v1213 = vunpack.c.l.b16 %v643
      %v1214 = vunpack.c.h.b16 %v643
      %v1215 = vunpack.c.l.b16 %v644
      %v1216 = vunpack.c.h.b16 %v644
      %v1217 = vunpack.c.l.b16 %v645
      %v1218 = vunpack.c.h.b16 %v645
      %v1219 = vunpack.c.l.b16 %v646
      %v1220 = vunpack.c.h.b16 %v646
      %v1221 = vunpack.c.l.b16 %v647
      %v1222 = vunpack.c.h.b16 %v647
      %v1223 = vunpack.c.l.b16 %v648
      %v1224 = vunpack.c.h.b16 %v648
      %v1225 = vunpack.c.l.b16 %v649
      %v1226 = vunpack.c.h.b16 %v649
      %v1227 = vunpack.c.l.b16 %v650
      %v1228 = vunpack.c.h.b16 %v650
      %v1229 = vunpack.c.l.b16 %v651
      %v1230 = vunpack.c.h.b16 %v651
      %v1231 = vunpack.c.l.b16 %v652
      %v1232 = vunpack.c.h.b16 %v652
      %v1233 = vunpack.c.l.b16 %v653
      %v1234 = vunpack.c.h.b16 %v653
      %v1235 = vunpack.c.l.b16 %v654
      %v1236 = vunpack.c.h.b16 %v654
      %v1237 = vunpack.c.l.b16 %v655
      %v1238 = vunpack.c.h.b16 %v655
      %v1239 = vunpack.c.l.b16 %v656
      %v1240 = vunpack.c.h.b16 %v656
      %v1241 = vunpack.c.l.b16 %v657
      %v1242 = vunpack.c.h.b16 %v657
      %v1243 = vunpack.c.l.b16 %v658
      %v1244 = vunpack.c.h.b16 %v658
      %v1245 = vunpack.c.l.b16 %v659
      %v1246 = vunpack.c.h.b16 %v659
      %v1247 = vunpack.c.l.b16 %v660
      %v1248 = vunpack.c.h.b16 %v660
      %v1249 = vunpack.c.l.b16 %v661
      %v1250 = vunpack.c.h.b16 %v661
      %v1251 = vunpack.c.l.b16 %v662
      %v1252 = vunpack.c.h.b16 %v662
      %v1253 = vunpack.c.l.b16 %v663
      %v1254 = vunpack.c.h.b16 %v663
      %v1255 = vunpack.c.l.b16 %v664
      %v1256 = vunpack.c.h.b16 %v664
      %v1257 = vunpack.c.l.b16 %v665
      %v1258 = vunpack.c.h.b16 %v665
      %v1259 = vunpack.c.l.b16 %v666
      %v1260 = vunpack.c.h.b16 %v666
      %v1261 = vunpack.c.l.b16 %v667
      %v1262 = vunpack.c.h.b16 %v667
      %v1263 = vunpack.c.l.b16 %v668
      %v1264 = vunpack.c.h.b16 %v668
      %v1265 = vunpack.c.l.b16 %v669
      %v1266 = vunpack.c.h.b16 %v669
      %v1267 = vunpack.c.l.b16 %v670
      %v1268 = vunpack.c.h.b16 %v670
      %v1269 = vunpack.c.l.b16 %v671
      %v1270 = vunpack.c.h.b16 %v671
      %v1271 = vunpack.c.l.b16 %v672
      %v1272 = vunpack.c.h.b16 %v672
      %v1273 = vunpack.c.l.b16 %v673
      %v1274 = vunpack.c.h.b16 %v673
      %v1275 = vunpack.c.l.b16 %v674
      %v1276 = vunpack.c.h.b16 %v674
      %v1277 = vunpack.c.l.b16 %v675
      %v1278 = vunpack.c.h.b16 %v675
      %v1279 = vunpack.c.l.b16 %v676
      %v1280 = vunpack.c.h.b16 %v676
      %v1281 = vunpack.c.l.b16 %v677
      %v1282 = vunpack.c.h.b16 %v677
      %v1283 = vunpack.c.l.b16 %v678
      %v1284 = vunpack.c.h.b16 %v678
      %v1285 = vunpack.c.l.b16 %v679
      %v1286 = vunpack.c.h.b16 %v679
      %v1287 = vunpack.c.l.b16 %v680
      %v1288 = vunpack.c.h.b16 %v680
      %v1289 = vunpack.c.l.b16 %v681
      %v1290 = vunpack.c.h.b16 %v681
      %v1291 = vunpack.c.l.b16 %v682
      %v1292 = vunpack.c.h.b16 %v682
      %v1293 = vunpack.c.l.b16 %v683
      %v1294 = vunpack.c.h.b16 %v683
      %v1295 = vunpack.c.l.b16 %v684
      %v1296 = vunpack.c.h.b16 %v684
      %v1297 = vunpack.c.l.b16 %v685
      %v1298 = vunpack.c.h.b16 %v685
      %v1299 = vunpack.c.l.b16 %v686
      %v1300 = vunpack.c.h.b16 %v686
      %v1301 = vunpack.c.l.b16 %v687
      %v1302 = vunpack.c.h.b16 %v687
      %v1303 = vunpack.c.l.b16 %v688
      %v1304 = vunpack.c.h.b16 %v688
      %v1305 = vunpack.c.l.b16 %v689
      %v1306 = vunpack.c.h.b16 %v689
      %v1307 = vunpack.c.l.b16 %v690
      %v1308 = vunpack.c.h.b16 %v690
      %v1309 = vunpack.c.l.b16 %v691
      %v1310 = vunpack.c.h.b16 %v691
      %v1311 = vunpack.c.l.b16 %v692
      %v1312 = vunpack.c.h.b16 %v692
      %v1313 = vunpack.c.l.b16 %v693
      %v1314 = vunpack.c.h.b16 %v693
      %v1315 = vunpack.c.l.b16 %v694
      %v1316 = vunpack.c.h.b16 %v694
      %v1317 = vunpack.c.l.b16 %v695
      %v1318 = vunpack.c.h.b16 %v695
      %v1319 = vunpack.c.l.b16 %v696
      %v1320 = vunpack.c.h.b16 %v696
      %v1321 = vunpack.c.l.b16 %v697
      %v1322 = vunpack.c.h.b16 %v697
      %v1323 = vunpack.c.l.b16 %v698
      %v1324 = vunpack.c.h.b16 %v698
      %v1325 = vunpack.c.l.b16 %v699
      %v1326 = vunpack.c.h.b16 %v699
      %v1327 = vunpack.c.l.b16 %v700
      %v1328 = vunpack.c.h.b16 %v700
      %v1329 = vunpack.c.l.b16 %v701
      %v1330 = vunpack.c.h.b16 %v701
      %v1331 = vunpack.c.l.b16 %v702
      %v1332 = vunpack.c.h.b16 %v702
      %v1333 = vunpack.c.l.b16 %v703
      %v1334 = vunpack.c.h.b16 %v703
      %v1335 = vunpack.c.l.b16 %v704
      %v1336 = vunpack.c.h.b16 %v704
      %v1337 = vunpack.c.l.b16 %v705
      %v1338 = vunpack.c.h.b16 %v705
      %v1339 = vunpack.c.l.b16 %v706
      %v1340 = vunpack.c.h.b16 %v706
      %v1341 = vunpack.c.l.b16 %v707
      %v1342 = vunpack.c.h.b16 %v707
      %v1343 = vunpack.c.l.b16 %v708
      %v1344 = vunpack.c.h.b16 %v708
      %v1345 = vunpack.c.l.b16 %v709
      %v1346 = vunpack.c.h.b16 %v709
      %v1347 = vunpack.c.l.b16 %v710
      %v1348 = vunpack.c.h.b16 %v710
      %v1349 = vunpack.c.l.b16 %v711
      %v1350 = vunpack.c.h.b16 %v711
      %v1351 = vunpack.c.l.b16 %v712
      %v1352 = vunpack.c.h.b16 %v712
      %v1353 = vunpack.c.l.b16 %v713
      %v1354 = vunpack.c.h.b16 %v713
      %v1355 = vunpack.c.l.b16 %v714
      %v1356 = vunpack.c.h.b16 %v714
      %v1357 = vunpack.c.l.b16 %v715
      %v1358 = vunpack.c.h.b16 %v715
      %v1359 = vunpack.c.l.b16 %v716
      %v1360 = vunpack.c.h.b16 %v716
      %v1361 = vunpack.c.l.b16 %v717
      %v1362 = vunpack.c.h.b16 %v717
      %v1363 = vunpack.c.l.b16 %v718
      %v1364 = vunpack.c.h.b16 %v718
      %v1365 = vunpack.c.l.b16 %v719
      %v1366 = vunpack.c.h.b16 %v719
      %v1367 = vunpack.c.l.b16 %v720
      %v1368 = vunpack.c.h.b16 %v720
      %v1369 = vunpack.c.l.b16 %v721
      %v1370 = vunpack.c.h.b16 %v721
      %v1371 = vunpack.c.l.b16 %v722
      %v1372 = vunpack.c.h.b16 %v722
      %v1373 = vunpack.c.l.b16 %v723
      %v1374 = vunpack.c.h.b16 %v723
      %v1375 = vunpack.c.l.b16 %v724
      %v1376 = vunpack.c.h.b16 %v724
      %v1377 = vunpack.c.l.b16 %v725
      %v1378 = vunpack.c.h.b16 %v725
      %v1379 = vunpack.c.l.b16 %v726
      %v1380 = vunpack.c.h.b16 %v726
      %v1381 = vunpack.c.l.b16 %v727
      %v1382 = vunpack.c.h.b16 %v727
      %v1383 = vunpack.c.l.b16 %v728
      %v1384 = vunpack.c.h.b16 %v728
      %v1385 = vunpack.c.l.b16 %v729
      %v1386 = vunpack.c.h.b16 %v729
      %v1387 = vunpack.c.l.b16 %v730
      %v1388 = vunpack.c.h.b16 %v730
      %v1389 = vunpack.c.l.b16 %v731
      %v1390 = vunpack.c.h.b16 %v731
      %v1391 = vunpack.c.l.b16 %v732
      %v1392 = vunpack.c.h.b16 %v732
      %v1393 = vunpack.c.l.b16 %v733
      %v1394 = vunpack.c.h.b16 %v733
      %v1395 = vunpack.c.l.b16 %v734
      %v1396 = vunpack.c.h.b16 %v734
      %v1397 = vunpack.c.l.b16 %v735
      %v1398 = vunpack.c.h.b16 %v735
      %v1399 = vunpack.c.l.b16 %v736
      %v1400 = vunpack.c.h.b16 %v736
      %v1401 = vunpack.c.l.b16 %v737
      %v1402 = vunpack.c.h.b16 %v737
      %v1403 = vunpack.c.l.b16 %v738
      %v1404 = vunpack.c.h.b16 %v738
      %v1405 = vunpack.c.l.b16 %v739
      %v1406 = vunpack.c.h.b16 %v739
      %v1407 = vunpack.c.l.b16 %v740
      %v1408 = vunpack.c.h.b16 %v740
      %v1409 = vunpack.c.l.b16 %v741
      %v1410 = vunpack.c.h.b16 %v741
      %v1411 = vunpack.c.l.b16 %v742
      %v1412 = vunpack.c.h.b16 %v742
      %v1413 = vunpack.c.l.b16 %v743
      %v1414 = vunpack.c.h.b16 %v743
      %v1415 = vunpack.c.l.b16 %v744
      %v1416 = vunpack.c.h.b16 %v744
      %v1417 = vunpack.c.l.b16 %v745
      %v1418 = vunpack.c.h.b16 %v745
      %v1419 = vunpack.c.l.b16 %v746
      %v1420 = vunpack.c.h.b16 %v746
      %v1421 = vunpack.c.l.b16 %v747
      %v1422 = vunpack.c.h.b16 %v747
      %v1423 = vunpack.c.l.b16 %v748
      %v1424 = vunpack.c.h.b16 %v748
      %v1425 = vunpack.c.l.b16 %v749
      %v1426 = vunpack.c.h.b16 %v749
      %v1427 = vunpack.c.l.b16 %v750
      %v1428 = vunpack.c.h.b16 %v750
      %v1429 = vunpack.c.l.b16 %v751
      %v1430 = vunpack.c.h.b16 %v751
      %v1431 = vunpack.c.l.b16 %v752
      %v1432 = vunpack.c.h.b16 %v752
      %v1433 = vunpack.c.l.b16 %v753
      %v1434 = vunpack.c.h.b16 %v753
      %v1435 = vunpack.c.l.b16 %v754
      %v1436 = vunpack.c.h.b16 %v754
      %v1437 = vunpack.c.l.b16 %v755
      %v1438 = vunpack.c.h.b16 %v755
      %v1439 = vunpack.c.l.b16 %v756
      %v1440 = vunpack.c.h.b16 %v756
      %v1441 = vunpack.c.l.b16 %v757
      %v1442 = vunpack.c.h.b16 %v757
      %v1443 = vunpack.c.l.b16 %v758
      %v1444 = vunpack.c.h.b16 %v758
      %v1445 = vunpack.c.l.b16 %v759
      %v1446 = vunpack.c.h.b16 %v759
      %v1447 = vunpack.c.l.b16 %v760
      %v1448 = vunpack.c.h.b16 %v760
      %v1449 = vunpack.c.l.b16 %v761
      %v1450 = vunpack.c.h.b16 %v761
      %v1451 = vunpack.c.l.b16 %v762
      %v1452 = vunpack.c.h.b16 %v762
      %v1453 = vunpack.c.l.b16 %v763
      %v1454 = vunpack.c.h.b16 %v763
      %v1455 = vunpack.c.l.b16 %v764
      %v1456 = vunpack.c.h.b16 %v764
      %v1457 = vunpack.c.l.b16 %v765
      %v1458 = vunpack.c.h.b16 %v765
      %v1459 = vunpack.c.l.b16 %v766
      %v1460 = vunpack.c.h.b16 %v766
      %v1461 = vunpack.c.l.b16 %v767
      %v1462 = vunpack.c.h.b16 %v767
      %v1463 = vunpack.c.l.b16 %v768
      %v1464 = vunpack.c.h.b16 %v768
      %v1465 = vunpack.c.l.b16 %v769
      %v1466 = vunpack.c.h.b16 %v769
      %v1467 = vunpack.c.l.b16 %v770
      %v1468 = vunpack.c.h.b16 %v770
      %v1469 = vunpack.c.l.b16 %v771
      %v1470 = vunpack.c.h.b16 %v771
      %v1471 = vunpack.c.l.b16 %v772
      %v1472 = vunpack.c.h.b16 %v772
      %v1473 = vunpack.c.l.b16 %v773
      %v1474 = vunpack.c.h.b16 %v773
      %v1475 = vunpack.c.l.b16 %v774
      %v1476 = vunpack.c.h.b16 %v774
      %v1477 = vunpack.c.l.b16 %v775
      %v1478 = vunpack.c.h.b16 %v775
      %v1479 = vunpack.c.l.b16 %v776
      %v1480 = vunpack.c.h.b16 %v776
      %v1481 = vunpack.c.l.b16 %v777
      %v1482 = vunpack.c.h.b16 %v777
      %v1483 = vunpack.c.l.b16 %v778
      %v1484 = vunpack.c.h.b16 %v778
      %v1485 = vunpack.c.l.b16 %v779
      %v1486 = vunpack.c.h.b16 %v779
      %v1487 = vunpack.c.l.b16 %v780
      %v1488 = vunpack.c.h.b16 %v780
      %v1489 = vunpack.c.l.b16 %v781
      %v1490 = vunpack.c.h.b16 %v781
      %v1491 = vunpack.c.l.b16 %v782
      %v1492 = vunpack.c.h.b16 %v782
      %v1493 = vunpack.c.l.b16 %v783
      %v1494 = vunpack.c.h.b16 %v783
      %v1495 = vunpack.c.l.b16 %v784
      %v1496 = vunpack.c.h.b16 %v784
      %v1497 = vunpack.c.l.b16 %v785
      %v1498 = vunpack.c.h.b16 %v785
      %v1499 = vunpack.c.l.b16 %v786
      %v1500 = vunpack.c.h.b16 %v786
      %v1501 = vunpack.c.l.b16 %v787
      %v1502 = vunpack.c.h.b16 %v787
      %v1503 = vunpack.c.l.b16 %v788
      %v1504 = vunpack.c.h.b16 %v788
      %v1505 = vunpack.c.l.b16 %v789
      %v1506 = vunpack.c.h.b16 %v789
      %v1507 = vunpack.c.l.b16 %v790
      %v1508 = vunpack.c.h.b16 %v790
      %v1509 = vunpack.c.l.b16 %v791
      %v1510 = vunpack.c.h.b16 %v791
      %v1511 = vunpack.c.l.b16 %v792
      %v1512 = vunpack.c.h.b16 %v792
      %v1513 = vunpack.c.l.b16 %v793
      %v1514 = vunpack.c.h.b16 %v793
      %v1515 = vunpack.c.l.b16 %v794
      %v1516 = vunpack.c.h.b16 %v794
      %v1517 = vunpack.c.l.b16 %v795
      %v1518 = vunpack.c.h.b16 %v795
      %v1519 = vunpack.c.l.b16 %v796
      %v1520 = vunpack.c.h.b16 %v796
      %v1521 = vunpack.c.l.b16 %v797
      %v1522 = vunpack.c.h.b16 %v797
      %v1523 = vunpack.c.l.b16 %v798
      %v1524 = vunpack.c.h.b16 %v798
      %v1525 = vunpack.c.l.b16 %v799
      %v1526 = vunpack.c.h.b16 %v799
      %v1527 = vunpack.c.l.b16 %v800
      %v1528 = vunpack.c.h.b16 %v800
      %v1529 = vunpack.c.l.b16 %v801
      %v1530 = vunpack.c.h.b16 %v801
      %v1531 = vunpack.c.l.b16 %v802
      %v1532 = vunpack.c.h.b16 %v802
      %v1533 = vunpack.c.l.b16 %v803
      %v1534 = vunpack.c.h.b16 %v803
      %v1535 = vunpack.c.l.b16 %v804
      %v1536 = vunpack.c.h.b16 %v804
      %v1537 = vunpack.c.l.b16 %v805
      %v1538 = vunpack.c.h.b16 %v805
      %v1539 = vunpack.c.l.b16 %v806
      %v1540 = vunpack.c.h.b16 %v806
      %v1541 = vunpack.c.l.b16 %v807
      %v1542 = vunpack.c.h.b16 %v807
      %v1543 = vunpack.c.l.b16 %v808
      %v1544 = vunpack.c.h.b16 %v808
      %v1545 = vunpack.c.l.b16 %v809
      %v1546 = vunpack.c.h.b16 %v809
      %v1547 = vunpack.c.l.b16 %v810
      %v1548 = vunpack.c.h.b16 %v810
      %v1549 = vunpack.c.l.b16 %v811
      %v1550 = vunpack.c.h.b16 %v811
      %v1551 = vunpack.c.l.b16 %v812
      %v1552 = vunpack.c.h.b16 %v812
      %v1553 = vunpack.c.l.b16 %v813
      %v1554 = vunpack.c.h.b16 %v813
      %v1555 = vunpack.c.l.b16 %v814
      %v1556 = vunpack.c.h.b16 %v814
      %v1557 = vunpack.c.l.b16 %v815
      %v1558 = vunpack.c.h.b16 %v815
      %v1559 = vunpack.c.l.b16 %v816
      %v1560 = vunpack.c.h.b16 %v816
      %v1561 = vunpack.c.l.b16 %v817
      %v1562 = vunpack.c.h.b16 %v817
      %v1563 = vunpack.c.l.b16 %v818
      %v1564 = vunpack.c.h.b16 %v818
      %v1565 = vunpack.c.l.b16 %v819
      %v1566 = vunpack.c.h.b16 %v819
      %v1567 = vunpack.c.l.b16 %v820
      %v1568 = vunpack.c.h.b16 %v820
      %v1569 = vunpack.c.l.b16 %v821
      %v1570 = vunpack.c.h.b16 %v821
      %v1571 = vunpack.c.l.b16 %v822
      %v1572 = vunpack.c.h.b16 %v822
      %v1573 = vunpack.c.l.b16 %v823
      %v1574 = vunpack.c.h.b16 %v823
      %v1575 = vunpack.c.l.b16 %v824
      %v1576 = vunpack.c.h.b16 %v824
      %v1577 = vunpack.c.l.b16 %v825
      %v1578 = vunpack.c.h.b16 %v825
      %v1579 = vunpack.c.l.b16 %v826
      %v1580 = vunpack.c.h.b16 %v826
      %v1581 = vunpack.c.l.b16 %v827
      %v1582 = vunpack.c.h.b16 %v827
      %v1583 = vunpack.c.l.b16 %v828
      %v1584 = vunpack.c.h.b16 %v828
      %v1585 = vunpack.c.l.b16 %v829
      %v1586 = vunpack.c.h.b16 %v829
      %v1587 = vunpack.c.l.b16 %v830
      %v1588 = vunpack.c.h.b16 %v830
      %v1589 = vunpack.c.l.b16 %v831
      %v1590 = vunpack.c.h.b16 %v831
      %v1591 = vunpack.c.l.b16 %v832
      %v1592 = vunpack.c.h.b16 %v832
      %v1593 = vunpack.c.l.b16 %v833
      %v1594 = vunpack.c.h.b16 %v833
      %v1595 = vunpack.c.l.b16 %v834
      %v1596 = vunpack.c.h.b16 %v834
      %v1597 = vunpack.c.l.b16 %v835
      %v1598 = vunpack.c.h.b16 %v835
      %v1599 = vunpack.c.l.b16 %v836
      %v1600 = vunpack.c.h.b16 %v836
      %v1601 = vunpack.c.l.b16 %v837
      %v1602 = vunpack.c.h.b16 %v837
      %v1603 = vunpack.c.l.b16 %v838
      %v1604 = vunpack.c.h.b16 %v838
      %v1605 = vunpack.c.l.b16 %v839
      %v1606 = vunpack.c.h.b16 %v839
      %v1607 = vunpack.c.l.b16 %v840
      %v1608 = vunpack.c.h.b16 %v840
      %v1609 = vpack.c.b16 %v1105, %v1097
      %v1610 = vpack.c.b16 %v1106, %v1098
      %v1611 = vpack.c.b16 %v1107, %v1099
      %v1612 = vpack.c.b16 %v1108, %v1100
      %v1613 = vpack.c.b16 %v1109, %v1101
      %v1614 = vpack.c.b16 %v1110, %v1102
      %v1615 = vpack.c.b16 %v1111, %v1103
      %v1616 = vpack.c.b16 %v1112, %v1104
      %v1617 = vpack.c.b16 %v1121, %v1113
      %v1618 = vpack.c.b16 %v1122, %v1114
      %v1619 = vpack.c.b16 %v1123, %v1115
      %v1620 = vpack.c.b16 %v1124, %v1116
      %v1621 = vpack.c.b16 %v1125, %v1117
      %v1622 = vpack.c.b16 %v1126, %v1118
      %v1623 = vpack.c.b16 %v1127, %v1119
      %v1624 = vpack.c.b16 %v1128, %v1120
      %v1625 = vpack.c.b16 %v1137, %v1129
      %v1626 = vpack.c.b16 %v1138, %v1130
      %v1627 = vpack.c.b16 %v1139, %v1131
      %v1628 = vpack.c.b16 %v1140, %v1132
      %v1629 = vpack.c.b16 %v1141, %v1133
      %v1630 = vpack.c.b16 %v1142, %v1134
      %v1631 = vpack.c.b16 %v1143, %v1135
      %v1632 = vpack.c.b16 %v1144, %v1136
      %v1633 = vpack.c.b16 %v1153, %v1145
      %v1634 = vpack.c.b16 %v1154, %v1146
      %v1635 = vpack.c.b16 %v1155, %v1147
      %v1636 = vpack.c.b16 %v1156, %v1148
      %v1637 = vpack.c.b16 %v1157, %v1149
      %v1638 = vpack.c.b16 %v1158, %v1150
      %v1639 = vpack.c.b16 %v1159, %v1151
      %v1640 = vpack.c.b16 %v1160, %v1152
      %v1641 = vpack.c.b16 %v1169, %v1161
      %v1642 = vpack.c.b16 %v1170, %v1162
      %v1643 = vpack.c.b16 %v1171, %v1163
      %v1644 = vpack.c.b16 %v1172, %v1164
      %v1645 = vpack.c.b16 %v1173, %v1165
      %v1646 = vpack.c.b16 %v1174, %v1166
      %v1647 = vpack.c.b16 %v1175, %v1167
      %v1648 = vpack.c.b16 %v1176, %v1168
      %v1649 = vpack.c.b16 %v1185, %v1177
      %v1650 = vpack.c.b16 %v1186, %v1178
      %v1651 = vpack.c.b16 %v1187, %v1179
      %v1652 = vpack.c.b16 %v1188, %v1180
      %v1653 = vpack.c.b16 %v1189, %v1181
      %v1654 = vpack.c.b16 %v1190, %v1182
      %v1655 = vpack.c.b16 %v1191, %v1183
      %v1656 = vpack.c.b16 %v1192, %v1184
      %v1657 = vpack.c.b16 %v1201, %v1193
      %v1658 = vpack.c.b16 %v1202, %v1194
      %v1659 = vpack.c.b16 %v1203, %v1195
      %v1660 = vpack.c.b16 %v1204, %v1196
      %v1661 = vpack.c.b16 %v1205, %v1197
      %v1662 = vpack.c.b16 %v1206, %v1198
      %v1663 = vpack.c.b16 %v1207, %v1199
      %v1664 = vpack.c.b16 %v1208, %v1200
      %v1665 = vpack.c.b16 %v1217, %v1209
      %v1666 = vpack.c.b16 %v1218, %v1210
      %v1667 = vpack.c.b16 %v1219, %v1211
      %v1668 = vpack.c.b16 %v1220, %v1212
      %v1669 = vpack.c.b16 %v1221, %v1213
      %v1670 = vpack.c.b16 %v1222, %v1214
      %v1671 = vpack.c.b16 %v1223, %v1215
      %v1672 = vpack.c.b16 %v1224, %v1216
      %v1673 = vpack.c.b16 %v1233, %v1225
      %v1674 = vpack.c.b16 %v1234, %v1226
      %v1675 = vpack.c.b16 %v1235, %v1227
      %v1676 = vpack.c.b16 %v1236, %v1228
      %v1677 = vpack.c.b16 %v1237, %v1229
      %v1678 = vpack.c.b16 %v1238, %v1230
      %v1679 = vpack.c.b16 %v1239, %v1231
      %v1680 = vpack.c.b16 %v1240, %v1232
      %v1681 = vpack.c.b16 %v1249, %v1241
      %v1682 = vpack.c.b16 %v1250, %v1242
      %v1683 = vpack.c.b16 %v1251, %v1243
      %v1684 = vpack.c.b16 %v1252, %v1244
      %v1685 = vpack.c.b16 %v1253, %v1245
      %v1686 = vpack.c.b16 %v1254, %v1246
      %v1687 = vpack.c.b16 %v1255, %v1247
      %v1688 = vpack.c.b16 %v1256, %v1248
      %v1689 = vpack.c.b16 %v1265, %v1257
      %v1690 = vpack.c.b16 %v1266, %v1258
      %v1691 = vpack.c.b16 %v1267, %v1259
      %v1692 = vpack.c.b16 %v1268, %v1260
      %v1693 = vpack.c.b16 %v1269, %v1261
      %v1694 = vpack.c.b16 %v1270, %v1262
      %v1695 = vpack.c.b16 %v1271, %v1263
      %v1696 = vpack.c.b16 %v1272, %v1264
      %v1697 = vpack.c.b16 %v1281, %v1273
      %v1698 = vpack.c.b16 %v1282, %v1274
      %v1699 = vpack.c.b16 %v1283, %v1275
      %v1700 = vpack.c.b16 %v1284, %v1276
      %v1701 = vpack.c.b16 %v1285, %v1277
      %v1702 = vpack.c.b16 %v1286, %v1278
      %v1703 = vpack.c.b16 %v1287, %v1279
      %v1704 = vpack.c.b16 %v1288, %v1280
      %v1705 = vpack.c.b16 %v1297, %v1289
      %v1706 = vpack.c.b16 %v1298, %v1290
      %v1707 = vpack.c.b16 %v1299, %v1291
      %v1708 = vpack.c.b16 %v1300, %v1292
      %v1709 = vpack.c.b16 %v1301, %v1293
      %v1710 = vpack.c.b16 %v1302, %v1294
      %v1711 = vpack.c.b16 %v1303, %v1295
      %v1712 = vpack.c.b16 %v1304, %v1296
      %v1713 = vpack.c.b16 %v1313, %v1305
      %v1714 = vpack.c.b16 %v1314, %v1306
      %v1715 = vpack.c.b16 %v1315, %v1307
      %v1716 = vpack.c.b16 %v1316, %v1308
      %v1717 = vpack.c.b16 %v1317, %v1309
      %v1718 = vpack.c.b16 %v1318, %v1310
      %v1719 = vpack.c.b16 %v1319, %v1311
      %v1720 = vpack.c.b16 %v1320, %v1312
      %v1721 = vpack.c.b16 %v1329, %v1321
      %v1722 = vpack.c.b16 %v1330, %v1322
      %v1723 = vpack.c.b16 %v1331, %v1323
      %v1724 = vpack.c.b16 %v1332, %v1324
      %v1725 = vpack.c.b16 %v1333, %v1325
      %v1726 = vpack.c.b16 %v1334, %v1326
      %v1727 = vpack.c.b16 %v1335, %v1327
      %v1728 = vpack.c.b16 %v1336, %v1328
      %v1729 = vpack.c.b16 %v1345, %v1337
      %v1730 = vpack.c.b16 %v1346, %v1338
      %v1731 = vpack.c.b16 %v1347, %v1339
      %v1732 = vpack.c.b16 %v1348, %v1340
      %v1733 = vpack.c.b16 %v1349, %v1341
      %v1734 = vpack.c.b16 %v1350, %v1342
      %v1735 = vpack.c.b16 %v1351, %v1343
      %v1736 = vpack.c.b16 %v1352, %v1344
      %v1737 = vpack.c.b16 %v1361, %v1353
      %v1738 = vpack.c.b16 %v1362, %v1354
      %v1739 = vpack.c.b16 %v1363, %v1355
      %v1740 = vpack.c.b16 %v1364, %v1356
      %v1741 = vpack.c.b16 %v1365, %v1357
      %v1742 = vpack.c.b16 %v1366, %v1358
      %v1743 = vpack.c.b16 %v1367, %v1359
      %v1744 = vpack.c.b16 %v1368, %v1360
      %v1745 = vpack.c.b16 %v1377, %v1369
      %v1746 = vpack.c.b16 %v1378, %v1370
      %v1747 = vpack.c.b16 %v1379, %v1371
      %v1748 = vpack.c.b16 %v1380, %v1372
      %v1749 = vpack.c.b16 %v1381, %v1373
      %v1750 = vpack.c.b16 %v1382, %v1374
      %v1751 = vpack.c.b16 %v1383, %v1375
      %v1752 = vpack.c.b16 %v1384, %v1376
      %v1753 = vpack.c.b16 %v1393, %v1385
      %v1754 = vpack.c.b16 %v1394, %v1386
      %v1755 = vpack.c.b16 %v1395, %v1387
      %v1756 = vpack.c.b16 %v1396, %v1388
      %v1757 = vpack.c.b16 %v1397, %v1389
      %v1758 = vpack.c.b16 %v1398, %v1390
      %v1759 = vpack.c.b16 %v1399, %v1391
      %v1760 = vpack.c.b16 %v1400, %v1392
      %v1761 = vpack.c.b16 %v1409, %v1401
      %v1762 = vpack.c.b16 %v1410, %v1402
      %v1763 = vpack.c.b16 %v1411, %v1403
      %v1764 = vpack.c.b16 %v1412, %v1404
      %v1765 = vpack.c.b16 %v1413, %v1405
      %v1766 = vpack.c.b16 %v1414, %v1406
      %v1767 = vpack.c.b16 %v1415, %v1407
      %v1768 = vpack.c.b16 %v1416, %v1408
      %v1769 = vpack.c.b16 %v1425, %v1417
      %v1770 = vpack.c.b16 %v1426, %v1418
      %v1771 = vpack.c.b16 %v1427, %v1419
      %v1772 = vpack.c.b16 %v1428, %v1420
      %v1773 = vpack.c.b16 %v1429, %v1421
      %v1774 = vpack.c.b16 %v1430, %v1422
      %v1775 = vpack.c.b16 %v1431, %v1423
      %v1776 = vpack.c.b16 %v1432, %v1424
      %v1777 = vpack.c.b16 %v1441, %v1433
      %v1778 = vpack.c.b16 %v1442, %v1434
      %v1779 = vpack.c.b16 %v1443, %v1435
      %v1780 = vpack.c.b16 %v1444, %v1436
      %v1781 = vpack.c.b16 %v1445, %v1437
      %v1782 = vpack.c.b16 %v1446, %v1438
      %v1783 = vpack.c.b16 %v1447, %v1439
      %v1784 = vpack.c.b16 %v1448, %v1440
      %v1785 = vpack.c.b16 %v1457, %v1449
      %v1786 = vpack.c.b16 %v1458, %v1450
      %v1787 = vpack.c.b16 %v1459, %v1451
      %v1788 = vpack.c.b16 %v1460, %v1452
      %v1789 = vpack.c.b16 %v1461, %v1453
      %v1790 = vpack.c.b16 %v1462, %v1454
      %v1791 = vpack.c.b16 %v1463, %v1455
      %v1792 = vpack.c.b16 %v1464, %v1456
      %v1793 = vpack.c.b16 %v1473, %v1465
      %v1794 = vpack.c.b16 %v1474, %v1466
      %v1795 = vpack.c.b16 %v1475, %v1467
      %v1796 = vpack.c.b16 %v1476, %v1468
      %v1797 = vpack.c.b16 %v1477, %v1469
      %v1798 = vpack.c.b16 %v1478, %v1470
      %v1799 = vpack.c.b16 %v1479, %v1471
      %v1800 = vpack.c.b16 %v1480, %v1472
      %v1801 = vpack.c.b16 %v1489, %v1481
      %v1802 = vpack.c.b16 %v1490, %v1482
      %v1803 = vpack.c.b16 %v1491, %v1483
      %v1804 = vpack.c.b16 %v1492, %v1484
      %v1805 = vpack.c.b16 %v1493, %v1485
      %v1806 = vpack.c.b16 %v1494, %v1486
      %v1807 = vpack.c.b16 %v1495, %v1487
      %v1808 = vpack.c.b16 %v1496, %v1488
      %v1809 = vpack.c.b16 %v1505, %v1497
      %v1810 = vpack.c.b16 %v1506, %v1498
      %v1811 = vpack.c.b16 %v1507, %v1499
      %v1812 = vpack.c.b16 %v1508, %v1500
      %v1813 = vpack.c.b16 %v1509, %v1501
      %v1814 = vpack.c.b16 %v1510, %v1502
      %v1815 = vpack.c.b16 %v1511, %v1503
      %v1816 = vpack.c.b16 %v1512, %v1504
      %v1817 = vpack.c.b16 %v1521, %v1513
      %v1818 = vpack.c.b16 %v1522, %v1514
      %v1819 = vpack.c.b16 %v1523, %v1515
      %v1820 = vpack.c.b16 %v1524, %v1516
      %v1821 = vpack.c.b16 %v1525, %v1517
      %v1822 = vpack.c.b16 %v1526, %v1518
      %v1823 = vpack.c.b16 %v1527, %v1519
      %v1824 = vpack.c.b16 %v1528, %v1520
      %v1825 = vpack.c.b16 %v1537, %v1529
      %v1826 = vpack.c.b16 %v1538, %v1530
      %v1827 = vpack.c.b16 %v1539, %v1531
      %v1828 = vpack.c.b16 %v1540, %v1532
      %v1829 = vpack.c.b16 %v1541, %v1533
      %v1830 = vpack.c.b16 %v1542, %v1534
      %v1831 = vpack.c.b16 %v1543, %v1535
      %v1832 = vpack.c.b16 %v1544, %v1536
      %v1833 = vpack.c.b16 %v1553, %v1545
      %v1834 = vpack.c.b16 %v1554, %v1546
      %v1835 = vpack.c.b16 %v1555, %v1547
      %v1836 = vpack.c.b16 %v1556, %v1548
      %v1837 = vpack.c.b16 %v1557, %v1549
      %v1838 = vpack.c.b16 %v1558, %v1550
      %v1839 = vpack.c.b16 %v1559, %v1551
      %v1840 = vpack.c.b16 %v1560, %v1552
      %v1841 = vpack.c.b16 %v1569, %v1561
      %v1842 = vpack.c.b16 %v1570, %v1562
      %v1843 = vpack.c.b16 %v1571, %v1563
      %v1844 = vpack.c.b16 %v1572, %v1564
      %v1845 = vpack.c.b16 %v1573, %v1565
      %v1846 = vpack.c.b16 %v1574, %v1566
      %v1847 = vpack.c.b16 %v1575, %v1567
      %v1848 = vpack.c.b16 %v1576, %v1568
      %v1849 = vpack.c.b16 %v1585, %v1577
      %v1850 = vpack.c.b16 %v1586, %v1578
      %v1851 = vpack.c.b16 %v1587, %v1579
      %v1852 = vpack.c.b16 %v1588, %v1580
      %v1853 = vpack.c.b16 %v1589, %v1581
      %v1854 = vpack.c.b16 %v1590, %v1582
      %v1855 = vpack.c.b16 %v1591, %v1583
      %v1856 = vpack.c.b16 %v1592, %v1584
      %v1857 = vpack.c.b16 %v1601, %v1593
      %v1858 = vpack.c.b16 %v1602, %v1594
      %v1859 = vpack.c.b16 %v1603, %v1595
      %v1860 = vpack.c.b16 %v1604, %v1596
      %v1861 = vpack.c.b16 %v1605, %v1597
      %v1862 = vpack.c.b16 %v1606, %v1598
      %v1863 = vpack.c.b16 %v1607, %v1599
      %v1864 = vpack.c.b16 %v1608, %v1600
      %2121 = vmatpush.bf16.msra.mxu0 %v471
      %2122 = vmatpush.bf16.msra.mxu0 %v469
      %2123 = vmatpush.bf16.msra.mxu0 %v467
      %2124 = vmatpush.bf16.msra.mxu0 %v465
      %2125 = vmatpush.bf16.msra.mxu0 %v463
      %2126 = vmatpush.bf16.msra.mxu0 %v461
      %2127 = vmatpush.bf16.msra.mxu0 %v459
      %2128 = vmatpush.bf16.msra.mxu0 %v457
      %2129 = vmatmul.bf16.gmra.mxu0 %v1609
      %v2130 = vpop.f32.mrf.mxu0
      %v2131 = vadd.f32 0.0, %v2130
      %v2132 = vpop.f32.mrf.mxu0
      %v2133 = vadd.f32 0.0, %v2132
      %2134 = vmatmul.bf16.gmra.mxu0 %v1617
      %v2135 = vpop.f32.mrf.mxu0
      %v2136 = vadd.f32 0.0, %v2135
      %v2137 = vpop.f32.mrf.mxu0
      %v2138 = vadd.f32 0.0, %v2137
      %2139 = vmatmul.bf16.gmra.mxu0 %v1625
      %v2140 = vpop.f32.mrf.mxu0
      %v2141 = vadd.f32 0.0, %v2140
      %v2142 = vpop.f32.mrf.mxu0
      %v2143 = vadd.f32 0.0, %v2142
      %2144 = vmatmul.bf16.gmra.mxu0 %v1633
      %v2145 = vpop.f32.mrf.mxu0
      %v2146 = vadd.f32 0.0, %v2145
      %v2147 = vpop.f32.mrf.mxu0
      %v2148 = vadd.f32 0.0, %v2147
      %2149 = vmatmul.bf16.gmra.mxu0 %v1641
      %v2150 = vpop.f32.mrf.mxu0
      %v2151 = vadd.f32 0.0, %v2150
      %v2152 = vpop.f32.mrf.mxu0
      %v2153 = vadd.f32 0.0, %v2152
      %2154 = vmatmul.bf16.gmra.mxu0 %v1649
      %v2155 = vpop.f32.mrf.mxu0
      %v2156 = vadd.f32 0.0, %v2155
      %v2157 = vpop.f32.mrf.mxu0
      %v2158 = vadd.f32 0.0, %v2157
      %2159 = vmatmul.bf16.gmra.mxu0 %v1657
      %v2160 = vpop.f32.mrf.mxu0
      %v2161 = vadd.f32 0.0, %v2160
      %v2162 = vpop.f32.mrf.mxu0
      %v2163 = vadd.f32 0.0, %v2162
      %2164 = vmatmul.bf16.gmra.mxu0 %v1665
      %v2165 = vpop.f32.mrf.mxu0
      %v2166 = vadd.f32 0.0, %v2165
      %v2167 = vpop.f32.mrf.mxu0
      %v2168 = vadd.f32 0.0, %v2167
      %2169 = vmatmul.bf16.gmra.mxu0 %v1673
      %v2170 = vpop.f32.mrf.mxu0
      %v2171 = vadd.f32 0.0, %v2170
      %v2172 = vpop.f32.mrf.mxu0
      %v2173 = vadd.f32 0.0, %v2172
      %2174 = vmatmul.bf16.gmra.mxu0 %v1681
      %v2175 = vpop.f32.mrf.mxu0
      %v2176 = vadd.f32 0.0, %v2175
      %v2177 = vpop.f32.mrf.mxu0
      %v2178 = vadd.f32 0.0, %v2177
      %2179 = vmatmul.bf16.gmra.mxu0 %v1689
      %v2180 = vpop.f32.mrf.mxu0
      %v2181 = vadd.f32 0.0, %v2180
      %v2182 = vpop.f32.mrf.mxu0
      %v2183 = vadd.f32 0.0, %v2182
      %2184 = vmatmul.bf16.gmra.mxu0 %v1697
      %v2185 = vpop.f32.mrf.mxu0
      %v2186 = vadd.f32 0.0, %v2185
      %v2187 = vpop.f32.mrf.mxu0
      %v2188 = vadd.f32 0.0, %v2187
      %2189 = vmatmul.bf16.gmra.mxu0 %v1705
      %v2190 = vpop.f32.mrf.mxu0
      %v2191 = vadd.f32 0.0, %v2190
      %v2192 = vpop.f32.mrf.mxu0
      %v2193 = vadd.f32 0.0, %v2192
      %2194 = vmatmul.bf16.gmra.mxu0 %v1713
      %v2195 = vpop.f32.mrf.mxu0
      %v2196 = vadd.f32 0.0, %v2195
      %v2197 = vpop.f32.mrf.mxu0
      %v2198 = vadd.f32 0.0, %v2197
      %2199 = vmatmul.bf16.gmra.mxu0 %v1721
      %v2200 = vpop.f32.mrf.mxu0
      %v2201 = vadd.f32 0.0, %v2200
      %v2202 = vpop.f32.mrf.mxu0
      %v2203 = vadd.f32 0.0, %v2202
      %2204 = vmatmul.bf16.gmra.mxu0 %v1729
      %v2205 = vpop.f32.mrf.mxu0
      %v2206 = vadd.f32 0.0, %v2205
      %v2207 = vpop.f32.mrf.mxu0
      %v2208 = vadd.f32 0.0, %v2207
      %2209 = vmatmul.bf16.gmra.mxu0 %v1737
      %v2210 = vpop.f32.mrf.mxu0
      %v2211 = vadd.f32 0.0, %v2210
      %v2212 = vpop.f32.mrf.mxu0
      %v2213 = vadd.f32 0.0, %v2212
      %2214 = vmatmul.bf16.gmra.mxu0 %v1745
      %v2215 = vpop.f32.mrf.mxu0
      %v2216 = vadd.f32 0.0, %v2215
      %v2217 = vpop.f32.mrf.mxu0
      %v2218 = vadd.f32 0.0, %v2217
      %2219 = vmatmul.bf16.gmra.mxu0 %v1753
      %v2220 = vpop.f32.mrf.mxu0
      %v2221 = vadd.f32 0.0, %v2220
      %v2222 = vpop.f32.mrf.mxu0
      %v2223 = vadd.f32 0.0, %v2222
      %2224 = vmatmul.bf16.gmra.mxu0 %v1761
      %v2225 = vpop.f32.mrf.mxu0
      %v2226 = vadd.f32 0.0, %v2225
      %v2227 = vpop.f32.mrf.mxu0
      %v2228 = vadd.f32 0.0, %v2227
      %2229 = vmatmul.bf16.gmra.mxu0 %v1769
      %v2230 = vpop.f32.mrf.mxu0
      %v2231 = vadd.f32 0.0, %v2230
      %v2232 = vpop.f32.mrf.mxu0
      %v2233 = vadd.f32 0.0, %v2232
      %2234 = vmatmul.bf16.gmra.mxu0 %v1777
      %v2235 = vpop.f32.mrf.mxu0
      %v2236 = vadd.f32 0.0, %v2235
      %v2237 = vpop.f32.mrf.mxu0
      %v2238 = vadd.f32 0.0, %v2237
      %2239 = vmatmul.bf16.gmra.mxu0 %v1785
      %v2240 = vpop.f32.mrf.mxu0
      %v2241 = vadd.f32 0.0, %v2240
      %v2242 = vpop.f32.mrf.mxu0
      %v2243 = vadd.f32 0.0, %v2242
      %2244 = vmatmul.bf16.gmra.mxu0 %v1793
      %v2245 = vpop.f32.mrf.mxu0
      %v2246 = vadd.f32 0.0, %v2245
      %v2247 = vpop.f32.mrf.mxu0
      %v2248 = vadd.f32 0.0, %v2247
      %2249 = vmatmul.bf16.gmra.mxu0 %v1801
      %v2250 = vpop.f32.mrf.mxu0
      %v2251 = vadd.f32 0.0, %v2250
      %v2252 = vpop.f32.mrf.mxu0
      %v2253 = vadd.f32 0.0, %v2252
      %2254 = vmatmul.bf16.gmra.mxu0 %v1809
      %v2255 = vpop.f32.mrf.mxu0
      %v2256 = vadd.f32 0.0, %v2255
      %v2257 = vpop.f32.mrf.mxu0
      %v2258 = vadd.f32 0.0, %v2257
      %2259 = vmatmul.bf16.gmra.mxu0 %v1817
      %v2260 = vpop.f32.mrf.mxu0
      %v2261 = vadd.f32 0.0, %v2260
      %v2262 = vpop.f32.mrf.mxu0
      %v2263 = vadd.f32 0.0, %v2262
      %2264 = vmatmul.bf16.gmra.mxu0 %v1825
      %v2265 = vpop.f32.mrf.mxu0
      %v2266 = vadd.f32 0.0, %v2265
      %v2267 = vpop.f32.mrf.mxu0
      %v2268 = vadd.f32 0.0, %v2267
      %2269 = vmatmul.bf16.gmra.mxu0 %v1833
      %v2270 = vpop.f32.mrf.mxu0
      %v2271 = vadd.f32 0.0, %v2270
      %v2272 = vpop.f32.mrf.mxu0
      %v2273 = vadd.f32 0.0, %v2272
      %2274 = vmatmul.bf16.gmra.mxu0 %v1841
      %v2275 = vpop.f32.mrf.mxu0
      %v2276 = vadd.f32 0.0, %v2275
      %v2277 = vpop.f32.mrf.mxu0
      %v2278 = vadd.f32 0.0, %v2277
      %2279 = vmatmul.bf16.gmra.mxu0 %v1849
      %v2280 = vpop.f32.mrf.mxu0
      %v2281 = vadd.f32 0.0, %v2280
      %v2282 = vpop.f32.mrf.mxu0
      %v2283 = vadd.f32 0.0, %v2282
      %2284 = vmatmul.bf16.gmra.mxu0 %v1857
      %v2285 = vpop.f32.mrf.mxu0
      %v2286 = vadd.f32 0.0, %v2285
      %v2287 = vpop.f32.mrf.mxu0
      %v2288 = vadd.f32 0.0, %v2287
      %2289 = vdwg.mxu0
      %2290 = vmatpush.bf16.msra.mxu0 %v487
      %2291 = vmatpush.bf16.msra.mxu0 %v485
      %2292 = vmatpush.bf16.msra.mxu0 %v483
      %2293 = vmatpush.bf16.msra.mxu0 %v481
      %2294 = vmatpush.bf16.msra.mxu0 %v479
      %2295 = vmatpush.bf16.msra.mxu0 %v477
      %2296 = vmatpush.bf16.msra.mxu0 %v475
      %2297 = vmatpush.bf16.msra.mxu0 %v473
      %2298 = vmatmul.bf16.gmra.mxu0 %v1610
      %v2299 = vpop.f32.mrf.mxu0
      %v2300 = vadd.f32 %v2131, %v2299
      %v2301 = vpop.f32.mrf.mxu0
      %v2302 = vadd.f32 %v2133, %v2301
      %2303 = vmatmul.bf16.gmra.mxu0 %v1618
      %v2304 = vpop.f32.mrf.mxu0
      %v2305 = vadd.f32 %v2136, %v2304
      %v2306 = vpop.f32.mrf.mxu0
      %v2307 = vadd.f32 %v2138, %v2306
      %2308 = vmatmul.bf16.gmra.mxu0 %v1626
      %v2309 = vpop.f32.mrf.mxu0
      %v2310 = vadd.f32 %v2141, %v2309
      %v2311 = vpop.f32.mrf.mxu0
      %v2312 = vadd.f32 %v2143, %v2311
      %2313 = vmatmul.bf16.gmra.mxu0 %v1634
      %v2314 = vpop.f32.mrf.mxu0
      %v2315 = vadd.f32 %v2146, %v2314
      %v2316 = vpop.f32.mrf.mxu0
      %v2317 = vadd.f32 %v2148, %v2316
      %2318 = vmatmul.bf16.gmra.mxu0 %v1642
      %v2319 = vpop.f32.mrf.mxu0
      %v2320 = vadd.f32 %v2151, %v2319
      %v2321 = vpop.f32.mrf.mxu0
      %v2322 = vadd.f32 %v2153, %v2321
      %2323 = vmatmul.bf16.gmra.mxu0 %v1650
      %v2324 = vpop.f32.mrf.mxu0
      %v2325 = vadd.f32 %v2156, %v2324
      %v2326 = vpop.f32.mrf.mxu0
      %v2327 = vadd.f32 %v2158, %v2326
      %2328 = vmatmul.bf16.gmra.mxu0 %v1658
      %v2329 = vpop.f32.mrf.mxu0
      %v2330 = vadd.f32 %v2161, %v2329
      %v2331 = vpop.f32.mrf.mxu0
      %v2332 = vadd.f32 %v2163, %v2331
      %2333 = vmatmul.bf16.gmra.mxu0 %v1666
      %v2334 = vpop.f32.mrf.mxu0
      %v2335 = vadd.f32 %v2166, %v2334
      %v2336 = vpop.f32.mrf.mxu0
      %v2337 = vadd.f32 %v2168, %v2336
      %2338 = vmatmul.bf16.gmra.mxu0 %v1674
      %v2339 = vpop.f32.mrf.mxu0
      %v2340 = vadd.f32 %v2171, %v2339
      %v2341 = vpop.f32.mrf.mxu0
      %v2342 = vadd.f32 %v2173, %v2341
      %2343 = vmatmul.bf16.gmra.mxu0 %v1682
      %v2344 = vpop.f32.mrf.mxu0
      %v2345 = vadd.f32 %v2176, %v2344
      %v2346 = vpop.f32.mrf.mxu0
      %v2347 = vadd.f32 %v2178, %v2346
      %2348 = vmatmul.bf16.gmra.mxu0 %v1690
      %v2349 = vpop.f32.mrf.mxu0
      %v2350 = vadd.f32 %v2181, %v2349
      %v2351 = vpop.f32.mrf.mxu0
      %v2352 = vadd.f32 %v2183, %v2351
      %2353 = vmatmul.bf16.gmra.mxu0 %v1698
      %v2354 = vpop.f32.mrf.mxu0
      %v2355 = vadd.f32 %v2186, %v2354
      %v2356 = vpop.f32.mrf.mxu0
      %v2357 = vadd.f32 %v2188, %v2356
      %2358 = vmatmul.bf16.gmra.mxu0 %v1706
      %v2359 = vpop.f32.mrf.mxu0
      %v2360 = vadd.f32 %v2191, %v2359
      %v2361 = vpop.f32.mrf.mxu0
      %v2362 = vadd.f32 %v2193, %v2361
      %2363 = vmatmul.bf16.gmra.mxu0 %v1714
      %v2364 = vpop.f32.mrf.mxu0
      %v2365 = vadd.f32 %v2196, %v2364
      %v2366 = vpop.f32.mrf.mxu0
      %v2367 = vadd.f32 %v2198, %v2366
      %2368 = vmatmul.bf16.gmra.mxu0 %v1722
      %v2369 = vpop.f32.mrf.mxu0
      %v2370 = vadd.f32 %v2201, %v2369
      %v2371 = vpop.f32.mrf.mxu0
      %v2372 = vadd.f32 %v2203, %v2371
      %2373 = vmatmul.bf16.gmra.mxu0 %v1730
      %v2374 = vpop.f32.mrf.mxu0
      %v2375 = vadd.f32 %v2206, %v2374
      %v2376 = vpop.f32.mrf.mxu0
      %v2377 = vadd.f32 %v2208, %v2376
      %2378 = vmatmul.bf16.gmra.mxu0 %v1738
      %v2379 = vpop.f32.mrf.mxu0
      %v2380 = vadd.f32 %v2211, %v2379
      %v2381 = vpop.f32.mrf.mxu0
      %v2382 = vadd.f32 %v2213, %v2381
      %2383 = vmatmul.bf16.gmra.mxu0 %v1746
      %v2384 = vpop.f32.mrf.mxu0
      %v2385 = vadd.f32 %v2216, %v2384
      %v2386 = vpop.f32.mrf.mxu0
      %v2387 = vadd.f32 %v2218, %v2386
      %2388 = vmatmul.bf16.gmra.mxu0 %v1754
      %v2389 = vpop.f32.mrf.mxu0
      %v2390 = vadd.f32 %v2221, %v2389
      %v2391 = vpop.f32.mrf.mxu0
      %v2392 = vadd.f32 %v2223, %v2391
      %2393 = vmatmul.bf16.gmra.mxu0 %v1762
      %v2394 = vpop.f32.mrf.mxu0
      %v2395 = vadd.f32 %v2226, %v2394
      %v2396 = vpop.f32.mrf.mxu0
      %v2397 = vadd.f32 %v2228, %v2396
      %2398 = vmatmul.bf16.gmra.mxu0 %v1770
      %v2399 = vpop.f32.mrf.mxu0
      %v2400 = vadd.f32 %v2231, %v2399
      %v2401 = vpop.f32.mrf.mxu0
      %v2402 = vadd.f32 %v2233, %v2401
      %2403 = vmatmul.bf16.gmra.mxu0 %v1778
      %v2404 = vpop.f32.mrf.mxu0
      %v2405 = vadd.f32 %v2236, %v2404
      %v2406 = vpop.f32.mrf.mxu0
      %v2407 = vadd.f32 %v2238, %v2406
      %2408 = vmatmul.bf16.gmra.mxu0 %v1786
      %v2409 = vpop.f32.mrf.mxu0
      %v2410 = vadd.f32 %v2241, %v2409
      %v2411 = vpop.f32.mrf.mxu0
      %v2412 = vadd.f32 %v2243, %v2411
      %2413 = vmatmul.bf16.gmra.mxu0 %v1794
      %v2414 = vpop.f32.mrf.mxu0
      %v2415 = vadd.f32 %v2246, %v2414
      %v2416 = vpop.f32.mrf.mxu0
      %v2417 = vadd.f32 %v2248, %v2416
      %2418 = vmatmul.bf16.gmra.mxu0 %v1802
      %v2419 = vpop.f32.mrf.mxu0
      %v2420 = vadd.f32 %v2251, %v2419
      %v2421 = vpop.f32.mrf.mxu0
      %v2422 = vadd.f32 %v2253, %v2421
      %2423 = vmatmul.bf16.gmra.mxu0 %v1810
      %v2424 = vpop.f32.mrf.mxu0
      %v2425 = vadd.f32 %v2256, %v2424
      %v2426 = vpop.f32.mrf.mxu0
      %v2427 = vadd.f32 %v2258, %v2426
      %2428 = vmatmul.bf16.gmra.mxu0 %v1818
      %v2429 = vpop.f32.mrf.mxu0
      %v2430 = vadd.f32 %v2261, %v2429
      %v2431 = vpop.f32.mrf.mxu0
      %v2432 = vadd.f32 %v2263, %v2431
      %2433 = vmatmul.bf16.gmra.mxu0 %v1826
      %v2434 = vpop.f32.mrf.mxu0
      %v2435 = vadd.f32 %v2266, %v2434
      %v2436 = vpop.f32.mrf.mxu0
      %v2437 = vadd.f32 %v2268, %v2436
      %2438 = vmatmul.bf16.gmra.mxu0 %v1834
      %v2439 = vpop.f32.mrf.mxu0
      %v2440 = vadd.f32 %v2271, %v2439
      %v2441 = vpop.f32.mrf.mxu0
      %v2442 = vadd.f32 %v2273, %v2441
      %2443 = vmatmul.bf16.gmra.mxu0 %v1842
      %v2444 = vpop.f32.mrf.mxu0
      %v2445 = vadd.f32 %v2276, %v2444
      %v2446 = vpop.f32.mrf.mxu0
      %v2447 = vadd.f32 %v2278, %v2446
      %2448 = vmatmul.bf16.gmra.mxu0 %v1850
      %v2449 = vpop.f32.mrf.mxu0
      %v2450 = vadd.f32 %v2281, %v2449
      %v2451 = vpop.f32.mrf.mxu0
      %v2452 = vadd.f32 %v2283, %v2451
      %2453 = vmatmul.bf16.gmra.mxu0 %v1858
      %v2454 = vpop.f32.mrf.mxu0
      %v2455 = vadd.f32 %v2286, %v2454
      %v2456 = vpop.f32.mrf.mxu0
      %v2457 = vadd.f32 %v2288, %v2456
      %2458 = vdwg.mxu0
      %2459 = vmatpush.bf16.msra.mxu0 %v503
      %2460 = vmatpush.bf16.msra.mxu0 %v501
      %2461 = vmatpush.bf16.msra.mxu0 %v499
      %2462 = vmatpush.bf16.msra.mxu0 %v497
      %2463 = vmatpush.bf16.msra.mxu0 %v495
      %2464 = vmatpush.bf16.msra.mxu0 %v493
      %2465 = vmatpush.bf16.msra.mxu0 %v491
      %2466 = vmatpush.bf16.msra.mxu0 %v489
      %2467 = vmatmul.bf16.gmra.mxu0 %v1611
      %v2468 = vpop.f32.mrf.mxu0
      %v2469 = vadd.f32 %v2300, %v2468
      %v2470 = vpop.f32.mrf.mxu0
      %v2471 = vadd.f32 %v2302, %v2470
      %2472 = vmatmul.bf16.gmra.mxu0 %v1619
      %v2473 = vpop.f32.mrf.mxu0
      %v2474 = vadd.f32 %v2305, %v2473
      %v2475 = vpop.f32.mrf.mxu0
      %v2476 = vadd.f32 %v2307, %v2475
      %2477 = vmatmul.bf16.gmra.mxu0 %v1627
      %v2478 = vpop.f32.mrf.mxu0
      %v2479 = vadd.f32 %v2310, %v2478
      %v2480 = vpop.f32.mrf.mxu0
      %v2481 = vadd.f32 %v2312, %v2480
      %2482 = vmatmul.bf16.gmra.mxu0 %v1635
      %v2483 = vpop.f32.mrf.mxu0
      %v2484 = vadd.f32 %v2315, %v2483
      %v2485 = vpop.f32.mrf.mxu0
      %v2486 = vadd.f32 %v2317, %v2485
      %2487 = vmatmul.bf16.gmra.mxu0 %v1643
      %v2488 = vpop.f32.mrf.mxu0
      %v2489 = vadd.f32 %v2320, %v2488
      %v2490 = vpop.f32.mrf.mxu0
      %v2491 = vadd.f32 %v2322, %v2490
      %2492 = vmatmul.bf16.gmra.mxu0 %v1651
      %v2493 = vpop.f32.mrf.mxu0
      %v2494 = vadd.f32 %v2325, %v2493
      %v2495 = vpop.f32.mrf.mxu0
      %v2496 = vadd.f32 %v2327, %v2495
      %2497 = vmatmul.bf16.gmra.mxu0 %v1659
      %v2498 = vpop.f32.mrf.mxu0
      %v2499 = vadd.f32 %v2330, %v2498
      %v2500 = vpop.f32.mrf.mxu0
      %v2501 = vadd.f32 %v2332, %v2500
      %2502 = vmatmul.bf16.gmra.mxu0 %v1667
      %v2503 = vpop.f32.mrf.mxu0
      %v2504 = vadd.f32 %v2335, %v2503
      %v2505 = vpop.f32.mrf.mxu0
      %v2506 = vadd.f32 %v2337, %v2505
      %2507 = vmatmul.bf16.gmra.mxu0 %v1675
      %v2508 = vpop.f32.mrf.mxu0
      %v2509 = vadd.f32 %v2340, %v2508
      %v2510 = vpop.f32.mrf.mxu0
      %v2511 = vadd.f32 %v2342, %v2510
      %2512 = vmatmul.bf16.gmra.mxu0 %v1683
      %v2513 = vpop.f32.mrf.mxu0
      %v2514 = vadd.f32 %v2345, %v2513
      %v2515 = vpop.f32.mrf.mxu0
      %v2516 = vadd.f32 %v2347, %v2515
      %2517 = vmatmul.bf16.gmra.mxu0 %v1691
      %v2518 = vpop.f32.mrf.mxu0
      %v2519 = vadd.f32 %v2350, %v2518
      %v2520 = vpop.f32.mrf.mxu0
      %v2521 = vadd.f32 %v2352, %v2520
      %2522 = vmatmul.bf16.gmra.mxu0 %v1699
      %v2523 = vpop.f32.mrf.mxu0
      %v2524 = vadd.f32 %v2355, %v2523
      %v2525 = vpop.f32.mrf.mxu0
      %v2526 = vadd.f32 %v2357, %v2525
      %2527 = vmatmul.bf16.gmra.mxu0 %v1707
      %v2528 = vpop.f32.mrf.mxu0
      %v2529 = vadd.f32 %v2360, %v2528
      %v2530 = vpop.f32.mrf.mxu0
      %v2531 = vadd.f32 %v2362, %v2530
      %2532 = vmatmul.bf16.gmra.mxu0 %v1715
      %v2533 = vpop.f32.mrf.mxu0
      %v2534 = vadd.f32 %v2365, %v2533
      %v2535 = vpop.f32.mrf.mxu0
      %v2536 = vadd.f32 %v2367, %v2535
      %2537 = vmatmul.bf16.gmra.mxu0 %v1723
      %v2538 = vpop.f32.mrf.mxu0
      %v2539 = vadd.f32 %v2370, %v2538
      %v2540 = vpop.f32.mrf.mxu0
      %v2541 = vadd.f32 %v2372, %v2540
      %2542 = vmatmul.bf16.gmra.mxu0 %v1731
      %v2543 = vpop.f32.mrf.mxu0
      %v2544 = vadd.f32 %v2375, %v2543
      %v2545 = vpop.f32.mrf.mxu0
      %v2546 = vadd.f32 %v2377, %v2545
      %2547 = vmatmul.bf16.gmra.mxu0 %v1739
      %v2548 = vpop.f32.mrf.mxu0
      %v2549 = vadd.f32 %v2380, %v2548
      %v2550 = vpop.f32.mrf.mxu0
      %v2551 = vadd.f32 %v2382, %v2550
      %2552 = vmatmul.bf16.gmra.mxu0 %v1747
      %v2553 = vpop.f32.mrf.mxu0
      %v2554 = vadd.f32 %v2385, %v2553
      %v2555 = vpop.f32.mrf.mxu0
      %v2556 = vadd.f32 %v2387, %v2555
      %2557 = vmatmul.bf16.gmra.mxu0 %v1755
      %v2558 = vpop.f32.mrf.mxu0
      %v2559 = vadd.f32 %v2390, %v2558
      %v2560 = vpop.f32.mrf.mxu0
      %v2561 = vadd.f32 %v2392, %v2560
      %2562 = vmatmul.bf16.gmra.mxu0 %v1763
      %v2563 = vpop.f32.mrf.mxu0
      %v2564 = vadd.f32 %v2395, %v2563
      %v2565 = vpop.f32.mrf.mxu0
      %v2566 = vadd.f32 %v2397, %v2565
      %2567 = vmatmul.bf16.gmra.mxu0 %v1771
      %v2568 = vpop.f32.mrf.mxu0
      %v2569 = vadd.f32 %v2400, %v2568
      %v2570 = vpop.f32.mrf.mxu0
      %v2571 = vadd.f32 %v2402, %v2570
      %2572 = vmatmul.bf16.gmra.mxu0 %v1779
      %v2573 = vpop.f32.mrf.mxu0
      %v2574 = vadd.f32 %v2405, %v2573
      %v2575 = vpop.f32.mrf.mxu0
      %v2576 = vadd.f32 %v2407, %v2575
      %2577 = vmatmul.bf16.gmra.mxu0 %v1787
      %v2578 = vpop.f32.mrf.mxu0
      %v2579 = vadd.f32 %v2410, %v2578
      %v2580 = vpop.f32.mrf.mxu0
      %v2581 = vadd.f32 %v2412, %v2580
      %2582 = vmatmul.bf16.gmra.mxu0 %v1795
      %v2583 = vpop.f32.mrf.mxu0
      %v2584 = vadd.f32 %v2415, %v2583
      %v2585 = vpop.f32.mrf.mxu0
      %v2586 = vadd.f32 %v2417, %v2585
      %2587 = vmatmul.bf16.gmra.mxu0 %v1803
      %v2588 = vpop.f32.mrf.mxu0
      %v2589 = vadd.f32 %v2420, %v2588
      %v2590 = vpop.f32.mrf.mxu0
      %v2591 = vadd.f32 %v2422, %v2590
      %2592 = vmatmul.bf16.gmra.mxu0 %v1811
      %v2593 = vpop.f32.mrf.mxu0
      %v2594 = vadd.f32 %v2425, %v2593
      %v2595 = vpop.f32.mrf.mxu0
      %v2596 = vadd.f32 %v2427, %v2595
      %2597 = vmatmul.bf16.gmra.mxu0 %v1819
      %v2598 = vpop.f32.mrf.mxu0
      %v2599 = vadd.f32 %v2430, %v2598
      %v2600 = vpop.f32.mrf.mxu0
      %v2601 = vadd.f32 %v2432, %v2600
      %2602 = vmatmul.bf16.gmra.mxu0 %v1827
      %v2603 = vpop.f32.mrf.mxu0
      %v2604 = vadd.f32 %v2435, %v2603
      %v2605 = vpop.f32.mrf.mxu0
      %v2606 = vadd.f32 %v2437, %v2605
      %2607 = vmatmul.bf16.gmra.mxu0 %v1835
      %v2608 = vpop.f32.mrf.mxu0
      %v2609 = vadd.f32 %v2440, %v2608
      %v2610 = vpop.f32.mrf.mxu0
      %v2611 = vadd.f32 %v2442, %v2610
      %2612 = vmatmul.bf16.gmra.mxu0 %v1843
      %v2613 = vpop.f32.mrf.mxu0
      %v2614 = vadd.f32 %v2445, %v2613
      %v2615 = vpop.f32.mrf.mxu0
      %v2616 = vadd.f32 %v2447, %v2615
      %2617 = vmatmul.bf16.gmra.mxu0 %v1851
      %v2618 = vpop.f32.mrf.mxu0
      %v2619 = vadd.f32 %v2450, %v2618
      %v2620 = vpop.f32.mrf.mxu0
      %v2621 = vadd.f32 %v2452, %v2620
      %2622 = vmatmul.bf16.gmra.mxu0 %v1859
      %v2623 = vpop.f32.mrf.mxu0
      %v2624 = vadd.f32 %v2455, %v2623
      %v2625 = vpop.f32.mrf.mxu0
      %v2626 = vadd.f32 %v2457, %v2625
      %2627 = vdwg.mxu0
      %2628 = vmatpush.bf16.msra.mxu0 %v519
      %2629 = vmatpush.bf16.msra.mxu0 %v517
      %2630 = vmatpush.bf16.msra.mxu0 %v515
      %2631 = vmatpush.bf16.msra.mxu0 %v513
      %2632 = vmatpush.bf16.msra.mxu0 %v511
      %2633 = vmatpush.bf16.msra.mxu0 %v509
      %2634 = vmatpush.bf16.msra.mxu0 %v507
      %2635 = vmatpush.bf16.msra.mxu0 %v505
      %2636 = vmatmul.bf16.gmra.mxu0 %v1612
      %v2637 = vpop.f32.mrf.mxu0
      %v2638 = vadd.f32 %v2469, %v2637
      %v2639 = vpop.f32.mrf.mxu0
      %v2640 = vadd.f32 %v2471, %v2639
      %2641 = vmatmul.bf16.gmra.mxu0 %v1620
      %v2642 = vpop.f32.mrf.mxu0
      %v2643 = vadd.f32 %v2474, %v2642
      %v2644 = vpop.f32.mrf.mxu0
      %v2645 = vadd.f32 %v2476, %v2644
      %2646 = vmatmul.bf16.gmra.mxu0 %v1628
      %v2647 = vpop.f32.mrf.mxu0
      %v2648 = vadd.f32 %v2479, %v2647
      %v2649 = vpop.f32.mrf.mxu0
      %v2650 = vadd.f32 %v2481, %v2649
      %2651 = vmatmul.bf16.gmra.mxu0 %v1636
      %v2652 = vpop.f32.mrf.mxu0
      %v2653 = vadd.f32 %v2484, %v2652
      %v2654 = vpop.f32.mrf.mxu0
      %v2655 = vadd.f32 %v2486, %v2654
      %2656 = vmatmul.bf16.gmra.mxu0 %v1644
      %v2657 = vpop.f32.mrf.mxu0
      %v2658 = vadd.f32 %v2489, %v2657
      %v2659 = vpop.f32.mrf.mxu0
      %v2660 = vadd.f32 %v2491, %v2659
      %2661 = vmatmul.bf16.gmra.mxu0 %v1652
      %v2662 = vpop.f32.mrf.mxu0
      %v2663 = vadd.f32 %v2494, %v2662
      %v2664 = vpop.f32.mrf.mxu0
      %v2665 = vadd.f32 %v2496, %v2664
      %2666 = vmatmul.bf16.gmra.mxu0 %v1660
      %v2667 = vpop.f32.mrf.mxu0
      %v2668 = vadd.f32 %v2499, %v2667
      %v2669 = vpop.f32.mrf.mxu0
      %v2670 = vadd.f32 %v2501, %v2669
      %2671 = vmatmul.bf16.gmra.mxu0 %v1668
      %v2672 = vpop.f32.mrf.mxu0
      %v2673 = vadd.f32 %v2504, %v2672
      %v2674 = vpop.f32.mrf.mxu0
      %v2675 = vadd.f32 %v2506, %v2674
      %2676 = vmatmul.bf16.gmra.mxu0 %v1676
      %v2677 = vpop.f32.mrf.mxu0
      %v2678 = vadd.f32 %v2509, %v2677
      %v2679 = vpop.f32.mrf.mxu0
      %v2680 = vadd.f32 %v2511, %v2679
      %2681 = vmatmul.bf16.gmra.mxu0 %v1684
      %v2682 = vpop.f32.mrf.mxu0
      %v2683 = vadd.f32 %v2514, %v2682
      %v2684 = vpop.f32.mrf.mxu0
      %v2685 = vadd.f32 %v2516, %v2684
      %2686 = vmatmul.bf16.gmra.mxu0 %v1692
      %v2687 = vpop.f32.mrf.mxu0
      %v2688 = vadd.f32 %v2519, %v2687
      %v2689 = vpop.f32.mrf.mxu0
      %v2690 = vadd.f32 %v2521, %v2689
      %2691 = vmatmul.bf16.gmra.mxu0 %v1700
      %v2692 = vpop.f32.mrf.mxu0
      %v2693 = vadd.f32 %v2524, %v2692
      %v2694 = vpop.f32.mrf.mxu0
      %v2695 = vadd.f32 %v2526, %v2694
      %2696 = vmatmul.bf16.gmra.mxu0 %v1708
      %v2697 = vpop.f32.mrf.mxu0
      %v2698 = vadd.f32 %v2529, %v2697
      %v2699 = vpop.f32.mrf.mxu0
      %v2700 = vadd.f32 %v2531, %v2699
      %2701 = vmatmul.bf16.gmra.mxu0 %v1716
      %v2702 = vpop.f32.mrf.mxu0
      %v2703 = vadd.f32 %v2534, %v2702
      %v2704 = vpop.f32.mrf.mxu0
      %v2705 = vadd.f32 %v2536, %v2704
      %2706 = vmatmul.bf16.gmra.mxu0 %v1724
      %v2707 = vpop.f32.mrf.mxu0
      %v2708 = vadd.f32 %v2539, %v2707
      %v2709 = vpop.f32.mrf.mxu0
      %v2710 = vadd.f32 %v2541, %v2709
      %2711 = vmatmul.bf16.gmra.mxu0 %v1732
      %v2712 = vpop.f32.mrf.mxu0
      %v2713 = vadd.f32 %v2544, %v2712
      %v2714 = vpop.f32.mrf.mxu0
      %v2715 = vadd.f32 %v2546, %v2714
      %2716 = vmatmul.bf16.gmra.mxu0 %v1740
      %v2717 = vpop.f32.mrf.mxu0
      %v2718 = vadd.f32 %v2549, %v2717
      %v2719 = vpop.f32.mrf.mxu0
      %v2720 = vadd.f32 %v2551, %v2719
      %2721 = vmatmul.bf16.gmra.mxu0 %v1748
      %v2722 = vpop.f32.mrf.mxu0
      %v2723 = vadd.f32 %v2554, %v2722
      %v2724 = vpop.f32.mrf.mxu0
      %v2725 = vadd.f32 %v2556, %v2724
      %2726 = vmatmul.bf16.gmra.mxu0 %v1756
      %v2727 = vpop.f32.mrf.mxu0
      %v2728 = vadd.f32 %v2559, %v2727
      %v2729 = vpop.f32.mrf.mxu0
      %v2730 = vadd.f32 %v2561, %v2729
      %2731 = vmatmul.bf16.gmra.mxu0 %v1764
      %v2732 = vpop.f32.mrf.mxu0
      %v2733 = vadd.f32 %v2564, %v2732
      %v2734 = vpop.f32.mrf.mxu0
      %v2735 = vadd.f32 %v2566, %v2734
      %2736 = vmatmul.bf16.gmra.mxu0 %v1772
      %v2737 = vpop.f32.mrf.mxu0
      %v2738 = vadd.f32 %v2569, %v2737
      %v2739 = vpop.f32.mrf.mxu0
      %v2740 = vadd.f32 %v2571, %v2739
      %2741 = vmatmul.bf16.gmra.mxu0 %v1780
      %v2742 = vpop.f32.mrf.mxu0
      %v2743 = vadd.f32 %v2574, %v2742
      %v2744 = vpop.f32.mrf.mxu0
      %v2745 = vadd.f32 %v2576, %v2744
      %2746 = vmatmul.bf16.gmra.mxu0 %v1788
      %v2747 = vpop.f32.mrf.mxu0
      %v2748 = vadd.f32 %v2579, %v2747
      %v2749 = vpop.f32.mrf.mxu0
      %v2750 = vadd.f32 %v2581, %v2749
      %2751 = vmatmul.bf16.gmra.mxu0 %v1796
      %v2752 = vpop.f32.mrf.mxu0
      %v2753 = vadd.f32 %v2584, %v2752
      %v2754 = vpop.f32.mrf.mxu0
      %v2755 = vadd.f32 %v2586, %v2754
      %2756 = vmatmul.bf16.gmra.mxu0 %v1804
      %v2757 = vpop.f32.mrf.mxu0
      %v2758 = vadd.f32 %v2589, %v2757
      %v2759 = vpop.f32.mrf.mxu0
      %v2760 = vadd.f32 %v2591, %v2759
      %2761 = vmatmul.bf16.gmra.mxu0 %v1812
      %v2762 = vpop.f32.mrf.mxu0
      %v2763 = vadd.f32 %v2594, %v2762
      %v2764 = vpop.f32.mrf.mxu0
      %v2765 = vadd.f32 %v2596, %v2764
      %2766 = vmatmul.bf16.gmra.mxu0 %v1820
      %v2767 = vpop.f32.mrf.mxu0
      %v2768 = vadd.f32 %v2599, %v2767
      %v2769 = vpop.f32.mrf.mxu0
      %v2770 = vadd.f32 %v2601, %v2769
      %2771 = vmatmul.bf16.gmra.mxu0 %v1828
      %v2772 = vpop.f32.mrf.mxu0
      %v2773 = vadd.f32 %v2604, %v2772
      %v2774 = vpop.f32.mrf.mxu0
      %v2775 = vadd.f32 %v2606, %v2774
      %2776 = vmatmul.bf16.gmra.mxu0 %v1836
      %v2777 = vpop.f32.mrf.mxu0
      %v2778 = vadd.f32 %v2609, %v2777
      %v2779 = vpop.f32.mrf.mxu0
      %v2780 = vadd.f32 %v2611, %v2779
      %2781 = vmatmul.bf16.gmra.mxu0 %v1844
      %v2782 = vpop.f32.mrf.mxu0
      %v2783 = vadd.f32 %v2614, %v2782
      %v2784 = vpop.f32.mrf.mxu0
      %v2785 = vadd.f32 %v2616, %v2784
      %2786 = vmatmul.bf16.gmra.mxu0 %v1852
      %v2787 = vpop.f32.mrf.mxu0
      %v2788 = vadd.f32 %v2619, %v2787
      %v2789 = vpop.f32.mrf.mxu0
      %v2790 = vadd.f32 %v2621, %v2789
      %2791 = vmatmul.bf16.gmra.mxu0 %v1860
      %v2792 = vpop.f32.mrf.mxu0
      %v2793 = vadd.f32 %v2624, %v2792
      %v2794 = vpop.f32.mrf.mxu0
      %v2795 = vadd.f32 %v2626, %v2794
      %2796 = vdwg.mxu0
      %2797 = vmatpush.bf16.msra.mxu0 %v535
      %2798 = vmatpush.bf16.msra.mxu0 %v533
      %2799 = vmatpush.bf16.msra.mxu0 %v531
      %2800 = vmatpush.bf16.msra.mxu0 %v529
      %2801 = vmatpush.bf16.msra.mxu0 %v527
      %2802 = vmatpush.bf16.msra.mxu0 %v525
      %2803 = vmatpush.bf16.msra.mxu0 %v523
      %2804 = vmatpush.bf16.msra.mxu0 %v521
      %2805 = vmatmul.bf16.gmra.mxu0 %v1613
      %v2806 = vpop.f32.mrf.mxu0
      %v2807 = vadd.f32 %v2638, %v2806
      %v2808 = vpop.f32.mrf.mxu0
      %v2809 = vadd.f32 %v2640, %v2808
      %2810 = vmatmul.bf16.gmra.mxu0 %v1621
      %v2811 = vpop.f32.mrf.mxu0
      %v2812 = vadd.f32 %v2643, %v2811
      %v2813 = vpop.f32.mrf.mxu0
      %v2814 = vadd.f32 %v2645, %v2813
      %2815 = vmatmul.bf16.gmra.mxu0 %v1629
      %v2816 = vpop.f32.mrf.mxu0
      %v2817 = vadd.f32 %v2648, %v2816
      %v2818 = vpop.f32.mrf.mxu0
      %v2819 = vadd.f32 %v2650, %v2818
      %2820 = vmatmul.bf16.gmra.mxu0 %v1637
      %v2821 = vpop.f32.mrf.mxu0
      %v2822 = vadd.f32 %v2653, %v2821
      %v2823 = vpop.f32.mrf.mxu0
      %v2824 = vadd.f32 %v2655, %v2823
      %2825 = vmatmul.bf16.gmra.mxu0 %v1645
      %v2826 = vpop.f32.mrf.mxu0
      %v2827 = vadd.f32 %v2658, %v2826
      %v2828 = vpop.f32.mrf.mxu0
      %v2829 = vadd.f32 %v2660, %v2828
      %2830 = vmatmul.bf16.gmra.mxu0 %v1653
      %v2831 = vpop.f32.mrf.mxu0
      %v2832 = vadd.f32 %v2663, %v2831
      %v2833 = vpop.f32.mrf.mxu0
      %v2834 = vadd.f32 %v2665, %v2833
      %2835 = vmatmul.bf16.gmra.mxu0 %v1661
      %v2836 = vpop.f32.mrf.mxu0
      %v2837 = vadd.f32 %v2668, %v2836
      %v2838 = vpop.f32.mrf.mxu0
      %v2839 = vadd.f32 %v2670, %v2838
      %2840 = vmatmul.bf16.gmra.mxu0 %v1669
      %v2841 = vpop.f32.mrf.mxu0
      %v2842 = vadd.f32 %v2673, %v2841
      %v2843 = vpop.f32.mrf.mxu0
      %v2844 = vadd.f32 %v2675, %v2843
      %2845 = vmatmul.bf16.gmra.mxu0 %v1677
      %v2846 = vpop.f32.mrf.mxu0
      %v2847 = vadd.f32 %v2678, %v2846
      %v2848 = vpop.f32.mrf.mxu0
      %v2849 = vadd.f32 %v2680, %v2848
      %2850 = vmatmul.bf16.gmra.mxu0 %v1685
      %v2851 = vpop.f32.mrf.mxu0
      %v2852 = vadd.f32 %v2683, %v2851
      %v2853 = vpop.f32.mrf.mxu0
      %v2854 = vadd.f32 %v2685, %v2853
      %2855 = vmatmul.bf16.gmra.mxu0 %v1693
      %v2856 = vpop.f32.mrf.mxu0
      %v2857 = vadd.f32 %v2688, %v2856
      %v2858 = vpop.f32.mrf.mxu0
      %v2859 = vadd.f32 %v2690, %v2858
      %2860 = vmatmul.bf16.gmra.mxu0 %v1701
      %v2861 = vpop.f32.mrf.mxu0
      %v2862 = vadd.f32 %v2693, %v2861
      %v2863 = vpop.f32.mrf.mxu0
      %v2864 = vadd.f32 %v2695, %v2863
      %2865 = vmatmul.bf16.gmra.mxu0 %v1709
      %v2866 = vpop.f32.mrf.mxu0
      %v2867 = vadd.f32 %v2698, %v2866
      %v2868 = vpop.f32.mrf.mxu0
      %v2869 = vadd.f32 %v2700, %v2868
      %2870 = vmatmul.bf16.gmra.mxu0 %v1717
      %v2871 = vpop.f32.mrf.mxu0
      %v2872 = vadd.f32 %v2703, %v2871
      %v2873 = vpop.f32.mrf.mxu0
      %v2874 = vadd.f32 %v2705, %v2873
      %2875 = vmatmul.bf16.gmra.mxu0 %v1725
      %v2876 = vpop.f32.mrf.mxu0
      %v2877 = vadd.f32 %v2708, %v2876
      %v2878 = vpop.f32.mrf.mxu0
      %v2879 = vadd.f32 %v2710, %v2878
      %2880 = vmatmul.bf16.gmra.mxu0 %v1733
      %v2881 = vpop.f32.mrf.mxu0
      %v2882 = vadd.f32 %v2713, %v2881
      %v2883 = vpop.f32.mrf.mxu0
      %v2884 = vadd.f32 %v2715, %v2883
      %2885 = vmatmul.bf16.gmra.mxu0 %v1741
      %v2886 = vpop.f32.mrf.mxu0
      %v2887 = vadd.f32 %v2718, %v2886
      %v2888 = vpop.f32.mrf.mxu0
      %v2889 = vadd.f32 %v2720, %v2888
      %2890 = vmatmul.bf16.gmra.mxu0 %v1749
      %v2891 = vpop.f32.mrf.mxu0
      %v2892 = vadd.f32 %v2723, %v2891
      %v2893 = vpop.f32.mrf.mxu0
      %v2894 = vadd.f32 %v2725, %v2893
      %2895 = vmatmul.bf16.gmra.mxu0 %v1757
      %v2896 = vpop.f32.mrf.mxu0
      %v2897 = vadd.f32 %v2728, %v2896
      %v2898 = vpop.f32.mrf.mxu0
      %v2899 = vadd.f32 %v2730, %v2898
      %2900 = vmatmul.bf16.gmra.mxu0 %v1765
      %v2901 = vpop.f32.mrf.mxu0
      %v2902 = vadd.f32 %v2733, %v2901
      %v2903 = vpop.f32.mrf.mxu0
      %v2904 = vadd.f32 %v2735, %v2903
      %2905 = vmatmul.bf16.gmra.mxu0 %v1773
      %v2906 = vpop.f32.mrf.mxu0
      %v2907 = vadd.f32 %v2738, %v2906
      %v2908 = vpop.f32.mrf.mxu0
      %v2909 = vadd.f32 %v2740, %v2908
      %2910 = vmatmul.bf16.gmra.mxu0 %v1781
      %v2911 = vpop.f32.mrf.mxu0
      %v2912 = vadd.f32 %v2743, %v2911
      %v2913 = vpop.f32.mrf.mxu0
      %v2914 = vadd.f32 %v2745, %v2913
      %2915 = vmatmul.bf16.gmra.mxu0 %v1789
      %v2916 = vpop.f32.mrf.mxu0
      %v2917 = vadd.f32 %v2748, %v2916
      %v2918 = vpop.f32.mrf.mxu0
      %v2919 = vadd.f32 %v2750, %v2918
      %2920 = vmatmul.bf16.gmra.mxu0 %v1797
      %v2921 = vpop.f32.mrf.mxu0
      %v2922 = vadd.f32 %v2753, %v2921
      %v2923 = vpop.f32.mrf.mxu0
      %v2924 = vadd.f32 %v2755, %v2923
      %2925 = vmatmul.bf16.gmra.mxu0 %v1805
      %v2926 = vpop.f32.mrf.mxu0
      %v2927 = vadd.f32 %v2758, %v2926
      %v2928 = vpop.f32.mrf.mxu0
      %v2929 = vadd.f32 %v2760, %v2928
      %2930 = vmatmul.bf16.gmra.mxu0 %v1813
      %v2931 = vpop.f32.mrf.mxu0
      %v2932 = vadd.f32 %v2763, %v2931
      %v2933 = vpop.f32.mrf.mxu0
      %v2934 = vadd.f32 %v2765, %v2933
      %2935 = vmatmul.bf16.gmra.mxu0 %v1821
      %v2936 = vpop.f32.mrf.mxu0
      %v2937 = vadd.f32 %v2768, %v2936
      %v2938 = vpop.f32.mrf.mxu0
      %v2939 = vadd.f32 %v2770, %v2938
      %2940 = vmatmul.bf16.gmra.mxu0 %v1829
      %v2941 = vpop.f32.mrf.mxu0
      %v2942 = vadd.f32 %v2773, %v2941
      %v2943 = vpop.f32.mrf.mxu0
      %v2944 = vadd.f32 %v2775, %v2943
      %2945 = vmatmul.bf16.gmra.mxu0 %v1837
      %v2946 = vpop.f32.mrf.mxu0
      %v2947 = vadd.f32 %v2778, %v2946
      %v2948 = vpop.f32.mrf.mxu0
      %v2949 = vadd.f32 %v2780, %v2948
      %2950 = vmatmul.bf16.gmra.mxu0 %v1845
      %v2951 = vpop.f32.mrf.mxu0
      %v2952 = vadd.f32 %v2783, %v2951
      %v2953 = vpop.f32.mrf.mxu0
      %v2954 = vadd.f32 %v2785, %v2953
      %2955 = vmatmul.bf16.gmra.mxu0 %v1853
      %v2956 = vpop.f32.mrf.mxu0
      %v2957 = vadd.f32 %v2788, %v2956
      %v2958 = vpop.f32.mrf.mxu0
      %v2959 = vadd.f32 %v2790, %v2958
      %2960 = vmatmul.bf16.gmra.mxu0 %v1861
      %v2961 = vpop.f32.mrf.mxu0
      %v2962 = vadd.f32 %v2793, %v2961
      %v2963 = vpop.f32.mrf.mxu0
      %v2964 = vadd.f32 %v2795, %v2963
      %2965 = vdwg.mxu0
      %2966 = vmatpush.bf16.msra.mxu0 %v551
      %2967 = vmatpush.bf16.msra.mxu0 %v549
      %2968 = vmatpush.bf16.msra.mxu0 %v547
      %2969 = vmatpush.bf16.msra.mxu0 %v545
      %2970 = vmatpush.bf16.msra.mxu0 %v543
      %2971 = vmatpush.bf16.msra.mxu0 %v541
      %2972 = vmatpush.bf16.msra.mxu0 %v539
      %2973 = vmatpush.bf16.msra.mxu0 %v537
      %2974 = vmatmul.bf16.gmra.mxu0 %v1614
      %v2975 = vpop.f32.mrf.mxu0
      %v2976 = vadd.f32 %v2807, %v2975
      %v2977 = vpop.f32.mrf.mxu0
      %v2978 = vadd.f32 %v2809, %v2977
      %2979 = vmatmul.bf16.gmra.mxu0 %v1622
      %v2980 = vpop.f32.mrf.mxu0
      %v2981 = vadd.f32 %v2812, %v2980
      %v2982 = vpop.f32.mrf.mxu0
      %v2983 = vadd.f32 %v2814, %v2982
      %2984 = vmatmul.bf16.gmra.mxu0 %v1630
      %v2985 = vpop.f32.mrf.mxu0
      %v2986 = vadd.f32 %v2817, %v2985
      %v2987 = vpop.f32.mrf.mxu0
      %v2988 = vadd.f32 %v2819, %v2987
      %2989 = vmatmul.bf16.gmra.mxu0 %v1638
      %v2990 = vpop.f32.mrf.mxu0
      %v2991 = vadd.f32 %v2822, %v2990
      %v2992 = vpop.f32.mrf.mxu0
      %v2993 = vadd.f32 %v2824, %v2992
      %2994 = vmatmul.bf16.gmra.mxu0 %v1646
      %v2995 = vpop.f32.mrf.mxu0
      %v2996 = vadd.f32 %v2827, %v2995
      %v2997 = vpop.f32.mrf.mxu0
      %v2998 = vadd.f32 %v2829, %v2997
      %2999 = vmatmul.bf16.gmra.mxu0 %v1654
      %v3000 = vpop.f32.mrf.mxu0
      %v3001 = vadd.f32 %v2832, %v3000
      %v3002 = vpop.f32.mrf.mxu0
      %v3003 = vadd.f32 %v2834, %v3002
      %3004 = vmatmul.bf16.gmra.mxu0 %v1662
      %v3005 = vpop.f32.mrf.mxu0
      %v3006 = vadd.f32 %v2837, %v3005
      %v3007 = vpop.f32.mrf.mxu0
      %v3008 = vadd.f32 %v2839, %v3007
      %3009 = vmatmul.bf16.gmra.mxu0 %v1670
      %v3010 = vpop.f32.mrf.mxu0
      %v3011 = vadd.f32 %v2842, %v3010
      %v3012 = vpop.f32.mrf.mxu0
      %v3013 = vadd.f32 %v2844, %v3012
      %3014 = vmatmul.bf16.gmra.mxu0 %v1678
      %v3015 = vpop.f32.mrf.mxu0
      %v3016 = vadd.f32 %v2847, %v3015
      %v3017 = vpop.f32.mrf.mxu0
      %v3018 = vadd.f32 %v2849, %v3017
      %3019 = vmatmul.bf16.gmra.mxu0 %v1686
      %v3020 = vpop.f32.mrf.mxu0
      %v3021 = vadd.f32 %v2852, %v3020
      %v3022 = vpop.f32.mrf.mxu0
      %v3023 = vadd.f32 %v2854, %v3022
      %3024 = vmatmul.bf16.gmra.mxu0 %v1694
      %v3025 = vpop.f32.mrf.mxu0
      %v3026 = vadd.f32 %v2857, %v3025
      %v3027 = vpop.f32.mrf.mxu0
      %v3028 = vadd.f32 %v2859, %v3027
      %3029 = vmatmul.bf16.gmra.mxu0 %v1702
      %v3030 = vpop.f32.mrf.mxu0
      %v3031 = vadd.f32 %v2862, %v3030
      %v3032 = vpop.f32.mrf.mxu0
      %v3033 = vadd.f32 %v2864, %v3032
      %3034 = vmatmul.bf16.gmra.mxu0 %v1710
      %v3035 = vpop.f32.mrf.mxu0
      %v3036 = vadd.f32 %v2867, %v3035
      %v3037 = vpop.f32.mrf.mxu0
      %v3038 = vadd.f32 %v2869, %v3037
      %3039 = vmatmul.bf16.gmra.mxu0 %v1718
      %v3040 = vpop.f32.mrf.mxu0
      %v3041 = vadd.f32 %v2872, %v3040
      %v3042 = vpop.f32.mrf.mxu0
      %v3043 = vadd.f32 %v2874, %v3042
      %3044 = vmatmul.bf16.gmra.mxu0 %v1726
      %v3045 = vpop.f32.mrf.mxu0
      %v3046 = vadd.f32 %v2877, %v3045
      %v3047 = vpop.f32.mrf.mxu0
      %v3048 = vadd.f32 %v2879, %v3047
      %3049 = vmatmul.bf16.gmra.mxu0 %v1734
      %v3050 = vpop.f32.mrf.mxu0
      %v3051 = vadd.f32 %v2882, %v3050
      %v3052 = vpop.f32.mrf.mxu0
      %v3053 = vadd.f32 %v2884, %v3052
      %3054 = vmatmul.bf16.gmra.mxu0 %v1742
      %v3055 = vpop.f32.mrf.mxu0
      %v3056 = vadd.f32 %v2887, %v3055
      %v3057 = vpop.f32.mrf.mxu0
      %v3058 = vadd.f32 %v2889, %v3057
      %3059 = vmatmul.bf16.gmra.mxu0 %v1750
      %v3060 = vpop.f32.mrf.mxu0
      %v3061 = vadd.f32 %v2892, %v3060
      %v3062 = vpop.f32.mrf.mxu0
      %v3063 = vadd.f32 %v2894, %v3062
      %3064 = vmatmul.bf16.gmra.mxu0 %v1758
      %v3065 = vpop.f32.mrf.mxu0
      %v3066 = vadd.f32 %v2897, %v3065
      %v3067 = vpop.f32.mrf.mxu0
      %v3068 = vadd.f32 %v2899, %v3067
      %3069 = vmatmul.bf16.gmra.mxu0 %v1766
      %v3070 = vpop.f32.mrf.mxu0
      %v3071 = vadd.f32 %v2902, %v3070
      %v3072 = vpop.f32.mrf.mxu0
      %v3073 = vadd.f32 %v2904, %v3072
      %3074 = vmatmul.bf16.gmra.mxu0 %v1774
      %v3075 = vpop.f32.mrf.mxu0
      %v3076 = vadd.f32 %v2907, %v3075
      %v3077 = vpop.f32.mrf.mxu0
      %v3078 = vadd.f32 %v2909, %v3077
      %3079 = vmatmul.bf16.gmra.mxu0 %v1782
      %v3080 = vpop.f32.mrf.mxu0
      %v3081 = vadd.f32 %v2912, %v3080
      %v3082 = vpop.f32.mrf.mxu0
      %v3083 = vadd.f32 %v2914, %v3082
      %3084 = vmatmul.bf16.gmra.mxu0 %v1790
      %v3085 = vpop.f32.mrf.mxu0
      %v3086 = vadd.f32 %v2917, %v3085
      %v3087 = vpop.f32.mrf.mxu0
      %v3088 = vadd.f32 %v2919, %v3087
      %3089 = vmatmul.bf16.gmra.mxu0 %v1798
      %v3090 = vpop.f32.mrf.mxu0
      %v3091 = vadd.f32 %v2922, %v3090
      %v3092 = vpop.f32.mrf.mxu0
      %v3093 = vadd.f32 %v2924, %v3092
      %3094 = vmatmul.bf16.gmra.mxu0 %v1806
      %v3095 = vpop.f32.mrf.mxu0
      %v3096 = vadd.f32 %v2927, %v3095
      %v3097 = vpop.f32.mrf.mxu0
      %v3098 = vadd.f32 %v2929, %v3097
      %3099 = vmatmul.bf16.gmra.mxu0 %v1814
      %v3100 = vpop.f32.mrf.mxu0
      %v3101 = vadd.f32 %v2932, %v3100
      %v3102 = vpop.f32.mrf.mxu0
      %v3103 = vadd.f32 %v2934, %v3102
      %3104 = vmatmul.bf16.gmra.mxu0 %v1822
      %v3105 = vpop.f32.mrf.mxu0
      %v3106 = vadd.f32 %v2937, %v3105
      %v3107 = vpop.f32.mrf.mxu0
      %v3108 = vadd.f32 %v2939, %v3107
      %3109 = vmatmul.bf16.gmra.mxu0 %v1830
      %v3110 = vpop.f32.mrf.mxu0
      %v3111 = vadd.f32 %v2942, %v3110
      %v3112 = vpop.f32.mrf.mxu0
      %v3113 = vadd.f32 %v2944, %v3112
      %3114 = vmatmul.bf16.gmra.mxu0 %v1838
      %v3115 = vpop.f32.mrf.mxu0
      %v3116 = vadd.f32 %v2947, %v3115
      %v3117 = vpop.f32.mrf.mxu0
      %v3118 = vadd.f32 %v2949, %v3117
      %3119 = vmatmul.bf16.gmra.mxu0 %v1846
      %v3120 = vpop.f32.mrf.mxu0
      %v3121 = vadd.f32 %v2952, %v3120
      %v3122 = vpop.f32.mrf.mxu0
      %v3123 = vadd.f32 %v2954, %v3122
      %3124 = vmatmul.bf16.gmra.mxu0 %v1854
      %v3125 = vpop.f32.mrf.mxu0
      %v3126 = vadd.f32 %v2957, %v3125
      %v3127 = vpop.f32.mrf.mxu0
      %v3128 = vadd.f32 %v2959, %v3127
      %3129 = vmatmul.bf16.gmra.mxu0 %v1862
      %v3130 = vpop.f32.mrf.mxu0
      %v3131 = vadd.f32 %v2962, %v3130
      %v3132 = vpop.f32.mrf.mxu0
      %v3133 = vadd.f32 %v2964, %v3132
      %3134 = vdwg.mxu0
      %3135 = vmatpush.bf16.msra.mxu0 %v567
      %3136 = vmatpush.bf16.msra.mxu0 %v565
      %3137 = vmatpush.bf16.msra.mxu0 %v563
      %3138 = vmatpush.bf16.msra.mxu0 %v561
      %3139 = vmatpush.bf16.msra.mxu0 %v559
      %3140 = vmatpush.bf16.msra.mxu0 %v557
      %3141 = vmatpush.bf16.msra.mxu0 %v555
      %3142 = vmatpush.bf16.msra.mxu0 %v553
      %3143 = vmatmul.bf16.gmra.mxu0 %v1615
      %v3144 = vpop.f32.mrf.mxu0
      %v3145 = vadd.f32 %v2976, %v3144
      %v3146 = vpop.f32.mrf.mxu0
      %v3147 = vadd.f32 %v2978, %v3146
      %3148 = vmatmul.bf16.gmra.mxu0 %v1623
      %v3149 = vpop.f32.mrf.mxu0
      %v3150 = vadd.f32 %v2981, %v3149
      %v3151 = vpop.f32.mrf.mxu0
      %v3152 = vadd.f32 %v2983, %v3151
      %3153 = vmatmul.bf16.gmra.mxu0 %v1631
      %v3154 = vpop.f32.mrf.mxu0
      %v3155 = vadd.f32 %v2986, %v3154
      %v3156 = vpop.f32.mrf.mxu0
      %v3157 = vadd.f32 %v2988, %v3156
      %3158 = vmatmul.bf16.gmra.mxu0 %v1639
      %v3159 = vpop.f32.mrf.mxu0
      %v3160 = vadd.f32 %v2991, %v3159
      %v3161 = vpop.f32.mrf.mxu0
      %v3162 = vadd.f32 %v2993, %v3161
      %3163 = vmatmul.bf16.gmra.mxu0 %v1647
      %v3164 = vpop.f32.mrf.mxu0
      %v3165 = vadd.f32 %v2996, %v3164
      %v3166 = vpop.f32.mrf.mxu0
      %v3167 = vadd.f32 %v2998, %v3166
      %3168 = vmatmul.bf16.gmra.mxu0 %v1655
      %v3169 = vpop.f32.mrf.mxu0
      %v3170 = vadd.f32 %v3001, %v3169
      %v3171 = vpop.f32.mrf.mxu0
      %v3172 = vadd.f32 %v3003, %v3171
      %3173 = vmatmul.bf16.gmra.mxu0 %v1663
      %v3174 = vpop.f32.mrf.mxu0
      %v3175 = vadd.f32 %v3006, %v3174
      %v3176 = vpop.f32.mrf.mxu0
      %v3177 = vadd.f32 %v3008, %v3176
      %3178 = vmatmul.bf16.gmra.mxu0 %v1671
      %v3179 = vpop.f32.mrf.mxu0
      %v3180 = vadd.f32 %v3011, %v3179
      %v3181 = vpop.f32.mrf.mxu0
      %v3182 = vadd.f32 %v3013, %v3181
      %3183 = vmatmul.bf16.gmra.mxu0 %v1679
      %v3184 = vpop.f32.mrf.mxu0
      %v3185 = vadd.f32 %v3016, %v3184
      %v3186 = vpop.f32.mrf.mxu0
      %v3187 = vadd.f32 %v3018, %v3186
      %3188 = vmatmul.bf16.gmra.mxu0 %v1687
      %v3189 = vpop.f32.mrf.mxu0
      %v3190 = vadd.f32 %v3021, %v3189
      %v3191 = vpop.f32.mrf.mxu0
      %v3192 = vadd.f32 %v3023, %v3191
      %3193 = vmatmul.bf16.gmra.mxu0 %v1695
      %v3194 = vpop.f32.mrf.mxu0
      %v3195 = vadd.f32 %v3026, %v3194
      %v3196 = vpop.f32.mrf.mxu0
      %v3197 = vadd.f32 %v3028, %v3196
      %3198 = vmatmul.bf16.gmra.mxu0 %v1703
      %v3199 = vpop.f32.mrf.mxu0
      %v3200 = vadd.f32 %v3031, %v3199
      %v3201 = vpop.f32.mrf.mxu0
      %v3202 = vadd.f32 %v3033, %v3201
      %3203 = vmatmul.bf16.gmra.mxu0 %v1711
      %v3204 = vpop.f32.mrf.mxu0
      %v3205 = vadd.f32 %v3036, %v3204
      %v3206 = vpop.f32.mrf.mxu0
      %v3207 = vadd.f32 %v3038, %v3206
      %3208 = vmatmul.bf16.gmra.mxu0 %v1719
      %v3209 = vpop.f32.mrf.mxu0
      %v3210 = vadd.f32 %v3041, %v3209
      %v3211 = vpop.f32.mrf.mxu0
      %v3212 = vadd.f32 %v3043, %v3211
      %3213 = vmatmul.bf16.gmra.mxu0 %v1727
      %v3214 = vpop.f32.mrf.mxu0
      %v3215 = vadd.f32 %v3046, %v3214
      %v3216 = vpop.f32.mrf.mxu0
      %v3217 = vadd.f32 %v3048, %v3216
      %3218 = vmatmul.bf16.gmra.mxu0 %v1735
      %v3219 = vpop.f32.mrf.mxu0
      %v3220 = vadd.f32 %v3051, %v3219
      %v3221 = vpop.f32.mrf.mxu0
      %v3222 = vadd.f32 %v3053, %v3221
      %3223 = vmatmul.bf16.gmra.mxu0 %v1743
      %v3224 = vpop.f32.mrf.mxu0
      %v3225 = vadd.f32 %v3056, %v3224
      %v3226 = vpop.f32.mrf.mxu0
      %v3227 = vadd.f32 %v3058, %v3226
      %3228 = vmatmul.bf16.gmra.mxu0 %v1751
      %v3229 = vpop.f32.mrf.mxu0
      %v3230 = vadd.f32 %v3061, %v3229
      %v3231 = vpop.f32.mrf.mxu0
      %v3232 = vadd.f32 %v3063, %v3231
      %3233 = vmatmul.bf16.gmra.mxu0 %v1759
      %v3234 = vpop.f32.mrf.mxu0
      %v3235 = vadd.f32 %v3066, %v3234
      %v3236 = vpop.f32.mrf.mxu0
      %v3237 = vadd.f32 %v3068, %v3236
      %3238 = vmatmul.bf16.gmra.mxu0 %v1767
      %v3239 = vpop.f32.mrf.mxu0
      %v3240 = vadd.f32 %v3071, %v3239
      %v3241 = vpop.f32.mrf.mxu0
      %v3242 = vadd.f32 %v3073, %v3241
      %3243 = vmatmul.bf16.gmra.mxu0 %v1775
      %v3244 = vpop.f32.mrf.mxu0
      %v3245 = vadd.f32 %v3076, %v3244
      %v3246 = vpop.f32.mrf.mxu0
      %v3247 = vadd.f32 %v3078, %v3246
      %3248 = vmatmul.bf16.gmra.mxu0 %v1783
      %v3249 = vpop.f32.mrf.mxu0
      %v3250 = vadd.f32 %v3081, %v3249
      %v3251 = vpop.f32.mrf.mxu0
      %v3252 = vadd.f32 %v3083, %v3251
      %3253 = vmatmul.bf16.gmra.mxu0 %v1791
      %v3254 = vpop.f32.mrf.mxu0
      %v3255 = vadd.f32 %v3086, %v3254
      %v3256 = vpop.f32.mrf.mxu0
      %v3257 = vadd.f32 %v3088, %v3256
      %3258 = vmatmul.bf16.gmra.mxu0 %v1799
      %v3259 = vpop.f32.mrf.mxu0
      %v3260 = vadd.f32 %v3091, %v3259
      %v3261 = vpop.f32.mrf.mxu0
      %v3262 = vadd.f32 %v3093, %v3261
      %3263 = vmatmul.bf16.gmra.mxu0 %v1807
      %v3264 = vpop.f32.mrf.mxu0
      %v3265 = vadd.f32 %v3096, %v3264
      %v3266 = vpop.f32.mrf.mxu0
      %v3267 = vadd.f32 %v3098, %v3266
      %3268 = vmatmul.bf16.gmra.mxu0 %v1815
      %v3269 = vpop.f32.mrf.mxu0
      %v3270 = vadd.f32 %v3101, %v3269
      %v3271 = vpop.f32.mrf.mxu0
      %v3272 = vadd.f32 %v3103, %v3271
      %3273 = vmatmul.bf16.gmra.mxu0 %v1823
      %v3274 = vpop.f32.mrf.mxu0
      %v3275 = vadd.f32 %v3106, %v3274
      %v3276 = vpop.f32.mrf.mxu0
      %v3277 = vadd.f32 %v3108, %v3276
      %3278 = vmatmul.bf16.gmra.mxu0 %v1831
      %v3279 = vpop.f32.mrf.mxu0
      %v3280 = vadd.f32 %v3111, %v3279
      %v3281 = vpop.f32.mrf.mxu0
      %v3282 = vadd.f32 %v3113, %v3281
      %3283 = vmatmul.bf16.gmra.mxu0 %v1839
      %v3284 = vpop.f32.mrf.mxu0
      %v3285 = vadd.f32 %v3116, %v3284
      %v3286 = vpop.f32.mrf.mxu0
      %v3287 = vadd.f32 %v3118, %v3286
      %3288 = vmatmul.bf16.gmra.mxu0 %v1847
      %v3289 = vpop.f32.mrf.mxu0
      %v3290 = vadd.f32 %v3121, %v3289
      %v3291 = vpop.f32.mrf.mxu0
      %v3292 = vadd.f32 %v3123, %v3291
      %3293 = vmatmul.bf16.gmra.mxu0 %v1855
      %v3294 = vpop.f32.mrf.mxu0
      %v3295 = vadd.f32 %v3126, %v3294
      %v3296 = vpop.f32.mrf.mxu0
      %v3297 = vadd.f32 %v3128, %v3296
      %3298 = vmatmul.bf16.gmra.mxu0 %v1863
      %v3299 = vpop.f32.mrf.mxu0
      %v3300 = vadd.f32 %v3131, %v3299
      %v3301 = vpop.f32.mrf.mxu0
      %v3302 = vadd.f32 %v3133, %v3301
      %3303 = vdwg.mxu0
      %3304 = vmatpush.bf16.msra.mxu0 %v583
      %3305 = vmatpush.bf16.msra.mxu0 %v581
      %3306 = vmatpush.bf16.msra.mxu0 %v579
      %3307 = vmatpush.bf16.msra.mxu0 %v577
      %3308 = vmatpush.bf16.msra.mxu0 %v575
      %3309 = vmatpush.bf16.msra.mxu0 %v573
      %3310 = vmatpush.bf16.msra.mxu0 %v571
      %3311 = vmatpush.bf16.msra.mxu0 %v569
      %3312 = vmatmul.bf16.gmra.mxu0 %v1616
      %v3313 = vpop.f32.mrf.mxu0
      %v3314 = vadd.f32 %v3145, %v3313
      %v3315 = vpop.f32.mrf.mxu0
      %v3316 = vadd.f32 %v3147, %v3315
      %3317 = vmatmul.bf16.gmra.mxu0 %v1624
      %v3318 = vpop.f32.mrf.mxu0
      %v3319 = vadd.f32 %v3150, %v3318
      %v3320 = vpop.f32.mrf.mxu0
      %v3321 = vadd.f32 %v3152, %v3320
      %3322 = vmatmul.bf16.gmra.mxu0 %v1632
      %v3323 = vpop.f32.mrf.mxu0
      %v3324 = vadd.f32 %v3155, %v3323
      %v3325 = vpop.f32.mrf.mxu0
      %v3326 = vadd.f32 %v3157, %v3325
      %3327 = vmatmul.bf16.gmra.mxu0 %v1640
      %v3328 = vpop.f32.mrf.mxu0
      %v3329 = vadd.f32 %v3160, %v3328
      %v3330 = vpop.f32.mrf.mxu0
      %v3331 = vadd.f32 %v3162, %v3330
      %3332 = vmatmul.bf16.gmra.mxu0 %v1648
      %v3333 = vpop.f32.mrf.mxu0
      %v3334 = vadd.f32 %v3165, %v3333
      %v3335 = vpop.f32.mrf.mxu0
      %v3336 = vadd.f32 %v3167, %v3335
      %3337 = vmatmul.bf16.gmra.mxu0 %v1656
      %v3338 = vpop.f32.mrf.mxu0
      %v3339 = vadd.f32 %v3170, %v3338
      %v3340 = vpop.f32.mrf.mxu0
      %v3341 = vadd.f32 %v3172, %v3340
      %3342 = vmatmul.bf16.gmra.mxu0 %v1664
      %v3343 = vpop.f32.mrf.mxu0
      %v3344 = vadd.f32 %v3175, %v3343
      %v3345 = vpop.f32.mrf.mxu0
      %v3346 = vadd.f32 %v3177, %v3345
      %3347 = vmatmul.bf16.gmra.mxu0 %v1672
      %v3348 = vpop.f32.mrf.mxu0
      %v3349 = vadd.f32 %v3180, %v3348
      %v3350 = vpop.f32.mrf.mxu0
      %v3351 = vadd.f32 %v3182, %v3350
      %3352 = vmatmul.bf16.gmra.mxu0 %v1680
      %v3353 = vpop.f32.mrf.mxu0
      %v3354 = vadd.f32 %v3185, %v3353
      %v3355 = vpop.f32.mrf.mxu0
      %v3356 = vadd.f32 %v3187, %v3355
      %3357 = vmatmul.bf16.gmra.mxu0 %v1688
      %v3358 = vpop.f32.mrf.mxu0
      %v3359 = vadd.f32 %v3190, %v3358
      %v3360 = vpop.f32.mrf.mxu0
      %v3361 = vadd.f32 %v3192, %v3360
      %3362 = vmatmul.bf16.gmra.mxu0 %v1696
      %v3363 = vpop.f32.mrf.mxu0
      %v3364 = vadd.f32 %v3195, %v3363
      %v3365 = vpop.f32.mrf.mxu0
      %v3366 = vadd.f32 %v3197, %v3365
      %3367 = vmatmul.bf16.gmra.mxu0 %v1704
      %v3368 = vpop.f32.mrf.mxu0
      %v3369 = vadd.f32 %v3200, %v3368
      %v3370 = vpop.f32.mrf.mxu0
      %v3371 = vadd.f32 %v3202, %v3370
      %3372 = vmatmul.bf16.gmra.mxu0 %v1712
      %v3373 = vpop.f32.mrf.mxu0
      %v3374 = vadd.f32 %v3205, %v3373
      %v3375 = vpop.f32.mrf.mxu0
      %v3376 = vadd.f32 %v3207, %v3375
      %3377 = vmatmul.bf16.gmra.mxu0 %v1720
      %v3378 = vpop.f32.mrf.mxu0
      %v3379 = vadd.f32 %v3210, %v3378
      %v3380 = vpop.f32.mrf.mxu0
      %v3381 = vadd.f32 %v3212, %v3380
      %3382 = vmatmul.bf16.gmra.mxu0 %v1728
      %v3383 = vpop.f32.mrf.mxu0
      %v3384 = vadd.f32 %v3215, %v3383
      %v3385 = vpop.f32.mrf.mxu0
      %v3386 = vadd.f32 %v3217, %v3385
      %3387 = vmatmul.bf16.gmra.mxu0 %v1736
      %v3388 = vpop.f32.mrf.mxu0
      %v3389 = vadd.f32 %v3220, %v3388
      %v3390 = vpop.f32.mrf.mxu0
      %v3391 = vadd.f32 %v3222, %v3390
      %3392 = vmatmul.bf16.gmra.mxu0 %v1744
      %v3393 = vpop.f32.mrf.mxu0
      %v3394 = vadd.f32 %v3225, %v3393
      %v3395 = vpop.f32.mrf.mxu0
      %v3396 = vadd.f32 %v3227, %v3395
      %3397 = vmatmul.bf16.gmra.mxu0 %v1752
      %v3398 = vpop.f32.mrf.mxu0
      %v3399 = vadd.f32 %v3230, %v3398
      %v3400 = vpop.f32.mrf.mxu0
      %v3401 = vadd.f32 %v3232, %v3400
      %3402 = vmatmul.bf16.gmra.mxu0 %v1760
      %v3403 = vpop.f32.mrf.mxu0
      %v3404 = vadd.f32 %v3235, %v3403
      %v3405 = vpop.f32.mrf.mxu0
      %v3406 = vadd.f32 %v3237, %v3405
      %3407 = vmatmul.bf16.gmra.mxu0 %v1768
      %v3408 = vpop.f32.mrf.mxu0
      %v3409 = vadd.f32 %v3240, %v3408
      %v3410 = vpop.f32.mrf.mxu0
      %v3411 = vadd.f32 %v3242, %v3410
      %3412 = vmatmul.bf16.gmra.mxu0 %v1776
      %v3413 = vpop.f32.mrf.mxu0
      %v3414 = vadd.f32 %v3245, %v3413
      %v3415 = vpop.f32.mrf.mxu0
      %v3416 = vadd.f32 %v3247, %v3415
      %3417 = vmatmul.bf16.gmra.mxu0 %v1784
      %v3418 = vpop.f32.mrf.mxu0
      %v3419 = vadd.f32 %v3250, %v3418
      %v3420 = vpop.f32.mrf.mxu0
      %v3421 = vadd.f32 %v3252, %v3420
      %3422 = vmatmul.bf16.gmra.mxu0 %v1792
      %v3423 = vpop.f32.mrf.mxu0
      %v3424 = vadd.f32 %v3255, %v3423
      %v3425 = vpop.f32.mrf.mxu0
      %v3426 = vadd.f32 %v3257, %v3425
      %3427 = vmatmul.bf16.gmra.mxu0 %v1800
      %v3428 = vpop.f32.mrf.mxu0
      %v3429 = vadd.f32 %v3260, %v3428
      %v3430 = vpop.f32.mrf.mxu0
      %v3431 = vadd.f32 %v3262, %v3430
      %3432 = vmatmul.bf16.gmra.mxu0 %v1808
      %v3433 = vpop.f32.mrf.mxu0
      %v3434 = vadd.f32 %v3265, %v3433
      %v3435 = vpop.f32.mrf.mxu0
      %v3436 = vadd.f32 %v3267, %v3435
      %3437 = vmatmul.bf16.gmra.mxu0 %v1816
      %v3438 = vpop.f32.mrf.mxu0
      %v3439 = vadd.f32 %v3270, %v3438
      %v3440 = vpop.f32.mrf.mxu0
      %v3441 = vadd.f32 %v3272, %v3440
      %3442 = vmatmul.bf16.gmra.mxu0 %v1824
      %v3443 = vpop.f32.mrf.mxu0
      %v3444 = vadd.f32 %v3275, %v3443
      %v3445 = vpop.f32.mrf.mxu0
      %v3446 = vadd.f32 %v3277, %v3445
      %3447 = vmatmul.bf16.gmra.mxu0 %v1832
      %v3448 = vpop.f32.mrf.mxu0
      %v3449 = vadd.f32 %v3280, %v3448
      %v3450 = vpop.f32.mrf.mxu0
      %v3451 = vadd.f32 %v3282, %v3450
      %3452 = vmatmul.bf16.gmra.mxu0 %v1840
      %v3453 = vpop.f32.mrf.mxu0
      %v3454 = vadd.f32 %v3285, %v3453
      %v3455 = vpop.f32.mrf.mxu0
      %v3456 = vadd.f32 %v3287, %v3455
      %3457 = vmatmul.bf16.gmra.mxu0 %v1848
      %v3458 = vpop.f32.mrf.mxu0
      %v3459 = vadd.f32 %v3290, %v3458
      %v3460 = vpop.f32.mrf.mxu0
      %v3461 = vadd.f32 %v3292, %v3460
      %3462 = vmatmul.bf16.gmra.mxu0 %v1856
      %v3463 = vpop.f32.mrf.mxu0
      %v3464 = vadd.f32 %v3295, %v3463
      %v3465 = vpop.f32.mrf.mxu0
      %v3466 = vadd.f32 %v3297, %v3465
      %3467 = vmatmul.bf16.gmra.mxu0 %v1864
      %v3468 = vpop.f32.mrf.mxu0
      %v3469 = vadd.f32 %v3300, %v3468
      %v3470 = vpop.f32.mrf.mxu0
      %v3471 = vadd.f32 %v3302, %v3470
      %3472 = vdwg.mxu0
      %3473 = vmatpush.bf16.msra.mxu0 %v472
      %3474 = vmatpush.bf16.msra.mxu0 %v470
      %3475 = vmatpush.bf16.msra.mxu0 %v468
      %3476 = vmatpush.bf16.msra.mxu0 %v466
      %3477 = vmatpush.bf16.msra.mxu0 %v464
      %3478 = vmatpush.bf16.msra.mxu0 %v462
      %3479 = vmatpush.bf16.msra.mxu0 %v460
      %3480 = vmatpush.bf16.msra.mxu0 %v458
      %3481 = vmatmul.bf16.gmra.mxu0 %v1609
      %v3482 = vpop.f32.mrf.mxu0
      %v3483 = vadd.f32 0.0, %v3482
      %v3484 = vpop.f32.mrf.mxu0
      %v3485 = vadd.f32 0.0, %v3484
      %3486 = vmatmul.bf16.gmra.mxu0 %v1617
      %v3487 = vpop.f32.mrf.mxu0
      %v3488 = vadd.f32 0.0, %v3487
      %v3489 = vpop.f32.mrf.mxu0
      %v3490 = vadd.f32 0.0, %v3489
      %3491 = vmatmul.bf16.gmra.mxu0 %v1625
      %v3492 = vpop.f32.mrf.mxu0
      %v3493 = vadd.f32 0.0, %v3492
      %v3494 = vpop.f32.mrf.mxu0
      %v3495 = vadd.f32 0.0, %v3494
      %3496 = vmatmul.bf16.gmra.mxu0 %v1633
      %v3497 = vpop.f32.mrf.mxu0
      %v3498 = vadd.f32 0.0, %v3497
      %v3499 = vpop.f32.mrf.mxu0
      %v3500 = vadd.f32 0.0, %v3499
      %3501 = vmatmul.bf16.gmra.mxu0 %v1641
      %v3502 = vpop.f32.mrf.mxu0
      %v3503 = vadd.f32 0.0, %v3502
      %v3504 = vpop.f32.mrf.mxu0
      %v3505 = vadd.f32 0.0, %v3504
      %3506 = vmatmul.bf16.gmra.mxu0 %v1649
      %v3507 = vpop.f32.mrf.mxu0
      %v3508 = vadd.f32 0.0, %v3507
      %v3509 = vpop.f32.mrf.mxu0
      %v3510 = vadd.f32 0.0, %v3509
      %3511 = vmatmul.bf16.gmra.mxu0 %v1657
      %v3512 = vpop.f32.mrf.mxu0
      %v3513 = vadd.f32 0.0, %v3512
      %v3514 = vpop.f32.mrf.mxu0
      %v3515 = vadd.f32 0.0, %v3514
      %3516 = vmatmul.bf16.gmra.mxu0 %v1665
      %v3517 = vpop.f32.mrf.mxu0
      %v3518 = vadd.f32 0.0, %v3517
      %v3519 = vpop.f32.mrf.mxu0
      %v3520 = vadd.f32 0.0, %v3519
      %3521 = vmatmul.bf16.gmra.mxu0 %v1673
      %v3522 = vpop.f32.mrf.mxu0
      %v3523 = vadd.f32 0.0, %v3522
      %v3524 = vpop.f32.mrf.mxu0
      %v3525 = vadd.f32 0.0, %v3524
      %3526 = vmatmul.bf16.gmra.mxu0 %v1681
      %v3527 = vpop.f32.mrf.mxu0
      %v3528 = vadd.f32 0.0, %v3527
      %v3529 = vpop.f32.mrf.mxu0
      %v3530 = vadd.f32 0.0, %v3529
      %3531 = vmatmul.bf16.gmra.mxu0 %v1689
      %v3532 = vpop.f32.mrf.mxu0
      %v3533 = vadd.f32 0.0, %v3532
      %v3534 = vpop.f32.mrf.mxu0
      %v3535 = vadd.f32 0.0, %v3534
      %3536 = vmatmul.bf16.gmra.mxu0 %v1697
      %v3537 = vpop.f32.mrf.mxu0
      %v3538 = vadd.f32 0.0, %v3537
      %v3539 = vpop.f32.mrf.mxu0
      %v3540 = vadd.f32 0.0, %v3539
      %3541 = vmatmul.bf16.gmra.mxu0 %v1705
      %v3542 = vpop.f32.mrf.mxu0
      %v3543 = vadd.f32 0.0, %v3542
      %v3544 = vpop.f32.mrf.mxu0
      %v3545 = vadd.f32 0.0, %v3544
      %3546 = vmatmul.bf16.gmra.mxu0 %v1713
      %v3547 = vpop.f32.mrf.mxu0
      %v3548 = vadd.f32 0.0, %v3547
      %v3549 = vpop.f32.mrf.mxu0
      %v3550 = vadd.f32 0.0, %v3549
      %3551 = vmatmul.bf16.gmra.mxu0 %v1721
      %v3552 = vpop.f32.mrf.mxu0
      %v3553 = vadd.f32 0.0, %v3552
      %v3554 = vpop.f32.mrf.mxu0
      %v3555 = vadd.f32 0.0, %v3554
      %3556 = vmatmul.bf16.gmra.mxu0 %v1729
      %v3557 = vpop.f32.mrf.mxu0
      %v3558 = vadd.f32 0.0, %v3557
      %v3559 = vpop.f32.mrf.mxu0
      %v3560 = vadd.f32 0.0, %v3559
      %3561 = vmatmul.bf16.gmra.mxu0 %v1737
      %v3562 = vpop.f32.mrf.mxu0
      %v3563 = vadd.f32 0.0, %v3562
      %v3564 = vpop.f32.mrf.mxu0
      %v3565 = vadd.f32 0.0, %v3564
      %3566 = vmatmul.bf16.gmra.mxu0 %v1745
      %v3567 = vpop.f32.mrf.mxu0
      %v3568 = vadd.f32 0.0, %v3567
      %v3569 = vpop.f32.mrf.mxu0
      %v3570 = vadd.f32 0.0, %v3569
      %3571 = vmatmul.bf16.gmra.mxu0 %v1753
      %v3572 = vpop.f32.mrf.mxu0
      %v3573 = vadd.f32 0.0, %v3572
      %v3574 = vpop.f32.mrf.mxu0
      %v3575 = vadd.f32 0.0, %v3574
      %3576 = vmatmul.bf16.gmra.mxu0 %v1761
      %v3577 = vpop.f32.mrf.mxu0
      %v3578 = vadd.f32 0.0, %v3577
      %v3579 = vpop.f32.mrf.mxu0
      %v3580 = vadd.f32 0.0, %v3579
      %3581 = vmatmul.bf16.gmra.mxu0 %v1769
      %v3582 = vpop.f32.mrf.mxu0
      %v3583 = vadd.f32 0.0, %v3582
      %v3584 = vpop.f32.mrf.mxu0
      %v3585 = vadd.f32 0.0, %v3584
      %3586 = vmatmul.bf16.gmra.mxu0 %v1777
      %v3587 = vpop.f32.mrf.mxu0
      %v3588 = vadd.f32 0.0, %v3587
      %v3589 = vpop.f32.mrf.mxu0
      %v3590 = vadd.f32 0.0, %v3589
      %3591 = vmatmul.bf16.gmra.mxu0 %v1785
      %v3592 = vpop.f32.mrf.mxu0
      %v3593 = vadd.f32 0.0, %v3592
      %v3594 = vpop.f32.mrf.mxu0
      %v3595 = vadd.f32 0.0, %v3594
      %3596 = vmatmul.bf16.gmra.mxu0 %v1793
      %v3597 = vpop.f32.mrf.mxu0
      %v3598 = vadd.f32 0.0, %v3597
      %v3599 = vpop.f32.mrf.mxu0
      %v3600 = vadd.f32 0.0, %v3599
      %3601 = vmatmul.bf16.gmra.mxu0 %v1801
      %v3602 = vpop.f32.mrf.mxu0
      %v3603 = vadd.f32 0.0, %v3602
      %v3604 = vpop.f32.mrf.mxu0
      %v3605 = vadd.f32 0.0, %v3604
      %3606 = vmatmul.bf16.gmra.mxu0 %v1809
      %v3607 = vpop.f32.mrf.mxu0
      %v3608 = vadd.f32 0.0, %v3607
      %v3609 = vpop.f32.mrf.mxu0
      %v3610 = vadd.f32 0.0, %v3609
      %3611 = vmatmul.bf16.gmra.mxu0 %v1817
      %v3612 = vpop.f32.mrf.mxu0
      %v3613 = vadd.f32 0.0, %v3612
      %v3614 = vpop.f32.mrf.mxu0
      %v3615 = vadd.f32 0.0, %v3614
      %3616 = vmatmul.bf16.gmra.mxu0 %v1825
      %v3617 = vpop.f32.mrf.mxu0
      %v3618 = vadd.f32 0.0, %v3617
      %v3619 = vpop.f32.mrf.mxu0
      %v3620 = vadd.f32 0.0, %v3619
      %3621 = vmatmul.bf16.gmra.mxu0 %v1833
      %v3622 = vpop.f32.mrf.mxu0
      %v3623 = vadd.f32 0.0, %v3622
      %v3624 = vpop.f32.mrf.mxu0
      %v3625 = vadd.f32 0.0, %v3624
      %3626 = vmatmul.bf16.gmra.mxu0 %v1841
      %v3627 = vpop.f32.mrf.mxu0
      %v3628 = vadd.f32 0.0, %v3627
      %v3629 = vpop.f32.mrf.mxu0
      %v3630 = vadd.f32 0.0, %v3629
      %3631 = vmatmul.bf16.gmra.mxu0 %v1849
      %v3632 = vpop.f32.mrf.mxu0
      %v3633 = vadd.f32 0.0, %v3632
      %v3634 = vpop.f32.mrf.mxu0
      %v3635 = vadd.f32 0.0, %v3634
      %3636 = vmatmul.bf16.gmra.mxu0 %v1857
      %v3637 = vpop.f32.mrf.mxu0
      %v3638 = vadd.f32 0.0, %v3637
      %v3639 = vpop.f32.mrf.mxu0
      %v3640 = vadd.f32 0.0, %v3639
      %3641 = vdwg.mxu0
      %3642 = vmatpush.bf16.msra.mxu0 %v488
      %3643 = vmatpush.bf16.msra.mxu0 %v486
      %3644 = vmatpush.bf16.msra.mxu0 %v484
      %3645 = vmatpush.bf16.msra.mxu0 %v482
      %3646 = vmatpush.bf16.msra.mxu0 %v480
      %3647 = vmatpush.bf16.msra.mxu0 %v478
      %3648 = vmatpush.bf16.msra.mxu0 %v476
      %3649 = vmatpush.bf16.msra.mxu0 %v474
      %3650 = vmatmul.bf16.gmra.mxu0 %v1610
      %v3651 = vpop.f32.mrf.mxu0
      %v3652 = vadd.f32 %v3483, %v3651
      %v3653 = vpop.f32.mrf.mxu0
      %v3654 = vadd.f32 %v3485, %v3653
      %3655 = vmatmul.bf16.gmra.mxu0 %v1618
      %v3656 = vpop.f32.mrf.mxu0
      %v3657 = vadd.f32 %v3488, %v3656
      %v3658 = vpop.f32.mrf.mxu0
      %v3659 = vadd.f32 %v3490, %v3658
      %3660 = vmatmul.bf16.gmra.mxu0 %v1626
      %v3661 = vpop.f32.mrf.mxu0
      %v3662 = vadd.f32 %v3493, %v3661
      %v3663 = vpop.f32.mrf.mxu0
      %v3664 = vadd.f32 %v3495, %v3663
      %3665 = vmatmul.bf16.gmra.mxu0 %v1634
      %v3666 = vpop.f32.mrf.mxu0
      %v3667 = vadd.f32 %v3498, %v3666
      %v3668 = vpop.f32.mrf.mxu0
      %v3669 = vadd.f32 %v3500, %v3668
      %3670 = vmatmul.bf16.gmra.mxu0 %v1642
      %v3671 = vpop.f32.mrf.mxu0
      %v3672 = vadd.f32 %v3503, %v3671
      %v3673 = vpop.f32.mrf.mxu0
      %v3674 = vadd.f32 %v3505, %v3673
      %3675 = vmatmul.bf16.gmra.mxu0 %v1650
      %v3676 = vpop.f32.mrf.mxu0
      %v3677 = vadd.f32 %v3508, %v3676
      %v3678 = vpop.f32.mrf.mxu0
      %v3679 = vadd.f32 %v3510, %v3678
      %3680 = vmatmul.bf16.gmra.mxu0 %v1658
      %v3681 = vpop.f32.mrf.mxu0
      %v3682 = vadd.f32 %v3513, %v3681
      %v3683 = vpop.f32.mrf.mxu0
      %v3684 = vadd.f32 %v3515, %v3683
      %3685 = vmatmul.bf16.gmra.mxu0 %v1666
      %v3686 = vpop.f32.mrf.mxu0
      %v3687 = vadd.f32 %v3518, %v3686
      %v3688 = vpop.f32.mrf.mxu0
      %v3689 = vadd.f32 %v3520, %v3688
      %3690 = vmatmul.bf16.gmra.mxu0 %v1674
      %v3691 = vpop.f32.mrf.mxu0
      %v3692 = vadd.f32 %v3523, %v3691
      %v3693 = vpop.f32.mrf.mxu0
      %v3694 = vadd.f32 %v3525, %v3693
      %3695 = vmatmul.bf16.gmra.mxu0 %v1682
      %v3696 = vpop.f32.mrf.mxu0
      %v3697 = vadd.f32 %v3528, %v3696
      %v3698 = vpop.f32.mrf.mxu0
      %v3699 = vadd.f32 %v3530, %v3698
      %3700 = vmatmul.bf16.gmra.mxu0 %v1690
      %v3701 = vpop.f32.mrf.mxu0
      %v3702 = vadd.f32 %v3533, %v3701
      %v3703 = vpop.f32.mrf.mxu0
      %v3704 = vadd.f32 %v3535, %v3703
      %3705 = vmatmul.bf16.gmra.mxu0 %v1698
      %v3706 = vpop.f32.mrf.mxu0
      %v3707 = vadd.f32 %v3538, %v3706
      %v3708 = vpop.f32.mrf.mxu0
      %v3709 = vadd.f32 %v3540, %v3708
      %3710 = vmatmul.bf16.gmra.mxu0 %v1706
      %v3711 = vpop.f32.mrf.mxu0
      %v3712 = vadd.f32 %v3543, %v3711
      %v3713 = vpop.f32.mrf.mxu0
      %v3714 = vadd.f32 %v3545, %v3713
      %3715 = vmatmul.bf16.gmra.mxu0 %v1714
      %v3716 = vpop.f32.mrf.mxu0
      %v3717 = vadd.f32 %v3548, %v3716
      %v3718 = vpop.f32.mrf.mxu0
      %v3719 = vadd.f32 %v3550, %v3718
      %3720 = vmatmul.bf16.gmra.mxu0 %v1722
      %v3721 = vpop.f32.mrf.mxu0
      %v3722 = vadd.f32 %v3553, %v3721
      %v3723 = vpop.f32.mrf.mxu0
      %v3724 = vadd.f32 %v3555, %v3723
      %3725 = vmatmul.bf16.gmra.mxu0 %v1730
      %v3726 = vpop.f32.mrf.mxu0
      %v3727 = vadd.f32 %v3558, %v3726
      %v3728 = vpop.f32.mrf.mxu0
      %v3729 = vadd.f32 %v3560, %v3728
      %3730 = vmatmul.bf16.gmra.mxu0 %v1738
      %v3731 = vpop.f32.mrf.mxu0
      %v3732 = vadd.f32 %v3563, %v3731
      %v3733 = vpop.f32.mrf.mxu0
      %v3734 = vadd.f32 %v3565, %v3733
      %3735 = vmatmul.bf16.gmra.mxu0 %v1746
      %v3736 = vpop.f32.mrf.mxu0
      %v3737 = vadd.f32 %v3568, %v3736
      %v3738 = vpop.f32.mrf.mxu0
      %v3739 = vadd.f32 %v3570, %v3738
      %3740 = vmatmul.bf16.gmra.mxu0 %v1754
      %v3741 = vpop.f32.mrf.mxu0
      %v3742 = vadd.f32 %v3573, %v3741
      %v3743 = vpop.f32.mrf.mxu0
      %v3744 = vadd.f32 %v3575, %v3743
      %3745 = vmatmul.bf16.gmra.mxu0 %v1762
      %v3746 = vpop.f32.mrf.mxu0
      %v3747 = vadd.f32 %v3578, %v3746
      %v3748 = vpop.f32.mrf.mxu0
      %v3749 = vadd.f32 %v3580, %v3748
      %3750 = vmatmul.bf16.gmra.mxu0 %v1770
      %v3751 = vpop.f32.mrf.mxu0
      %v3752 = vadd.f32 %v3583, %v3751
      %v3753 = vpop.f32.mrf.mxu0
      %v3754 = vadd.f32 %v3585, %v3753
      %3755 = vmatmul.bf16.gmra.mxu0 %v1778
      %v3756 = vpop.f32.mrf.mxu0
      %v3757 = vadd.f32 %v3588, %v3756
      %v3758 = vpop.f32.mrf.mxu0
      %v3759 = vadd.f32 %v3590, %v3758
      %3760 = vmatmul.bf16.gmra.mxu0 %v1786
      %v3761 = vpop.f32.mrf.mxu0
      %v3762 = vadd.f32 %v3593, %v3761
      %v3763 = vpop.f32.mrf.mxu0
      %v3764 = vadd.f32 %v3595, %v3763
      %3765 = vmatmul.bf16.gmra.mxu0 %v1794
      %v3766 = vpop.f32.mrf.mxu0
      %v3767 = vadd.f32 %v3598, %v3766
      %v3768 = vpop.f32.mrf.mxu0
      %v3769 = vadd.f32 %v3600, %v3768
      %3770 = vmatmul.bf16.gmra.mxu0 %v1802
      %v3771 = vpop.f32.mrf.mxu0
      %v3772 = vadd.f32 %v3603, %v3771
      %v3773 = vpop.f32.mrf.mxu0
      %v3774 = vadd.f32 %v3605, %v3773
      %3775 = vmatmul.bf16.gmra.mxu0 %v1810
      %v3776 = vpop.f32.mrf.mxu0
      %v3777 = vadd.f32 %v3608, %v3776
      %v3778 = vpop.f32.mrf.mxu0
      %v3779 = vadd.f32 %v3610, %v3778
      %3780 = vmatmul.bf16.gmra.mxu0 %v1818
      %v3781 = vpop.f32.mrf.mxu0
      %v3782 = vadd.f32 %v3613, %v3781
      %v3783 = vpop.f32.mrf.mxu0
      %v3784 = vadd.f32 %v3615, %v3783
      %3785 = vmatmul.bf16.gmra.mxu0 %v1826
      %v3786 = vpop.f32.mrf.mxu0
      %v3787 = vadd.f32 %v3618, %v3786
      %v3788 = vpop.f32.mrf.mxu0
      %v3789 = vadd.f32 %v3620, %v3788
      %3790 = vmatmul.bf16.gmra.mxu0 %v1834
      %v3791 = vpop.f32.mrf.mxu0
      %v3792 = vadd.f32 %v3623, %v3791
      %v3793 = vpop.f32.mrf.mxu0
      %v3794 = vadd.f32 %v3625, %v3793
      %3795 = vmatmul.bf16.gmra.mxu0 %v1842
      %v3796 = vpop.f32.mrf.mxu0
      %v3797 = vadd.f32 %v3628, %v3796
      %v3798 = vpop.f32.mrf.mxu0
      %v3799 = vadd.f32 %v3630, %v3798
      %3800 = vmatmul.bf16.gmra.mxu0 %v1850
      %v3801 = vpop.f32.mrf.mxu0
      %v3802 = vadd.f32 %v3633, %v3801
      %v3803 = vpop.f32.mrf.mxu0
      %v3804 = vadd.f32 %v3635, %v3803
      %3805 = vmatmul.bf16.gmra.mxu0 %v1858
      %v3806 = vpop.f32.mrf.mxu0
      %v3807 = vadd.f32 %v3638, %v3806
      %v3808 = vpop.f32.mrf.mxu0
      %v3809 = vadd.f32 %v3640, %v3808
      %3810 = vdwg.mxu0
      %3811 = vmatpush.bf16.msra.mxu0 %v504
      %3812 = vmatpush.bf16.msra.mxu0 %v502
      %3813 = vmatpush.bf16.msra.mxu0 %v500
      %3814 = vmatpush.bf16.msra.mxu0 %v498
      %3815 = vmatpush.bf16.msra.mxu0 %v496
      %3816 = vmatpush.bf16.msra.mxu0 %v494
      %3817 = vmatpush.bf16.msra.mxu0 %v492
      %3818 = vmatpush.bf16.msra.mxu0 %v490
      %3819 = vmatmul.bf16.gmra.mxu0 %v1611
      %v3820 = vpop.f32.mrf.mxu0
      %v3821 = vadd.f32 %v3652, %v3820
      %v3822 = vpop.f32.mrf.mxu0
      %v3823 = vadd.f32 %v3654, %v3822
      %3824 = vmatmul.bf16.gmra.mxu0 %v1619
      %v3825 = vpop.f32.mrf.mxu0
      %v3826 = vadd.f32 %v3657, %v3825
      %v3827 = vpop.f32.mrf.mxu0
      %v3828 = vadd.f32 %v3659, %v3827
      %3829 = vmatmul.bf16.gmra.mxu0 %v1627
      %v3830 = vpop.f32.mrf.mxu0
      %v3831 = vadd.f32 %v3662, %v3830
      %v3832 = vpop.f32.mrf.mxu0
      %v3833 = vadd.f32 %v3664, %v3832
      %3834 = vmatmul.bf16.gmra.mxu0 %v1635
      %v3835 = vpop.f32.mrf.mxu0
      %v3836 = vadd.f32 %v3667, %v3835
      %v3837 = vpop.f32.mrf.mxu0
      %v3838 = vadd.f32 %v3669, %v3837
      %3839 = vmatmul.bf16.gmra.mxu0 %v1643
      %v3840 = vpop.f32.mrf.mxu0
      %v3841 = vadd.f32 %v3672, %v3840
      %v3842 = vpop.f32.mrf.mxu0
      %v3843 = vadd.f32 %v3674, %v3842
      %3844 = vmatmul.bf16.gmra.mxu0 %v1651
      %v3845 = vpop.f32.mrf.mxu0
      %v3846 = vadd.f32 %v3677, %v3845
      %v3847 = vpop.f32.mrf.mxu0
      %v3848 = vadd.f32 %v3679, %v3847
      %3849 = vmatmul.bf16.gmra.mxu0 %v1659
      %v3850 = vpop.f32.mrf.mxu0
      %v3851 = vadd.f32 %v3682, %v3850
      %v3852 = vpop.f32.mrf.mxu0
      %v3853 = vadd.f32 %v3684, %v3852
      %3854 = vmatmul.bf16.gmra.mxu0 %v1667
      %v3855 = vpop.f32.mrf.mxu0
      %v3856 = vadd.f32 %v3687, %v3855
      %v3857 = vpop.f32.mrf.mxu0
      %v3858 = vadd.f32 %v3689, %v3857
      %3859 = vmatmul.bf16.gmra.mxu0 %v1675
      %v3860 = vpop.f32.mrf.mxu0
      %v3861 = vadd.f32 %v3692, %v3860
      %v3862 = vpop.f32.mrf.mxu0
      %v3863 = vadd.f32 %v3694, %v3862
      %3864 = vmatmul.bf16.gmra.mxu0 %v1683
      %v3865 = vpop.f32.mrf.mxu0
      %v3866 = vadd.f32 %v3697, %v3865
      %v3867 = vpop.f32.mrf.mxu0
      %v3868 = vadd.f32 %v3699, %v3867
      %3869 = vmatmul.bf16.gmra.mxu0 %v1691
      %v3870 = vpop.f32.mrf.mxu0
      %v3871 = vadd.f32 %v3702, %v3870
      %v3872 = vpop.f32.mrf.mxu0
      %v3873 = vadd.f32 %v3704, %v3872
      %3874 = vmatmul.bf16.gmra.mxu0 %v1699
      %v3875 = vpop.f32.mrf.mxu0
      %v3876 = vadd.f32 %v3707, %v3875
      %v3877 = vpop.f32.mrf.mxu0
      %v3878 = vadd.f32 %v3709, %v3877
      %3879 = vmatmul.bf16.gmra.mxu0 %v1707
      %v3880 = vpop.f32.mrf.mxu0
      %v3881 = vadd.f32 %v3712, %v3880
      %v3882 = vpop.f32.mrf.mxu0
      %v3883 = vadd.f32 %v3714, %v3882
      %3884 = vmatmul.bf16.gmra.mxu0 %v1715
      %v3885 = vpop.f32.mrf.mxu0
      %v3886 = vadd.f32 %v3717, %v3885
      %v3887 = vpop.f32.mrf.mxu0
      %v3888 = vadd.f32 %v3719, %v3887
      %3889 = vmatmul.bf16.gmra.mxu0 %v1723
      %v3890 = vpop.f32.mrf.mxu0
      %v3891 = vadd.f32 %v3722, %v3890
      %v3892 = vpop.f32.mrf.mxu0
      %v3893 = vadd.f32 %v3724, %v3892
      %3894 = vmatmul.bf16.gmra.mxu0 %v1731
      %v3895 = vpop.f32.mrf.mxu0
      %v3896 = vadd.f32 %v3727, %v3895
      %v3897 = vpop.f32.mrf.mxu0
      %v3898 = vadd.f32 %v3729, %v3897
      %3899 = vmatmul.bf16.gmra.mxu0 %v1739
      %v3900 = vpop.f32.mrf.mxu0
      %v3901 = vadd.f32 %v3732, %v3900
      %v3902 = vpop.f32.mrf.mxu0
      %v3903 = vadd.f32 %v3734, %v3902
      %3904 = vmatmul.bf16.gmra.mxu0 %v1747
      %v3905 = vpop.f32.mrf.mxu0
      %v3906 = vadd.f32 %v3737, %v3905
      %v3907 = vpop.f32.mrf.mxu0
      %v3908 = vadd.f32 %v3739, %v3907
      %3909 = vmatmul.bf16.gmra.mxu0 %v1755
      %v3910 = vpop.f32.mrf.mxu0
      %v3911 = vadd.f32 %v3742, %v3910
      %v3912 = vpop.f32.mrf.mxu0
      %v3913 = vadd.f32 %v3744, %v3912
      %3914 = vmatmul.bf16.gmra.mxu0 %v1763
      %v3915 = vpop.f32.mrf.mxu0
      %v3916 = vadd.f32 %v3747, %v3915
      %v3917 = vpop.f32.mrf.mxu0
      %v3918 = vadd.f32 %v3749, %v3917
      %3919 = vmatmul.bf16.gmra.mxu0 %v1771
      %v3920 = vpop.f32.mrf.mxu0
      %v3921 = vadd.f32 %v3752, %v3920
      %v3922 = vpop.f32.mrf.mxu0
      %v3923 = vadd.f32 %v3754, %v3922
      %3924 = vmatmul.bf16.gmra.mxu0 %v1779
      %v3925 = vpop.f32.mrf.mxu0
      %v3926 = vadd.f32 %v3757, %v3925
      %v3927 = vpop.f32.mrf.mxu0
      %v3928 = vadd.f32 %v3759, %v3927
      %3929 = vmatmul.bf16.gmra.mxu0 %v1787
      %v3930 = vpop.f32.mrf.mxu0
      %v3931 = vadd.f32 %v3762, %v3930
      %v3932 = vpop.f32.mrf.mxu0
      %v3933 = vadd.f32 %v3764, %v3932
      %3934 = vmatmul.bf16.gmra.mxu0 %v1795
      %v3935 = vpop.f32.mrf.mxu0
      %v3936 = vadd.f32 %v3767, %v3935
      %v3937 = vpop.f32.mrf.mxu0
      %v3938 = vadd.f32 %v3769, %v3937
      %3939 = vmatmul.bf16.gmra.mxu0 %v1803
      %v3940 = vpop.f32.mrf.mxu0
      %v3941 = vadd.f32 %v3772, %v3940
      %v3942 = vpop.f32.mrf.mxu0
      %v3943 = vadd.f32 %v3774, %v3942
      %3944 = vmatmul.bf16.gmra.mxu0 %v1811
      %v3945 = vpop.f32.mrf.mxu0
      %v3946 = vadd.f32 %v3777, %v3945
      %v3947 = vpop.f32.mrf.mxu0
      %v3948 = vadd.f32 %v3779, %v3947
      %3949 = vmatmul.bf16.gmra.mxu0 %v1819
      %v3950 = vpop.f32.mrf.mxu0
      %v3951 = vadd.f32 %v3782, %v3950
      %v3952 = vpop.f32.mrf.mxu0
      %v3953 = vadd.f32 %v3784, %v3952
      %3954 = vmatmul.bf16.gmra.mxu0 %v1827
      %v3955 = vpop.f32.mrf.mxu0
      %v3956 = vadd.f32 %v3787, %v3955
      %v3957 = vpop.f32.mrf.mxu0
      %v3958 = vadd.f32 %v3789, %v3957
      %3959 = vmatmul.bf16.gmra.mxu0 %v1835
      %v3960 = vpop.f32.mrf.mxu0
      %v3961 = vadd.f32 %v3792, %v3960
      %v3962 = vpop.f32.mrf.mxu0
      %v3963 = vadd.f32 %v3794, %v3962
      %3964 = vmatmul.bf16.gmra.mxu0 %v1843
      %v3965 = vpop.f32.mrf.mxu0
      %v3966 = vadd.f32 %v3797, %v3965
      %v3967 = vpop.f32.mrf.mxu0
      %v3968 = vadd.f32 %v3799, %v3967
      %3969 = vmatmul.bf16.gmra.mxu0 %v1851
      %v3970 = vpop.f32.mrf.mxu0
      %v3971 = vadd.f32 %v3802, %v3970
      %v3972 = vpop.f32.mrf.mxu0
      %v3973 = vadd.f32 %v3804, %v3972
      %3974 = vmatmul.bf16.gmra.mxu0 %v1859
      %v3975 = vpop.f32.mrf.mxu0
      %v3976 = vadd.f32 %v3807, %v3975
      %v3977 = vpop.f32.mrf.mxu0
      %v3978 = vadd.f32 %v3809, %v3977
      %3979 = vdwg.mxu0
      %3980 = vmatpush.bf16.msra.mxu0 %v520
      %3981 = vmatpush.bf16.msra.mxu0 %v518
      %3982 = vmatpush.bf16.msra.mxu0 %v516
      %3983 = vmatpush.bf16.msra.mxu0 %v514
      %3984 = vmatpush.bf16.msra.mxu0 %v512
      %3985 = vmatpush.bf16.msra.mxu0 %v510
      %3986 = vmatpush.bf16.msra.mxu0 %v508
      %3987 = vmatpush.bf16.msra.mxu0 %v506
      %3988 = vmatmul.bf16.gmra.mxu0 %v1612
      %v3989 = vpop.f32.mrf.mxu0
      %v3990 = vadd.f32 %v3821, %v3989
      %v3991 = vpop.f32.mrf.mxu0
      %v3992 = vadd.f32 %v3823, %v3991
      %3993 = vmatmul.bf16.gmra.mxu0 %v1620
      %v3994 = vpop.f32.mrf.mxu0
      %v3995 = vadd.f32 %v3826, %v3994
      %v3996 = vpop.f32.mrf.mxu0
      %v3997 = vadd.f32 %v3828, %v3996
      %3998 = vmatmul.bf16.gmra.mxu0 %v1628
      %v3999 = vpop.f32.mrf.mxu0
      %v4000 = vadd.f32 %v3831, %v3999
      %v4001 = vpop.f32.mrf.mxu0
      %v4002 = vadd.f32 %v3833, %v4001
      %4003 = vmatmul.bf16.gmra.mxu0 %v1636
      %v4004 = vpop.f32.mrf.mxu0
      %v4005 = vadd.f32 %v3836, %v4004
      %v4006 = vpop.f32.mrf.mxu0
      %v4007 = vadd.f32 %v3838, %v4006
      %4008 = vmatmul.bf16.gmra.mxu0 %v1644
      %v4009 = vpop.f32.mrf.mxu0
      %v4010 = vadd.f32 %v3841, %v4009
      %v4011 = vpop.f32.mrf.mxu0
      %v4012 = vadd.f32 %v3843, %v4011
      %4013 = vmatmul.bf16.gmra.mxu0 %v1652
      %v4014 = vpop.f32.mrf.mxu0
      %v4015 = vadd.f32 %v3846, %v4014
      %v4016 = vpop.f32.mrf.mxu0
      %v4017 = vadd.f32 %v3848, %v4016
      %4018 = vmatmul.bf16.gmra.mxu0 %v1660
      %v4019 = vpop.f32.mrf.mxu0
      %v4020 = vadd.f32 %v3851, %v4019
      %v4021 = vpop.f32.mrf.mxu0
      %v4022 = vadd.f32 %v3853, %v4021
      %4023 = vmatmul.bf16.gmra.mxu0 %v1668
      %v4024 = vpop.f32.mrf.mxu0
      %v4025 = vadd.f32 %v3856, %v4024
      %v4026 = vpop.f32.mrf.mxu0
      %v4027 = vadd.f32 %v3858, %v4026
      %4028 = vmatmul.bf16.gmra.mxu0 %v1676
      %v4029 = vpop.f32.mrf.mxu0
      %v4030 = vadd.f32 %v3861, %v4029
      %v4031 = vpop.f32.mrf.mxu0
      %v4032 = vadd.f32 %v3863, %v4031
      %4033 = vmatmul.bf16.gmra.mxu0 %v1684
      %v4034 = vpop.f32.mrf.mxu0
      %v4035 = vadd.f32 %v3866, %v4034
      %v4036 = vpop.f32.mrf.mxu0
      %v4037 = vadd.f32 %v3868, %v4036
      %4038 = vmatmul.bf16.gmra.mxu0 %v1692
      %v4039 = vpop.f32.mrf.mxu0
      %v4040 = vadd.f32 %v3871, %v4039
      %v4041 = vpop.f32.mrf.mxu0
      %v4042 = vadd.f32 %v3873, %v4041
      %4043 = vmatmul.bf16.gmra.mxu0 %v1700
      %v4044 = vpop.f32.mrf.mxu0
      %v4045 = vadd.f32 %v3876, %v4044
      %v4046 = vpop.f32.mrf.mxu0
      %v4047 = vadd.f32 %v3878, %v4046
      %4048 = vmatmul.bf16.gmra.mxu0 %v1708
      %v4049 = vpop.f32.mrf.mxu0
      %v4050 = vadd.f32 %v3881, %v4049
      %v4051 = vpop.f32.mrf.mxu0
      %v4052 = vadd.f32 %v3883, %v4051
      %4053 = vmatmul.bf16.gmra.mxu0 %v1716
      %v4054 = vpop.f32.mrf.mxu0
      %v4055 = vadd.f32 %v3886, %v4054
      %v4056 = vpop.f32.mrf.mxu0
      %v4057 = vadd.f32 %v3888, %v4056
      %4058 = vmatmul.bf16.gmra.mxu0 %v1724
      %v4059 = vpop.f32.mrf.mxu0
      %v4060 = vadd.f32 %v3891, %v4059
      %v4061 = vpop.f32.mrf.mxu0
      %v4062 = vadd.f32 %v3893, %v4061
      %4063 = vmatmul.bf16.gmra.mxu0 %v1732
      %v4064 = vpop.f32.mrf.mxu0
      %v4065 = vadd.f32 %v3896, %v4064
      %v4066 = vpop.f32.mrf.mxu0
      %v4067 = vadd.f32 %v3898, %v4066
      %4068 = vmatmul.bf16.gmra.mxu0 %v1740
      %v4069 = vpop.f32.mrf.mxu0
      %v4070 = vadd.f32 %v3901, %v4069
      %v4071 = vpop.f32.mrf.mxu0
      %v4072 = vadd.f32 %v3903, %v4071
      %4073 = vmatmul.bf16.gmra.mxu0 %v1748
      %v4074 = vpop.f32.mrf.mxu0
      %v4075 = vadd.f32 %v3906, %v4074
      %v4076 = vpop.f32.mrf.mxu0
      %v4077 = vadd.f32 %v3908, %v4076
      %4078 = vmatmul.bf16.gmra.mxu0 %v1756
      %v4079 = vpop.f32.mrf.mxu0
      %v4080 = vadd.f32 %v3911, %v4079
      %v4081 = vpop.f32.mrf.mxu0
      %v4082 = vadd.f32 %v3913, %v4081
      %4083 = vmatmul.bf16.gmra.mxu0 %v1764
      %v4084 = vpop.f32.mrf.mxu0
      %v4085 = vadd.f32 %v3916, %v4084
      %v4086 = vpop.f32.mrf.mxu0
      %v4087 = vadd.f32 %v3918, %v4086
      %4088 = vmatmul.bf16.gmra.mxu0 %v1772
      %v4089 = vpop.f32.mrf.mxu0
      %v4090 = vadd.f32 %v3921, %v4089
      %v4091 = vpop.f32.mrf.mxu0
      %v4092 = vadd.f32 %v3923, %v4091
      %4093 = vmatmul.bf16.gmra.mxu0 %v1780
      %v4094 = vpop.f32.mrf.mxu0
      %v4095 = vadd.f32 %v3926, %v4094
      %v4096 = vpop.f32.mrf.mxu0
      %v4097 = vadd.f32 %v3928, %v4096
      %4098 = vmatmul.bf16.gmra.mxu0 %v1788
      %v4099 = vpop.f32.mrf.mxu0
      %v4100 = vadd.f32 %v3931, %v4099
      %v4101 = vpop.f32.mrf.mxu0
      %v4102 = vadd.f32 %v3933, %v4101
      %4103 = vmatmul.bf16.gmra.mxu0 %v1796
      %v4104 = vpop.f32.mrf.mxu0
      %v4105 = vadd.f32 %v3936, %v4104
      %v4106 = vpop.f32.mrf.mxu0
      %v4107 = vadd.f32 %v3938, %v4106
      %4108 = vmatmul.bf16.gmra.mxu0 %v1804
      %v4109 = vpop.f32.mrf.mxu0
      %v4110 = vadd.f32 %v3941, %v4109
      %v4111 = vpop.f32.mrf.mxu0
      %v4112 = vadd.f32 %v3943, %v4111
      %4113 = vmatmul.bf16.gmra.mxu0 %v1812
      %v4114 = vpop.f32.mrf.mxu0
      %v4115 = vadd.f32 %v3946, %v4114
      %v4116 = vpop.f32.mrf.mxu0
      %v4117 = vadd.f32 %v3948, %v4116
      %4118 = vmatmul.bf16.gmra.mxu0 %v1820
      %v4119 = vpop.f32.mrf.mxu0
      %v4120 = vadd.f32 %v3951, %v4119
      %v4121 = vpop.f32.mrf.mxu0
      %v4122 = vadd.f32 %v3953, %v4121
      %4123 = vmatmul.bf16.gmra.mxu0 %v1828
      %v4124 = vpop.f32.mrf.mxu0
      %v4125 = vadd.f32 %v3956, %v4124
      %v4126 = vpop.f32.mrf.mxu0
      %v4127 = vadd.f32 %v3958, %v4126
      %4128 = vmatmul.bf16.gmra.mxu0 %v1836
      %v4129 = vpop.f32.mrf.mxu0
      %v4130 = vadd.f32 %v3961, %v4129
      %v4131 = vpop.f32.mrf.mxu0
      %v4132 = vadd.f32 %v3963, %v4131
      %4133 = vmatmul.bf16.gmra.mxu0 %v1844
      %v4134 = vpop.f32.mrf.mxu0
      %v4135 = vadd.f32 %v3966, %v4134
      %v4136 = vpop.f32.mrf.mxu0
      %v4137 = vadd.f32 %v3968, %v4136
      %4138 = vmatmul.bf16.gmra.mxu0 %v1852
      %v4139 = vpop.f32.mrf.mxu0
      %v4140 = vadd.f32 %v3971, %v4139
      %v4141 = vpop.f32.mrf.mxu0
      %v4142 = vadd.f32 %v3973, %v4141
      %4143 = vmatmul.bf16.gmra.mxu0 %v1860
      %v4144 = vpop.f32.mrf.mxu0
      %v4145 = vadd.f32 %v3976, %v4144
      %v4146 = vpop.f32.mrf.mxu0
      %v4147 = vadd.f32 %v3978, %v4146
      %4148 = vdwg.mxu0
      %4149 = vmatpush.bf16.msra.mxu0 %v536
      %4150 = vmatpush.bf16.msra.mxu0 %v534
      %4151 = vmatpush.bf16.msra.mxu0 %v532
      %4152 = vmatpush.bf16.msra.mxu0 %v530
      %4153 = vmatpush.bf16.msra.mxu0 %v528
      %4154 = vmatpush.bf16.msra.mxu0 %v526
      %4155 = vmatpush.bf16.msra.mxu0 %v524
      %4156 = vmatpush.bf16.msra.mxu0 %v522
      %4157 = vmatmul.bf16.gmra.mxu0 %v1613
      %v4158 = vpop.f32.mrf.mxu0
      %v4159 = vadd.f32 %v3990, %v4158
      %v4160 = vpop.f32.mrf.mxu0
      %v4161 = vadd.f32 %v3992, %v4160
      %4162 = vmatmul.bf16.gmra.mxu0 %v1621
      %v4163 = vpop.f32.mrf.mxu0
      %v4164 = vadd.f32 %v3995, %v4163
      %v4165 = vpop.f32.mrf.mxu0
      %v4166 = vadd.f32 %v3997, %v4165
      %4167 = vmatmul.bf16.gmra.mxu0 %v1629
      %v4168 = vpop.f32.mrf.mxu0
      %v4169 = vadd.f32 %v4000, %v4168
      %v4170 = vpop.f32.mrf.mxu0
      %v4171 = vadd.f32 %v4002, %v4170
      %4172 = vmatmul.bf16.gmra.mxu0 %v1637
      %v4173 = vpop.f32.mrf.mxu0
      %v4174 = vadd.f32 %v4005, %v4173
      %v4175 = vpop.f32.mrf.mxu0
      %v4176 = vadd.f32 %v4007, %v4175
      %4177 = vmatmul.bf16.gmra.mxu0 %v1645
      %v4178 = vpop.f32.mrf.mxu0
      %v4179 = vadd.f32 %v4010, %v4178
      %v4180 = vpop.f32.mrf.mxu0
      %v4181 = vadd.f32 %v4012, %v4180
      %4182 = vmatmul.bf16.gmra.mxu0 %v1653
      %v4183 = vpop.f32.mrf.mxu0
      %v4184 = vadd.f32 %v4015, %v4183
      %v4185 = vpop.f32.mrf.mxu0
      %v4186 = vadd.f32 %v4017, %v4185
      %4187 = vmatmul.bf16.gmra.mxu0 %v1661
      %v4188 = vpop.f32.mrf.mxu0
      %v4189 = vadd.f32 %v4020, %v4188
      %v4190 = vpop.f32.mrf.mxu0
      %v4191 = vadd.f32 %v4022, %v4190
      %4192 = vmatmul.bf16.gmra.mxu0 %v1669
      %v4193 = vpop.f32.mrf.mxu0
      %v4194 = vadd.f32 %v4025, %v4193
      %v4195 = vpop.f32.mrf.mxu0
      %v4196 = vadd.f32 %v4027, %v4195
      %4197 = vmatmul.bf16.gmra.mxu0 %v1677
      %v4198 = vpop.f32.mrf.mxu0
      %v4199 = vadd.f32 %v4030, %v4198
      %v4200 = vpop.f32.mrf.mxu0
      %v4201 = vadd.f32 %v4032, %v4200
      %4202 = vmatmul.bf16.gmra.mxu0 %v1685
      %v4203 = vpop.f32.mrf.mxu0
      %v4204 = vadd.f32 %v4035, %v4203
      %v4205 = vpop.f32.mrf.mxu0
      %v4206 = vadd.f32 %v4037, %v4205
      %4207 = vmatmul.bf16.gmra.mxu0 %v1693
      %v4208 = vpop.f32.mrf.mxu0
      %v4209 = vadd.f32 %v4040, %v4208
      %v4210 = vpop.f32.mrf.mxu0
      %v4211 = vadd.f32 %v4042, %v4210
      %4212 = vmatmul.bf16.gmra.mxu0 %v1701
      %v4213 = vpop.f32.mrf.mxu0
      %v4214 = vadd.f32 %v4045, %v4213
      %v4215 = vpop.f32.mrf.mxu0
      %v4216 = vadd.f32 %v4047, %v4215
      %4217 = vmatmul.bf16.gmra.mxu0 %v1709
      %v4218 = vpop.f32.mrf.mxu0
      %v4219 = vadd.f32 %v4050, %v4218
      %v4220 = vpop.f32.mrf.mxu0
      %v4221 = vadd.f32 %v4052, %v4220
      %4222 = vmatmul.bf16.gmra.mxu0 %v1717
      %v4223 = vpop.f32.mrf.mxu0
      %v4224 = vadd.f32 %v4055, %v4223
      %v4225 = vpop.f32.mrf.mxu0
      %v4226 = vadd.f32 %v4057, %v4225
      %4227 = vmatmul.bf16.gmra.mxu0 %v1725
      %v4228 = vpop.f32.mrf.mxu0
      %v4229 = vadd.f32 %v4060, %v4228
      %v4230 = vpop.f32.mrf.mxu0
      %v4231 = vadd.f32 %v4062, %v4230
      %4232 = vmatmul.bf16.gmra.mxu0 %v1733
      %v4233 = vpop.f32.mrf.mxu0
      %v4234 = vadd.f32 %v4065, %v4233
      %v4235 = vpop.f32.mrf.mxu0
      %v4236 = vadd.f32 %v4067, %v4235
      %4237 = vmatmul.bf16.gmra.mxu0 %v1741
      %v4238 = vpop.f32.mrf.mxu0
      %v4239 = vadd.f32 %v4070, %v4238
      %v4240 = vpop.f32.mrf.mxu0
      %v4241 = vadd.f32 %v4072, %v4240
      %4242 = vmatmul.bf16.gmra.mxu0 %v1749
      %v4243 = vpop.f32.mrf.mxu0
      %v4244 = vadd.f32 %v4075, %v4243
      %v4245 = vpop.f32.mrf.mxu0
      %v4246 = vadd.f32 %v4077, %v4245
      %4247 = vmatmul.bf16.gmra.mxu0 %v1757
      %v4248 = vpop.f32.mrf.mxu0
      %v4249 = vadd.f32 %v4080, %v4248
      %v4250 = vpop.f32.mrf.mxu0
      %v4251 = vadd.f32 %v4082, %v4250
      %4252 = vmatmul.bf16.gmra.mxu0 %v1765
      %v4253 = vpop.f32.mrf.mxu0
      %v4254 = vadd.f32 %v4085, %v4253
      %v4255 = vpop.f32.mrf.mxu0
      %v4256 = vadd.f32 %v4087, %v4255
      %4257 = vmatmul.bf16.gmra.mxu0 %v1773
      %v4258 = vpop.f32.mrf.mxu0
      %v4259 = vadd.f32 %v4090, %v4258
      %v4260 = vpop.f32.mrf.mxu0
      %v4261 = vadd.f32 %v4092, %v4260
      %4262 = vmatmul.bf16.gmra.mxu0 %v1781
      %v4263 = vpop.f32.mrf.mxu0
      %v4264 = vadd.f32 %v4095, %v4263
      %v4265 = vpop.f32.mrf.mxu0
      %v4266 = vadd.f32 %v4097, %v4265
      %4267 = vmatmul.bf16.gmra.mxu0 %v1789
      %v4268 = vpop.f32.mrf.mxu0
      %v4269 = vadd.f32 %v4100, %v4268
      %v4270 = vpop.f32.mrf.mxu0
      %v4271 = vadd.f32 %v4102, %v4270
      %4272 = vmatmul.bf16.gmra.mxu0 %v1797
      %v4273 = vpop.f32.mrf.mxu0
      %v4274 = vadd.f32 %v4105, %v4273
      %v4275 = vpop.f32.mrf.mxu0
      %v4276 = vadd.f32 %v4107, %v4275
      %4277 = vmatmul.bf16.gmra.mxu0 %v1805
      %v4278 = vpop.f32.mrf.mxu0
      %v4279 = vadd.f32 %v4110, %v4278
      %v4280 = vpop.f32.mrf.mxu0
      %v4281 = vadd.f32 %v4112, %v4280
      %4282 = vmatmul.bf16.gmra.mxu0 %v1813
      %v4283 = vpop.f32.mrf.mxu0
      %v4284 = vadd.f32 %v4115, %v4283
      %v4285 = vpop.f32.mrf.mxu0
      %v4286 = vadd.f32 %v4117, %v4285
      %4287 = vmatmul.bf16.gmra.mxu0 %v1821
      %v4288 = vpop.f32.mrf.mxu0
      %v4289 = vadd.f32 %v4120, %v4288
      %v4290 = vpop.f32.mrf.mxu0
      %v4291 = vadd.f32 %v4122, %v4290
      %4292 = vmatmul.bf16.gmra.mxu0 %v1829
      %v4293 = vpop.f32.mrf.mxu0
      %v4294 = vadd.f32 %v4125, %v4293
      %v4295 = vpop.f32.mrf.mxu0
      %v4296 = vadd.f32 %v4127, %v4295
      %4297 = vmatmul.bf16.gmra.mxu0 %v1837
      %v4298 = vpop.f32.mrf.mxu0
      %v4299 = vadd.f32 %v4130, %v4298
      %v4300 = vpop.f32.mrf.mxu0
      %v4301 = vadd.f32 %v4132, %v4300
      %4302 = vmatmul.bf16.gmra.mxu0 %v1845
      %v4303 = vpop.f32.mrf.mxu0
      %v4304 = vadd.f32 %v4135, %v4303
      %v4305 = vpop.f32.mrf.mxu0
      %v4306 = vadd.f32 %v4137, %v4305
      %4307 = vmatmul.bf16.gmra.mxu0 %v1853
      %v4308 = vpop.f32.mrf.mxu0
      %v4309 = vadd.f32 %v4140, %v4308
      %v4310 = vpop.f32.mrf.mxu0
      %v4311 = vadd.f32 %v4142, %v4310
      %4312 = vmatmul.bf16.gmra.mxu0 %v1861
      %v4313 = vpop.f32.mrf.mxu0
      %v4314 = vadd.f32 %v4145, %v4313
      %v4315 = vpop.f32.mrf.mxu0
      %v4316 = vadd.f32 %v4147, %v4315
      %4317 = vdwg.mxu0
      %4318 = vmatpush.bf16.msra.mxu0 %v552
      %4319 = vmatpush.bf16.msra.mxu0 %v550
      %4320 = vmatpush.bf16.msra.mxu0 %v548
      %4321 = vmatpush.bf16.msra.mxu0 %v546
      %4322 = vmatpush.bf16.msra.mxu0 %v544
      %4323 = vmatpush.bf16.msra.mxu0 %v542
      %4324 = vmatpush.bf16.msra.mxu0 %v540
      %4325 = vmatpush.bf16.msra.mxu0 %v538
      %4326 = vmatmul.bf16.gmra.mxu0 %v1614
      %v4327 = vpop.f32.mrf.mxu0
      %v4328 = vadd.f32 %v4159, %v4327
      %v4329 = vpop.f32.mrf.mxu0
      %v4330 = vadd.f32 %v4161, %v4329
      %4331 = vmatmul.bf16.gmra.mxu0 %v1622
      %v4332 = vpop.f32.mrf.mxu0
      %v4333 = vadd.f32 %v4164, %v4332
      %v4334 = vpop.f32.mrf.mxu0
      %v4335 = vadd.f32 %v4166, %v4334
      %4336 = vmatmul.bf16.gmra.mxu0 %v1630
      %v4337 = vpop.f32.mrf.mxu0
      %v4338 = vadd.f32 %v4169, %v4337
      %v4339 = vpop.f32.mrf.mxu0
      %v4340 = vadd.f32 %v4171, %v4339
      %4341 = vmatmul.bf16.gmra.mxu0 %v1638
      %v4342 = vpop.f32.mrf.mxu0
      %v4343 = vadd.f32 %v4174, %v4342
      %v4344 = vpop.f32.mrf.mxu0
      %v4345 = vadd.f32 %v4176, %v4344
      %4346 = vmatmul.bf16.gmra.mxu0 %v1646
      %v4347 = vpop.f32.mrf.mxu0
      %v4348 = vadd.f32 %v4179, %v4347
      %v4349 = vpop.f32.mrf.mxu0
      %v4350 = vadd.f32 %v4181, %v4349
      %4351 = vmatmul.bf16.gmra.mxu0 %v1654
      %v4352 = vpop.f32.mrf.mxu0
      %v4353 = vadd.f32 %v4184, %v4352
      %v4354 = vpop.f32.mrf.mxu0
      %v4355 = vadd.f32 %v4186, %v4354
      %4356 = vmatmul.bf16.gmra.mxu0 %v1662
      %v4357 = vpop.f32.mrf.mxu0
      %v4358 = vadd.f32 %v4189, %v4357
      %v4359 = vpop.f32.mrf.mxu0
      %v4360 = vadd.f32 %v4191, %v4359
      %4361 = vmatmul.bf16.gmra.mxu0 %v1670
      %v4362 = vpop.f32.mrf.mxu0
      %v4363 = vadd.f32 %v4194, %v4362
      %v4364 = vpop.f32.mrf.mxu0
      %v4365 = vadd.f32 %v4196, %v4364
      %4366 = vmatmul.bf16.gmra.mxu0 %v1678
      %v4367 = vpop.f32.mrf.mxu0
      %v4368 = vadd.f32 %v4199, %v4367
      %v4369 = vpop.f32.mrf.mxu0
      %v4370 = vadd.f32 %v4201, %v4369
      %4371 = vmatmul.bf16.gmra.mxu0 %v1686
      %v4372 = vpop.f32.mrf.mxu0
      %v4373 = vadd.f32 %v4204, %v4372
      %v4374 = vpop.f32.mrf.mxu0
      %v4375 = vadd.f32 %v4206, %v4374
      %4376 = vmatmul.bf16.gmra.mxu0 %v1694
      %v4377 = vpop.f32.mrf.mxu0
      %v4378 = vadd.f32 %v4209, %v4377
      %v4379 = vpop.f32.mrf.mxu0
      %v4380 = vadd.f32 %v4211, %v4379
      %4381 = vmatmul.bf16.gmra.mxu0 %v1702
      %v4382 = vpop.f32.mrf.mxu0
      %v4383 = vadd.f32 %v4214, %v4382
      %v4384 = vpop.f32.mrf.mxu0
      %v4385 = vadd.f32 %v4216, %v4384
      %4386 = vmatmul.bf16.gmra.mxu0 %v1710
      %v4387 = vpop.f32.mrf.mxu0
      %v4388 = vadd.f32 %v4219, %v4387
      %v4389 = vpop.f32.mrf.mxu0
      %v4390 = vadd.f32 %v4221, %v4389
      %4391 = vmatmul.bf16.gmra.mxu0 %v1718
      %v4392 = vpop.f32.mrf.mxu0
      %v4393 = vadd.f32 %v4224, %v4392
      %v4394 = vpop.f32.mrf.mxu0
      %v4395 = vadd.f32 %v4226, %v4394
      %4396 = vmatmul.bf16.gmra.mxu0 %v1726
      %v4397 = vpop.f32.mrf.mxu0
      %v4398 = vadd.f32 %v4229, %v4397
      %v4399 = vpop.f32.mrf.mxu0
      %v4400 = vadd.f32 %v4231, %v4399
      %4401 = vmatmul.bf16.gmra.mxu0 %v1734
      %v4402 = vpop.f32.mrf.mxu0
      %v4403 = vadd.f32 %v4234, %v4402
      %v4404 = vpop.f32.mrf.mxu0
      %v4405 = vadd.f32 %v4236, %v4404
      %4406 = vmatmul.bf16.gmra.mxu0 %v1742
      %v4407 = vpop.f32.mrf.mxu0
      %v4408 = vadd.f32 %v4239, %v4407
      %v4409 = vpop.f32.mrf.mxu0
      %v4410 = vadd.f32 %v4241, %v4409
      %4411 = vmatmul.bf16.gmra.mxu0 %v1750
      %v4412 = vpop.f32.mrf.mxu0
      %v4413 = vadd.f32 %v4244, %v4412
      %v4414 = vpop.f32.mrf.mxu0
      %v4415 = vadd.f32 %v4246, %v4414
      %4416 = vmatmul.bf16.gmra.mxu0 %v1758
      %v4417 = vpop.f32.mrf.mxu0
      %v4418 = vadd.f32 %v4249, %v4417
      %v4419 = vpop.f32.mrf.mxu0
      %v4420 = vadd.f32 %v4251, %v4419
      %4421 = vmatmul.bf16.gmra.mxu0 %v1766
      %v4422 = vpop.f32.mrf.mxu0
      %v4423 = vadd.f32 %v4254, %v4422
      %v4424 = vpop.f32.mrf.mxu0
      %v4425 = vadd.f32 %v4256, %v4424
      %4426 = vmatmul.bf16.gmra.mxu0 %v1774
      %v4427 = vpop.f32.mrf.mxu0
      %v4428 = vadd.f32 %v4259, %v4427
      %v4429 = vpop.f32.mrf.mxu0
      %v4430 = vadd.f32 %v4261, %v4429
      %4431 = vmatmul.bf16.gmra.mxu0 %v1782
      %v4432 = vpop.f32.mrf.mxu0
      %v4433 = vadd.f32 %v4264, %v4432
      %v4434 = vpop.f32.mrf.mxu0
      %v4435 = vadd.f32 %v4266, %v4434
      %4436 = vmatmul.bf16.gmra.mxu0 %v1790
      %v4437 = vpop.f32.mrf.mxu0
      %v4438 = vadd.f32 %v4269, %v4437
      %v4439 = vpop.f32.mrf.mxu0
      %v4440 = vadd.f32 %v4271, %v4439
      %4441 = vmatmul.bf16.gmra.mxu0 %v1798
      %v4442 = vpop.f32.mrf.mxu0
      %v4443 = vadd.f32 %v4274, %v4442
      %v4444 = vpop.f32.mrf.mxu0
      %v4445 = vadd.f32 %v4276, %v4444
      %4446 = vmatmul.bf16.gmra.mxu0 %v1806
      %v4447 = vpop.f32.mrf.mxu0
      %v4448 = vadd.f32 %v4279, %v4447
      %v4449 = vpop.f32.mrf.mxu0
      %v4450 = vadd.f32 %v4281, %v4449
      %4451 = vmatmul.bf16.gmra.mxu0 %v1814
      %v4452 = vpop.f32.mrf.mxu0
      %v4453 = vadd.f32 %v4284, %v4452
      %v4454 = vpop.f32.mrf.mxu0
      %v4455 = vadd.f32 %v4286, %v4454
      %4456 = vmatmul.bf16.gmra.mxu0 %v1822
      %v4457 = vpop.f32.mrf.mxu0
      %v4458 = vadd.f32 %v4289, %v4457
      %v4459 = vpop.f32.mrf.mxu0
      %v4460 = vadd.f32 %v4291, %v4459
      %4461 = vmatmul.bf16.gmra.mxu0 %v1830
      %v4462 = vpop.f32.mrf.mxu0
      %v4463 = vadd.f32 %v4294, %v4462
      %v4464 = vpop.f32.mrf.mxu0
      %v4465 = vadd.f32 %v4296, %v4464
      %4466 = vmatmul.bf16.gmra.mxu0 %v1838
      %v4467 = vpop.f32.mrf.mxu0
      %v4468 = vadd.f32 %v4299, %v4467
      %v4469 = vpop.f32.mrf.mxu0
      %v4470 = vadd.f32 %v4301, %v4469
      %4471 = vmatmul.bf16.gmra.mxu0 %v1846
      %v4472 = vpop.f32.mrf.mxu0
      %v4473 = vadd.f32 %v4304, %v4472
      %v4474 = vpop.f32.mrf.mxu0
      %v4475 = vadd.f32 %v4306, %v4474
      %4476 = vmatmul.bf16.gmra.mxu0 %v1854
      %v4477 = vpop.f32.mrf.mxu0
      %v4478 = vadd.f32 %v4309, %v4477
      %v4479 = vpop.f32.mrf.mxu0
      %v4480 = vadd.f32 %v4311, %v4479
      %4481 = vmatmul.bf16.gmra.mxu0 %v1862
      %v4482 = vpop.f32.mrf.mxu0
      %v4483 = vadd.f32 %v4314, %v4482
      %v4484 = vpop.f32.mrf.mxu0
      %v4485 = vadd.f32 %v4316, %v4484
      %4486 = vdwg.mxu0
      %4487 = vmatpush.bf16.msra.mxu0 %v568
      %4488 = vmatpush.bf16.msra.mxu0 %v566
      %4489 = vmatpush.bf16.msra.mxu0 %v564
      %4490 = vmatpush.bf16.msra.mxu0 %v562
      %4491 = vmatpush.bf16.msra.mxu0 %v560
      %4492 = vmatpush.bf16.msra.mxu0 %v558
      %4493 = vmatpush.bf16.msra.mxu0 %v556
      %4494 = vmatpush.bf16.msra.mxu0 %v554
      %4495 = vmatmul.bf16.gmra.mxu0 %v1615
      %v4496 = vpop.f32.mrf.mxu0
      %v4497 = vadd.f32 %v4328, %v4496
      %v4498 = vpop.f32.mrf.mxu0
      %v4499 = vadd.f32 %v4330, %v4498
      %4500 = vmatmul.bf16.gmra.mxu0 %v1623
      %v4501 = vpop.f32.mrf.mxu0
      %v4502 = vadd.f32 %v4333, %v4501
      %v4503 = vpop.f32.mrf.mxu0
      %v4504 = vadd.f32 %v4335, %v4503
      %4505 = vmatmul.bf16.gmra.mxu0 %v1631
      %v4506 = vpop.f32.mrf.mxu0
      %v4507 = vadd.f32 %v4338, %v4506
      %v4508 = vpop.f32.mrf.mxu0
      %v4509 = vadd.f32 %v4340, %v4508
      %4510 = vmatmul.bf16.gmra.mxu0 %v1639
      %v4511 = vpop.f32.mrf.mxu0
      %v4512 = vadd.f32 %v4343, %v4511
      %v4513 = vpop.f32.mrf.mxu0
      %v4514 = vadd.f32 %v4345, %v4513
      %4515 = vmatmul.bf16.gmra.mxu0 %v1647
      %v4516 = vpop.f32.mrf.mxu0
      %v4517 = vadd.f32 %v4348, %v4516
      %v4518 = vpop.f32.mrf.mxu0
      %v4519 = vadd.f32 %v4350, %v4518
      %4520 = vmatmul.bf16.gmra.mxu0 %v1655
      %v4521 = vpop.f32.mrf.mxu0
      %v4522 = vadd.f32 %v4353, %v4521
      %v4523 = vpop.f32.mrf.mxu0
      %v4524 = vadd.f32 %v4355, %v4523
      %4525 = vmatmul.bf16.gmra.mxu0 %v1663
      %v4526 = vpop.f32.mrf.mxu0
      %v4527 = vadd.f32 %v4358, %v4526
      %v4528 = vpop.f32.mrf.mxu0
      %v4529 = vadd.f32 %v4360, %v4528
      %4530 = vmatmul.bf16.gmra.mxu0 %v1671
      %v4531 = vpop.f32.mrf.mxu0
      %v4532 = vadd.f32 %v4363, %v4531
      %v4533 = vpop.f32.mrf.mxu0
      %v4534 = vadd.f32 %v4365, %v4533
      %4535 = vmatmul.bf16.gmra.mxu0 %v1679
      %v4536 = vpop.f32.mrf.mxu0
      %v4537 = vadd.f32 %v4368, %v4536
      %v4538 = vpop.f32.mrf.mxu0
      %v4539 = vadd.f32 %v4370, %v4538
      %4540 = vmatmul.bf16.gmra.mxu0 %v1687
      %v4541 = vpop.f32.mrf.mxu0
      %v4542 = vadd.f32 %v4373, %v4541
      %v4543 = vpop.f32.mrf.mxu0
      %v4544 = vadd.f32 %v4375, %v4543
      %4545 = vmatmul.bf16.gmra.mxu0 %v1695
      %v4546 = vpop.f32.mrf.mxu0
      %v4547 = vadd.f32 %v4378, %v4546
      %v4548 = vpop.f32.mrf.mxu0
      %v4549 = vadd.f32 %v4380, %v4548
      %4550 = vmatmul.bf16.gmra.mxu0 %v1703
      %v4551 = vpop.f32.mrf.mxu0
      %v4552 = vadd.f32 %v4383, %v4551
      %v4553 = vpop.f32.mrf.mxu0
      %v4554 = vadd.f32 %v4385, %v4553
      %4555 = vmatmul.bf16.gmra.mxu0 %v1711
      %v4556 = vpop.f32.mrf.mxu0
      %v4557 = vadd.f32 %v4388, %v4556
      %v4558 = vpop.f32.mrf.mxu0
      %v4559 = vadd.f32 %v4390, %v4558
      %4560 = vmatmul.bf16.gmra.mxu0 %v1719
      %v4561 = vpop.f32.mrf.mxu0
      %v4562 = vadd.f32 %v4393, %v4561
      %v4563 = vpop.f32.mrf.mxu0
      %v4564 = vadd.f32 %v4395, %v4563
      %4565 = vmatmul.bf16.gmra.mxu0 %v1727
      %v4566 = vpop.f32.mrf.mxu0
      %v4567 = vadd.f32 %v4398, %v4566
      %v4568 = vpop.f32.mrf.mxu0
      %v4569 = vadd.f32 %v4400, %v4568
      %4570 = vmatmul.bf16.gmra.mxu0 %v1735
      %v4571 = vpop.f32.mrf.mxu0
      %v4572 = vadd.f32 %v4403, %v4571
      %v4573 = vpop.f32.mrf.mxu0
      %v4574 = vadd.f32 %v4405, %v4573
      %4575 = vmatmul.bf16.gmra.mxu0 %v1743
      %v4576 = vpop.f32.mrf.mxu0
      %v4577 = vadd.f32 %v4408, %v4576
      %v4578 = vpop.f32.mrf.mxu0
      %v4579 = vadd.f32 %v4410, %v4578
      %4580 = vmatmul.bf16.gmra.mxu0 %v1751
      %v4581 = vpop.f32.mrf.mxu0
      %v4582 = vadd.f32 %v4413, %v4581
      %v4583 = vpop.f32.mrf.mxu0
      %v4584 = vadd.f32 %v4415, %v4583
      %4585 = vmatmul.bf16.gmra.mxu0 %v1759
      %v4586 = vpop.f32.mrf.mxu0
      %v4587 = vadd.f32 %v4418, %v4586
      %v4588 = vpop.f32.mrf.mxu0
      %v4589 = vadd.f32 %v4420, %v4588
      %4590 = vmatmul.bf16.gmra.mxu0 %v1767
      %v4591 = vpop.f32.mrf.mxu0
      %v4592 = vadd.f32 %v4423, %v4591
      %v4593 = vpop.f32.mrf.mxu0
      %v4594 = vadd.f32 %v4425, %v4593
      %4595 = vmatmul.bf16.gmra.mxu0 %v1775
      %v4596 = vpop.f32.mrf.mxu0
      %v4597 = vadd.f32 %v4428, %v4596
      %v4598 = vpop.f32.mrf.mxu0
      %v4599 = vadd.f32 %v4430, %v4598
      %4600 = vmatmul.bf16.gmra.mxu0 %v1783
      %v4601 = vpop.f32.mrf.mxu0
      %v4602 = vadd.f32 %v4433, %v4601
      %v4603 = vpop.f32.mrf.mxu0
      %v4604 = vadd.f32 %v4435, %v4603
      %4605 = vmatmul.bf16.gmra.mxu0 %v1791
      %v4606 = vpop.f32.mrf.mxu0
      %v4607 = vadd.f32 %v4438, %v4606
      %v4608 = vpop.f32.mrf.mxu0
      %v4609 = vadd.f32 %v4440, %v4608
      %4610 = vmatmul.bf16.gmra.mxu0 %v1799
      %v4611 = vpop.f32.mrf.mxu0
      %v4612 = vadd.f32 %v4443, %v4611
      %v4613 = vpop.f32.mrf.mxu0
      %v4614 = vadd.f32 %v4445, %v4613
      %4615 = vmatmul.bf16.gmra.mxu0 %v1807
      %v4616 = vpop.f32.mrf.mxu0
      %v4617 = vadd.f32 %v4448, %v4616
      %v4618 = vpop.f32.mrf.mxu0
      %v4619 = vadd.f32 %v4450, %v4618
      %4620 = vmatmul.bf16.gmra.mxu0 %v1815
      %v4621 = vpop.f32.mrf.mxu0
      %v4622 = vadd.f32 %v4453, %v4621
      %v4623 = vpop.f32.mrf.mxu0
      %v4624 = vadd.f32 %v4455, %v4623
      %4625 = vmatmul.bf16.gmra.mxu0 %v1823
      %v4626 = vpop.f32.mrf.mxu0
      %v4627 = vadd.f32 %v4458, %v4626
      %v4628 = vpop.f32.mrf.mxu0
      %v4629 = vadd.f32 %v4460, %v4628
      %4630 = vmatmul.bf16.gmra.mxu0 %v1831
      %v4631 = vpop.f32.mrf.mxu0
      %v4632 = vadd.f32 %v4463, %v4631
      %v4633 = vpop.f32.mrf.mxu0
      %v4634 = vadd.f32 %v4465, %v4633
      %4635 = vmatmul.bf16.gmra.mxu0 %v1839
      %v4636 = vpop.f32.mrf.mxu0
      %v4637 = vadd.f32 %v4468, %v4636
      %v4638 = vpop.f32.mrf.mxu0
      %v4639 = vadd.f32 %v4470, %v4638
      %4640 = vmatmul.bf16.gmra.mxu0 %v1847
      %v4641 = vpop.f32.mrf.mxu0
      %v4642 = vadd.f32 %v4473, %v4641
      %v4643 = vpop.f32.mrf.mxu0
      %v4644 = vadd.f32 %v4475, %v4643
      %4645 = vmatmul.bf16.gmra.mxu0 %v1855
      %v4646 = vpop.f32.mrf.mxu0
      %v4647 = vadd.f32 %v4478, %v4646
      %v4648 = vpop.f32.mrf.mxu0
      %v4649 = vadd.f32 %v4480, %v4648
      %4650 = vmatmul.bf16.gmra.mxu0 %v1863
      %v4651 = vpop.f32.mrf.mxu0
      %v4652 = vadd.f32 %v4483, %v4651
      %v4653 = vpop.f32.mrf.mxu0
      %v4654 = vadd.f32 %v4485, %v4653
      %4655 = vdwg.mxu0
      %4656 = vmatpush.bf16.msra.mxu0 %v584
      %4657 = vmatpush.bf16.msra.mxu0 %v582
      %4658 = vmatpush.bf16.msra.mxu0 %v580
      %4659 = vmatpush.bf16.msra.mxu0 %v578
      %4660 = vmatpush.bf16.msra.mxu0 %v576
      %4661 = vmatpush.bf16.msra.mxu0 %v574
      %4662 = vmatpush.bf16.msra.mxu0 %v572
      %4663 = vmatpush.bf16.msra.mxu0 %v570
      %4664 = vmatmul.bf16.gmra.mxu0 %v1616
      %v4665 = vpop.f32.mrf.mxu0
      %v4666 = vadd.f32 %v4497, %v4665
      %v4667 = vpop.f32.mrf.mxu0
      %v4668 = vadd.f32 %v4499, %v4667
      %4669 = vmatmul.bf16.gmra.mxu0 %v1624
      %v4670 = vpop.f32.mrf.mxu0
      %v4671 = vadd.f32 %v4502, %v4670
      %v4672 = vpop.f32.mrf.mxu0
      %v4673 = vadd.f32 %v4504, %v4672
      %4674 = vmatmul.bf16.gmra.mxu0 %v1632
      %v4675 = vpop.f32.mrf.mxu0
      %v4676 = vadd.f32 %v4507, %v4675
      %v4677 = vpop.f32.mrf.mxu0
      %v4678 = vadd.f32 %v4509, %v4677
      %4679 = vmatmul.bf16.gmra.mxu0 %v1640
      %v4680 = vpop.f32.mrf.mxu0
      %v4681 = vadd.f32 %v4512, %v4680
      %v4682 = vpop.f32.mrf.mxu0
      %v4683 = vadd.f32 %v4514, %v4682
      %4684 = vmatmul.bf16.gmra.mxu0 %v1648
      %v4685 = vpop.f32.mrf.mxu0
      %v4686 = vadd.f32 %v4517, %v4685
      %v4687 = vpop.f32.mrf.mxu0
      %v4688 = vadd.f32 %v4519, %v4687
      %4689 = vmatmul.bf16.gmra.mxu0 %v1656
      %v4690 = vpop.f32.mrf.mxu0
      %v4691 = vadd.f32 %v4522, %v4690
      %v4692 = vpop.f32.mrf.mxu0
      %v4693 = vadd.f32 %v4524, %v4692
      %4694 = vmatmul.bf16.gmra.mxu0 %v1664
      %v4695 = vpop.f32.mrf.mxu0
      %v4696 = vadd.f32 %v4527, %v4695
      %v4697 = vpop.f32.mrf.mxu0
      %v4698 = vadd.f32 %v4529, %v4697
      %4699 = vmatmul.bf16.gmra.mxu0 %v1672
      %v4700 = vpop.f32.mrf.mxu0
      %v4701 = vadd.f32 %v4532, %v4700
      %v4702 = vpop.f32.mrf.mxu0
      %v4703 = vadd.f32 %v4534, %v4702
      %4704 = vmatmul.bf16.gmra.mxu0 %v1680
      %v4705 = vpop.f32.mrf.mxu0
      %v4706 = vadd.f32 %v4537, %v4705
      %v4707 = vpop.f32.mrf.mxu0
      %v4708 = vadd.f32 %v4539, %v4707
      %4709 = vmatmul.bf16.gmra.mxu0 %v1688
      %v4710 = vpop.f32.mrf.mxu0
      %v4711 = vadd.f32 %v4542, %v4710
      %v4712 = vpop.f32.mrf.mxu0
      %v4713 = vadd.f32 %v4544, %v4712
      %4714 = vmatmul.bf16.gmra.mxu0 %v1696
      %v4715 = vpop.f32.mrf.mxu0
      %v4716 = vadd.f32 %v4547, %v4715
      %v4717 = vpop.f32.mrf.mxu0
      %v4718 = vadd.f32 %v4549, %v4717
      %4719 = vmatmul.bf16.gmra.mxu0 %v1704
      %v4720 = vpop.f32.mrf.mxu0
      %v4721 = vadd.f32 %v4552, %v4720
      %v4722 = vpop.f32.mrf.mxu0
      %v4723 = vadd.f32 %v4554, %v4722
      %4724 = vmatmul.bf16.gmra.mxu0 %v1712
      %v4725 = vpop.f32.mrf.mxu0
      %v4726 = vadd.f32 %v4557, %v4725
      %v4727 = vpop.f32.mrf.mxu0
      %v4728 = vadd.f32 %v4559, %v4727
      %4729 = vmatmul.bf16.gmra.mxu0 %v1720
      %v4730 = vpop.f32.mrf.mxu0
      %v4731 = vadd.f32 %v4562, %v4730
      %v4732 = vpop.f32.mrf.mxu0
      %v4733 = vadd.f32 %v4564, %v4732
      %4734 = vmatmul.bf16.gmra.mxu0 %v1728
      %v4735 = vpop.f32.mrf.mxu0
      %v4736 = vadd.f32 %v4567, %v4735
      %v4737 = vpop.f32.mrf.mxu0
      %v4738 = vadd.f32 %v4569, %v4737
      %4739 = vmatmul.bf16.gmra.mxu0 %v1736
      %v4740 = vpop.f32.mrf.mxu0
      %v4741 = vadd.f32 %v4572, %v4740
      %v4742 = vpop.f32.mrf.mxu0
      %v4743 = vadd.f32 %v4574, %v4742
      %4744 = vmatmul.bf16.gmra.mxu0 %v1744
      %v4745 = vpop.f32.mrf.mxu0
      %v4746 = vadd.f32 %v4577, %v4745
      %v4747 = vpop.f32.mrf.mxu0
      %v4748 = vadd.f32 %v4579, %v4747
      %4749 = vmatmul.bf16.gmra.mxu0 %v1752
      %v4750 = vpop.f32.mrf.mxu0
      %v4751 = vadd.f32 %v4582, %v4750
      %v4752 = vpop.f32.mrf.mxu0
      %v4753 = vadd.f32 %v4584, %v4752
      %4754 = vmatmul.bf16.gmra.mxu0 %v1760
      %v4755 = vpop.f32.mrf.mxu0
      %v4756 = vadd.f32 %v4587, %v4755
      %v4757 = vpop.f32.mrf.mxu0
      %v4758 = vadd.f32 %v4589, %v4757
      %4759 = vmatmul.bf16.gmra.mxu0 %v1768
      %v4760 = vpop.f32.mrf.mxu0
      %v4761 = vadd.f32 %v4592, %v4760
      %v4762 = vpop.f32.mrf.mxu0
      %v4763 = vadd.f32 %v4594, %v4762
      %4764 = vmatmul.bf16.gmra.mxu0 %v1776
      %v4765 = vpop.f32.mrf.mxu0
      %v4766 = vadd.f32 %v4597, %v4765
      %v4767 = vpop.f32.mrf.mxu0
      %v4768 = vadd.f32 %v4599, %v4767
      %4769 = vmatmul.bf16.gmra.mxu0 %v1784
      %v4770 = vpop.f32.mrf.mxu0
      %v4771 = vadd.f32 %v4602, %v4770
      %v4772 = vpop.f32.mrf.mxu0
      %v4773 = vadd.f32 %v4604, %v4772
      %4774 = vmatmul.bf16.gmra.mxu0 %v1792
      %v4775 = vpop.f32.mrf.mxu0
      %v4776 = vadd.f32 %v4607, %v4775
      %v4777 = vpop.f32.mrf.mxu0
      %v4778 = vadd.f32 %v4609, %v4777
      %4779 = vmatmul.bf16.gmra.mxu0 %v1800
      %v4780 = vpop.f32.mrf.mxu0
      %v4781 = vadd.f32 %v4612, %v4780
      %v4782 = vpop.f32.mrf.mxu0
      %v4783 = vadd.f32 %v4614, %v4782
      %4784 = vmatmul.bf16.gmra.mxu0 %v1808
      %v4785 = vpop.f32.mrf.mxu0
      %v4786 = vadd.f32 %v4617, %v4785
      %v4787 = vpop.f32.mrf.mxu0
      %v4788 = vadd.f32 %v4619, %v4787
      %4789 = vmatmul.bf16.gmra.mxu0 %v1816
      %v4790 = vpop.f32.mrf.mxu0
      %v4791 = vadd.f32 %v4622, %v4790
      %v4792 = vpop.f32.mrf.mxu0
      %v4793 = vadd.f32 %v4624, %v4792
      %4794 = vmatmul.bf16.gmra.mxu0 %v1824
      %v4795 = vpop.f32.mrf.mxu0
      %v4796 = vadd.f32 %v4627, %v4795
      %v4797 = vpop.f32.mrf.mxu0
      %v4798 = vadd.f32 %v4629, %v4797
      %4799 = vmatmul.bf16.gmra.mxu0 %v1832
      %v4800 = vpop.f32.mrf.mxu0
      %v4801 = vadd.f32 %v4632, %v4800
      %v4802 = vpop.f32.mrf.mxu0
      %v4803 = vadd.f32 %v4634, %v4802
      %4804 = vmatmul.bf16.gmra.mxu0 %v1840
      %v4805 = vpop.f32.mrf.mxu0
      %v4806 = vadd.f32 %v4637, %v4805
      %v4807 = vpop.f32.mrf.mxu0
      %v4808 = vadd.f32 %v4639, %v4807
      %4809 = vmatmul.bf16.gmra.mxu0 %v1848
      %v4810 = vpop.f32.mrf.mxu0
      %v4811 = vadd.f32 %v4642, %v4810
      %v4812 = vpop.f32.mrf.mxu0
      %v4813 = vadd.f32 %v4644, %v4812
      %4814 = vmatmul.bf16.gmra.mxu0 %v1856
      %v4815 = vpop.f32.mrf.mxu0
      %v4816 = vadd.f32 %v4647, %v4815
      %v4817 = vpop.f32.mrf.mxu0
      %v4818 = vadd.f32 %v4649, %v4817
      %4819 = vmatmul.bf16.gmra.mxu0 %v1864
      %v4820 = vpop.f32.mrf.mxu0
      %v4821 = vadd.f32 %v4652, %v4820
      %v4822 = vpop.f32.mrf.mxu0
      %v4823 = vadd.f32 %v4654, %v4822
      %4824 = vdwg.mxu0
      %vm4825 = vcmask 556032
      %v4826 = vsel %vm4825, %v4666, 0.0
      %v4827 = vadd.f32 %v3314, %v4826
      %4828 = vadd.xlane.f32.xlu0 %v4827
      %v4829 = vpop.xlane.xlu0 %4828
      %v4830 = vsel %vm4825, %v4668, 0.0
      %v4831 = vadd.f32 %v3316, %v4830
      %4832 = vadd.xlane.f32.xlu0 %v4831
      %v4833 = vpop.xlane.xlu0 %4832
      %v4834 = vsel %vm4825, %v4671, 0.0
      %v4835 = vadd.f32 %v3319, %v4834
      %4836 = vadd.xlane.f32.xlu0 %v4835
      %v4837 = vpop.xlane.xlu0 %4836
      %v4838 = vsel %vm4825, %v4673, 0.0
      %v4839 = vadd.f32 %v3321, %v4838
      %4840 = vadd.xlane.f32.xlu0 %v4839
      %v4841 = vpop.xlane.xlu0 %4840
      %v4842 = vsel %vm4825, %v4676, 0.0
      %v4843 = vadd.f32 %v3324, %v4842
      %4844 = vadd.xlane.f32.xlu0 %v4843
      %v4845 = vpop.xlane.xlu0 %4844
      %v4846 = vsel %vm4825, %v4678, 0.0
      %v4847 = vadd.f32 %v3326, %v4846
      %4848 = vadd.xlane.f32.xlu0 %v4847
      %v4849 = vpop.xlane.xlu0 %4848
      %v4850 = vsel %vm4825, %v4681, 0.0
      %v4851 = vadd.f32 %v3329, %v4850
      %4852 = vadd.xlane.f32.xlu0 %v4851
      %v4853 = vpop.xlane.xlu0 %4852
      %v4854 = vsel %vm4825, %v4683, 0.0
      %v4855 = vadd.f32 %v3331, %v4854
      %4856 = vadd.xlane.f32.xlu0 %v4855
      %v4857 = vpop.xlane.xlu0 %4856
      %v4858 = vsel %vm4825, %v4686, 0.0
      %v4859 = vadd.f32 %v3334, %v4858
      %4860 = vadd.xlane.f32.xlu0 %v4859
      %v4861 = vpop.xlane.xlu0 %4860
      %v4862 = vsel %vm4825, %v4688, 0.0
      %v4863 = vadd.f32 %v3336, %v4862
      %4864 = vadd.xlane.f32.xlu0 %v4863
      %v4865 = vpop.xlane.xlu0 %4864
      %v4866 = vsel %vm4825, %v4691, 0.0
      %v4867 = vadd.f32 %v3339, %v4866
      %4868 = vadd.xlane.f32.xlu0 %v4867
      %v4869 = vpop.xlane.xlu0 %4868
      %v4870 = vsel %vm4825, %v4693, 0.0
      %v4871 = vadd.f32 %v3341, %v4870
      %4872 = vadd.xlane.f32.xlu0 %v4871
      %v4873 = vpop.xlane.xlu0 %4872
      %v4874 = vsel %vm4825, %v4696, 0.0
      %v4875 = vadd.f32 %v3344, %v4874
      %4876 = vadd.xlane.f32.xlu0 %v4875
      %v4877 = vpop.xlane.xlu0 %4876
      %v4878 = vsel %vm4825, %v4698, 0.0
      %v4879 = vadd.f32 %v3346, %v4878
      %4880 = vadd.xlane.f32.xlu0 %v4879
      %v4881 = vpop.xlane.xlu0 %4880
      %v4882 = vsel %vm4825, %v4701, 0.0
      %v4883 = vadd.f32 %v3349, %v4882
      %4884 = vadd.xlane.f32.xlu0 %v4883
      %v4885 = vpop.xlane.xlu0 %4884
      %v4886 = vsel %vm4825, %v4703, 0.0
      %v4887 = vadd.f32 %v3351, %v4886
      %4888 = vadd.xlane.f32.xlu0 %v4887
      %v4889 = vpop.xlane.xlu0 %4888
      %v4890 = vsel %vm4825, %v4706, 0.0
      %v4891 = vadd.f32 %v3354, %v4890
      %4892 = vadd.xlane.f32.xlu0 %v4891
      %v4893 = vpop.xlane.xlu0 %4892
      %v4894 = vsel %vm4825, %v4708, 0.0
      %v4895 = vadd.f32 %v3356, %v4894
      %4896 = vadd.xlane.f32.xlu0 %v4895
      %v4897 = vpop.xlane.xlu0 %4896
      %v4898 = vsel %vm4825, %v4711, 0.0
      %v4899 = vadd.f32 %v3359, %v4898
      %4900 = vadd.xlane.f32.xlu0 %v4899
      %v4901 = vpop.xlane.xlu0 %4900
      %v4902 = vsel %vm4825, %v4713, 0.0
      %v4903 = vadd.f32 %v3361, %v4902
      %4904 = vadd.xlane.f32.xlu0 %v4903
      %v4905 = vpop.xlane.xlu0 %4904
      %v4906 = vsel %vm4825, %v4716, 0.0
      %v4907 = vadd.f32 %v3364, %v4906
      %4908 = vadd.xlane.f32.xlu0 %v4907
      %v4909 = vpop.xlane.xlu0 %4908
      %v4910 = vsel %vm4825, %v4718, 0.0
      %v4911 = vadd.f32 %v3366, %v4910
      %4912 = vadd.xlane.f32.xlu0 %v4911
      %v4913 = vpop.xlane.xlu0 %4912
      %v4914 = vsel %vm4825, %v4721, 0.0
      %v4915 = vadd.f32 %v3369, %v4914
      %4916 = vadd.xlane.f32.xlu0 %v4915
      %v4917 = vpop.xlane.xlu0 %4916
      %v4918 = vsel %vm4825, %v4723, 0.0
      %v4919 = vadd.f32 %v3371, %v4918
      %4920 = vadd.xlane.f32.xlu0 %v4919
      %v4921 = vpop.xlane.xlu0 %4920
      %v4922 = vsel %vm4825, %v4726, 0.0
      %v4923 = vadd.f32 %v3374, %v4922
      %4924 = vadd.xlane.f32.xlu0 %v4923
      %v4925 = vpop.xlane.xlu0 %4924
      %v4926 = vsel %vm4825, %v4728, 0.0
      %v4927 = vadd.f32 %v3376, %v4926
      %4928 = vadd.xlane.f32.xlu0 %v4927
      %v4929 = vpop.xlane.xlu0 %4928
      %v4930 = vsel %vm4825, %v4731, 0.0
      %v4931 = vadd.f32 %v3379, %v4930
      %4932 = vadd.xlane.f32.xlu0 %v4931
      %v4933 = vpop.xlane.xlu0 %4932
      %v4934 = vsel %vm4825, %v4733, 0.0
      %v4935 = vadd.f32 %v3381, %v4934
      %4936 = vadd.xlane.f32.xlu0 %v4935
      %v4937 = vpop.xlane.xlu0 %4936
      %v4938 = vsel %vm4825, %v4736, 0.0
      %v4939 = vadd.f32 %v3384, %v4938
      %4940 = vadd.xlane.f32.xlu0 %v4939
      %v4941 = vpop.xlane.xlu0 %4940
      %v4942 = vsel %vm4825, %v4738, 0.0
      %v4943 = vadd.f32 %v3386, %v4942
      %4944 = vadd.xlane.f32.xlu0 %v4943
      %v4945 = vpop.xlane.xlu0 %4944
      %v4946 = vsel %vm4825, %v4741, 0.0
      %v4947 = vadd.f32 %v3389, %v4946
      %4948 = vadd.xlane.f32.xlu0 %v4947
      %v4949 = vpop.xlane.xlu0 %4948
      %v4950 = vsel %vm4825, %v4743, 0.0
      %v4951 = vadd.f32 %v3391, %v4950
      %4952 = vadd.xlane.f32.xlu0 %v4951
      %v4953 = vpop.xlane.xlu0 %4952
      %v4954 = vsel %vm4825, %v4746, 0.0
      %v4955 = vadd.f32 %v3394, %v4954
      %4956 = vadd.xlane.f32.xlu0 %v4955
      %v4957 = vpop.xlane.xlu0 %4956
      %v4958 = vsel %vm4825, %v4748, 0.0
      %v4959 = vadd.f32 %v3396, %v4958
      %4960 = vadd.xlane.f32.xlu0 %v4959
      %v4961 = vpop.xlane.xlu0 %4960
      %v4962 = vsel %vm4825, %v4751, 0.0
      %v4963 = vadd.f32 %v3399, %v4962
      %4964 = vadd.xlane.f32.xlu0 %v4963
      %v4965 = vpop.xlane.xlu0 %4964
      %v4966 = vsel %vm4825, %v4753, 0.0
      %v4967 = vadd.f32 %v3401, %v4966
      %4968 = vadd.xlane.f32.xlu0 %v4967
      %v4969 = vpop.xlane.xlu0 %4968
      %v4970 = vsel %vm4825, %v4756, 0.0
      %v4971 = vadd.f32 %v3404, %v4970
      %4972 = vadd.xlane.f32.xlu0 %v4971
      %v4973 = vpop.xlane.xlu0 %4972
      %v4974 = vsel %vm4825, %v4758, 0.0
      %v4975 = vadd.f32 %v3406, %v4974
      %4976 = vadd.xlane.f32.xlu0 %v4975
      %v4977 = vpop.xlane.xlu0 %4976
      %v4978 = vsel %vm4825, %v4761, 0.0
      %v4979 = vadd.f32 %v3409, %v4978
      %4980 = vadd.xlane.f32.xlu0 %v4979
      %v4981 = vpop.xlane.xlu0 %4980
      %v4982 = vsel %vm4825, %v4763, 0.0
      %v4983 = vadd.f32 %v3411, %v4982
      %4984 = vadd.xlane.f32.xlu0 %v4983
      %v4985 = vpop.xlane.xlu0 %4984
      %v4986 = vsel %vm4825, %v4766, 0.0
      %v4987 = vadd.f32 %v3414, %v4986
      %4988 = vadd.xlane.f32.xlu0 %v4987
      %v4989 = vpop.xlane.xlu0 %4988
      %v4990 = vsel %vm4825, %v4768, 0.0
      %v4991 = vadd.f32 %v3416, %v4990
      %4992 = vadd.xlane.f32.xlu0 %v4991
      %v4993 = vpop.xlane.xlu0 %4992
      %v4994 = vsel %vm4825, %v4771, 0.0
      %v4995 = vadd.f32 %v3419, %v4994
      %4996 = vadd.xlane.f32.xlu0 %v4995
      %v4997 = vpop.xlane.xlu0 %4996
      %v4998 = vsel %vm4825, %v4773, 0.0
      %v4999 = vadd.f32 %v3421, %v4998
      %5000 = vadd.xlane.f32.xlu0 %v4999
      %v5001 = vpop.xlane.xlu0 %5000
      %v5002 = vsel %vm4825, %v4776, 0.0
      %v5003 = vadd.f32 %v3424, %v5002
      %5004 = vadd.xlane.f32.xlu0 %v5003
      %v5005 = vpop.xlane.xlu0 %5004
      %v5006 = vsel %vm4825, %v4778, 0.0
      %v5007 = vadd.f32 %v3426, %v5006
      %5008 = vadd.xlane.f32.xlu0 %v5007
      %v5009 = vpop.xlane.xlu0 %5008
      %v5010 = vsel %vm4825, %v4781, 0.0
      %v5011 = vadd.f32 %v3429, %v5010
      %5012 = vadd.xlane.f32.xlu0 %v5011
      %v5013 = vpop.xlane.xlu0 %5012
      %v5014 = vsel %vm4825, %v4783, 0.0
      %v5015 = vadd.f32 %v3431, %v5014
      %5016 = vadd.xlane.f32.xlu0 %v5015
      %v5017 = vpop.xlane.xlu0 %5016
      %v5018 = vsel %vm4825, %v4786, 0.0
      %v5019 = vadd.f32 %v3434, %v5018
      %5020 = vadd.xlane.f32.xlu0 %v5019
      %v5021 = vpop.xlane.xlu0 %5020
      %v5022 = vsel %vm4825, %v4788, 0.0
      %v5023 = vadd.f32 %v3436, %v5022
      %5024 = vadd.xlane.f32.xlu0 %v5023
      %v5025 = vpop.xlane.xlu0 %5024
      %v5026 = vsel %vm4825, %v4791, 0.0
      %v5027 = vadd.f32 %v3439, %v5026
      %5028 = vadd.xlane.f32.xlu0 %v5027
      %v5029 = vpop.xlane.xlu0 %5028
      %v5030 = vsel %vm4825, %v4793, 0.0
      %v5031 = vadd.f32 %v3441, %v5030
      %5032 = vadd.xlane.f32.xlu0 %v5031
      %v5033 = vpop.xlane.xlu0 %5032
      %v5034 = vsel %vm4825, %v4796, 0.0
      %v5035 = vadd.f32 %v3444, %v5034
      %5036 = vadd.xlane.f32.xlu0 %v5035
      %v5037 = vpop.xlane.xlu0 %5036
      %v5038 = vsel %vm4825, %v4798, 0.0
      %v5039 = vadd.f32 %v3446, %v5038
      %5040 = vadd.xlane.f32.xlu0 %v5039
      %v5041 = vpop.xlane.xlu0 %5040
      %v5042 = vsel %vm4825, %v4801, 0.0
      %v5043 = vadd.f32 %v3449, %v5042
      %5044 = vadd.xlane.f32.xlu0 %v5043
      %v5045 = vpop.xlane.xlu0 %5044
      %v5046 = vsel %vm4825, %v4803, 0.0
      %v5047 = vadd.f32 %v3451, %v5046
      %5048 = vadd.xlane.f32.xlu0 %v5047
      %v5049 = vpop.xlane.xlu0 %5048
      %v5050 = vsel %vm4825, %v4806, 0.0
      %v5051 = vadd.f32 %v3454, %v5050
      %5052 = vadd.xlane.f32.xlu0 %v5051
      %v5053 = vpop.xlane.xlu0 %5052
      %v5054 = vsel %vm4825, %v4808, 0.0
      %v5055 = vadd.f32 %v3456, %v5054
      %5056 = vadd.xlane.f32.xlu0 %v5055
      %v5057 = vpop.xlane.xlu0 %5056
      %v5058 = vsel %vm4825, %v4811, 0.0
      %v5059 = vadd.f32 %v3459, %v5058
      %5060 = vadd.xlane.f32.xlu0 %v5059
      %v5061 = vpop.xlane.xlu0 %5060
      %v5062 = vsel %vm4825, %v4813, 0.0
      %v5063 = vadd.f32 %v3461, %v5062
      %5064 = vadd.xlane.f32.xlu0 %v5063
      %v5065 = vpop.xlane.xlu0 %5064
      %v5066 = vsel %vm4825, %v4816, 0.0
      %v5067 = vadd.f32 %v3464, %v5066
      %5068 = vadd.xlane.f32.xlu0 %v5067
      %v5069 = vpop.xlane.xlu0 %5068
      %v5070 = vsel %vm4825, %v4818, 0.0
      %v5071 = vadd.f32 %v3466, %v5070
      %5072 = vadd.xlane.f32.xlu0 %v5071
      %v5073 = vpop.xlane.xlu0 %5072
      %v5074 = vsel %vm4825, %v4821, 0.0
      %v5075 = vadd.f32 %v3469, %v5074
      %5076 = vadd.xlane.f32.xlu0 %v5075
      %v5077 = vpop.xlane.xlu0 %5076
      %v5078 = vsel %vm4825, %v4823, 0.0
      %v5079 = vadd.f32 %v3471, %v5078
      %5080 = vadd.xlane.f32.xlu0 %v5079
      %v5081 = vpop.xlane.xlu0 %5080
      %v5082 = vmul.f32 %v3314, %v3314
      %v5083 = vmul.f32 %v4666, %v4666
      %v5084 = vmul.f32 %v3316, %v3316
      %v5085 = vmul.f32 %v4668, %v4668
      %v5086 = vmul.f32 %v3319, %v3319
      %v5087 = vmul.f32 %v4671, %v4671
      %v5088 = vmul.f32 %v3321, %v3321
      %v5089 = vmul.f32 %v4673, %v4673
      %v5090 = vmul.f32 %v3324, %v3324
      %v5091 = vmul.f32 %v4676, %v4676
      %v5092 = vmul.f32 %v3326, %v3326
      %v5093 = vmul.f32 %v4678, %v4678
      %v5094 = vmul.f32 %v3329, %v3329
      %v5095 = vmul.f32 %v4681, %v4681
      %v5096 = vmul.f32 %v3331, %v3331
      %v5097 = vmul.f32 %v4683, %v4683
      %v5098 = vmul.f32 %v3334, %v3334
      %v5099 = vmul.f32 %v4686, %v4686
      %v5100 = vmul.f32 %v3336, %v3336
      %v5101 = vmul.f32 %v4688, %v4688
      %v5102 = vmul.f32 %v3339, %v3339
      %v5103 = vmul.f32 %v4691, %v4691
      %v5104 = vmul.f32 %v3341, %v3341
      %v5105 = vmul.f32 %v4693, %v4693
      %v5106 = vmul.f32 %v3344, %v3344
      %v5107 = vmul.f32 %v4696, %v4696
      %v5108 = vmul.f32 %v3346, %v3346
      %v5109 = vmul.f32 %v4698, %v4698
      %v5110 = vmul.f32 %v3349, %v3349
      %v5111 = vmul.f32 %v4701, %v4701
      %v5112 = vmul.f32 %v3351, %v3351
      %v5113 = vmul.f32 %v4703, %v4703
      %v5114 = vmul.f32 %v3354, %v3354
      %v5115 = vmul.f32 %v4706, %v4706
      %v5116 = vmul.f32 %v3356, %v3356
      %v5117 = vmul.f32 %v4708, %v4708
      %v5118 = vmul.f32 %v3359, %v3359
      %v5119 = vmul.f32 %v4711, %v4711
      %v5120 = vmul.f32 %v3361, %v3361
      %v5121 = vmul.f32 %v4713, %v4713
      %v5122 = vmul.f32 %v3364, %v3364
      %v5123 = vmul.f32 %v4716, %v4716
      %v5124 = vmul.f32 %v3366, %v3366
      %v5125 = vmul.f32 %v4718, %v4718
      %v5126 = vmul.f32 %v3369, %v3369
      %v5127 = vmul.f32 %v4721, %v4721
      %v5128 = vmul.f32 %v3371, %v3371
      %v5129 = vmul.f32 %v4723, %v4723
      %v5130 = vmul.f32 %v3374, %v3374
      %v5131 = vmul.f32 %v4726, %v4726
      %v5132 = vmul.f32 %v3376, %v3376
      %v5133 = vmul.f32 %v4728, %v4728
      %v5134 = vmul.f32 %v3379, %v3379
      %v5135 = vmul.f32 %v4731, %v4731
      %v5136 = vmul.f32 %v3381, %v3381
      %v5137 = vmul.f32 %v4733, %v4733
      %v5138 = vmul.f32 %v3384, %v3384
      %v5139 = vmul.f32 %v4736, %v4736
      %v5140 = vmul.f32 %v3386, %v3386
      %v5141 = vmul.f32 %v4738, %v4738
      %v5142 = vmul.f32 %v3389, %v3389
      %v5143 = vmul.f32 %v4741, %v4741
      %v5144 = vmul.f32 %v3391, %v3391
      %v5145 = vmul.f32 %v4743, %v4743
      %v5146 = vmul.f32 %v3394, %v3394
      %v5147 = vmul.f32 %v4746, %v4746
      %v5148 = vmul.f32 %v3396, %v3396
      %v5149 = vmul.f32 %v4748, %v4748
      %v5150 = vmul.f32 %v3399, %v3399
      %v5151 = vmul.f32 %v4751, %v4751
      %v5152 = vmul.f32 %v3401, %v3401
      %v5153 = vmul.f32 %v4753, %v4753
      %v5154 = vmul.f32 %v3404, %v3404
      %v5155 = vmul.f32 %v4756, %v4756
      %v5156 = vmul.f32 %v3406, %v3406
      %v5157 = vmul.f32 %v4758, %v4758
      %v5158 = vmul.f32 %v3409, %v3409
      %v5159 = vmul.f32 %v4761, %v4761
      %v5160 = vmul.f32 %v3411, %v3411
      %v5161 = vmul.f32 %v4763, %v4763
      %v5162 = vmul.f32 %v3414, %v3414
      %v5163 = vmul.f32 %v4766, %v4766
      %v5164 = vmul.f32 %v3416, %v3416
      %v5165 = vmul.f32 %v4768, %v4768
      %v5166 = vmul.f32 %v3419, %v3419
      %v5167 = vmul.f32 %v4771, %v4771
      %v5168 = vmul.f32 %v3421, %v3421
      %v5169 = vmul.f32 %v4773, %v4773
      %v5170 = vmul.f32 %v3424, %v3424
      %v5171 = vmul.f32 %v4776, %v4776
      %v5172 = vmul.f32 %v3426, %v3426
      %v5173 = vmul.f32 %v4778, %v4778
      %v5174 = vmul.f32 %v3429, %v3429
      %v5175 = vmul.f32 %v4781, %v4781
      %v5176 = vmul.f32 %v3431, %v3431
      %v5177 = vmul.f32 %v4783, %v4783
      %v5178 = vmul.f32 %v3434, %v3434
      %v5179 = vmul.f32 %v4786, %v4786
      %v5180 = vmul.f32 %v3436, %v3436
      %v5181 = vmul.f32 %v4788, %v4788
      %v5182 = vmul.f32 %v3439, %v3439
      %v5183 = vmul.f32 %v4791, %v4791
      %v5184 = vmul.f32 %v3441, %v3441
      %v5185 = vmul.f32 %v4793, %v4793
      %v5186 = vmul.f32 %v3444, %v3444
      %v5187 = vmul.f32 %v4796, %v4796
      %v5188 = vmul.f32 %v3446, %v3446
      %v5189 = vmul.f32 %v4798, %v4798
      %v5190 = vmul.f32 %v3449, %v3449
      %v5191 = vmul.f32 %v4801, %v4801
      %v5192 = vmul.f32 %v3451, %v3451
      %v5193 = vmul.f32 %v4803, %v4803
      %v5194 = vmul.f32 %v3454, %v3454
      %v5195 = vmul.f32 %v4806, %v4806
      %v5196 = vmul.f32 %v3456, %v3456
      %v5197 = vmul.f32 %v4808, %v4808
      %v5198 = vmul.f32 %v3459, %v3459
      %v5199 = vmul.f32 %v4811, %v4811
      %v5200 = vmul.f32 %v3461, %v3461
      %v5201 = vmul.f32 %v4813, %v4813
      %v5202 = vmul.f32 %v3464, %v3464
      %v5203 = vmul.f32 %v4816, %v4816
      %v5204 = vmul.f32 %v3466, %v3466
      %v5205 = vmul.f32 %v4818, %v4818
      %v5206 = vmul.f32 %v3469, %v3469
      %v5207 = vmul.f32 %v4821, %v4821
      %v5208 = vmul.f32 %v3471, %v3471
      %v5209 = vmul.f32 %v4823, %v4823
      %v5210 = vsel %vm4825, %v5083, 0.0
      %v5211 = vadd.f32 %v5082, %v5210
      %5212 = vadd.xlane.f32.xlu0 %v5211
      %v5213 = vpop.xlane.xlu0 %5212
      %v5214 = vsel %vm4825, %v5085, 0.0
      %v5215 = vadd.f32 %v5084, %v5214
      %5216 = vadd.xlane.f32.xlu0 %v5215
      %v5217 = vpop.xlane.xlu0 %5216
      %v5218 = vsel %vm4825, %v5087, 0.0
      %v5219 = vadd.f32 %v5086, %v5218
      %5220 = vadd.xlane.f32.xlu0 %v5219
      %v5221 = vpop.xlane.xlu0 %5220
      %v5222 = vsel %vm4825, %v5089, 0.0
      %v5223 = vadd.f32 %v5088, %v5222
      %5224 = vadd.xlane.f32.xlu0 %v5223
      %v5225 = vpop.xlane.xlu0 %5224
      %v5226 = vsel %vm4825, %v5091, 0.0
      %v5227 = vadd.f32 %v5090, %v5226
      %5228 = vadd.xlane.f32.xlu0 %v5227
      %v5229 = vpop.xlane.xlu0 %5228
      %v5230 = vsel %vm4825, %v5093, 0.0
      %v5231 = vadd.f32 %v5092, %v5230
      %5232 = vadd.xlane.f32.xlu0 %v5231
      %v5233 = vpop.xlane.xlu0 %5232
      %v5234 = vsel %vm4825, %v5095, 0.0
      %v5235 = vadd.f32 %v5094, %v5234
      %5236 = vadd.xlane.f32.xlu0 %v5235
      %v5237 = vpop.xlane.xlu0 %5236
      %v5238 = vsel %vm4825, %v5097, 0.0
      %v5239 = vadd.f32 %v5096, %v5238
      %5240 = vadd.xlane.f32.xlu0 %v5239
      %v5241 = vpop.xlane.xlu0 %5240
      %v5242 = vsel %vm4825, %v5099, 0.0
      %v5243 = vadd.f32 %v5098, %v5242
      %5244 = vadd.xlane.f32.xlu0 %v5243
      %v5245 = vpop.xlane.xlu0 %5244
      %v5246 = vsel %vm4825, %v5101, 0.0
      %v5247 = vadd.f32 %v5100, %v5246
      %5248 = vadd.xlane.f32.xlu0 %v5247
      %v5249 = vpop.xlane.xlu0 %5248
      %v5250 = vsel %vm4825, %v5103, 0.0
      %v5251 = vadd.f32 %v5102, %v5250
      %5252 = vadd.xlane.f32.xlu0 %v5251
      %v5253 = vpop.xlane.xlu0 %5252
      %v5254 = vsel %vm4825, %v5105, 0.0
      %v5255 = vadd.f32 %v5104, %v5254
      %5256 = vadd.xlane.f32.xlu0 %v5255
      %v5257 = vpop.xlane.xlu0 %5256
      %v5258 = vsel %vm4825, %v5107, 0.0
      %v5259 = vadd.f32 %v5106, %v5258
      %5260 = vadd.xlane.f32.xlu0 %v5259
      %v5261 = vpop.xlane.xlu0 %5260
      %v5262 = vsel %vm4825, %v5109, 0.0
      %v5263 = vadd.f32 %v5108, %v5262
      %5264 = vadd.xlane.f32.xlu0 %v5263
      %v5265 = vpop.xlane.xlu0 %5264
      %v5266 = vsel %vm4825, %v5111, 0.0
      %v5267 = vadd.f32 %v5110, %v5266
      %5268 = vadd.xlane.f32.xlu0 %v5267
      %v5269 = vpop.xlane.xlu0 %5268
      %v5270 = vsel %vm4825, %v5113, 0.0
      %v5271 = vadd.f32 %v5112, %v5270
      %5272 = vadd.xlane.f32.xlu0 %v5271
      %v5273 = vpop.xlane.xlu0 %5272
      %v5274 = vsel %vm4825, %v5115, 0.0
      %v5275 = vadd.f32 %v5114, %v5274
      %5276 = vadd.xlane.f32.xlu0 %v5275
      %v5277 = vpop.xlane.xlu0 %5276
      %v5278 = vsel %vm4825, %v5117, 0.0
      %v5279 = vadd.f32 %v5116, %v5278
      %5280 = vadd.xlane.f32.xlu0 %v5279
      %v5281 = vpop.xlane.xlu0 %5280
      %v5282 = vsel %vm4825, %v5119, 0.0
      %v5283 = vadd.f32 %v5118, %v5282
      %5284 = vadd.xlane.f32.xlu0 %v5283
      %v5285 = vpop.xlane.xlu0 %5284
      %v5286 = vsel %vm4825, %v5121, 0.0
      %v5287 = vadd.f32 %v5120, %v5286
      %5288 = vadd.xlane.f32.xlu0 %v5287
      %v5289 = vpop.xlane.xlu0 %5288
      %v5290 = vsel %vm4825, %v5123, 0.0
      %v5291 = vadd.f32 %v5122, %v5290
      %5292 = vadd.xlane.f32.xlu0 %v5291
      %v5293 = vpop.xlane.xlu0 %5292
      %v5294 = vsel %vm4825, %v5125, 0.0
      %v5295 = vadd.f32 %v5124, %v5294
      %5296 = vadd.xlane.f32.xlu0 %v5295
      %v5297 = vpop.xlane.xlu0 %5296
      %v5298 = vsel %vm4825, %v5127, 0.0
      %v5299 = vadd.f32 %v5126, %v5298
      %5300 = vadd.xlane.f32.xlu0 %v5299
      %v5301 = vpop.xlane.xlu0 %5300
      %v5302 = vsel %vm4825, %v5129, 0.0
      %v5303 = vadd.f32 %v5128, %v5302
      %5304 = vadd.xlane.f32.xlu0 %v5303
      %v5305 = vpop.xlane.xlu0 %5304
      %v5306 = vsel %vm4825, %v5131, 0.0
      %v5307 = vadd.f32 %v5130, %v5306
      %5308 = vadd.xlane.f32.xlu0 %v5307
      %v5309 = vpop.xlane.xlu0 %5308
      %v5310 = vsel %vm4825, %v5133, 0.0
      %v5311 = vadd.f32 %v5132, %v5310
      %5312 = vadd.xlane.f32.xlu0 %v5311
      %v5313 = vpop.xlane.xlu0 %5312
      %v5314 = vsel %vm4825, %v5135, 0.0
      %v5315 = vadd.f32 %v5134, %v5314
      %5316 = vadd.xlane.f32.xlu0 %v5315
      %v5317 = vpop.xlane.xlu0 %5316
      %v5318 = vsel %vm4825, %v5137, 0.0
      %v5319 = vadd.f32 %v5136, %v5318
      %5320 = vadd.xlane.f32.xlu0 %v5319
      %v5321 = vpop.xlane.xlu0 %5320
      %v5322 = vsel %vm4825, %v5139, 0.0
      %v5323 = vadd.f32 %v5138, %v5322
      %5324 = vadd.xlane.f32.xlu0 %v5323
      %v5325 = vpop.xlane.xlu0 %5324
      %v5326 = vsel %vm4825, %v5141, 0.0
      %v5327 = vadd.f32 %v5140, %v5326
      %5328 = vadd.xlane.f32.xlu0 %v5327
      %v5329 = vpop.xlane.xlu0 %5328
      %v5330 = vsel %vm4825, %v5143, 0.0
      %v5331 = vadd.f32 %v5142, %v5330
      %5332 = vadd.xlane.f32.xlu0 %v5331
      %v5333 = vpop.xlane.xlu0 %5332
      %v5334 = vsel %vm4825, %v5145, 0.0
      %v5335 = vadd.f32 %v5144, %v5334
      %5336 = vadd.xlane.f32.xlu0 %v5335
      %v5337 = vpop.xlane.xlu0 %5336
      %v5338 = vsel %vm4825, %v5147, 0.0
      %v5339 = vadd.f32 %v5146, %v5338
      %5340 = vadd.xlane.f32.xlu0 %v5339
      %v5341 = vpop.xlane.xlu0 %5340
      %v5342 = vsel %vm4825, %v5149, 0.0
      %v5343 = vadd.f32 %v5148, %v5342
      %5344 = vadd.xlane.f32.xlu0 %v5343
      %v5345 = vpop.xlane.xlu0 %5344
      %v5346 = vsel %vm4825, %v5151, 0.0
      %v5347 = vadd.f32 %v5150, %v5346
      %5348 = vadd.xlane.f32.xlu0 %v5347
      %v5349 = vpop.xlane.xlu0 %5348
      %v5350 = vsel %vm4825, %v5153, 0.0
      %v5351 = vadd.f32 %v5152, %v5350
      %5352 = vadd.xlane.f32.xlu0 %v5351
      %v5353 = vpop.xlane.xlu0 %5352
      %v5354 = vsel %vm4825, %v5155, 0.0
      %v5355 = vadd.f32 %v5154, %v5354
      %5356 = vadd.xlane.f32.xlu0 %v5355
      %v5357 = vpop.xlane.xlu0 %5356
      %v5358 = vsel %vm4825, %v5157, 0.0
      %v5359 = vadd.f32 %v5156, %v5358
      %5360 = vadd.xlane.f32.xlu0 %v5359
      %v5361 = vpop.xlane.xlu0 %5360
      %v5362 = vsel %vm4825, %v5159, 0.0
      %v5363 = vadd.f32 %v5158, %v5362
      %5364 = vadd.xlane.f32.xlu0 %v5363
      %v5365 = vpop.xlane.xlu0 %5364
      %v5366 = vsel %vm4825, %v5161, 0.0
      %v5367 = vadd.f32 %v5160, %v5366
      %5368 = vadd.xlane.f32.xlu0 %v5367
      %v5369 = vpop.xlane.xlu0 %5368
      %v5370 = vsel %vm4825, %v5163, 0.0
      %v5371 = vadd.f32 %v5162, %v5370
      %5372 = vadd.xlane.f32.xlu0 %v5371
      %v5373 = vpop.xlane.xlu0 %5372
      %v5374 = vsel %vm4825, %v5165, 0.0
      %v5375 = vadd.f32 %v5164, %v5374
      %5376 = vadd.xlane.f32.xlu0 %v5375
      %v5377 = vpop.xlane.xlu0 %5376
      %v5378 = vsel %vm4825, %v5167, 0.0
      %v5379 = vadd.f32 %v5166, %v5378
      %5380 = vadd.xlane.f32.xlu0 %v5379
      %v5381 = vpop.xlane.xlu0 %5380
      %v5382 = vsel %vm4825, %v5169, 0.0
      %v5383 = vadd.f32 %v5168, %v5382
      %5384 = vadd.xlane.f32.xlu0 %v5383
      %v5385 = vpop.xlane.xlu0 %5384
      %v5386 = vsel %vm4825, %v5171, 0.0
      %v5387 = vadd.f32 %v5170, %v5386
      %5388 = vadd.xlane.f32.xlu0 %v5387
      %v5389 = vpop.xlane.xlu0 %5388
      %v5390 = vsel %vm4825, %v5173, 0.0
      %v5391 = vadd.f32 %v5172, %v5390
      %5392 = vadd.xlane.f32.xlu0 %v5391
      %v5393 = vpop.xlane.xlu0 %5392
      %v5394 = vsel %vm4825, %v5175, 0.0
      %v5395 = vadd.f32 %v5174, %v5394
      %5396 = vadd.xlane.f32.xlu0 %v5395
      %v5397 = vpop.xlane.xlu0 %5396
      %v5398 = vsel %vm4825, %v5177, 0.0
      %v5399 = vadd.f32 %v5176, %v5398
      %5400 = vadd.xlane.f32.xlu0 %v5399
      %v5401 = vpop.xlane.xlu0 %5400
      %v5402 = vsel %vm4825, %v5179, 0.0
      %v5403 = vadd.f32 %v5178, %v5402
      %5404 = vadd.xlane.f32.xlu0 %v5403
      %v5405 = vpop.xlane.xlu0 %5404
      %v5406 = vsel %vm4825, %v5181, 0.0
      %v5407 = vadd.f32 %v5180, %v5406
      %5408 = vadd.xlane.f32.xlu0 %v5407
      %v5409 = vpop.xlane.xlu0 %5408
      %v5410 = vsel %vm4825, %v5183, 0.0
      %v5411 = vadd.f32 %v5182, %v5410
      %5412 = vadd.xlane.f32.xlu0 %v5411
      %v5413 = vpop.xlane.xlu0 %5412
      %v5414 = vsel %vm4825, %v5185, 0.0
      %v5415 = vadd.f32 %v5184, %v5414
      %5416 = vadd.xlane.f32.xlu0 %v5415
      %v5417 = vpop.xlane.xlu0 %5416
      %v5418 = vsel %vm4825, %v5187, 0.0
      %v5419 = vadd.f32 %v5186, %v5418
      %5420 = vadd.xlane.f32.xlu0 %v5419
      %v5421 = vpop.xlane.xlu0 %5420
      %v5422 = vsel %vm4825, %v5189, 0.0
      %v5423 = vadd.f32 %v5188, %v5422
      %5424 = vadd.xlane.f32.xlu0 %v5423
      %v5425 = vpop.xlane.xlu0 %5424
      %v5426 = vsel %vm4825, %v5191, 0.0
      %v5427 = vadd.f32 %v5190, %v5426
      %5428 = vadd.xlane.f32.xlu0 %v5427
      %v5429 = vpop.xlane.xlu0 %5428
      %v5430 = vsel %vm4825, %v5193, 0.0
      %v5431 = vadd.f32 %v5192, %v5430
      %5432 = vadd.xlane.f32.xlu0 %v5431
      %v5433 = vpop.xlane.xlu0 %5432
      %v5434 = vsel %vm4825, %v5195, 0.0
      %v5435 = vadd.f32 %v5194, %v5434
      %5436 = vadd.xlane.f32.xlu0 %v5435
      %v5437 = vpop.xlane.xlu0 %5436
      %v5438 = vsel %vm4825, %v5197, 0.0
      %v5439 = vadd.f32 %v5196, %v5438
      %5440 = vadd.xlane.f32.xlu0 %v5439
      %v5441 = vpop.xlane.xlu0 %5440
      %v5442 = vsel %vm4825, %v5199, 0.0
      %v5443 = vadd.f32 %v5198, %v5442
      %5444 = vadd.xlane.f32.xlu0 %v5443
      %v5445 = vpop.xlane.xlu0 %5444
      %v5446 = vsel %vm4825, %v5201, 0.0
      %v5447 = vadd.f32 %v5200, %v5446
      %5448 = vadd.xlane.f32.xlu0 %v5447
      %v5449 = vpop.xlane.xlu0 %5448
      %v5450 = vsel %vm4825, %v5203, 0.0
      %v5451 = vadd.f32 %v5202, %v5450
      %5452 = vadd.xlane.f32.xlu0 %v5451
      %v5453 = vpop.xlane.xlu0 %5452
      %v5454 = vsel %vm4825, %v5205, 0.0
      %v5455 = vadd.f32 %v5204, %v5454
      %5456 = vadd.xlane.f32.xlu0 %v5455
      %v5457 = vpop.xlane.xlu0 %5456
      %v5458 = vsel %vm4825, %v5207, 0.0
      %v5459 = vadd.f32 %v5206, %v5458
      %5460 = vadd.xlane.f32.xlu0 %v5459
      %v5461 = vpop.xlane.xlu0 %5460
      %v5462 = vsel %vm4825, %v5209, 0.0
      %v5463 = vadd.f32 %v5208, %v5462
      %5464 = vadd.xlane.f32.xlu0 %v5463
      %v5465 = vpop.xlane.xlu0 %5464
      %v5466 = vmul.f32 %v4829, 0.0051020407
      %v5467 = vmul.f32 %v4833, 0.0051020407
      %v5468 = vmul.f32 %v4837, 0.0051020407
      %v5469 = vmul.f32 %v4841, 0.0051020407
      %v5470 = vmul.f32 %v4845, 0.0051020407
      %v5471 = vmul.f32 %v4849, 0.0051020407
      %v5472 = vmul.f32 %v4853, 0.0051020407
      %v5473 = vmul.f32 %v4857, 0.0051020407
      %v5474 = vmul.f32 %v4861, 0.0051020407
      %v5475 = vmul.f32 %v4865, 0.0051020407
      %v5476 = vmul.f32 %v4869, 0.0051020407
      %v5477 = vmul.f32 %v4873, 0.0051020407
      %v5478 = vmul.f32 %v4877, 0.0051020407
      %v5479 = vmul.f32 %v4881, 0.0051020407
      %v5480 = vmul.f32 %v4885, 0.0051020407
      %v5481 = vmul.f32 %v4889, 0.0051020407
      %v5482 = vmul.f32 %v4893, 0.0051020407
      %v5483 = vmul.f32 %v4897, 0.0051020407
      %v5484 = vmul.f32 %v4901, 0.0051020407
      %v5485 = vmul.f32 %v4905, 0.0051020407
      %v5486 = vmul.f32 %v4909, 0.0051020407
      %v5487 = vmul.f32 %v4913, 0.0051020407
      %v5488 = vmul.f32 %v4917, 0.0051020407
      %v5489 = vmul.f32 %v4921, 0.0051020407
      %v5490 = vmul.f32 %v4925, 0.0051020407
      %v5491 = vmul.f32 %v4929, 0.0051020407
      %v5492 = vmul.f32 %v4933, 0.0051020407
      %v5493 = vmul.f32 %v4937, 0.0051020407
      %v5494 = vmul.f32 %v4941, 0.0051020407
      %v5495 = vmul.f32 %v4945, 0.0051020407
      %v5496 = vmul.f32 %v4949, 0.0051020407
      %v5497 = vmul.f32 %v4953, 0.0051020407
      %v5498 = vmul.f32 %v4957, 0.0051020407
      %v5499 = vmul.f32 %v4961, 0.0051020407
      %v5500 = vmul.f32 %v4965, 0.0051020407
      %v5501 = vmul.f32 %v4969, 0.0051020407
      %v5502 = vmul.f32 %v4973, 0.0051020407
      %v5503 = vmul.f32 %v4977, 0.0051020407
      %v5504 = vmul.f32 %v4981, 0.0051020407
      %v5505 = vmul.f32 %v4985, 0.0051020407
      %v5506 = vmul.f32 %v4989, 0.0051020407
      %v5507 = vmul.f32 %v4993, 0.0051020407
      %v5508 = vmul.f32 %v4997, 0.0051020407
      %v5509 = vmul.f32 %v5001, 0.0051020407
      %v5510 = vmul.f32 %v5005, 0.0051020407
      %v5511 = vmul.f32 %v5009, 0.0051020407
      %v5512 = vmul.f32 %v5013, 0.0051020407
      %v5513 = vmul.f32 %v5017, 0.0051020407
      %v5514 = vmul.f32 %v5021, 0.0051020407
      %v5515 = vmul.f32 %v5025, 0.0051020407
      %v5516 = vmul.f32 %v5029, 0.0051020407
      %v5517 = vmul.f32 %v5033, 0.0051020407
      %v5518 = vmul.f32 %v5037, 0.0051020407
      %v5519 = vmul.f32 %v5041, 0.0051020407
      %v5520 = vmul.f32 %v5045, 0.0051020407
      %v5521 = vmul.f32 %v5049, 0.0051020407
      %v5522 = vmul.f32 %v5053, 0.0051020407
      %v5523 = vmul.f32 %v5057, 0.0051020407
      %v5524 = vmul.f32 %v5061, 0.0051020407
      %v5525 = vmul.f32 %v5065, 0.0051020407
      %v5526 = vmul.f32 %v5069, 0.0051020407
      %v5527 = vmul.f32 %v5073, 0.0051020407
      %v5528 = vmul.f32 %v5077, 0.0051020407
      %v5529 = vmul.f32 %v5081, 0.0051020407
      %v5530 = vmul.f32 %v5213, 0.0051020407
      %v5531 = vmul.f32 %v5217, 0.0051020407
      %v5532 = vmul.f32 %v5221, 0.0051020407
      %v5533 = vmul.f32 %v5225, 0.0051020407
      %v5534 = vmul.f32 %v5229, 0.0051020407
      %v5535 = vmul.f32 %v5233, 0.0051020407
      %v5536 = vmul.f32 %v5237, 0.0051020407
      %v5537 = vmul.f32 %v5241, 0.0051020407
      %v5538 = vmul.f32 %v5245, 0.0051020407
      %v5539 = vmul.f32 %v5249, 0.0051020407
      %v5540 = vmul.f32 %v5253, 0.0051020407
      %v5541 = vmul.f32 %v5257, 0.0051020407
      %v5542 = vmul.f32 %v5261, 0.0051020407
      %v5543 = vmul.f32 %v5265, 0.0051020407
      %v5544 = vmul.f32 %v5269, 0.0051020407
      %v5545 = vmul.f32 %v5273, 0.0051020407
      %v5546 = vmul.f32 %v5277, 0.0051020407
      %v5547 = vmul.f32 %v5281, 0.0051020407
      %v5548 = vmul.f32 %v5285, 0.0051020407
      %v5549 = vmul.f32 %v5289, 0.0051020407
      %v5550 = vmul.f32 %v5293, 0.0051020407
      %v5551 = vmul.f32 %v5297, 0.0051020407
      %v5552 = vmul.f32 %v5301, 0.0051020407
      %v5553 = vmul.f32 %v5305, 0.0051020407
      %v5554 = vmul.f32 %v5309, 0.0051020407
      %v5555 = vmul.f32 %v5313, 0.0051020407
      %v5556 = vmul.f32 %v5317, 0.0051020407
      %v5557 = vmul.f32 %v5321, 0.0051020407
      %v5558 = vmul.f32 %v5325, 0.0051020407
      %v5559 = vmul.f32 %v5329, 0.0051020407
      %v5560 = vmul.f32 %v5333, 0.0051020407
      %v5561 = vmul.f32 %v5337, 0.0051020407
      %v5562 = vmul.f32 %v5341, 0.0051020407
      %v5563 = vmul.f32 %v5345, 0.0051020407
      %v5564 = vmul.f32 %v5349, 0.0051020407
      %v5565 = vmul.f32 %v5353, 0.0051020407
      %v5566 = vmul.f32 %v5357, 0.0051020407
      %v5567 = vmul.f32 %v5361, 0.0051020407
      %v5568 = vmul.f32 %v5365, 0.0051020407
      %v5569 = vmul.f32 %v5369, 0.0051020407
      %v5570 = vmul.f32 %v5373, 0.0051020407
      %v5571 = vmul.f32 %v5377, 0.0051020407
      %v5572 = vmul.f32 %v5381, 0.0051020407
      %v5573 = vmul.f32 %v5385, 0.0051020407
      %v5574 = vmul.f32 %v5389, 0.0051020407
      %v5575 = vmul.f32 %v5393, 0.0051020407
      %v5576 = vmul.f32 %v5397, 0.0051020407
      %v5577 = vmul.f32 %v5401, 0.0051020407
      %v5578 = vmul.f32 %v5405, 0.0051020407
      %v5579 = vmul.f32 %v5409, 0.0051020407
      %v5580 = vmul.f32 %v5413, 0.0051020407
      %v5581 = vmul.f32 %v5417, 0.0051020407
      %v5582 = vmul.f32 %v5421, 0.0051020407
      %v5583 = vmul.f32 %v5425, 0.0051020407
      %v5584 = vmul.f32 %v5429, 0.0051020407
      %v5585 = vmul.f32 %v5433, 0.0051020407
      %v5586 = vmul.f32 %v5437, 0.0051020407
      %v5587 = vmul.f32 %v5441, 0.0051020407
      %v5588 = vmul.f32 %v5445, 0.0051020407
      %v5589 = vmul.f32 %v5449, 0.0051020407
      %v5590 = vmul.f32 %v5453, 0.0051020407
      %v5591 = vmul.f32 %v5457, 0.0051020407
      %v5592 = vmul.f32 %v5461, 0.0051020407
      %v5593 = vmul.f32 %v5465, 0.0051020407
      %v5594 = vmul.f32 %v5466, %v5466
      %v5595 = vmul.f32 %v5467, %v5467
      %v5596 = vmul.f32 %v5468, %v5468
      %v5597 = vmul.f32 %v5469, %v5469
      %v5598 = vmul.f32 %v5470, %v5470
      %v5599 = vmul.f32 %v5471, %v5471
      %v5600 = vmul.f32 %v5472, %v5472
      %v5601 = vmul.f32 %v5473, %v5473
      %v5602 = vmul.f32 %v5474, %v5474
      %v5603 = vmul.f32 %v5475, %v5475
      %v5604 = vmul.f32 %v5476, %v5476
      %v5605 = vmul.f32 %v5477, %v5477
      %v5606 = vmul.f32 %v5478, %v5478
      %v5607 = vmul.f32 %v5479, %v5479
      %v5608 = vmul.f32 %v5480, %v5480
      %v5609 = vmul.f32 %v5481, %v5481
      %v5610 = vmul.f32 %v5482, %v5482
      %v5611 = vmul.f32 %v5483, %v5483
      %v5612 = vmul.f32 %v5484, %v5484
      %v5613 = vmul.f32 %v5485, %v5485
      %v5614 = vmul.f32 %v5486, %v5486
      %v5615 = vmul.f32 %v5487, %v5487
      %v5616 = vmul.f32 %v5488, %v5488
      %v5617 = vmul.f32 %v5489, %v5489
      %v5618 = vmul.f32 %v5490, %v5490
      %v5619 = vmul.f32 %v5491, %v5491
      %v5620 = vmul.f32 %v5492, %v5492
      %v5621 = vmul.f32 %v5493, %v5493
      %v5622 = vmul.f32 %v5494, %v5494
      %v5623 = vmul.f32 %v5495, %v5495
      %v5624 = vmul.f32 %v5496, %v5496
      %v5625 = vmul.f32 %v5497, %v5497
      %v5626 = vmul.f32 %v5498, %v5498
      %v5627 = vmul.f32 %v5499, %v5499
      %v5628 = vmul.f32 %v5500, %v5500
      %v5629 = vmul.f32 %v5501, %v5501
      %v5630 = vmul.f32 %v5502, %v5502
      %v5631 = vmul.f32 %v5503, %v5503
      %v5632 = vmul.f32 %v5504, %v5504
      %v5633 = vmul.f32 %v5505, %v5505
      %v5634 = vmul.f32 %v5506, %v5506
      %v5635 = vmul.f32 %v5507, %v5507
      %v5636 = vmul.f32 %v5508, %v5508
      %v5637 = vmul.f32 %v5509, %v5509
      %v5638 = vmul.f32 %v5510, %v5510
      %v5639 = vmul.f32 %v5511, %v5511
      %v5640 = vmul.f32 %v5512, %v5512
      %v5641 = vmul.f32 %v5513, %v5513
      %v5642 = vmul.f32 %v5514, %v5514
      %v5643 = vmul.f32 %v5515, %v5515
      %v5644 = vmul.f32 %v5516, %v5516
      %v5645 = vmul.f32 %v5517, %v5517
      %v5646 = vmul.f32 %v5518, %v5518
      %v5647 = vmul.f32 %v5519, %v5519
      %v5648 = vmul.f32 %v5520, %v5520
      %v5649 = vmul.f32 %v5521, %v5521
      %v5650 = vmul.f32 %v5522, %v5522
      %v5651 = vmul.f32 %v5523, %v5523
      %v5652 = vmul.f32 %v5524, %v5524
      %v5653 = vmul.f32 %v5525, %v5525
      %v5654 = vmul.f32 %v5526, %v5526
      %v5655 = vmul.f32 %v5527, %v5527
      %v5656 = vmul.f32 %v5528, %v5528
      %v5657 = vmul.f32 %v5529, %v5529
      %v5658 = vsub.f32 %v5530, %v5594
      %v5659 = vsub.f32 %v5531, %v5595
      %v5660 = vsub.f32 %v5532, %v5596
      %v5661 = vsub.f32 %v5533, %v5597
      %v5662 = vsub.f32 %v5534, %v5598
      %v5663 = vsub.f32 %v5535, %v5599
      %v5664 = vsub.f32 %v5536, %v5600
      %v5665 = vsub.f32 %v5537, %v5601
      %v5666 = vsub.f32 %v5538, %v5602
      %v5667 = vsub.f32 %v5539, %v5603
      %v5668 = vsub.f32 %v5540, %v5604
      %v5669 = vsub.f32 %v5541, %v5605
      %v5670 = vsub.f32 %v5542, %v5606
      %v5671 = vsub.f32 %v5543, %v5607
      %v5672 = vsub.f32 %v5544, %v5608
      %v5673 = vsub.f32 %v5545, %v5609
      %v5674 = vsub.f32 %v5546, %v5610
      %v5675 = vsub.f32 %v5547, %v5611
      %v5676 = vsub.f32 %v5548, %v5612
      %v5677 = vsub.f32 %v5549, %v5613
      %v5678 = vsub.f32 %v5550, %v5614
      %v5679 = vsub.f32 %v5551, %v5615
      %v5680 = vsub.f32 %v5552, %v5616
      %v5681 = vsub.f32 %v5553, %v5617
      %v5682 = vsub.f32 %v5554, %v5618
      %v5683 = vsub.f32 %v5555, %v5619
      %v5684 = vsub.f32 %v5556, %v5620
      %v5685 = vsub.f32 %v5557, %v5621
      %v5686 = vsub.f32 %v5558, %v5622
      %v5687 = vsub.f32 %v5559, %v5623
      %v5688 = vsub.f32 %v5560, %v5624
      %v5689 = vsub.f32 %v5561, %v5625
      %v5690 = vsub.f32 %v5562, %v5626
      %v5691 = vsub.f32 %v5563, %v5627
      %v5692 = vsub.f32 %v5564, %v5628
      %v5693 = vsub.f32 %v5565, %v5629
      %v5694 = vsub.f32 %v5566, %v5630
      %v5695 = vsub.f32 %v5567, %v5631
      %v5696 = vsub.f32 %v5568, %v5632
      %v5697 = vsub.f32 %v5569, %v5633
      %v5698 = vsub.f32 %v5570, %v5634
      %v5699 = vsub.f32 %v5571, %v5635
      %v5700 = vsub.f32 %v5572, %v5636
      %v5701 = vsub.f32 %v5573, %v5637
      %v5702 = vsub.f32 %v5574, %v5638
      %v5703 = vsub.f32 %v5575, %v5639
      %v5704 = vsub.f32 %v5576, %v5640
      %v5705 = vsub.f32 %v5577, %v5641
      %v5706 = vsub.f32 %v5578, %v5642
      %v5707 = vsub.f32 %v5579, %v5643
      %v5708 = vsub.f32 %v5580, %v5644
      %v5709 = vsub.f32 %v5581, %v5645
      %v5710 = vsub.f32 %v5582, %v5646
      %v5711 = vsub.f32 %v5583, %v5647
      %v5712 = vsub.f32 %v5584, %v5648
      %v5713 = vsub.f32 %v5585, %v5649
      %v5714 = vsub.f32 %v5586, %v5650
      %v5715 = vsub.f32 %v5587, %v5651
      %v5716 = vsub.f32 %v5588, %v5652
      %v5717 = vsub.f32 %v5589, %v5653
      %v5718 = vsub.f32 %v5590, %v5654
      %v5719 = vsub.f32 %v5591, %v5655
      %v5720 = vsub.f32 %v5592, %v5656
      %v5721 = vsub.f32 %v5593, %v5657
      %v5722 = vmax.f32 %v5658, 0.0
      %v5723 = vmax.f32 %v5659, 0.0
      %v5724 = vmax.f32 %v5660, 0.0
      %v5725 = vmax.f32 %v5661, 0.0
      %v5726 = vmax.f32 %v5662, 0.0
      %v5727 = vmax.f32 %v5663, 0.0
      %v5728 = vmax.f32 %v5664, 0.0
      %v5729 = vmax.f32 %v5665, 0.0
      %v5730 = vmax.f32 %v5666, 0.0
      %v5731 = vmax.f32 %v5667, 0.0
      %v5732 = vmax.f32 %v5668, 0.0
      %v5733 = vmax.f32 %v5669, 0.0
      %v5734 = vmax.f32 %v5670, 0.0
      %v5735 = vmax.f32 %v5671, 0.0
      %v5736 = vmax.f32 %v5672, 0.0
      %v5737 = vmax.f32 %v5673, 0.0
      %v5738 = vmax.f32 %v5674, 0.0
      %v5739 = vmax.f32 %v5675, 0.0
      %v5740 = vmax.f32 %v5676, 0.0
      %v5741 = vmax.f32 %v5677, 0.0
      %v5742 = vmax.f32 %v5678, 0.0
      %v5743 = vmax.f32 %v5679, 0.0
      %v5744 = vmax.f32 %v5680, 0.0
      %v5745 = vmax.f32 %v5681, 0.0
      %v5746 = vmax.f32 %v5682, 0.0
      %v5747 = vmax.f32 %v5683, 0.0
      %v5748 = vmax.f32 %v5684, 0.0
      %v5749 = vmax.f32 %v5685, 0.0
      %v5750 = vmax.f32 %v5686, 0.0
      %v5751 = vmax.f32 %v5687, 0.0
      %v5752 = vmax.f32 %v5688, 0.0
      %v5753 = vmax.f32 %v5689, 0.0
      %v5754 = vmax.f32 %v5690, 0.0
      %v5755 = vmax.f32 %v5691, 0.0
      %v5756 = vmax.f32 %v5692, 0.0
      %v5757 = vmax.f32 %v5693, 0.0
      %v5758 = vmax.f32 %v5694, 0.0
      %v5759 = vmax.f32 %v5695, 0.0
      %v5760 = vmax.f32 %v5696, 0.0
      %v5761 = vmax.f32 %v5697, 0.0
      %v5762 = vmax.f32 %v5698, 0.0
      %v5763 = vmax.f32 %v5699, 0.0
      %v5764 = vmax.f32 %v5700, 0.0
      %v5765 = vmax.f32 %v5701, 0.0
      %v5766 = vmax.f32 %v5702, 0.0
      %v5767 = vmax.f32 %v5703, 0.0
      %v5768 = vmax.f32 %v5704, 0.0
      %v5769 = vmax.f32 %v5705, 0.0
      %v5770 = vmax.f32 %v5706, 0.0
      %v5771 = vmax.f32 %v5707, 0.0
      %v5772 = vmax.f32 %v5708, 0.0
      %v5773 = vmax.f32 %v5709, 0.0
      %v5774 = vmax.f32 %v5710, 0.0
      %v5775 = vmax.f32 %v5711, 0.0
      %v5776 = vmax.f32 %v5712, 0.0
      %v5777 = vmax.f32 %v5713, 0.0
      %v5778 = vmax.f32 %v5714, 0.0
      %v5779 = vmax.f32 %v5715, 0.0
      %v5780 = vmax.f32 %v5716, 0.0
      %v5781 = vmax.f32 %v5717, 0.0
      %v5782 = vmax.f32 %v5718, 0.0
      %v5783 = vmax.f32 %v5719, 0.0
      %v5784 = vmax.f32 %v5720, 0.0
      %v5785 = vmax.f32 %v5721, 0.0
      %v5786 = vld [vmem:[%s192] sm:$0xff]
      %v5787 = vld [vmem:[%s192 + $0x8] sm:$0xff]
      %v5788 = vld [vmem:[%s192 + $0x10] sm:$0xff]
      %v5789 = vld [vmem:[%s192 + $0x18] sm:$0xff]
      %v5790 = vld [vmem:[%s192 + $0x20] sm:$0xff]
      %v5791 = vld [vmem:[%s192 + $0x28] sm:$0xff]
      %v5792 = vld [vmem:[%s192 + $0x30] sm:$0xff]
      %v5793 = vld [vmem:[%s192 + $0x38] sm:$0xff]
      %v5794 = vld [vmem:[%s192 + $0x40] sm:$0xff]
      %v5795 = vld [vmem:[%s192 + $0x48] sm:$0xff]
      %v5796 = vld [vmem:[%s192 + $0x50] sm:$0xff]
      %v5797 = vld [vmem:[%s192 + $0x58] sm:$0xff]
      %v5798 = vld [vmem:[%s192 + $0x60] sm:$0xff]
      %v5799 = vld [vmem:[%s192 + $0x68] sm:$0xff]
      %v5800 = vld [vmem:[%s192 + $0x70] sm:$0xff]
      %v5801 = vld [vmem:[%s192 + $0x78] sm:$0xff]
      %v5802 = vld [vmem:[%s192 + $0x80] sm:$0xff]
      %v5803 = vld [vmem:[%s192 + $0x88] sm:$0xff]
      %v5804 = vld [vmem:[%s192 + $0x90] sm:$0xff]
      %v5805 = vld [vmem:[%s192 + $0x98] sm:$0xff]
      %v5806 = vld [vmem:[%s192 + $0xa0] sm:$0xff]
      %v5807 = vld [vmem:[%s192 + $0xa8] sm:$0xff]
      %v5808 = vld [vmem:[%s192 + $0xb0] sm:$0xff]
      %v5809 = vld [vmem:[%s192 + $0xb8] sm:$0xff]
      %v5810 = vld [vmem:[%s192 + $0xc0] sm:$0xff]
      %v5811 = vld [vmem:[%s192 + $0xc8] sm:$0xff]
      %v5812 = vld [vmem:[%s192 + $0xd0] sm:$0xff]
      %v5813 = vld [vmem:[%s192 + $0xd8] sm:$0xff]
      %v5814 = vld [vmem:[%s192 + $0xe0] sm:$0xff]
      %v5815 = vld [vmem:[%s192 + $0xe8] sm:$0xff]
      %v5816 = vld [vmem:[%s192 + $0xf0] sm:$0xff]
      %v5817 = vld [vmem:[%s192 + $0xf8] sm:$0xff]
      %v5818 = vld [vmem:[%s192 + $0x100] sm:$0xff]
      %v5819 = vld [vmem:[%s192 + $0x108] sm:$0xff]
      %v5820 = vld [vmem:[%s192 + $0x110] sm:$0xff]
      %v5821 = vld [vmem:[%s192 + $0x118] sm:$0xff]
      %v5822 = vld [vmem:[%s192 + $0x120] sm:$0xff]
      %v5823 = vld [vmem:[%s192 + $0x128] sm:$0xff]
      %v5824 = vld [vmem:[%s192 + $0x130] sm:$0xff]
      %v5825 = vld [vmem:[%s192 + $0x138] sm:$0xff]
      %v5826 = vld [vmem:[%s192 + $0x140] sm:$0xff]
      %v5827 = vld [vmem:[%s192 + $0x148] sm:$0xff]
      %v5828 = vld [vmem:[%s192 + $0x150] sm:$0xff]
      %v5829 = vld [vmem:[%s192 + $0x158] sm:$0xff]
      %v5830 = vld [vmem:[%s192 + $0x160] sm:$0xff]
      %v5831 = vld [vmem:[%s192 + $0x168] sm:$0xff]
      %v5832 = vld [vmem:[%s192 + $0x170] sm:$0xff]
      %v5833 = vld [vmem:[%s192 + $0x178] sm:$0xff]
      %v5834 = vld [vmem:[%s192 + $0x180] sm:$0xff]
      %v5835 = vld [vmem:[%s192 + $0x188] sm:$0xff]
      %v5836 = vld [vmem:[%s192 + $0x190] sm:$0xff]
      %v5837 = vld [vmem:[%s192 + $0x198] sm:$0xff]
      %v5838 = vld [vmem:[%s192 + $0x1a0] sm:$0xff]
      %v5839 = vld [vmem:[%s192 + $0x1a8] sm:$0xff]
      %v5840 = vld [vmem:[%s192 + $0x1b0] sm:$0xff]
      %v5841 = vld [vmem:[%s192 + $0x1b8] sm:$0xff]
      %v5842 = vld [vmem:[%s192 + $0x1c0] sm:$0xff]
      %v5843 = vld [vmem:[%s192 + $0x1c8] sm:$0xff]
      %v5844 = vld [vmem:[%s192 + $0x1d0] sm:$0xff]
      %v5845 = vld [vmem:[%s192 + $0x1d8] sm:$0xff]
      %v5846 = vld [vmem:[%s192 + $0x1e0] sm:$0xff]
      %v5847 = vld [vmem:[%s192 + $0x1e8] sm:$0xff]
      %v5848 = vld [vmem:[%s192 + $0x1f0] sm:$0xff]
      %v5849 = vld [vmem:[%s192 + $0x1f8] sm:$0xff]
      %v5850 = vadd.f32 %v5722, 1e-05
      %v5851 = vadd.f32 %v5723, 1e-05
      %v5852 = vadd.f32 %v5724, 1e-05
      %v5853 = vadd.f32 %v5725, 1e-05
      %v5854 = vadd.f32 %v5726, 1e-05
      %v5855 = vadd.f32 %v5727, 1e-05
      %v5856 = vadd.f32 %v5728, 1e-05
      %v5857 = vadd.f32 %v5729, 1e-05
      %v5858 = vadd.f32 %v5730, 1e-05
      %v5859 = vadd.f32 %v5731, 1e-05
      %v5860 = vadd.f32 %v5732, 1e-05
      %v5861 = vadd.f32 %v5733, 1e-05
      %v5862 = vadd.f32 %v5734, 1e-05
      %v5863 = vadd.f32 %v5735, 1e-05
      %v5864 = vadd.f32 %v5736, 1e-05
      %v5865 = vadd.f32 %v5737, 1e-05
      %v5866 = vadd.f32 %v5738, 1e-05
      %v5867 = vadd.f32 %v5739, 1e-05
      %v5868 = vadd.f32 %v5740, 1e-05
      %v5869 = vadd.f32 %v5741, 1e-05
      %v5870 = vadd.f32 %v5742, 1e-05
      %v5871 = vadd.f32 %v5743, 1e-05
      %v5872 = vadd.f32 %v5744, 1e-05
      %v5873 = vadd.f32 %v5745, 1e-05
      %v5874 = vadd.f32 %v5746, 1e-05
      %v5875 = vadd.f32 %v5747, 1e-05
      %v5876 = vadd.f32 %v5748, 1e-05
      %v5877 = vadd.f32 %v5749, 1e-05
      %v5878 = vadd.f32 %v5750, 1e-05
      %v5879 = vadd.f32 %v5751, 1e-05
      %v5880 = vadd.f32 %v5752, 1e-05
      %v5881 = vadd.f32 %v5753, 1e-05
      %v5882 = vadd.f32 %v5754, 1e-05
      %v5883 = vadd.f32 %v5755, 1e-05
      %v5884 = vadd.f32 %v5756, 1e-05
      %v5885 = vadd.f32 %v5757, 1e-05
      %v5886 = vadd.f32 %v5758, 1e-05
      %v5887 = vadd.f32 %v5759, 1e-05
      %v5888 = vadd.f32 %v5760, 1e-05
      %v5889 = vadd.f32 %v5761, 1e-05
      %v5890 = vadd.f32 %v5762, 1e-05
      %v5891 = vadd.f32 %v5763, 1e-05
      %v5892 = vadd.f32 %v5764, 1e-05
      %v5893 = vadd.f32 %v5765, 1e-05
      %v5894 = vadd.f32 %v5766, 1e-05
      %v5895 = vadd.f32 %v5767, 1e-05
      %v5896 = vadd.f32 %v5768, 1e-05
      %v5897 = vadd.f32 %v5769, 1e-05
      %v5898 = vadd.f32 %v5770, 1e-05
      %v5899 = vadd.f32 %v5771, 1e-05
      %v5900 = vadd.f32 %v5772, 1e-05
      %v5901 = vadd.f32 %v5773, 1e-05
      %v5902 = vadd.f32 %v5774, 1e-05
      %v5903 = vadd.f32 %v5775, 1e-05
      %v5904 = vadd.f32 %v5776, 1e-05
      %v5905 = vadd.f32 %v5777, 1e-05
      %v5906 = vadd.f32 %v5778, 1e-05
      %v5907 = vadd.f32 %v5779, 1e-05
      %v5908 = vadd.f32 %v5780, 1e-05
      %v5909 = vadd.f32 %v5781, 1e-05
      %v5910 = vadd.f32 %v5782, 1e-05
      %v5911 = vadd.f32 %v5783, 1e-05
      %v5912 = vadd.f32 %v5784, 1e-05
      %v5913 = vadd.f32 %v5785, 1e-05
      %v5914 = vrsqrt.pop %v5850
      %v5915 = vmul.f32 %v5914, %v5850
      %v5916 = vmul.f32 %v5915, %v5914
      %v5917 = vmul.f32 0.5, %v5916
      %v5918 = vsub.f32 1.5, %v5917
      %v5919 = vmul.f32 %v5914, %v5918
      %vm5920 = vweird.f32 %v5850
      %vm5921 = vweird.f32 %v5914
      %vm5922 = vmor %vm5920, %vm5921
      %v5923 = vsel %vm5922, %v5914, %v5919
      %v5924 = vrsqrt.pop %v5851
      %v5925 = vmul.f32 %v5924, %v5851
      %v5926 = vmul.f32 %v5925, %v5924
      %v5927 = vmul.f32 0.5, %v5926
      %v5928 = vsub.f32 1.5, %v5927
      %v5929 = vmul.f32 %v5924, %v5928
      %vm5930 = vweird.f32 %v5851
      %vm5931 = vweird.f32 %v5924
      %vm5932 = vmor %vm5930, %vm5931
      %v5933 = vsel %vm5932, %v5924, %v5929
      %v5934 = vrsqrt.pop %v5852
      %v5935 = vmul.f32 %v5934, %v5852
      %v5936 = vmul.f32 %v5935, %v5934
      %v5937 = vmul.f32 0.5, %v5936
      %v5938 = vsub.f32 1.5, %v5937
      %v5939 = vmul.f32 %v5934, %v5938
      %vm5940 = vweird.f32 %v5852
      %vm5941 = vweird.f32 %v5934
      %vm5942 = vmor %vm5940, %vm5941
      %v5943 = vsel %vm5942, %v5934, %v5939
      %v5944 = vrsqrt.pop %v5853
      %v5945 = vmul.f32 %v5944, %v5853
      %v5946 = vmul.f32 %v5945, %v5944
      %v5947 = vmul.f32 0.5, %v5946
      %v5948 = vsub.f32 1.5, %v5947
      %v5949 = vmul.f32 %v5944, %v5948
      %vm5950 = vweird.f32 %v5853
      %vm5951 = vweird.f32 %v5944
      %vm5952 = vmor %vm5950, %vm5951
      %v5953 = vsel %vm5952, %v5944, %v5949
      %v5954 = vrsqrt.pop %v5854
      %v5955 = vmul.f32 %v5954, %v5854
      %v5956 = vmul.f32 %v5955, %v5954
      %v5957 = vmul.f32 0.5, %v5956
      %v5958 = vsub.f32 1.5, %v5957
      %v5959 = vmul.f32 %v5954, %v5958
      %vm5960 = vweird.f32 %v5854
      %vm5961 = vweird.f32 %v5954
      %vm5962 = vmor %vm5960, %vm5961
      %v5963 = vsel %vm5962, %v5954, %v5959
      %v5964 = vrsqrt.pop %v5855
      %v5965 = vmul.f32 %v5964, %v5855
      %v5966 = vmul.f32 %v5965, %v5964
      %v5967 = vmul.f32 0.5, %v5966
      %v5968 = vsub.f32 1.5, %v5967
      %v5969 = vmul.f32 %v5964, %v5968
      %vm5970 = vweird.f32 %v5855
      %vm5971 = vweird.f32 %v5964
      %vm5972 = vmor %vm5970, %vm5971
      %v5973 = vsel %vm5972, %v5964, %v5969
      %v5974 = vrsqrt.pop %v5856
      %v5975 = vmul.f32 %v5974, %v5856
      %v5976 = vmul.f32 %v5975, %v5974
      %v5977 = vmul.f32 0.5, %v5976
      %v5978 = vsub.f32 1.5, %v5977
      %v5979 = vmul.f32 %v5974, %v5978
      %vm5980 = vweird.f32 %v5856
      %vm5981 = vweird.f32 %v5974
      %vm5982 = vmor %vm5980, %vm5981
      %v5983 = vsel %vm5982, %v5974, %v5979
      %v5984 = vrsqrt.pop %v5857
      %v5985 = vmul.f32 %v5984, %v5857
      %v5986 = vmul.f32 %v5985, %v5984
      %v5987 = vmul.f32 0.5, %v5986
      %v5988 = vsub.f32 1.5, %v5987
      %v5989 = vmul.f32 %v5984, %v5988
      %vm5990 = vweird.f32 %v5857
      %vm5991 = vweird.f32 %v5984
      %vm5992 = vmor %vm5990, %vm5991
      %v5993 = vsel %vm5992, %v5984, %v5989
      %v5994 = vrsqrt.pop %v5858
      %v5995 = vmul.f32 %v5994, %v5858
      %v5996 = vmul.f32 %v5995, %v5994
      %v5997 = vmul.f32 0.5, %v5996
      %v5998 = vsub.f32 1.5, %v5997
      %v5999 = vmul.f32 %v5994, %v5998
      %vm6000 = vweird.f32 %v5858
      %vm6001 = vweird.f32 %v5994
      %vm6002 = vmor %vm6000, %vm6001
      %v6003 = vsel %vm6002, %v5994, %v5999
      %v6004 = vrsqrt.pop %v5859
      %v6005 = vmul.f32 %v6004, %v5859
      %v6006 = vmul.f32 %v6005, %v6004
      %v6007 = vmul.f32 0.5, %v6006
      %v6008 = vsub.f32 1.5, %v6007
      %v6009 = vmul.f32 %v6004, %v6008
      %vm6010 = vweird.f32 %v5859
      %vm6011 = vweird.f32 %v6004
      %vm6012 = vmor %vm6010, %vm6011
      %v6013 = vsel %vm6012, %v6004, %v6009
      %v6014 = vrsqrt.pop %v5860
      %v6015 = vmul.f32 %v6014, %v5860
      %v6016 = vmul.f32 %v6015, %v6014
      %v6017 = vmul.f32 0.5, %v6016
      %v6018 = vsub.f32 1.5, %v6017
      %v6019 = vmul.f32 %v6014, %v6018
      %vm6020 = vweird.f32 %v5860
      %vm6021 = vweird.f32 %v6014
      %vm6022 = vmor %vm6020, %vm6021
      %v6023 = vsel %vm6022, %v6014, %v6019
      %v6024 = vrsqrt.pop %v5861
      %v6025 = vmul.f32 %v6024, %v5861
      %v6026 = vmul.f32 %v6025, %v6024
      %v6027 = vmul.f32 0.5, %v6026
      %v6028 = vsub.f32 1.5, %v6027
      %v6029 = vmul.f32 %v6024, %v6028
      %vm6030 = vweird.f32 %v5861
      %vm6031 = vweird.f32 %v6024
      %vm6032 = vmor %vm6030, %vm6031
      %v6033 = vsel %vm6032, %v6024, %v6029
      %v6034 = vrsqrt.pop %v5862
      %v6035 = vmul.f32 %v6034, %v5862
      %v6036 = vmul.f32 %v6035, %v6034
      %v6037 = vmul.f32 0.5, %v6036
      %v6038 = vsub.f32 1.5, %v6037
      %v6039 = vmul.f32 %v6034, %v6038
      %vm6040 = vweird.f32 %v5862
      %vm6041 = vweird.f32 %v6034
      %vm6042 = vmor %vm6040, %vm6041
      %v6043 = vsel %vm6042, %v6034, %v6039
      %v6044 = vrsqrt.pop %v5863
      %v6045 = vmul.f32 %v6044, %v5863
      %v6046 = vmul.f32 %v6045, %v6044
      %v6047 = vmul.f32 0.5, %v6046
      %v6048 = vsub.f32 1.5, %v6047
      %v6049 = vmul.f32 %v6044, %v6048
      %vm6050 = vweird.f32 %v5863
      %vm6051 = vweird.f32 %v6044
      %vm6052 = vmor %vm6050, %vm6051
      %v6053 = vsel %vm6052, %v6044, %v6049
      %v6054 = vrsqrt.pop %v5864
      %v6055 = vmul.f32 %v6054, %v5864
      %v6056 = vmul.f32 %v6055, %v6054
      %v6057 = vmul.f32 0.5, %v6056
      %v6058 = vsub.f32 1.5, %v6057
      %v6059 = vmul.f32 %v6054, %v6058
      %vm6060 = vweird.f32 %v5864
      %vm6061 = vweird.f32 %v6054
      %vm6062 = vmor %vm6060, %vm6061
      %v6063 = vsel %vm6062, %v6054, %v6059
      %v6064 = vrsqrt.pop %v5865
      %v6065 = vmul.f32 %v6064, %v5865
      %v6066 = vmul.f32 %v6065, %v6064
      %v6067 = vmul.f32 0.5, %v6066
      %v6068 = vsub.f32 1.5, %v6067
      %v6069 = vmul.f32 %v6064, %v6068
      %vm6070 = vweird.f32 %v5865
      %vm6071 = vweird.f32 %v6064
      %vm6072 = vmor %vm6070, %vm6071
      %v6073 = vsel %vm6072, %v6064, %v6069
      %v6074 = vrsqrt.pop %v5866
      %v6075 = vmul.f32 %v6074, %v5866
      %v6076 = vmul.f32 %v6075, %v6074
      %v6077 = vmul.f32 0.5, %v6076
      %v6078 = vsub.f32 1.5, %v6077
      %v6079 = vmul.f32 %v6074, %v6078
      %vm6080 = vweird.f32 %v5866
      %vm6081 = vweird.f32 %v6074
      %vm6082 = vmor %vm6080, %vm6081
      %v6083 = vsel %vm6082, %v6074, %v6079
      %v6084 = vrsqrt.pop %v5867
      %v6085 = vmul.f32 %v6084, %v5867
      %v6086 = vmul.f32 %v6085, %v6084
      %v6087 = vmul.f32 0.5, %v6086
      %v6088 = vsub.f32 1.5, %v6087
      %v6089 = vmul.f32 %v6084, %v6088
      %vm6090 = vweird.f32 %v5867
      %vm6091 = vweird.f32 %v6084
      %vm6092 = vmor %vm6090, %vm6091
      %v6093 = vsel %vm6092, %v6084, %v6089
      %v6094 = vrsqrt.pop %v5868
      %v6095 = vmul.f32 %v6094, %v5868
      %v6096 = vmul.f32 %v6095, %v6094
      %v6097 = vmul.f32 0.5, %v6096
      %v6098 = vsub.f32 1.5, %v6097
      %v6099 = vmul.f32 %v6094, %v6098
      %vm6100 = vweird.f32 %v5868
      %vm6101 = vweird.f32 %v6094
      %vm6102 = vmor %vm6100, %vm6101
      %v6103 = vsel %vm6102, %v6094, %v6099
      %v6104 = vrsqrt.pop %v5869
      %v6105 = vmul.f32 %v6104, %v5869
      %v6106 = vmul.f32 %v6105, %v6104
      %v6107 = vmul.f32 0.5, %v6106
      %v6108 = vsub.f32 1.5, %v6107
      %v6109 = vmul.f32 %v6104, %v6108
      %vm6110 = vweird.f32 %v5869
      %vm6111 = vweird.f32 %v6104
      %vm6112 = vmor %vm6110, %vm6111
      %v6113 = vsel %vm6112, %v6104, %v6109
      %v6114 = vrsqrt.pop %v5870
      %v6115 = vmul.f32 %v6114, %v5870
      %v6116 = vmul.f32 %v6115, %v6114
      %v6117 = vmul.f32 0.5, %v6116
      %v6118 = vsub.f32 1.5, %v6117
      %v6119 = vmul.f32 %v6114, %v6118
      %vm6120 = vweird.f32 %v5870
      %vm6121 = vweird.f32 %v6114
      %vm6122 = vmor %vm6120, %vm6121
      %v6123 = vsel %vm6122, %v6114, %v6119
      %v6124 = vrsqrt.pop %v5871
      %v6125 = vmul.f32 %v6124, %v5871
      %v6126 = vmul.f32 %v6125, %v6124
      %v6127 = vmul.f32 0.5, %v6126
      %v6128 = vsub.f32 1.5, %v6127
      %v6129 = vmul.f32 %v6124, %v6128
      %vm6130 = vweird.f32 %v5871
      %vm6131 = vweird.f32 %v6124
      %vm6132 = vmor %vm6130, %vm6131
      %v6133 = vsel %vm6132, %v6124, %v6129
      %v6134 = vrsqrt.pop %v5872
      %v6135 = vmul.f32 %v6134, %v5872
      %v6136 = vmul.f32 %v6135, %v6134
      %v6137 = vmul.f32 0.5, %v6136
      %v6138 = vsub.f32 1.5, %v6137
      %v6139 = vmul.f32 %v6134, %v6138
      %vm6140 = vweird.f32 %v5872
      %vm6141 = vweird.f32 %v6134
      %vm6142 = vmor %vm6140, %vm6141
      %v6143 = vsel %vm6142, %v6134, %v6139
      %v6144 = vrsqrt.pop %v5873
      %v6145 = vmul.f32 %v6144, %v5873
      %v6146 = vmul.f32 %v6145, %v6144
      %v6147 = vmul.f32 0.5, %v6146
      %v6148 = vsub.f32 1.5, %v6147
      %v6149 = vmul.f32 %v6144, %v6148
      %vm6150 = vweird.f32 %v5873
      %vm6151 = vweird.f32 %v6144
      %vm6152 = vmor %vm6150, %vm6151
      %v6153 = vsel %vm6152, %v6144, %v6149
      %v6154 = vrsqrt.pop %v5874
      %v6155 = vmul.f32 %v6154, %v5874
      %v6156 = vmul.f32 %v6155, %v6154
      %v6157 = vmul.f32 0.5, %v6156
      %v6158 = vsub.f32 1.5, %v6157
      %v6159 = vmul.f32 %v6154, %v6158
      %vm6160 = vweird.f32 %v5874
      %vm6161 = vweird.f32 %v6154
      %vm6162 = vmor %vm6160, %vm6161
      %v6163 = vsel %vm6162, %v6154, %v6159
      %v6164 = vrsqrt.pop %v5875
      %v6165 = vmul.f32 %v6164, %v5875
      %v6166 = vmul.f32 %v6165, %v6164
      %v6167 = vmul.f32 0.5, %v6166
      %v6168 = vsub.f32 1.5, %v6167
      %v6169 = vmul.f32 %v6164, %v6168
      %vm6170 = vweird.f32 %v5875
      %vm6171 = vweird.f32 %v6164
      %vm6172 = vmor %vm6170, %vm6171
      %v6173 = vsel %vm6172, %v6164, %v6169
      %v6174 = vrsqrt.pop %v5876
      %v6175 = vmul.f32 %v6174, %v5876
      %v6176 = vmul.f32 %v6175, %v6174
      %v6177 = vmul.f32 0.5, %v6176
      %v6178 = vsub.f32 1.5, %v6177
      %v6179 = vmul.f32 %v6174, %v6178
      %vm6180 = vweird.f32 %v5876
      %vm6181 = vweird.f32 %v6174
      %vm6182 = vmor %vm6180, %vm6181
      %v6183 = vsel %vm6182, %v6174, %v6179
      %v6184 = vrsqrt.pop %v5877
      %v6185 = vmul.f32 %v6184, %v5877
      %v6186 = vmul.f32 %v6185, %v6184
      %v6187 = vmul.f32 0.5, %v6186
      %v6188 = vsub.f32 1.5, %v6187
      %v6189 = vmul.f32 %v6184, %v6188
      %vm6190 = vweird.f32 %v5877
      %vm6191 = vweird.f32 %v6184
      %vm6192 = vmor %vm6190, %vm6191
      %v6193 = vsel %vm6192, %v6184, %v6189
      %v6194 = vrsqrt.pop %v5878
      %v6195 = vmul.f32 %v6194, %v5878
      %v6196 = vmul.f32 %v6195, %v6194
      %v6197 = vmul.f32 0.5, %v6196
      %v6198 = vsub.f32 1.5, %v6197
      %v6199 = vmul.f32 %v6194, %v6198
      %vm6200 = vweird.f32 %v5878
      %vm6201 = vweird.f32 %v6194
      %vm6202 = vmor %vm6200, %vm6201
      %v6203 = vsel %vm6202, %v6194, %v6199
      %v6204 = vrsqrt.pop %v5879
      %v6205 = vmul.f32 %v6204, %v5879
      %v6206 = vmul.f32 %v6205, %v6204
      %v6207 = vmul.f32 0.5, %v6206
      %v6208 = vsub.f32 1.5, %v6207
      %v6209 = vmul.f32 %v6204, %v6208
      %vm6210 = vweird.f32 %v5879
      %vm6211 = vweird.f32 %v6204
      %vm6212 = vmor %vm6210, %vm6211
      %v6213 = vsel %vm6212, %v6204, %v6209
      %v6214 = vrsqrt.pop %v5880
      %v6215 = vmul.f32 %v6214, %v5880
      %v6216 = vmul.f32 %v6215, %v6214
      %v6217 = vmul.f32 0.5, %v6216
      %v6218 = vsub.f32 1.5, %v6217
      %v6219 = vmul.f32 %v6214, %v6218
      %vm6220 = vweird.f32 %v5880
      %vm6221 = vweird.f32 %v6214
      %vm6222 = vmor %vm6220, %vm6221
      %v6223 = vsel %vm6222, %v6214, %v6219
      %v6224 = vrsqrt.pop %v5881
      %v6225 = vmul.f32 %v6224, %v5881
      %v6226 = vmul.f32 %v6225, %v6224
      %v6227 = vmul.f32 0.5, %v6226
      %v6228 = vsub.f32 1.5, %v6227
      %v6229 = vmul.f32 %v6224, %v6228
      %vm6230 = vweird.f32 %v5881
      %vm6231 = vweird.f32 %v6224
      %vm6232 = vmor %vm6230, %vm6231
      %v6233 = vsel %vm6232, %v6224, %v6229
      %v6234 = vrsqrt.pop %v5882
      %v6235 = vmul.f32 %v6234, %v5882
      %v6236 = vmul.f32 %v6235, %v6234
      %v6237 = vmul.f32 0.5, %v6236
      %v6238 = vsub.f32 1.5, %v6237
      %v6239 = vmul.f32 %v6234, %v6238
      %vm6240 = vweird.f32 %v5882
      %vm6241 = vweird.f32 %v6234
      %vm6242 = vmor %vm6240, %vm6241
      %v6243 = vsel %vm6242, %v6234, %v6239
      %v6244 = vrsqrt.pop %v5883
      %v6245 = vmul.f32 %v6244, %v5883
      %v6246 = vmul.f32 %v6245, %v6244
      %v6247 = vmul.f32 0.5, %v6246
      %v6248 = vsub.f32 1.5, %v6247
      %v6249 = vmul.f32 %v6244, %v6248
      %vm6250 = vweird.f32 %v5883
      %vm6251 = vweird.f32 %v6244
      %vm6252 = vmor %vm6250, %vm6251
      %v6253 = vsel %vm6252, %v6244, %v6249
      %v6254 = vrsqrt.pop %v5884
      %v6255 = vmul.f32 %v6254, %v5884
      %v6256 = vmul.f32 %v6255, %v6254
      %v6257 = vmul.f32 0.5, %v6256
      %v6258 = vsub.f32 1.5, %v6257
      %v6259 = vmul.f32 %v6254, %v6258
      %vm6260 = vweird.f32 %v5884
      %vm6261 = vweird.f32 %v6254
      %vm6262 = vmor %vm6260, %vm6261
      %v6263 = vsel %vm6262, %v6254, %v6259
      %v6264 = vrsqrt.pop %v5885
      %v6265 = vmul.f32 %v6264, %v5885
      %v6266 = vmul.f32 %v6265, %v6264
      %v6267 = vmul.f32 0.5, %v6266
      %v6268 = vsub.f32 1.5, %v6267
      %v6269 = vmul.f32 %v6264, %v6268
      %vm6270 = vweird.f32 %v5885
      %vm6271 = vweird.f32 %v6264
      %vm6272 = vmor %vm6270, %vm6271
      %v6273 = vsel %vm6272, %v6264, %v6269
      %v6274 = vrsqrt.pop %v5886
      %v6275 = vmul.f32 %v6274, %v5886
      %v6276 = vmul.f32 %v6275, %v6274
      %v6277 = vmul.f32 0.5, %v6276
      %v6278 = vsub.f32 1.5, %v6277
      %v6279 = vmul.f32 %v6274, %v6278
      %vm6280 = vweird.f32 %v5886
      %vm6281 = vweird.f32 %v6274
      %vm6282 = vmor %vm6280, %vm6281
      %v6283 = vsel %vm6282, %v6274, %v6279
      %v6284 = vrsqrt.pop %v5887
      %v6285 = vmul.f32 %v6284, %v5887
      %v6286 = vmul.f32 %v6285, %v6284
      %v6287 = vmul.f32 0.5, %v6286
      %v6288 = vsub.f32 1.5, %v6287
      %v6289 = vmul.f32 %v6284, %v6288
      %vm6290 = vweird.f32 %v5887
      %vm6291 = vweird.f32 %v6284
      %vm6292 = vmor %vm6290, %vm6291
      %v6293 = vsel %vm6292, %v6284, %v6289
      %v6294 = vrsqrt.pop %v5888
      %v6295 = vmul.f32 %v6294, %v5888
      %v6296 = vmul.f32 %v6295, %v6294
      %v6297 = vmul.f32 0.5, %v6296
      %v6298 = vsub.f32 1.5, %v6297
      %v6299 = vmul.f32 %v6294, %v6298
      %vm6300 = vweird.f32 %v5888
      %vm6301 = vweird.f32 %v6294
      %vm6302 = vmor %vm6300, %vm6301
      %v6303 = vsel %vm6302, %v6294, %v6299
      %v6304 = vrsqrt.pop %v5889
      %v6305 = vmul.f32 %v6304, %v5889
      %v6306 = vmul.f32 %v6305, %v6304
      %v6307 = vmul.f32 0.5, %v6306
      %v6308 = vsub.f32 1.5, %v6307
      %v6309 = vmul.f32 %v6304, %v6308
      %vm6310 = vweird.f32 %v5889
      %vm6311 = vweird.f32 %v6304
      %vm6312 = vmor %vm6310, %vm6311
      %v6313 = vsel %vm6312, %v6304, %v6309
      %v6314 = vrsqrt.pop %v5890
      %v6315 = vmul.f32 %v6314, %v5890
      %v6316 = vmul.f32 %v6315, %v6314
      %v6317 = vmul.f32 0.5, %v6316
      %v6318 = vsub.f32 1.5, %v6317
      %v6319 = vmul.f32 %v6314, %v6318
      %vm6320 = vweird.f32 %v5890
      %vm6321 = vweird.f32 %v6314
      %vm6322 = vmor %vm6320, %vm6321
      %v6323 = vsel %vm6322, %v6314, %v6319
      %v6324 = vrsqrt.pop %v5891
      %v6325 = vmul.f32 %v6324, %v5891
      %v6326 = vmul.f32 %v6325, %v6324
      %v6327 = vmul.f32 0.5, %v6326
      %v6328 = vsub.f32 1.5, %v6327
      %v6329 = vmul.f32 %v6324, %v6328
      %vm6330 = vweird.f32 %v5891
      %vm6331 = vweird.f32 %v6324
      %vm6332 = vmor %vm6330, %vm6331
      %v6333 = vsel %vm6332, %v6324, %v6329
      %v6334 = vrsqrt.pop %v5892
      %v6335 = vmul.f32 %v6334, %v5892
      %v6336 = vmul.f32 %v6335, %v6334
      %v6337 = vmul.f32 0.5, %v6336
      %v6338 = vsub.f32 1.5, %v6337
      %v6339 = vmul.f32 %v6334, %v6338
      %vm6340 = vweird.f32 %v5892
      %vm6341 = vweird.f32 %v6334
      %vm6342 = vmor %vm6340, %vm6341
      %v6343 = vsel %vm6342, %v6334, %v6339
      %v6344 = vrsqrt.pop %v5893
      %v6345 = vmul.f32 %v6344, %v5893
      %v6346 = vmul.f32 %v6345, %v6344
      %v6347 = vmul.f32 0.5, %v6346
      %v6348 = vsub.f32 1.5, %v6347
      %v6349 = vmul.f32 %v6344, %v6348
      %vm6350 = vweird.f32 %v5893
      %vm6351 = vweird.f32 %v6344
      %vm6352 = vmor %vm6350, %vm6351
      %v6353 = vsel %vm6352, %v6344, %v6349
      %v6354 = vrsqrt.pop %v5894
      %v6355 = vmul.f32 %v6354, %v5894
      %v6356 = vmul.f32 %v6355, %v6354
      %v6357 = vmul.f32 0.5, %v6356
      %v6358 = vsub.f32 1.5, %v6357
      %v6359 = vmul.f32 %v6354, %v6358
      %vm6360 = vweird.f32 %v5894
      %vm6361 = vweird.f32 %v6354
      %vm6362 = vmor %vm6360, %vm6361
      %v6363 = vsel %vm6362, %v6354, %v6359
      %v6364 = vrsqrt.pop %v5895
      %v6365 = vmul.f32 %v6364, %v5895
      %v6366 = vmul.f32 %v6365, %v6364
      %v6367 = vmul.f32 0.5, %v6366
      %v6368 = vsub.f32 1.5, %v6367
      %v6369 = vmul.f32 %v6364, %v6368
      %vm6370 = vweird.f32 %v5895
      %vm6371 = vweird.f32 %v6364
      %vm6372 = vmor %vm6370, %vm6371
      %v6373 = vsel %vm6372, %v6364, %v6369
      %v6374 = vrsqrt.pop %v5896
      %v6375 = vmul.f32 %v6374, %v5896
      %v6376 = vmul.f32 %v6375, %v6374
      %v6377 = vmul.f32 0.5, %v6376
      %v6378 = vsub.f32 1.5, %v6377
      %v6379 = vmul.f32 %v6374, %v6378
      %vm6380 = vweird.f32 %v5896
      %vm6381 = vweird.f32 %v6374
      %vm6382 = vmor %vm6380, %vm6381
      %v6383 = vsel %vm6382, %v6374, %v6379
      %v6384 = vrsqrt.pop %v5897
      %v6385 = vmul.f32 %v6384, %v5897
      %v6386 = vmul.f32 %v6385, %v6384
      %v6387 = vmul.f32 0.5, %v6386
      %v6388 = vsub.f32 1.5, %v6387
      %v6389 = vmul.f32 %v6384, %v6388
      %vm6390 = vweird.f32 %v5897
      %vm6391 = vweird.f32 %v6384
      %vm6392 = vmor %vm6390, %vm6391
      %v6393 = vsel %vm6392, %v6384, %v6389
      %v6394 = vrsqrt.pop %v5898
      %v6395 = vmul.f32 %v6394, %v5898
      %v6396 = vmul.f32 %v6395, %v6394
      %v6397 = vmul.f32 0.5, %v6396
      %v6398 = vsub.f32 1.5, %v6397
      %v6399 = vmul.f32 %v6394, %v6398
      %vm6400 = vweird.f32 %v5898
      %vm6401 = vweird.f32 %v6394
      %vm6402 = vmor %vm6400, %vm6401
      %v6403 = vsel %vm6402, %v6394, %v6399
      %v6404 = vrsqrt.pop %v5899
      %v6405 = vmul.f32 %v6404, %v5899
      %v6406 = vmul.f32 %v6405, %v6404
      %v6407 = vmul.f32 0.5, %v6406
      %v6408 = vsub.f32 1.5, %v6407
      %v6409 = vmul.f32 %v6404, %v6408
      %vm6410 = vweird.f32 %v5899
      %vm6411 = vweird.f32 %v6404
      %vm6412 = vmor %vm6410, %vm6411
      %v6413 = vsel %vm6412, %v6404, %v6409
      %v6414 = vrsqrt.pop %v5900
      %v6415 = vmul.f32 %v6414, %v5900
      %v6416 = vmul.f32 %v6415, %v6414
      %v6417 = vmul.f32 0.5, %v6416
      %v6418 = vsub.f32 1.5, %v6417
      %v6419 = vmul.f32 %v6414, %v6418
      %vm6420 = vweird.f32 %v5900
      %vm6421 = vweird.f32 %v6414
      %vm6422 = vmor %vm6420, %vm6421
      %v6423 = vsel %vm6422, %v6414, %v6419
      %v6424 = vrsqrt.pop %v5901
      %v6425 = vmul.f32 %v6424, %v5901
      %v6426 = vmul.f32 %v6425, %v6424
      %v6427 = vmul.f32 0.5, %v6426
      %v6428 = vsub.f32 1.5, %v6427
      %v6429 = vmul.f32 %v6424, %v6428
      %vm6430 = vweird.f32 %v5901
      %vm6431 = vweird.f32 %v6424
      %vm6432 = vmor %vm6430, %vm6431
      %v6433 = vsel %vm6432, %v6424, %v6429
      %v6434 = vrsqrt.pop %v5902
      %v6435 = vmul.f32 %v6434, %v5902
      %v6436 = vmul.f32 %v6435, %v6434
      %v6437 = vmul.f32 0.5, %v6436
      %v6438 = vsub.f32 1.5, %v6437
      %v6439 = vmul.f32 %v6434, %v6438
      %vm6440 = vweird.f32 %v5902
      %vm6441 = vweird.f32 %v6434
      %vm6442 = vmor %vm6440, %vm6441
      %v6443 = vsel %vm6442, %v6434, %v6439
      %v6444 = vrsqrt.pop %v5903
      %v6445 = vmul.f32 %v6444, %v5903
      %v6446 = vmul.f32 %v6445, %v6444
      %v6447 = vmul.f32 0.5, %v6446
      %v6448 = vsub.f32 1.5, %v6447
      %v6449 = vmul.f32 %v6444, %v6448
      %vm6450 = vweird.f32 %v5903
      %vm6451 = vweird.f32 %v6444
      %vm6452 = vmor %vm6450, %vm6451
      %v6453 = vsel %vm6452, %v6444, %v6449
      %v6454 = vrsqrt.pop %v5904
      %v6455 = vmul.f32 %v6454, %v5904
      %v6456 = vmul.f32 %v6455, %v6454
      %v6457 = vmul.f32 0.5, %v6456
      %v6458 = vsub.f32 1.5, %v6457
      %v6459 = vmul.f32 %v6454, %v6458
      %vm6460 = vweird.f32 %v5904
      %vm6461 = vweird.f32 %v6454
      %vm6462 = vmor %vm6460, %vm6461
      %v6463 = vsel %vm6462, %v6454, %v6459
      %v6464 = vrsqrt.pop %v5905
      %v6465 = vmul.f32 %v6464, %v5905
      %v6466 = vmul.f32 %v6465, %v6464
      %v6467 = vmul.f32 0.5, %v6466
      %v6468 = vsub.f32 1.5, %v6467
      %v6469 = vmul.f32 %v6464, %v6468
      %vm6470 = vweird.f32 %v5905
      %vm6471 = vweird.f32 %v6464
      %vm6472 = vmor %vm6470, %vm6471
      %v6473 = vsel %vm6472, %v6464, %v6469
      %v6474 = vrsqrt.pop %v5906
      %v6475 = vmul.f32 %v6474, %v5906
      %v6476 = vmul.f32 %v6475, %v6474
      %v6477 = vmul.f32 0.5, %v6476
      %v6478 = vsub.f32 1.5, %v6477
      %v6479 = vmul.f32 %v6474, %v6478
      %vm6480 = vweird.f32 %v5906
      %vm6481 = vweird.f32 %v6474
      %vm6482 = vmor %vm6480, %vm6481
      %v6483 = vsel %vm6482, %v6474, %v6479
      %v6484 = vrsqrt.pop %v5907
      %v6485 = vmul.f32 %v6484, %v5907
      %v6486 = vmul.f32 %v6485, %v6484
      %v6487 = vmul.f32 0.5, %v6486
      %v6488 = vsub.f32 1.5, %v6487
      %v6489 = vmul.f32 %v6484, %v6488
      %vm6490 = vweird.f32 %v5907
      %vm6491 = vweird.f32 %v6484
      %vm6492 = vmor %vm6490, %vm6491
      %v6493 = vsel %vm6492, %v6484, %v6489
      %v6494 = vrsqrt.pop %v5908
      %v6495 = vmul.f32 %v6494, %v5908
      %v6496 = vmul.f32 %v6495, %v6494
      %v6497 = vmul.f32 0.5, %v6496
      %v6498 = vsub.f32 1.5, %v6497
      %v6499 = vmul.f32 %v6494, %v6498
      %vm6500 = vweird.f32 %v5908
      %vm6501 = vweird.f32 %v6494
      %vm6502 = vmor %vm6500, %vm6501
      %v6503 = vsel %vm6502, %v6494, %v6499
      %v6504 = vrsqrt.pop %v5909
      %v6505 = vmul.f32 %v6504, %v5909
      %v6506 = vmul.f32 %v6505, %v6504
      %v6507 = vmul.f32 0.5, %v6506
      %v6508 = vsub.f32 1.5, %v6507
      %v6509 = vmul.f32 %v6504, %v6508
      %vm6510 = vweird.f32 %v5909
      %vm6511 = vweird.f32 %v6504
      %vm6512 = vmor %vm6510, %vm6511
      %v6513 = vsel %vm6512, %v6504, %v6509
      %v6514 = vrsqrt.pop %v5910
      %v6515 = vmul.f32 %v6514, %v5910
      %v6516 = vmul.f32 %v6515, %v6514
      %v6517 = vmul.f32 0.5, %v6516
      %v6518 = vsub.f32 1.5, %v6517
      %v6519 = vmul.f32 %v6514, %v6518
      %vm6520 = vweird.f32 %v5910
      %vm6521 = vweird.f32 %v6514
      %vm6522 = vmor %vm6520, %vm6521
      %v6523 = vsel %vm6522, %v6514, %v6519
      %v6524 = vrsqrt.pop %v5911
      %v6525 = vmul.f32 %v6524, %v5911
      %v6526 = vmul.f32 %v6525, %v6524
      %v6527 = vmul.f32 0.5, %v6526
      %v6528 = vsub.f32 1.5, %v6527
      %v6529 = vmul.f32 %v6524, %v6528
      %vm6530 = vweird.f32 %v5911
      %vm6531 = vweird.f32 %v6524
      %vm6532 = vmor %vm6530, %vm6531
      %v6533 = vsel %vm6532, %v6524, %v6529
      %v6534 = vrsqrt.pop %v5912
      %v6535 = vmul.f32 %v6534, %v5912
      %v6536 = vmul.f32 %v6535, %v6534
      %v6537 = vmul.f32 0.5, %v6536
      %v6538 = vsub.f32 1.5, %v6537
      %v6539 = vmul.f32 %v6534, %v6538
      %vm6540 = vweird.f32 %v5912
      %vm6541 = vweird.f32 %v6534
      %vm6542 = vmor %vm6540, %vm6541
      %v6543 = vsel %vm6542, %v6534, %v6539
      %v6544 = vrsqrt.pop %v5913
      %v6545 = vmul.f32 %v6544, %v5913
      %v6546 = vmul.f32 %v6545, %v6544
      %v6547 = vmul.f32 0.5, %v6546
      %v6548 = vsub.f32 1.5, %v6547
      %v6549 = vmul.f32 %v6544, %v6548
      %vm6550 = vweird.f32 %v5913
      %vm6551 = vweird.f32 %v6544
      %vm6552 = vmor %vm6550, %vm6551
      %v6553 = vsel %vm6552, %v6544, %v6549
      %v6554 = vmul.f32 %v5786, %v5923
      %v6555 = vmul.f32 %v5787, %v5933
      %v6556 = vmul.f32 %v5788, %v5943
      %v6557 = vmul.f32 %v5789, %v5953
      %v6558 = vmul.f32 %v5790, %v5963
      %v6559 = vmul.f32 %v5791, %v5973
      %v6560 = vmul.f32 %v5792, %v5983
      %v6561 = vmul.f32 %v5793, %v5993
      %v6562 = vmul.f32 %v5794, %v6003
      %v6563 = vmul.f32 %v5795, %v6013
      %v6564 = vmul.f32 %v5796, %v6023
      %v6565 = vmul.f32 %v5797, %v6033
      %v6566 = vmul.f32 %v5798, %v6043
      %v6567 = vmul.f32 %v5799, %v6053
      %v6568 = vmul.f32 %v5800, %v6063
      %v6569 = vmul.f32 %v5801, %v6073
      %v6570 = vmul.f32 %v5802, %v6083
      %v6571 = vmul.f32 %v5803, %v6093
      %v6572 = vmul.f32 %v5804, %v6103
      %v6573 = vmul.f32 %v5805, %v6113
      %v6574 = vmul.f32 %v5806, %v6123
      %v6575 = vmul.f32 %v5807, %v6133
      %v6576 = vmul.f32 %v5808, %v6143
      %v6577 = vmul.f32 %v5809, %v6153
      %v6578 = vmul.f32 %v5810, %v6163
      %v6579 = vmul.f32 %v5811, %v6173
      %v6580 = vmul.f32 %v5812, %v6183
      %v6581 = vmul.f32 %v5813, %v6193
      %v6582 = vmul.f32 %v5814, %v6203
      %v6583 = vmul.f32 %v5815, %v6213
      %v6584 = vmul.f32 %v5816, %v6223
      %v6585 = vmul.f32 %v5817, %v6233
      %v6586 = vmul.f32 %v5818, %v6243
      %v6587 = vmul.f32 %v5819, %v6253
      %v6588 = vmul.f32 %v5820, %v6263
      %v6589 = vmul.f32 %v5821, %v6273
      %v6590 = vmul.f32 %v5822, %v6283
      %v6591 = vmul.f32 %v5823, %v6293
      %v6592 = vmul.f32 %v5824, %v6303
      %v6593 = vmul.f32 %v5825, %v6313
      %v6594 = vmul.f32 %v5826, %v6323
      %v6595 = vmul.f32 %v5827, %v6333
      %v6596 = vmul.f32 %v5828, %v6343
      %v6597 = vmul.f32 %v5829, %v6353
      %v6598 = vmul.f32 %v5830, %v6363
      %v6599 = vmul.f32 %v5831, %v6373
      %v6600 = vmul.f32 %v5832, %v6383
      %v6601 = vmul.f32 %v5833, %v6393
      %v6602 = vmul.f32 %v5834, %v6403
      %v6603 = vmul.f32 %v5835, %v6413
      %v6604 = vmul.f32 %v5836, %v6423
      %v6605 = vmul.f32 %v5837, %v6433
      %v6606 = vmul.f32 %v5838, %v6443
      %v6607 = vmul.f32 %v5839, %v6453
      %v6608 = vmul.f32 %v5840, %v6463
      %v6609 = vmul.f32 %v5841, %v6473
      %v6610 = vmul.f32 %v5842, %v6483
      %v6611 = vmul.f32 %v5843, %v6493
      %v6612 = vmul.f32 %v5844, %v6503
      %v6613 = vmul.f32 %v5845, %v6513
      %v6614 = vmul.f32 %v5846, %v6523
      %v6615 = vmul.f32 %v5847, %v6533
      %v6616 = vmul.f32 %v5848, %v6543
      %v6617 = vmul.f32 %v5849, %v6553
      %v6618 = vmul.f32 %v5466, %v6554
      %v6619 = vmul.f32 %v5467, %v6555
      %v6620 = vmul.f32 %v5468, %v6556
      %v6621 = vmul.f32 %v5469, %v6557
      %v6622 = vmul.f32 %v5470, %v6558
      %v6623 = vmul.f32 %v5471, %v6559
      %v6624 = vmul.f32 %v5472, %v6560
      %v6625 = vmul.f32 %v5473, %v6561
      %v6626 = vmul.f32 %v5474, %v6562
      %v6627 = vmul.f32 %v5475, %v6563
      %v6628 = vmul.f32 %v5476, %v6564
      %v6629 = vmul.f32 %v5477, %v6565
      %v6630 = vmul.f32 %v5478, %v6566
      %v6631 = vmul.f32 %v5479, %v6567
      %v6632 = vmul.f32 %v5480, %v6568
      %v6633 = vmul.f32 %v5481, %v6569
      %v6634 = vmul.f32 %v5482, %v6570
      %v6635 = vmul.f32 %v5483, %v6571
      %v6636 = vmul.f32 %v5484, %v6572
      %v6637 = vmul.f32 %v5485, %v6573
      %v6638 = vmul.f32 %v5486, %v6574
      %v6639 = vmul.f32 %v5487, %v6575
      %v6640 = vmul.f32 %v5488, %v6576
      %v6641 = vmul.f32 %v5489, %v6577
      %v6642 = vmul.f32 %v5490, %v6578
      %v6643 = vmul.f32 %v5491, %v6579
      %v6644 = vmul.f32 %v5492, %v6580
      %v6645 = vmul.f32 %v5493, %v6581
      %v6646 = vmul.f32 %v5494, %v6582
      %v6647 = vmul.f32 %v5495, %v6583
      %v6648 = vmul.f32 %v5496, %v6584
      %v6649 = vmul.f32 %v5497, %v6585
      %v6650 = vmul.f32 %v5498, %v6586
      %v6651 = vmul.f32 %v5499, %v6587
      %v6652 = vmul.f32 %v5500, %v6588
      %v6653 = vmul.f32 %v5501, %v6589
      %v6654 = vmul.f32 %v5502, %v6590
      %v6655 = vmul.f32 %v5503, %v6591
      %v6656 = vmul.f32 %v5504, %v6592
      %v6657 = vmul.f32 %v5505, %v6593
      %v6658 = vmul.f32 %v5506, %v6594
      %v6659 = vmul.f32 %v5507, %v6595
      %v6660 = vmul.f32 %v5508, %v6596
      %v6661 = vmul.f32 %v5509, %v6597
      %v6662 = vmul.f32 %v5510, %v6598
      %v6663 = vmul.f32 %v5511, %v6599
      %v6664 = vmul.f32 %v5512, %v6600
      %v6665 = vmul.f32 %v5513, %v6601
      %v6666 = vmul.f32 %v5514, %v6602
      %v6667 = vmul.f32 %v5515, %v6603
      %v6668 = vmul.f32 %v5516, %v6604
      %v6669 = vmul.f32 %v5517, %v6605
      %v6670 = vmul.f32 %v5518, %v6606
      %v6671 = vmul.f32 %v5519, %v6607
      %v6672 = vmul.f32 %v5520, %v6608
      %v6673 = vmul.f32 %v5521, %v6609
      %v6674 = vmul.f32 %v5522, %v6610
      %v6675 = vmul.f32 %v5523, %v6611
      %v6676 = vmul.f32 %v5524, %v6612
      %v6677 = vmul.f32 %v5525, %v6613
      %v6678 = vmul.f32 %v5526, %v6614
      %v6679 = vmul.f32 %v5527, %v6615
      %v6680 = vmul.f32 %v5528, %v6616
      %v6681 = vmul.f32 %v5529, %v6617
      %6746 = vrot.lane.b32.xlu0 %v6618, 1
      %v6747 = vpop.permute.xlu0 %6746
      %6748 = vrot.lane.b32.xlu0 %v6619, 1
      %v6749 = vpop.permute.xlu0 %6748
      %6750 = vrot.lane.b32.xlu0 %v6620, 1
      %v6751 = vpop.permute.xlu0 %6750
      %6752 = vrot.lane.b32.xlu0 %v6621, 1
      %v6753 = vpop.permute.xlu0 %6752
      %6754 = vrot.lane.b32.xlu0 %v6622, 1
      %v6755 = vpop.permute.xlu0 %6754
      %6756 = vrot.lane.b32.xlu0 %v6623, 1
      %v6757 = vpop.permute.xlu0 %6756
      %6758 = vrot.lane.b32.xlu0 %v6624, 1
      %v6759 = vpop.permute.xlu0 %6758
      %6760 = vrot.lane.b32.xlu0 %v6625, 1
      %v6761 = vpop.permute.xlu0 %6760
      %6762 = vrot.lane.b32.xlu0 %v6626, 1
      %v6763 = vpop.permute.xlu0 %6762
      %6764 = vrot.lane.b32.xlu0 %v6627, 1
      %v6765 = vpop.permute.xlu0 %6764
      %6766 = vrot.lane.b32.xlu0 %v6628, 1
      %v6767 = vpop.permute.xlu0 %6766
      %6768 = vrot.lane.b32.xlu0 %v6629, 1
      %v6769 = vpop.permute.xlu0 %6768
      %6770 = vrot.lane.b32.xlu0 %v6630, 1
      %v6771 = vpop.permute.xlu0 %6770
      %6772 = vrot.lane.b32.xlu0 %v6631, 1
      %v6773 = vpop.permute.xlu0 %6772
      %6774 = vrot.lane.b32.xlu0 %v6632, 1
      %v6775 = vpop.permute.xlu0 %6774
      %6776 = vrot.lane.b32.xlu0 %v6633, 1
      %v6777 = vpop.permute.xlu0 %6776
      %6778 = vrot.lane.b32.xlu0 %v6634, 1
      %v6779 = vpop.permute.xlu0 %6778
      %6780 = vrot.lane.b32.xlu0 %v6635, 1
      %v6781 = vpop.permute.xlu0 %6780
      %6782 = vrot.lane.b32.xlu0 %v6636, 1
      %v6783 = vpop.permute.xlu0 %6782
      %6784 = vrot.lane.b32.xlu0 %v6637, 1
      %v6785 = vpop.permute.xlu0 %6784
      %6786 = vrot.lane.b32.xlu0 %v6638, 1
      %v6787 = vpop.permute.xlu0 %6786
      %6788 = vrot.lane.b32.xlu0 %v6639, 1
      %v6789 = vpop.permute.xlu0 %6788
      %6790 = vrot.lane.b32.xlu0 %v6640, 1
      %v6791 = vpop.permute.xlu0 %6790
      %6792 = vrot.lane.b32.xlu0 %v6641, 1
      %v6793 = vpop.permute.xlu0 %6792
      %6794 = vrot.lane.b32.xlu0 %v6642, 1
      %v6795 = vpop.permute.xlu0 %6794
      %6796 = vrot.lane.b32.xlu0 %v6643, 1
      %v6797 = vpop.permute.xlu0 %6796
      %6798 = vrot.lane.b32.xlu0 %v6644, 1
      %v6799 = vpop.permute.xlu0 %6798
      %6800 = vrot.lane.b32.xlu0 %v6645, 1
      %v6801 = vpop.permute.xlu0 %6800
      %6802 = vrot.lane.b32.xlu0 %v6646, 1
      %v6803 = vpop.permute.xlu0 %6802
      %6804 = vrot.lane.b32.xlu0 %v6647, 1
      %v6805 = vpop.permute.xlu0 %6804
      %6806 = vrot.lane.b32.xlu0 %v6648, 1
      %v6807 = vpop.permute.xlu0 %6806
      %6808 = vrot.lane.b32.xlu0 %v6649, 1
      %v6809 = vpop.permute.xlu0 %6808
      %6810 = vrot.lane.b32.xlu0 %v6650, 1
      %v6811 = vpop.permute.xlu0 %6810
      %6812 = vrot.lane.b32.xlu0 %v6651, 1
      %v6813 = vpop.permute.xlu0 %6812
      %6814 = vrot.lane.b32.xlu0 %v6652, 1
      %v6815 = vpop.permute.xlu0 %6814
      %6816 = vrot.lane.b32.xlu0 %v6653, 1
      %v6817 = vpop.permute.xlu0 %6816
      %6818 = vrot.lane.b32.xlu0 %v6654, 1
      %v6819 = vpop.permute.xlu0 %6818
      %6820 = vrot.lane.b32.xlu0 %v6655, 1
      %v6821 = vpop.permute.xlu0 %6820
      %6822 = vrot.lane.b32.xlu0 %v6656, 1
      %v6823 = vpop.permute.xlu0 %6822
      %6824 = vrot.lane.b32.xlu0 %v6657, 1
      %v6825 = vpop.permute.xlu0 %6824
      %6826 = vrot.lane.b32.xlu0 %v6658, 1
      %v6827 = vpop.permute.xlu0 %6826
      %6828 = vrot.lane.b32.xlu0 %v6659, 1
      %v6829 = vpop.permute.xlu0 %6828
      %6830 = vrot.lane.b32.xlu0 %v6660, 1
      %v6831 = vpop.permute.xlu0 %6830
      %6832 = vrot.lane.b32.xlu0 %v6661, 1
      %v6833 = vpop.permute.xlu0 %6832
      %6834 = vrot.lane.b32.xlu0 %v6662, 1
      %v6835 = vpop.permute.xlu0 %6834
      %6836 = vrot.lane.b32.xlu0 %v6663, 1
      %v6837 = vpop.permute.xlu0 %6836
      %6838 = vrot.lane.b32.xlu0 %v6664, 1
      %v6839 = vpop.permute.xlu0 %6838
      %6840 = vrot.lane.b32.xlu0 %v6665, 1
      %v6841 = vpop.permute.xlu0 %6840
      %6842 = vrot.lane.b32.xlu0 %v6666, 1
      %v6843 = vpop.permute.xlu0 %6842
      %6844 = vrot.lane.b32.xlu0 %v6667, 1
      %v6845 = vpop.permute.xlu0 %6844
      %6846 = vrot.lane.b32.xlu0 %v6668, 1
      %v6847 = vpop.permute.xlu0 %6846
      %6848 = vrot.lane.b32.xlu0 %v6669, 1
      %v6849 = vpop.permute.xlu0 %6848
      %6850 = vrot.lane.b32.xlu0 %v6670, 1
      %v6851 = vpop.permute.xlu0 %6850
      %6852 = vrot.lane.b32.xlu0 %v6671, 1
      %v6853 = vpop.permute.xlu0 %6852
      %6854 = vrot.lane.b32.xlu0 %v6672, 1
      %v6855 = vpop.permute.xlu0 %6854
      %6856 = vrot.lane.b32.xlu0 %v6673, 1
      %v6857 = vpop.permute.xlu0 %6856
      %6858 = vrot.lane.b32.xlu0 %v6674, 1
      %v6859 = vpop.permute.xlu0 %6858
      %6860 = vrot.lane.b32.xlu0 %v6675, 1
      %v6861 = vpop.permute.xlu0 %6860
      %6862 = vrot.lane.b32.xlu0 %v6676, 1
      %v6863 = vpop.permute.xlu0 %6862
      %6864 = vrot.lane.b32.xlu0 %v6677, 1
      %v6865 = vpop.permute.xlu0 %6864
      %6866 = vrot.lane.b32.xlu0 %v6678, 1
      %v6867 = vpop.permute.xlu0 %6866
      %6868 = vrot.lane.b32.xlu0 %v6679, 1
      %v6869 = vpop.permute.xlu0 %6868
      %6870 = vrot.lane.b32.xlu0 %v6680, 1
      %v6871 = vpop.permute.xlu0 %6870
      %6872 = vrot.lane.b32.xlu0 %v6681, 1
      %v6873 = vpop.permute.xlu0 %6872
      %v6938 = vsub.f32 %v5786, %v6747
      %v6939 = vsub.f32 %v5787, %v6749
      %v6940 = vsub.f32 %v5788, %v6751
      %v6941 = vsub.f32 %v5789, %v6753
      %v6942 = vsub.f32 %v5790, %v6755
      %v6943 = vsub.f32 %v5791, %v6757
      %v6944 = vsub.f32 %v5792, %v6759
      %v6945 = vsub.f32 %v5793, %v6761
      %v6946 = vsub.f32 %v5794, %v6763
      %v6947 = vsub.f32 %v5795, %v6765
      %v6948 = vsub.f32 %v5796, %v6767
      %v6949 = vsub.f32 %v5797, %v6769
      %v6950 = vsub.f32 %v5798, %v6771
      %v6951 = vsub.f32 %v5799, %v6773
      %v6952 = vsub.f32 %v5800, %v6775
      %v6953 = vsub.f32 %v5801, %v6777
      %v6954 = vsub.f32 %v5802, %v6779
      %v6955 = vsub.f32 %v5803, %v6781
      %v6956 = vsub.f32 %v5804, %v6783
      %v6957 = vsub.f32 %v5805, %v6785
      %v6958 = vsub.f32 %v5806, %v6787
      %v6959 = vsub.f32 %v5807, %v6789
      %v6960 = vsub.f32 %v5808, %v6791
      %v6961 = vsub.f32 %v5809, %v6793
      %v6962 = vsub.f32 %v5810, %v6795
      %v6963 = vsub.f32 %v5811, %v6797
      %v6964 = vsub.f32 %v5812, %v6799
      %v6965 = vsub.f32 %v5813, %v6801
      %v6966 = vsub.f32 %v5814, %v6803
      %v6967 = vsub.f32 %v5815, %v6805
      %v6968 = vsub.f32 %v5816, %v6807
      %v6969 = vsub.f32 %v5817, %v6809
      %v6970 = vsub.f32 %v5818, %v6811
      %v6971 = vsub.f32 %v5819, %v6813
      %v6972 = vsub.f32 %v5820, %v6815
      %v6973 = vsub.f32 %v5821, %v6817
      %v6974 = vsub.f32 %v5822, %v6819
      %v6975 = vsub.f32 %v5823, %v6821
      %v6976 = vsub.f32 %v5824, %v6823
      %v6977 = vsub.f32 %v5825, %v6825
      %v6978 = vsub.f32 %v5826, %v6827
      %v6979 = vsub.f32 %v5827, %v6829
      %v6980 = vsub.f32 %v5828, %v6831
      %v6981 = vsub.f32 %v5829, %v6833
      %v6982 = vsub.f32 %v5830, %v6835
      %v6983 = vsub.f32 %v5831, %v6837
      %v6984 = vsub.f32 %v5832, %v6839
      %v6985 = vsub.f32 %v5833, %v6841
      %v6986 = vsub.f32 %v5834, %v6843
      %v6987 = vsub.f32 %v5835, %v6845
      %v6988 = vsub.f32 %v5836, %v6847
      %v6989 = vsub.f32 %v5837, %v6849
      %v6990 = vsub.f32 %v5838, %v6851
      %v6991 = vsub.f32 %v5839, %v6853
      %v6992 = vsub.f32 %v5840, %v6855
      %v6993 = vsub.f32 %v5841, %v6857
      %v6994 = vsub.f32 %v5842, %v6859
      %v6995 = vsub.f32 %v5843, %v6861
      %v6996 = vsub.f32 %v5844, %v6863
      %v6997 = vsub.f32 %v5845, %v6865
      %v6998 = vsub.f32 %v5846, %v6867
      %v6999 = vsub.f32 %v5847, %v6869
      %v7000 = vsub.f32 %v5848, %v6871
      %v7001 = vsub.f32 %v5849, %v6873
      %7003 = vset.pattern.permute.xlu0 0
      %7004 = vperm.xlu0 %7003, %v6554
      %v7005 = vpop.permute.xlu0 %7004
      %7008 = vset.pattern.permute.xlu0 0
      %7009 = vperm.xlu0 %7008, %v6555
      %v7010 = vpop.permute.xlu0 %7009
      %7013 = vset.pattern.permute.xlu0 0
      %7014 = vperm.xlu0 %7013, %v6556
      %v7015 = vpop.permute.xlu0 %7014
      %7018 = vset.pattern.permute.xlu0 0
      %7019 = vperm.xlu0 %7018, %v6557
      %v7020 = vpop.permute.xlu0 %7019
      %7023 = vset.pattern.permute.xlu0 0
      %7024 = vperm.xlu0 %7023, %v6558
      %v7025 = vpop.permute.xlu0 %7024
      %7028 = vset.pattern.permute.xlu0 0
      %7029 = vperm.xlu0 %7028, %v6559
      %v7030 = vpop.permute.xlu0 %7029
      %7033 = vset.pattern.permute.xlu0 0
      %7034 = vperm.xlu0 %7033, %v6560
      %v7035 = vpop.permute.xlu0 %7034
      %7038 = vset.pattern.permute.xlu0 0
      %7039 = vperm.xlu0 %7038, %v6561
      %v7040 = vpop.permute.xlu0 %7039
      %7043 = vset.pattern.permute.xlu0 0
      %7044 = vperm.xlu0 %7043, %v6562
      %v7045 = vpop.permute.xlu0 %7044
      %7048 = vset.pattern.permute.xlu0 0
      %7049 = vperm.xlu0 %7048, %v6563
      %v7050 = vpop.permute.xlu0 %7049
      %7053 = vset.pattern.permute.xlu0 0
      %7054 = vperm.xlu0 %7053, %v6564
      %v7055 = vpop.permute.xlu0 %7054
      %7058 = vset.pattern.permute.xlu0 0
      %7059 = vperm.xlu0 %7058, %v6565
      %v7060 = vpop.permute.xlu0 %7059
      %7063 = vset.pattern.permute.xlu0 0
      %7064 = vperm.xlu0 %7063, %v6566
      %v7065 = vpop.permute.xlu0 %7064
      %7068 = vset.pattern.permute.xlu0 0
      %7069 = vperm.xlu0 %7068, %v6567
      %v7070 = vpop.permute.xlu0 %7069
      %7073 = vset.pattern.permute.xlu0 0
      %7074 = vperm.xlu0 %7073, %v6568
      %v7075 = vpop.permute.xlu0 %7074
      %7078 = vset.pattern.permute.xlu0 0
      %7079 = vperm.xlu0 %7078, %v6569
      %v7080 = vpop.permute.xlu0 %7079
      %7083 = vset.pattern.permute.xlu0 0
      %7084 = vperm.xlu0 %7083, %v6570
      %v7085 = vpop.permute.xlu0 %7084
      %7088 = vset.pattern.permute.xlu0 0
      %7089 = vperm.xlu0 %7088, %v6571
      %v7090 = vpop.permute.xlu0 %7089
      %7093 = vset.pattern.permute.xlu0 0
      %7094 = vperm.xlu0 %7093, %v6572
      %v7095 = vpop.permute.xlu0 %7094
      %7098 = vset.pattern.permute.xlu0 0
      %7099 = vperm.xlu0 %7098, %v6573
      %v7100 = vpop.permute.xlu0 %7099
      %7103 = vset.pattern.permute.xlu0 0
      %7104 = vperm.xlu0 %7103, %v6574
      %v7105 = vpop.permute.xlu0 %7104
      %7108 = vset.pattern.permute.xlu0 0
      %7109 = vperm.xlu0 %7108, %v6575
      %v7110 = vpop.permute.xlu0 %7109
      %7113 = vset.pattern.permute.xlu0 0
      %7114 = vperm.xlu0 %7113, %v6576
      %v7115 = vpop.permute.xlu0 %7114
      %7118 = vset.pattern.permute.xlu0 0
      %7119 = vperm.xlu0 %7118, %v6577
      %v7120 = vpop.permute.xlu0 %7119
      %7123 = vset.pattern.permute.xlu0 0
      %7124 = vperm.xlu0 %7123, %v6578
      %v7125 = vpop.permute.xlu0 %7124
      %7128 = vset.pattern.permute.xlu0 0
      %7129 = vperm.xlu0 %7128, %v6579
      %v7130 = vpop.permute.xlu0 %7129
      %7133 = vset.pattern.permute.xlu0 0
      %7134 = vperm.xlu0 %7133, %v6580
      %v7135 = vpop.permute.xlu0 %7134
      %7138 = vset.pattern.permute.xlu0 0
      %7139 = vperm.xlu0 %7138, %v6581
      %v7140 = vpop.permute.xlu0 %7139
      %7143 = vset.pattern.permute.xlu0 0
      %7144 = vperm.xlu0 %7143, %v6582
      %v7145 = vpop.permute.xlu0 %7144
      %7148 = vset.pattern.permute.xlu0 0
      %7149 = vperm.xlu0 %7148, %v6583
      %v7150 = vpop.permute.xlu0 %7149
      %7153 = vset.pattern.permute.xlu0 0
      %7154 = vperm.xlu0 %7153, %v6584
      %v7155 = vpop.permute.xlu0 %7154
      %7158 = vset.pattern.permute.xlu0 0
      %7159 = vperm.xlu0 %7158, %v6585
      %v7160 = vpop.permute.xlu0 %7159
      %7163 = vset.pattern.permute.xlu0 0
      %7164 = vperm.xlu0 %7163, %v6586
      %v7165 = vpop.permute.xlu0 %7164
      %7168 = vset.pattern.permute.xlu0 0
      %7169 = vperm.xlu0 %7168, %v6587
      %v7170 = vpop.permute.xlu0 %7169
      %7173 = vset.pattern.permute.xlu0 0
      %7174 = vperm.xlu0 %7173, %v6588
      %v7175 = vpop.permute.xlu0 %7174
      %7178 = vset.pattern.permute.xlu0 0
      %7179 = vperm.xlu0 %7178, %v6589
      %v7180 = vpop.permute.xlu0 %7179
      %7183 = vset.pattern.permute.xlu0 0
      %7184 = vperm.xlu0 %7183, %v6590
      %v7185 = vpop.permute.xlu0 %7184
      %7188 = vset.pattern.permute.xlu0 0
      %7189 = vperm.xlu0 %7188, %v6591
      %v7190 = vpop.permute.xlu0 %7189
      %7193 = vset.pattern.permute.xlu0 0
      %7194 = vperm.xlu0 %7193, %v6592
      %v7195 = vpop.permute.xlu0 %7194
      %7198 = vset.pattern.permute.xlu0 0
      %7199 = vperm.xlu0 %7198, %v6593
      %v7200 = vpop.permute.xlu0 %7199
      %7203 = vset.pattern.permute.xlu0 0
      %7204 = vperm.xlu0 %7203, %v6594
      %v7205 = vpop.permute.xlu0 %7204
      %7208 = vset.pattern.permute.xlu0 0
      %7209 = vperm.xlu0 %7208, %v6595
      %v7210 = vpop.permute.xlu0 %7209
      %7213 = vset.pattern.permute.xlu0 0
      %7214 = vperm.xlu0 %7213, %v6596
      %v7215 = vpop.permute.xlu0 %7214
      %7218 = vset.pattern.permute.xlu0 0
      %7219 = vperm.xlu0 %7218, %v6597
      %v7220 = vpop.permute.xlu0 %7219
      %7223 = vset.pattern.permute.xlu0 0
      %7224 = vperm.xlu0 %7223, %v6598
      %v7225 = vpop.permute.xlu0 %7224
      %7228 = vset.pattern.permute.xlu0 0
      %7229 = vperm.xlu0 %7228, %v6599
      %v7230 = vpop.permute.xlu0 %7229
      %7233 = vset.pattern.permute.xlu0 0
      %7234 = vperm.xlu0 %7233, %v6600
      %v7235 = vpop.permute.xlu0 %7234
      %7238 = vset.pattern.permute.xlu0 0
      %7239 = vperm.xlu0 %7238, %v6601
      %v7240 = vpop.permute.xlu0 %7239
      %7243 = vset.pattern.permute.xlu0 0
      %7244 = vperm.xlu0 %7243, %v6602
      %v7245 = vpop.permute.xlu0 %7244
      %7248 = vset.pattern.permute.xlu0 0
      %7249 = vperm.xlu0 %7248, %v6603
      %v7250 = vpop.permute.xlu0 %7249
      %7253 = vset.pattern.permute.xlu0 0
      %7254 = vperm.xlu0 %7253, %v6604
      %v7255 = vpop.permute.xlu0 %7254
      %7258 = vset.pattern.permute.xlu0 0
      %7259 = vperm.xlu0 %7258, %v6605
      %v7260 = vpop.permute.xlu0 %7259
      %7263 = vset.pattern.permute.xlu0 0
      %7264 = vperm.xlu0 %7263, %v6606
      %v7265 = vpop.permute.xlu0 %7264
      %7268 = vset.pattern.permute.xlu0 0
      %7269 = vperm.xlu0 %7268, %v6607
      %v7270 = vpop.permute.xlu0 %7269
      %7273 = vset.pattern.permute.xlu0 0
      %7274 = vperm.xlu0 %7273, %v6608
      %v7275 = vpop.permute.xlu0 %7274
      %7278 = vset.pattern.permute.xlu0 0
      %7279 = vperm.xlu0 %7278, %v6609
      %v7280 = vpop.permute.xlu0 %7279
      %7283 = vset.pattern.permute.xlu0 0
      %7284 = vperm.xlu0 %7283, %v6610
      %v7285 = vpop.permute.xlu0 %7284
      %7288 = vset.pattern.permute.xlu0 0
      %7289 = vperm.xlu0 %7288, %v6611
      %v7290 = vpop.permute.xlu0 %7289
      %7293 = vset.pattern.permute.xlu0 0
      %7294 = vperm.xlu0 %7293, %v6612
      %v7295 = vpop.permute.xlu0 %7294
      %7298 = vset.pattern.permute.xlu0 0
      %7299 = vperm.xlu0 %7298, %v6613
      %v7300 = vpop.permute.xlu0 %7299
      %7303 = vset.pattern.permute.xlu0 0
      %7304 = vperm.xlu0 %7303, %v6614
      %v7305 = vpop.permute.xlu0 %7304
      %7308 = vset.pattern.permute.xlu0 0
      %7309 = vperm.xlu0 %7308, %v6615
      %v7310 = vpop.permute.xlu0 %7309
      %7313 = vset.pattern.permute.xlu0 0
      %7314 = vperm.xlu0 %7313, %v6616
      %v7315 = vpop.permute.xlu0 %7314
      %7318 = vset.pattern.permute.xlu0 0
      %7319 = vperm.xlu0 %7318, %v6617
      %v7320 = vpop.permute.xlu0 %7319
      %v7322 = vmul.f32 %v3314, %v7005
      %v7323 = vmul.f32 %v4666, %v7005
      %v7324 = vmul.f32 %v3316, %v7010
      %v7325 = vmul.f32 %v4668, %v7010
      %v7326 = vmul.f32 %v3319, %v7015
      %v7327 = vmul.f32 %v4671, %v7015
      %v7328 = vmul.f32 %v3321, %v7020
      %v7329 = vmul.f32 %v4673, %v7020
      %v7330 = vmul.f32 %v3324, %v7025
      %v7331 = vmul.f32 %v4676, %v7025
      %v7332 = vmul.f32 %v3326, %v7030
      %v7333 = vmul.f32 %v4678, %v7030
      %v7334 = vmul.f32 %v3329, %v7035
      %v7335 = vmul.f32 %v4681, %v7035
      %v7336 = vmul.f32 %v3331, %v7040
      %v7337 = vmul.f32 %v4683, %v7040
      %v7338 = vmul.f32 %v3334, %v7045
      %v7339 = vmul.f32 %v4686, %v7045
      %v7340 = vmul.f32 %v3336, %v7050
      %v7341 = vmul.f32 %v4688, %v7050
      %v7342 = vmul.f32 %v3339, %v7055
      %v7343 = vmul.f32 %v4691, %v7055
      %v7344 = vmul.f32 %v3341, %v7060
      %v7345 = vmul.f32 %v4693, %v7060
      %v7346 = vmul.f32 %v3344, %v7065
      %v7347 = vmul.f32 %v4696, %v7065
      %v7348 = vmul.f32 %v3346, %v7070
      %v7349 = vmul.f32 %v4698, %v7070
      %v7350 = vmul.f32 %v3349, %v7075
      %v7351 = vmul.f32 %v4701, %v7075
      %v7352 = vmul.f32 %v3351, %v7080
      %v7353 = vmul.f32 %v4703, %v7080
      %v7354 = vmul.f32 %v3354, %v7085
      %v7355 = vmul.f32 %v4706, %v7085
      %v7356 = vmul.f32 %v3356, %v7090
      %v7357 = vmul.f32 %v4708, %v7090
      %v7358 = vmul.f32 %v3359, %v7095
      %v7359 = vmul.f32 %v4711, %v7095
      %v7360 = vmul.f32 %v3361, %v7100
      %v7361 = vmul.f32 %v4713, %v7100
      %v7362 = vmul.f32 %v3364, %v7105
      %v7363 = vmul.f32 %v4716, %v7105
      %v7364 = vmul.f32 %v3366, %v7110
      %v7365 = vmul.f32 %v4718, %v7110
      %v7366 = vmul.f32 %v3369, %v7115
      %v7367 = vmul.f32 %v4721, %v7115
      %v7368 = vmul.f32 %v3371, %v7120
      %v7369 = vmul.f32 %v4723, %v7120
      %v7370 = vmul.f32 %v3374, %v7125
      %v7371 = vmul.f32 %v4726, %v7125
      %v7372 = vmul.f32 %v3376, %v7130
      %v7373 = vmul.f32 %v4728, %v7130
      %v7374 = vmul.f32 %v3379, %v7135
      %v7375 = vmul.f32 %v4731, %v7135
      %v7376 = vmul.f32 %v3381, %v7140
      %v7377 = vmul.f32 %v4733, %v7140
      %v7378 = vmul.f32 %v3384, %v7145
      %v7379 = vmul.f32 %v4736, %v7145
      %v7380 = vmul.f32 %v3386, %v7150
      %v7381 = vmul.f32 %v4738, %v7150
      %v7382 = vmul.f32 %v3389, %v7155
      %v7383 = vmul.f32 %v4741, %v7155
      %v7384 = vmul.f32 %v3391, %v7160
      %v7385 = vmul.f32 %v4743, %v7160
      %v7386 = vmul.f32 %v3394, %v7165
      %v7387 = vmul.f32 %v4746, %v7165
      %v7388 = vmul.f32 %v3396, %v7170
      %v7389 = vmul.f32 %v4748, %v7170
      %v7390 = vmul.f32 %v3399, %v7175
      %v7391 = vmul.f32 %v4751, %v7175
      %v7392 = vmul.f32 %v3401, %v7180
      %v7393 = vmul.f32 %v4753, %v7180
      %v7394 = vmul.f32 %v3404, %v7185
      %v7395 = vmul.f32 %v4756, %v7185
      %v7396 = vmul.f32 %v3406, %v7190
      %v7397 = vmul.f32 %v4758, %v7190
      %v7398 = vmul.f32 %v3409, %v7195
      %v7399 = vmul.f32 %v4761, %v7195
      %v7400 = vmul.f32 %v3411, %v7200
      %v7401 = vmul.f32 %v4763, %v7200
      %v7402 = vmul.f32 %v3414, %v7205
      %v7403 = vmul.f32 %v4766, %v7205
      %v7404 = vmul.f32 %v3416, %v7210
      %v7405 = vmul.f32 %v4768, %v7210
      %v7406 = vmul.f32 %v3419, %v7215
      %v7407 = vmul.f32 %v4771, %v7215
      %v7408 = vmul.f32 %v3421, %v7220
      %v7409 = vmul.f32 %v4773, %v7220
      %v7410 = vmul.f32 %v3424, %v7225
      %v7411 = vmul.f32 %v4776, %v7225
      %v7412 = vmul.f32 %v3426, %v7230
      %v7413 = vmul.f32 %v4778, %v7230
      %v7414 = vmul.f32 %v3429, %v7235
      %v7415 = vmul.f32 %v4781, %v7235
      %v7416 = vmul.f32 %v3431, %v7240
      %v7417 = vmul.f32 %v4783, %v7240
      %v7418 = vmul.f32 %v3434, %v7245
      %v7419 = vmul.f32 %v4786, %v7245
      %v7420 = vmul.f32 %v3436, %v7250
      %v7421 = vmul.f32 %v4788, %v7250
      %v7422 = vmul.f32 %v3439, %v7255
      %v7423 = vmul.f32 %v4791, %v7255
      %v7424 = vmul.f32 %v3441, %v7260
      %v7425 = vmul.f32 %v4793, %v7260
      %v7426 = vmul.f32 %v3444, %v7265
      %v7427 = vmul.f32 %v4796, %v7265
      %v7428 = vmul.f32 %v3446, %v7270
      %v7429 = vmul.f32 %v4798, %v7270
      %v7430 = vmul.f32 %v3449, %v7275
      %v7431 = vmul.f32 %v4801, %v7275
      %v7432 = vmul.f32 %v3451, %v7280
      %v7433 = vmul.f32 %v4803, %v7280
      %v7434 = vmul.f32 %v3454, %v7285
      %v7435 = vmul.f32 %v4806, %v7285
      %v7436 = vmul.f32 %v3456, %v7290
      %v7437 = vmul.f32 %v4808, %v7290
      %v7438 = vmul.f32 %v3459, %v7295
      %v7439 = vmul.f32 %v4811, %v7295
      %v7440 = vmul.f32 %v3461, %v7300
      %v7441 = vmul.f32 %v4813, %v7300
      %v7442 = vmul.f32 %v3464, %v7305
      %v7443 = vmul.f32 %v4816, %v7305
      %v7444 = vmul.f32 %v3466, %v7310
      %v7445 = vmul.f32 %v4818, %v7310
      %v7446 = vmul.f32 %v3469, %v7315
      %v7447 = vmul.f32 %v4821, %v7315
      %v7448 = vmul.f32 %v3471, %v7320
      %v7449 = vmul.f32 %v4823, %v7320
      %7451 = vset.pattern.permute.xlu0 1
      %7452 = vperm.xlu0 %7451, %v6938
      %v7453 = vpop.permute.xlu0 %7452
      %7456 = vset.pattern.permute.xlu0 1
      %7457 = vperm.xlu0 %7456, %v6939
      %v7458 = vpop.permute.xlu0 %7457
      %7461 = vset.pattern.permute.xlu0 1
      %7462 = vperm.xlu0 %7461, %v6940
      %v7463 = vpop.permute.xlu0 %7462
      %7466 = vset.pattern.permute.xlu0 1
      %7467 = vperm.xlu0 %7466, %v6941
      %v7468 = vpop.permute.xlu0 %7467
      %7471 = vset.pattern.permute.xlu0 1
      %7472 = vperm.xlu0 %7471, %v6942
      %v7473 = vpop.permute.xlu0 %7472
      %7476 = vset.pattern.permute.xlu0 1
      %7477 = vperm.xlu0 %7476, %v6943
      %v7478 = vpop.permute.xlu0 %7477
      %7481 = vset.pattern.permute.xlu0 1
      %7482 = vperm.xlu0 %7481, %v6944
      %v7483 = vpop.permute.xlu0 %7482
      %7486 = vset.pattern.permute.xlu0 1
      %7487 = vperm.xlu0 %7486, %v6945
      %v7488 = vpop.permute.xlu0 %7487
      %7491 = vset.pattern.permute.xlu0 1
      %7492 = vperm.xlu0 %7491, %v6946
      %v7493 = vpop.permute.xlu0 %7492
      %7496 = vset.pattern.permute.xlu0 1
      %7497 = vperm.xlu0 %7496, %v6947
      %v7498 = vpop.permute.xlu0 %7497
      %7501 = vset.pattern.permute.xlu0 1
      %7502 = vperm.xlu0 %7501, %v6948
      %v7503 = vpop.permute.xlu0 %7502
      %7506 = vset.pattern.permute.xlu0 1
      %7507 = vperm.xlu0 %7506, %v6949
      %v7508 = vpop.permute.xlu0 %7507
      %7511 = vset.pattern.permute.xlu0 1
      %7512 = vperm.xlu0 %7511, %v6950
      %v7513 = vpop.permute.xlu0 %7512
      %7516 = vset.pattern.permute.xlu0 1
      %7517 = vperm.xlu0 %7516, %v6951
      %v7518 = vpop.permute.xlu0 %7517
      %7521 = vset.pattern.permute.xlu0 1
      %7522 = vperm.xlu0 %7521, %v6952
      %v7523 = vpop.permute.xlu0 %7522
      %7526 = vset.pattern.permute.xlu0 1
      %7527 = vperm.xlu0 %7526, %v6953
      %v7528 = vpop.permute.xlu0 %7527
      %7531 = vset.pattern.permute.xlu0 1
      %7532 = vperm.xlu0 %7531, %v6954
      %v7533 = vpop.permute.xlu0 %7532
      %7536 = vset.pattern.permute.xlu0 1
      %7537 = vperm.xlu0 %7536, %v6955
      %v7538 = vpop.permute.xlu0 %7537
      %7541 = vset.pattern.permute.xlu0 1
      %7542 = vperm.xlu0 %7541, %v6956
      %v7543 = vpop.permute.xlu0 %7542
      %7546 = vset.pattern.permute.xlu0 1
      %7547 = vperm.xlu0 %7546, %v6957
      %v7548 = vpop.permute.xlu0 %7547
      %7551 = vset.pattern.permute.xlu0 1
      %7552 = vperm.xlu0 %7551, %v6958
      %v7553 = vpop.permute.xlu0 %7552
      %7556 = vset.pattern.permute.xlu0 1
      %7557 = vperm.xlu0 %7556, %v6959
      %v7558 = vpop.permute.xlu0 %7557
      %7561 = vset.pattern.permute.xlu0 1
      %7562 = vperm.xlu0 %7561, %v6960
      %v7563 = vpop.permute.xlu0 %7562
      %7566 = vset.pattern.permute.xlu0 1
      %7567 = vperm.xlu0 %7566, %v6961
      %v7568 = vpop.permute.xlu0 %7567
      %7571 = vset.pattern.permute.xlu0 1
      %7572 = vperm.xlu0 %7571, %v6962
      %v7573 = vpop.permute.xlu0 %7572
      %7576 = vset.pattern.permute.xlu0 1
      %7577 = vperm.xlu0 %7576, %v6963
      %v7578 = vpop.permute.xlu0 %7577
      %7581 = vset.pattern.permute.xlu0 1
      %7582 = vperm.xlu0 %7581, %v6964
      %v7583 = vpop.permute.xlu0 %7582
      %7586 = vset.pattern.permute.xlu0 1
      %7587 = vperm.xlu0 %7586, %v6965
      %v7588 = vpop.permute.xlu0 %7587
      %7591 = vset.pattern.permute.xlu0 1
      %7592 = vperm.xlu0 %7591, %v6966
      %v7593 = vpop.permute.xlu0 %7592
      %7596 = vset.pattern.permute.xlu0 1
      %7597 = vperm.xlu0 %7596, %v6967
      %v7598 = vpop.permute.xlu0 %7597
      %7601 = vset.pattern.permute.xlu0 1
      %7602 = vperm.xlu0 %7601, %v6968
      %v7603 = vpop.permute.xlu0 %7602
      %7606 = vset.pattern.permute.xlu0 1
      %7607 = vperm.xlu0 %7606, %v6969
      %v7608 = vpop.permute.xlu0 %7607
      %7611 = vset.pattern.permute.xlu0 1
      %7612 = vperm.xlu0 %7611, %v6970
      %v7613 = vpop.permute.xlu0 %7612
      %7616 = vset.pattern.permute.xlu0 1
      %7617 = vperm.xlu0 %7616, %v6971
      %v7618 = vpop.permute.xlu0 %7617
      %7621 = vset.pattern.permute.xlu0 1
      %7622 = vperm.xlu0 %7621, %v6972
      %v7623 = vpop.permute.xlu0 %7622
      %7626 = vset.pattern.permute.xlu0 1
      %7627 = vperm.xlu0 %7626, %v6973
      %v7628 = vpop.permute.xlu0 %7627
      %7631 = vset.pattern.permute.xlu0 1
      %7632 = vperm.xlu0 %7631, %v6974
      %v7633 = vpop.permute.xlu0 %7632
      %7636 = vset.pattern.permute.xlu0 1
      %7637 = vperm.xlu0 %7636, %v6975
      %v7638 = vpop.permute.xlu0 %7637
      %7641 = vset.pattern.permute.xlu0 1
      %7642 = vperm.xlu0 %7641, %v6976
      %v7643 = vpop.permute.xlu0 %7642
      %7646 = vset.pattern.permute.xlu0 1
      %7647 = vperm.xlu0 %7646, %v6977
      %v7648 = vpop.permute.xlu0 %7647
      %7651 = vset.pattern.permute.xlu0 1
      %7652 = vperm.xlu0 %7651, %v6978
      %v7653 = vpop.permute.xlu0 %7652
      %7656 = vset.pattern.permute.xlu0 1
      %7657 = vperm.xlu0 %7656, %v6979
      %v7658 = vpop.permute.xlu0 %7657
      %7661 = vset.pattern.permute.xlu0 1
      %7662 = vperm.xlu0 %7661, %v6980
      %v7663 = vpop.permute.xlu0 %7662
      %7666 = vset.pattern.permute.xlu0 1
      %7667 = vperm.xlu0 %7666, %v6981
      %v7668 = vpop.permute.xlu0 %7667
      %7671 = vset.pattern.permute.xlu0 1
      %7672 = vperm.xlu0 %7671, %v6982
      %v7673 = vpop.permute.xlu0 %7672
      %7676 = vset.pattern.permute.xlu0 1
      %7677 = vperm.xlu0 %7676, %v6983
      %v7678 = vpop.permute.xlu0 %7677
      %7681 = vset.pattern.permute.xlu0 1
      %7682 = vperm.xlu0 %7681, %v6984
      %v7683 = vpop.permute.xlu0 %7682
      %7686 = vset.pattern.permute.xlu0 1
      %7687 = vperm.xlu0 %7686, %v6985
      %v7688 = vpop.permute.xlu0 %7687
      %7691 = vset.pattern.permute.xlu0 1
      %7692 = vperm.xlu0 %7691, %v6986
      %v7693 = vpop.permute.xlu0 %7692
      %7696 = vset.pattern.permute.xlu0 1
      %7697 = vperm.xlu0 %7696, %v6987
      %v7698 = vpop.permute.xlu0 %7697
      %7701 = vset.pattern.permute.xlu0 1
      %7702 = vperm.xlu0 %7701, %v6988
      %v7703 = vpop.permute.xlu0 %7702
      %7706 = vset.pattern.permute.xlu0 1
      %7707 = vperm.xlu0 %7706, %v6989
      %v7708 = vpop.permute.xlu0 %7707
      %7711 = vset.pattern.permute.xlu0 1
      %7712 = vperm.xlu0 %7711, %v6990
      %v7713 = vpop.permute.xlu0 %7712
      %7716 = vset.pattern.permute.xlu0 1
      %7717 = vperm.xlu0 %7716, %v6991
      %v7718 = vpop.permute.xlu0 %7717
      %7721 = vset.pattern.permute.xlu0 1
      %7722 = vperm.xlu0 %7721, %v6992
      %v7723 = vpop.permute.xlu0 %7722
      %7726 = vset.pattern.permute.xlu0 1
      %7727 = vperm.xlu0 %7726, %v6993
      %v7728 = vpop.permute.xlu0 %7727
      %7731 = vset.pattern.permute.xlu0 1
      %7732 = vperm.xlu0 %7731, %v6994
      %v7733 = vpop.permute.xlu0 %7732
      %7736 = vset.pattern.permute.xlu0 1
      %7737 = vperm.xlu0 %7736, %v6995
      %v7738 = vpop.permute.xlu0 %7737
      %7741 = vset.pattern.permute.xlu0 1
      %7742 = vperm.xlu0 %7741, %v6996
      %v7743 = vpop.permute.xlu0 %7742
      %7746 = vset.pattern.permute.xlu0 1
      %7747 = vperm.xlu0 %7746, %v6997
      %v7748 = vpop.permute.xlu0 %7747
      %7751 = vset.pattern.permute.xlu0 1
      %7752 = vperm.xlu0 %7751, %v6998
      %v7753 = vpop.permute.xlu0 %7752
      %7756 = vset.pattern.permute.xlu0 1
      %7757 = vperm.xlu0 %7756, %v6999
      %v7758 = vpop.permute.xlu0 %7757
      %7761 = vset.pattern.permute.xlu0 1
      %7762 = vperm.xlu0 %7761, %v7000
      %v7763 = vpop.permute.xlu0 %7762
      %7766 = vset.pattern.permute.xlu0 1
      %7767 = vperm.xlu0 %7766, %v7001
      %v7768 = vpop.permute.xlu0 %7767
      %v7770 = vadd.f32 %v7322, %v7453
      %v7771 = vadd.f32 %v7323, %v7453
      %v7772 = vadd.f32 %v7324, %v7458
      %v7773 = vadd.f32 %v7325, %v7458
      %v7774 = vadd.f32 %v7326, %v7463
      %v7775 = vadd.f32 %v7327, %v7463
      %v7776 = vadd.f32 %v7328, %v7468
      %v7777 = vadd.f32 %v7329, %v7468
      %v7778 = vadd.f32 %v7330, %v7473
      %v7779 = vadd.f32 %v7331, %v7473
      %v7780 = vadd.f32 %v7332, %v7478
      %v7781 = vadd.f32 %v7333, %v7478
      %v7782 = vadd.f32 %v7334, %v7483
      %v7783 = vadd.f32 %v7335, %v7483
      %v7784 = vadd.f32 %v7336, %v7488
      %v7785 = vadd.f32 %v7337, %v7488
      %v7786 = vadd.f32 %v7338, %v7493
      %v7787 = vadd.f32 %v7339, %v7493
      %v7788 = vadd.f32 %v7340, %v7498
      %v7789 = vadd.f32 %v7341, %v7498
      %v7790 = vadd.f32 %v7342, %v7503
      %v7791 = vadd.f32 %v7343, %v7503
      %v7792 = vadd.f32 %v7344, %v7508
      %v7793 = vadd.f32 %v7345, %v7508
      %v7794 = vadd.f32 %v7346, %v7513
      %v7795 = vadd.f32 %v7347, %v7513
      %v7796 = vadd.f32 %v7348, %v7518
      %v7797 = vadd.f32 %v7349, %v7518
      %v7798 = vadd.f32 %v7350, %v7523
      %v7799 = vadd.f32 %v7351, %v7523
      %v7800 = vadd.f32 %v7352, %v7528
      %v7801 = vadd.f32 %v7353, %v7528
      %v7802 = vadd.f32 %v7354, %v7533
      %v7803 = vadd.f32 %v7355, %v7533
      %v7804 = vadd.f32 %v7356, %v7538
      %v7805 = vadd.f32 %v7357, %v7538
      %v7806 = vadd.f32 %v7358, %v7543
      %v7807 = vadd.f32 %v7359, %v7543
      %v7808 = vadd.f32 %v7360, %v7548
      %v7809 = vadd.f32 %v7361, %v7548
      %v7810 = vadd.f32 %v7362, %v7553
      %v7811 = vadd.f32 %v7363, %v7553
      %v7812 = vadd.f32 %v7364, %v7558
      %v7813 = vadd.f32 %v7365, %v7558
      %v7814 = vadd.f32 %v7366, %v7563
      %v7815 = vadd.f32 %v7367, %v7563
      %v7816 = vadd.f32 %v7368, %v7568
      %v7817 = vadd.f32 %v7369, %v7568
      %v7818 = vadd.f32 %v7370, %v7573
      %v7819 = vadd.f32 %v7371, %v7573
      %v7820 = vadd.f32 %v7372, %v7578
      %v7821 = vadd.f32 %v7373, %v7578
      %v7822 = vadd.f32 %v7374, %v7583
      %v7823 = vadd.f32 %v7375, %v7583
      %v7824 = vadd.f32 %v7376, %v7588
      %v7825 = vadd.f32 %v7377, %v7588
      %v7826 = vadd.f32 %v7378, %v7593
      %v7827 = vadd.f32 %v7379, %v7593
      %v7828 = vadd.f32 %v7380, %v7598
      %v7829 = vadd.f32 %v7381, %v7598
      %v7830 = vadd.f32 %v7382, %v7603
      %v7831 = vadd.f32 %v7383, %v7603
      %v7832 = vadd.f32 %v7384, %v7608
      %v7833 = vadd.f32 %v7385, %v7608
      %v7834 = vadd.f32 %v7386, %v7613
      %v7835 = vadd.f32 %v7387, %v7613
      %v7836 = vadd.f32 %v7388, %v7618
      %v7837 = vadd.f32 %v7389, %v7618
      %v7838 = vadd.f32 %v7390, %v7623
      %v7839 = vadd.f32 %v7391, %v7623
      %v7840 = vadd.f32 %v7392, %v7628
      %v7841 = vadd.f32 %v7393, %v7628
      %v7842 = vadd.f32 %v7394, %v7633
      %v7843 = vadd.f32 %v7395, %v7633
      %v7844 = vadd.f32 %v7396, %v7638
      %v7845 = vadd.f32 %v7397, %v7638
      %v7846 = vadd.f32 %v7398, %v7643
      %v7847 = vadd.f32 %v7399, %v7643
      %v7848 = vadd.f32 %v7400, %v7648
      %v7849 = vadd.f32 %v7401, %v7648
      %v7850 = vadd.f32 %v7402, %v7653
      %v7851 = vadd.f32 %v7403, %v7653
      %v7852 = vadd.f32 %v7404, %v7658
      %v7853 = vadd.f32 %v7405, %v7658
      %v7854 = vadd.f32 %v7406, %v7663
      %v7855 = vadd.f32 %v7407, %v7663
      %v7856 = vadd.f32 %v7408, %v7668
      %v7857 = vadd.f32 %v7409, %v7668
      %v7858 = vadd.f32 %v7410, %v7673
      %v7859 = vadd.f32 %v7411, %v7673
      %v7860 = vadd.f32 %v7412, %v7678
      %v7861 = vadd.f32 %v7413, %v7678
      %v7862 = vadd.f32 %v7414, %v7683
      %v7863 = vadd.f32 %v7415, %v7683
      %v7864 = vadd.f32 %v7416, %v7688
      %v7865 = vadd.f32 %v7417, %v7688
      %v7866 = vadd.f32 %v7418, %v7693
      %v7867 = vadd.f32 %v7419, %v7693
      %v7868 = vadd.f32 %v7420, %v7698
      %v7869 = vadd.f32 %v7421, %v7698
      %v7870 = vadd.f32 %v7422, %v7703
      %v7871 = vadd.f32 %v7423, %v7703
      %v7872 = vadd.f32 %v7424, %v7708
      %v7873 = vadd.f32 %v7425, %v7708
      %v7874 = vadd.f32 %v7426, %v7713
      %v7875 = vadd.f32 %v7427, %v7713
      %v7876 = vadd.f32 %v7428, %v7718
      %v7877 = vadd.f32 %v7429, %v7718
      %v7878 = vadd.f32 %v7430, %v7723
      %v7879 = vadd.f32 %v7431, %v7723
      %v7880 = vadd.f32 %v7432, %v7728
      %v7881 = vadd.f32 %v7433, %v7728
      %v7882 = vadd.f32 %v7434, %v7733
      %v7883 = vadd.f32 %v7435, %v7733
      %v7884 = vadd.f32 %v7436, %v7738
      %v7885 = vadd.f32 %v7437, %v7738
      %v7886 = vadd.f32 %v7438, %v7743
      %v7887 = vadd.f32 %v7439, %v7743
      %v7888 = vadd.f32 %v7440, %v7748
      %v7889 = vadd.f32 %v7441, %v7748
      %v7890 = vadd.f32 %v7442, %v7753
      %v7891 = vadd.f32 %v7443, %v7753
      %v7892 = vadd.f32 %v7444, %v7758
      %v7893 = vadd.f32 %v7445, %v7758
      %v7894 = vadd.f32 %v7446, %v7763
      %v7895 = vadd.f32 %v7447, %v7763
      %v7896 = vadd.f32 %v7448, %v7768
      %v7897 = vadd.f32 %v7449, %v7768
      %v7898 = vmax.f32 %v7770, 0.0
      %v7899 = vmax.f32 %v7771, 0.0
      %v7900 = vmax.f32 %v7772, 0.0
      %v7901 = vmax.f32 %v7773, 0.0
      %v7902 = vmax.f32 %v7774, 0.0
      %v7903 = vmax.f32 %v7775, 0.0
      %v7904 = vmax.f32 %v7776, 0.0
      %v7905 = vmax.f32 %v7777, 0.0
      %v7906 = vmax.f32 %v7778, 0.0
      %v7907 = vmax.f32 %v7779, 0.0
      %v7908 = vmax.f32 %v7780, 0.0
      %v7909 = vmax.f32 %v7781, 0.0
      %v7910 = vmax.f32 %v7782, 0.0
      %v7911 = vmax.f32 %v7783, 0.0
      %v7912 = vmax.f32 %v7784, 0.0
      %v7913 = vmax.f32 %v7785, 0.0
      %v7914 = vmax.f32 %v7786, 0.0
      %v7915 = vmax.f32 %v7787, 0.0
      %v7916 = vmax.f32 %v7788, 0.0
      %v7917 = vmax.f32 %v7789, 0.0
      %v7918 = vmax.f32 %v7790, 0.0
      %v7919 = vmax.f32 %v7791, 0.0
      %v7920 = vmax.f32 %v7792, 0.0
      %v7921 = vmax.f32 %v7793, 0.0
      %v7922 = vmax.f32 %v7794, 0.0
      %v7923 = vmax.f32 %v7795, 0.0
      %v7924 = vmax.f32 %v7796, 0.0
      %v7925 = vmax.f32 %v7797, 0.0
      %v7926 = vmax.f32 %v7798, 0.0
      %v7927 = vmax.f32 %v7799, 0.0
      %v7928 = vmax.f32 %v7800, 0.0
      %v7929 = vmax.f32 %v7801, 0.0
      %v7930 = vmax.f32 %v7802, 0.0
      %v7931 = vmax.f32 %v7803, 0.0
      %v7932 = vmax.f32 %v7804, 0.0
      %v7933 = vmax.f32 %v7805, 0.0
      %v7934 = vmax.f32 %v7806, 0.0
      %v7935 = vmax.f32 %v7807, 0.0
      %v7936 = vmax.f32 %v7808, 0.0
      %v7937 = vmax.f32 %v7809, 0.0
      %v7938 = vmax.f32 %v7810, 0.0
      %v7939 = vmax.f32 %v7811, 0.0
      %v7940 = vmax.f32 %v7812, 0.0
      %v7941 = vmax.f32 %v7813, 0.0
      %v7942 = vmax.f32 %v7814, 0.0
      %v7943 = vmax.f32 %v7815, 0.0
      %v7944 = vmax.f32 %v7816, 0.0
      %v7945 = vmax.f32 %v7817, 0.0
      %v7946 = vmax.f32 %v7818, 0.0
      %v7947 = vmax.f32 %v7819, 0.0
      %v7948 = vmax.f32 %v7820, 0.0
      %v7949 = vmax.f32 %v7821, 0.0
      %v7950 = vmax.f32 %v7822, 0.0
      %v7951 = vmax.f32 %v7823, 0.0
      %v7952 = vmax.f32 %v7824, 0.0
      %v7953 = vmax.f32 %v7825, 0.0
      %v7954 = vmax.f32 %v7826, 0.0
      %v7955 = vmax.f32 %v7827, 0.0
      %v7956 = vmax.f32 %v7828, 0.0
      %v7957 = vmax.f32 %v7829, 0.0
      %v7958 = vmax.f32 %v7830, 0.0
      %v7959 = vmax.f32 %v7831, 0.0
      %v7960 = vmax.f32 %v7832, 0.0
      %v7961 = vmax.f32 %v7833, 0.0
      %v7962 = vmax.f32 %v7834, 0.0
      %v7963 = vmax.f32 %v7835, 0.0
      %v7964 = vmax.f32 %v7836, 0.0
      %v7965 = vmax.f32 %v7837, 0.0
      %v7966 = vmax.f32 %v7838, 0.0
      %v7967 = vmax.f32 %v7839, 0.0
      %v7968 = vmax.f32 %v7840, 0.0
      %v7969 = vmax.f32 %v7841, 0.0
      %v7970 = vmax.f32 %v7842, 0.0
      %v7971 = vmax.f32 %v7843, 0.0
      %v7972 = vmax.f32 %v7844, 0.0
      %v7973 = vmax.f32 %v7845, 0.0
      %v7974 = vmax.f32 %v7846, 0.0
      %v7975 = vmax.f32 %v7847, 0.0
      %v7976 = vmax.f32 %v7848, 0.0
      %v7977 = vmax.f32 %v7849, 0.0
      %v7978 = vmax.f32 %v7850, 0.0
      %v7979 = vmax.f32 %v7851, 0.0
      %v7980 = vmax.f32 %v7852, 0.0
      %v7981 = vmax.f32 %v7853, 0.0
      %v7982 = vmax.f32 %v7854, 0.0
      %v7983 = vmax.f32 %v7855, 0.0
      %v7984 = vmax.f32 %v7856, 0.0
      %v7985 = vmax.f32 %v7857, 0.0
      %v7986 = vmax.f32 %v7858, 0.0
      %v7987 = vmax.f32 %v7859, 0.0
      %v7988 = vmax.f32 %v7860, 0.0
      %v7989 = vmax.f32 %v7861, 0.0
      %v7990 = vmax.f32 %v7862, 0.0
      %v7991 = vmax.f32 %v7863, 0.0
      %v7992 = vmax.f32 %v7864, 0.0
      %v7993 = vmax.f32 %v7865, 0.0
      %v7994 = vmax.f32 %v7866, 0.0
      %v7995 = vmax.f32 %v7867, 0.0
      %v7996 = vmax.f32 %v7868, 0.0
      %v7997 = vmax.f32 %v7869, 0.0
      %v7998 = vmax.f32 %v7870, 0.0
      %v7999 = vmax.f32 %v7871, 0.0
      %v8000 = vmax.f32 %v7872, 0.0
      %v8001 = vmax.f32 %v7873, 0.0
      %v8002 = vmax.f32 %v7874, 0.0
      %v8003 = vmax.f32 %v7875, 0.0
      %v8004 = vmax.f32 %v7876, 0.0
      %v8005 = vmax.f32 %v7877, 0.0
      %v8006 = vmax.f32 %v7878, 0.0
      %v8007 = vmax.f32 %v7879, 0.0
      %v8008 = vmax.f32 %v7880, 0.0
      %v8009 = vmax.f32 %v7881, 0.0
      %v8010 = vmax.f32 %v7882, 0.0
      %v8011 = vmax.f32 %v7883, 0.0
      %v8012 = vmax.f32 %v7884, 0.0
      %v8013 = vmax.f32 %v7885, 0.0
      %v8014 = vmax.f32 %v7886, 0.0
      %v8015 = vmax.f32 %v7887, 0.0
      %v8016 = vmax.f32 %v7888, 0.0
      %v8017 = vmax.f32 %v7889, 0.0
      %v8018 = vmax.f32 %v7890, 0.0
      %v8019 = vmax.f32 %v7891, 0.0
      %v8020 = vmax.f32 %v7892, 0.0
      %v8021 = vmax.f32 %v7893, 0.0
      %v8022 = vmax.f32 %v7894, 0.0
      %v8023 = vmax.f32 %v7895, 0.0
      %v8024 = vmax.f32 %v7896, 0.0
      %v8025 = vmax.f32 %v7897, 0.0
      %8026 = vst [vmem:[%s199] sm:$0xff] %v7898
      %8027 = vst.msk [vmem:[%s199 + $0x8] sm:$0xff] %vm4825, %v7899
      %8028 = vst [vmem:[%s199 + $0x10] sm:$0xff] %v7900
      %8029 = vst.msk [vmem:[%s199 + $0x18] sm:$0xff] %vm4825, %v7901
      %8030 = vst [vmem:[%s199 + $0x20] sm:$0xff] %v7902
      %8031 = vst.msk [vmem:[%s199 + $0x28] sm:$0xff] %vm4825, %v7903
      %8032 = vst [vmem:[%s199 + $0x30] sm:$0xff] %v7904
      %8033 = vst.msk [vmem:[%s199 + $0x38] sm:$0xff] %vm4825, %v7905
      %8034 = vst [vmem:[%s199 + $0x40] sm:$0xff] %v7906
      %8035 = vst.msk [vmem:[%s199 + $0x48] sm:$0xff] %vm4825, %v7907
      %8036 = vst [vmem:[%s199 + $0x50] sm:$0xff] %v7908
      %8037 = vst.msk [vmem:[%s199 + $0x58] sm:$0xff] %vm4825, %v7909
      %8038 = vst [vmem:[%s199 + $0x60] sm:$0xff] %v7910
      %8039 = vst.msk [vmem:[%s199 + $0x68] sm:$0xff] %vm4825, %v7911
      %8040 = vst [vmem:[%s199 + $0x70] sm:$0xff] %v7912
      %8041 = vst.msk [vmem:[%s199 + $0x78] sm:$0xff] %vm4825, %v7913
      %8042 = vst [vmem:[%s199 + $0x80] sm:$0xff] %v7914
      %8043 = vst.msk [vmem:[%s199 + $0x88] sm:$0xff] %vm4825, %v7915
      %8044 = vst [vmem:[%s199 + $0x90] sm:$0xff] %v7916
      %8045 = vst.msk [vmem:[%s199 + $0x98] sm:$0xff] %vm4825, %v7917
      %8046 = vst [vmem:[%s199 + $0xa0] sm:$0xff] %v7918
      %8047 = vst.msk [vmem:[%s199 + $0xa8] sm:$0xff] %vm4825, %v7919
      %8048 = vst [vmem:[%s199 + $0xb0] sm:$0xff] %v7920
      %8049 = vst.msk [vmem:[%s199 + $0xb8] sm:$0xff] %vm4825, %v7921
      %8050 = vst [vmem:[%s199 + $0xc0] sm:$0xff] %v7922
      %8051 = vst.msk [vmem:[%s199 + $0xc8] sm:$0xff] %vm4825, %v7923
      %8052 = vst [vmem:[%s199 + $0xd0] sm:$0xff] %v7924
      %8053 = vst.msk [vmem:[%s199 + $0xd8] sm:$0xff] %vm4825, %v7925
      %8054 = vst [vmem:[%s199 + $0xe0] sm:$0xff] %v7926
      %8055 = vst.msk [vmem:[%s199 + $0xe8] sm:$0xff] %vm4825, %v7927
      %8056 = vst [vmem:[%s199 + $0xf0] sm:$0xff] %v7928
      %8057 = vst.msk [vmem:[%s199 + $0xf8] sm:$0xff] %vm4825, %v7929
      %8058 = vst [vmem:[%s199 + $0x100] sm:$0xff] %v7930
      %8059 = vst.msk [vmem:[%s199 + $0x108] sm:$0xff] %vm4825, %v7931
      %8060 = vst [vmem:[%s199 + $0x110] sm:$0xff] %v7932
      %8061 = vst.msk [vmem:[%s199 + $0x118] sm:$0xff] %vm4825, %v7933
      %8062 = vst [vmem:[%s199 + $0x120] sm:$0xff] %v7934
      %8063 = vst.msk [vmem:[%s199 + $0x128] sm:$0xff] %vm4825, %v7935
      %8064 = vst [vmem:[%s199 + $0x130] sm:$0xff] %v7936
      %8065 = vst.msk [vmem:[%s199 + $0x138] sm:$0xff] %vm4825, %v7937
      %8066 = vst [vmem:[%s199 + $0x140] sm:$0xff] %v7938
      %8067 = vst.msk [vmem:[%s199 + $0x148] sm:$0xff] %vm4825, %v7939
      %8068 = vst [vmem:[%s199 + $0x150] sm:$0xff] %v7940
      %8069 = vst.msk [vmem:[%s199 + $0x158] sm:$0xff] %vm4825, %v7941
      %8070 = vst [vmem:[%s199 + $0x160] sm:$0xff] %v7942
      %8071 = vst.msk [vmem:[%s199 + $0x168] sm:$0xff] %vm4825, %v7943
      %8072 = vst [vmem:[%s199 + $0x170] sm:$0xff] %v7944
      %8073 = vst.msk [vmem:[%s199 + $0x178] sm:$0xff] %vm4825, %v7945
      %8074 = vst [vmem:[%s199 + $0x180] sm:$0xff] %v7946
      %8075 = vst.msk [vmem:[%s199 + $0x188] sm:$0xff] %vm4825, %v7947
      %8076 = vst [vmem:[%s199 + $0x190] sm:$0xff] %v7948
      %8077 = vst.msk [vmem:[%s199 + $0x198] sm:$0xff] %vm4825, %v7949
      %8078 = vst [vmem:[%s199 + $0x1a0] sm:$0xff] %v7950
      %8079 = vst.msk [vmem:[%s199 + $0x1a8] sm:$0xff] %vm4825, %v7951
      %8080 = vst [vmem:[%s199 + $0x1b0] sm:$0xff] %v7952
      %8081 = vst.msk [vmem:[%s199 + $0x1b8] sm:$0xff] %vm4825, %v7953
      %8082 = vst [vmem:[%s199 + $0x1c0] sm:$0xff] %v7954
      %8083 = vst.msk [vmem:[%s199 + $0x1c8] sm:$0xff] %vm4825, %v7955
      %8084 = vst [vmem:[%s199 + $0x1d0] sm:$0xff] %v7956
      %8085 = vst.msk [vmem:[%s199 + $0x1d8] sm:$0xff] %vm4825, %v7957
      %8086 = vst [vmem:[%s199 + $0x1e0] sm:$0xff] %v7958
      %8087 = vst.msk [vmem:[%s199 + $0x1e8] sm:$0xff] %vm4825, %v7959
      %8088 = vst [vmem:[%s199 + $0x1f0] sm:$0xff] %v7960
      %8089 = vst.msk [vmem:[%s199 + $0x1f8] sm:$0xff] %vm4825, %v7961
      %8090 = vst [vmem:[%s199 + $0x200] sm:$0xff] %v7962
      %8091 = vst.msk [vmem:[%s199 + $0x208] sm:$0xff] %vm4825, %v7963
      %8092 = vst [vmem:[%s199 + $0x210] sm:$0xff] %v7964
      %8093 = vst.msk [vmem:[%s199 + $0x218] sm:$0xff] %vm4825, %v7965
      %8094 = vst [vmem:[%s199 + $0x220] sm:$0xff] %v7966
      %8095 = vst.msk [vmem:[%s199 + $0x228] sm:$0xff] %vm4825, %v7967
      %8096 = vst [vmem:[%s199 + $0x230] sm:$0xff] %v7968
      %8097 = vst.msk [vmem:[%s199 + $0x238] sm:$0xff] %vm4825, %v7969
      %8098 = vst [vmem:[%s199 + $0x240] sm:$0xff] %v7970
      %8099 = vst.msk [vmem:[%s199 + $0x248] sm:$0xff] %vm4825, %v7971
      %8100 = vst [vmem:[%s199 + $0x250] sm:$0xff] %v7972
      %8101 = vst.msk [vmem:[%s199 + $0x258] sm:$0xff] %vm4825, %v7973
      %8102 = vst [vmem:[%s199 + $0x260] sm:$0xff] %v7974
      %8103 = vst.msk [vmem:[%s199 + $0x268] sm:$0xff] %vm4825, %v7975
      %8104 = vst [vmem:[%s199 + $0x270] sm:$0xff] %v7976
      %8105 = vst.msk [vmem:[%s199 + $0x278] sm:$0xff] %vm4825, %v7977
      %8106 = vst [vmem:[%s199 + $0x280] sm:$0xff] %v7978
      %8107 = vst.msk [vmem:[%s199 + $0x288] sm:$0xff] %vm4825, %v7979
      %8108 = vst [vmem:[%s199 + $0x290] sm:$0xff] %v7980
      %8109 = vst.msk [vmem:[%s199 + $0x298] sm:$0xff] %vm4825, %v7981
      %8110 = vst [vmem:[%s199 + $0x2a0] sm:$0xff] %v7982
      %8111 = vst.msk [vmem:[%s199 + $0x2a8] sm:$0xff] %vm4825, %v7983
      %8112 = vst [vmem:[%s199 + $0x2b0] sm:$0xff] %v7984
      %8113 = vst.msk [vmem:[%s199 + $0x2b8] sm:$0xff] %vm4825, %v7985
      %8114 = vst [vmem:[%s199 + $0x2c0] sm:$0xff] %v7986
      %8115 = vst.msk [vmem:[%s199 + $0x2c8] sm:$0xff] %vm4825, %v7987
      %8116 = vst [vmem:[%s199 + $0x2d0] sm:$0xff] %v7988
      %8117 = vst.msk [vmem:[%s199 + $0x2d8] sm:$0xff] %vm4825, %v7989
      %8118 = vst [vmem:[%s199 + $0x2e0] sm:$0xff] %v7990
      %8119 = vst.msk [vmem:[%s199 + $0x2e8] sm:$0xff] %vm4825, %v7991
      %8120 = vst [vmem:[%s199 + $0x2f0] sm:$0xff] %v7992
      %8121 = vst.msk [vmem:[%s199 + $0x2f8] sm:$0xff] %vm4825, %v7993
      %8122 = vst [vmem:[%s199 + $0x300] sm:$0xff] %v7994
      %8123 = vst.msk [vmem:[%s199 + $0x308] sm:$0xff] %vm4825, %v7995
      %8124 = vst [vmem:[%s199 + $0x310] sm:$0xff] %v7996
      %8125 = vst.msk [vmem:[%s199 + $0x318] sm:$0xff] %vm4825, %v7997
      %8126 = vst [vmem:[%s199 + $0x320] sm:$0xff] %v7998
      %8127 = vst.msk [vmem:[%s199 + $0x328] sm:$0xff] %vm4825, %v7999
      %8128 = vst [vmem:[%s199 + $0x330] sm:$0xff] %v8000
      %8129 = vst.msk [vmem:[%s199 + $0x338] sm:$0xff] %vm4825, %v8001
      %8130 = vst [vmem:[%s199 + $0x340] sm:$0xff] %v8002
      %8131 = vst.msk [vmem:[%s199 + $0x348] sm:$0xff] %vm4825, %v8003
      %8132 = vst [vmem:[%s199 + $0x350] sm:$0xff] %v8004
      %8133 = vst.msk [vmem:[%s199 + $0x358] sm:$0xff] %vm4825, %v8005
      %8134 = vst [vmem:[%s199 + $0x360] sm:$0xff] %v8006
      %8135 = vst.msk [vmem:[%s199 + $0x368] sm:$0xff] %vm4825, %v8007
      %8136 = vst [vmem:[%s199 + $0x370] sm:$0xff] %v8008
      %8137 = vst.msk [vmem:[%s199 + $0x378] sm:$0xff] %vm4825, %v8009
      %8138 = vst [vmem:[%s199 + $0x380] sm:$0xff] %v8010
      %8139 = vst.msk [vmem:[%s199 + $0x388] sm:$0xff] %vm4825, %v8011
      %8140 = vst [vmem:[%s199 + $0x390] sm:$0xff] %v8012
      %8141 = vst.msk [vmem:[%s199 + $0x398] sm:$0xff] %vm4825, %v8013
      %8142 = vst [vmem:[%s199 + $0x3a0] sm:$0xff] %v8014
      %8143 = vst.msk [vmem:[%s199 + $0x3a8] sm:$0xff] %vm4825, %v8015
      %8144 = vst [vmem:[%s199 + $0x3b0] sm:$0xff] %v8016
      %8145 = vst.msk [vmem:[%s199 + $0x3b8] sm:$0xff] %vm4825, %v8017
      %8146 = vst [vmem:[%s199 + $0x3c0] sm:$0xff] %v8018
      %8147 = vst.msk [vmem:[%s199 + $0x3c8] sm:$0xff] %vm4825, %v8019
      %8148 = vst [vmem:[%s199 + $0x3d0] sm:$0xff] %v8020
      %8149 = vst.msk [vmem:[%s199 + $0x3d8] sm:$0xff] %vm4825, %v8021
      %8150 = vst [vmem:[%s199 + $0x3e0] sm:$0xff] %v8022
      %8151 = vst.msk [vmem:[%s199 + $0x3e8] sm:$0xff] %vm4825, %v8023
      %8152 = vst [vmem:[%s199 + $0x3f0] sm:$0xff] %v8024
      %8153 = vst.msk [vmem:[%s199 + $0x3f8] sm:$0xff] %vm4825, %v8025
      %s8154 = smul.u32 64, %s14
      %p8155 = scmp.lt.s32.totalorder %s8154, 127
      %s8156 = scalar_select %p8155, %s8154, 127
      %s8157 = smul.addr %s8156, 2
      %s8158 = smul.addr %s8157, 8
      %s8159 = scalar_lea.vmem %s3, %s8158
      // Predicated region
      $region33: #{conv2d_bn_relu.1} parent=31 // pred_check
        %p8160 = pneg %p105
      $region34: #{conv2d_bn_relu.1} parent=31 // pred_check_branch
        %8162 = sbr.rel (%p8160) target = $region36
      $region35: #{conv2d_bn_relu.1} parent=31 // pred_region
        %s8163 = smul.u32 64, %s14
      $region36: #{conv2d_bn_relu.1} parent=31 // pred_fallthru
        _
    $region32: #{conv2d_bn_relu.1} parent=5 // pred_fallthru
      _
    %p8164 = scmp.le.s32.totalorder 2, %s9
    // Predicated region
    $region37: #{conv2d_bn_relu.1} parent=5 // pred_check
      %p8165 = pneg %p8164
    $region38: #{conv2d_bn_relu.1} parent=5 // pred_check_branch
      %8167 = sbr.rel (%p8165) target = $region40
    $region39: #{conv2d_bn_relu.1} parent=5 // pred_region
      %s8168 = ssub.s32 %s9, 2
      // Predicated region
      $region41: #{conv2d_bn_relu.1} parent=39 // pred_check
        %p8169 = pneg %p111
      $region42: #{conv2d_bn_relu.1} parent=39 // pred_check_branch
        %8171 = sbr.rel (%p8169) target = $region44
      $region43: #{conv2d_bn_relu.1} parent=39 // pred_region
        %s8172 = smul.u32 64, %s15
        %p8173 = scmp.lt.s32.totalorder %s8172, 127
        %s8174 = scalar_select %p8173, %s8172, 127
        %s8175 = smul.addr %s8174, 2
        %s8176 = smul.addr %s8175, 8
        %s8177 = scalar_lea.vmem %s3, %s8176
      $region44: #{conv2d_bn_relu.1} parent=39 // pred_fallthru
        _
    $region40: #{conv2d_bn_relu.1} parent=5 // pred_fallthru
      _
  $region6: #{conv2d_bn_relu.1} parent=0 // loop_footer
    %s13 = sadd.s32 1, %s9
  $region7: #{conv2d_bn_relu.1} parent=0 // loop_footer_branch
    %8 = sbr.rel target = $region3
  $region8: #{conv2d_bn_relu.1} parent=0 // loop_exit
    _

</llo_original>
